<compile_context>
chip_gen: v7x
topology: tpu7x:2x2x1
jax: 0.10.0
libtpu: 0.0.40
codegen_flags: <defaults>
</compile_context>

<pallas_src>
import numpy as np
import jax
import jax.numpy as jnp
from jax.experimental import pallas as pl
from jax.experimental.pallas import tpu as pltpu  # noqa: F401  (kept for the real-size TODOs)


# ------------------------------ fused autoencoder kernel ------------------------------

def _autoencoder_kernel(
    x_ref,                                  # (Bp, T*Din)   batch-major, trailing dims merged
    wih_e0_ref, whh_e0_ref, b_e0_ref,       # (Din,4Hp) (Hp,4Hp) (1,4Hp)   encoder layer 0
    wih_e1_ref, whh_e1_ref, b_e1_ref,       # (Hp,4Hp)  (Hp,4Hp) (1,4Hp)   encoder layer 1
    wih_d0_ref, whh_d0_ref, b_d0_ref,       # (Hp,4Dp)  (Dp,4Dp) (1,4Dp)   decoder layer 0
    wih_d1_ref, whh_d1_ref, b_d1_ref,       # (Dp,4Dp)  (Dp,4Dp) (1,4Dp)   decoder layer 1
    out_ref,                                # (Bp, SEQ*Dp)  batch-major, trailing dims merged
):
    f32 = jnp.float32
    Bp = x_ref.shape[0]
    Din = wih_e0_ref.shape[0]
    Hp = whh_e0_ref.shape[0]
    Dp = whh_d0_ref.shape[0]
    T = x_ref.shape[1] // Din
    SEQ = out_ref.shape[1] // Dp

    def mm(a, b):
        return jnp.dot(a, b, preferred_element_type=f32)

    def lstm_cell(pre, c, hd):
        # Gate order after weight-prep permutation: [i, f, o, g].  hd is a multiple of 128,
        # so every slice below is a full-lane, unmasked vreg slice.
        sig = jax.nn.sigmoid(pre[:, :3 * hd])
        i_g = sig[:, 0 * hd:1 * hd]
        f_g = sig[:, 1 * hd:2 * hd]
        o_g = sig[:, 2 * hd:3 * hd]
        g_g = jnp.tanh(pre[:, 3 * hd:4 * hd])
        c_new = f_g * c + i_g * g_g
        h_new = o_g * jnp.tanh(c_new)
        return h_new, c_new

    # ---------------- encoder: two stacked layers, interleaved with a 1-step skew ----------
    # Iteration s runs layer-0 step s and layer-1 step s-1.  The two recurrent matmul chains
    # are independent inside one iteration, so the MXU latency of one hides the other.
    b_e0 = jnp.broadcast_to(b_e0_ref[...], (Bp, 4 * Hp))     # hoist bias broadcasts
    b_e1 = jnp.broadcast_to(b_e1_ref[...], (Bp, 4 * Hp))

    zH = jnp.zeros((Bp, Hp), f32)
    h0, c0, h1, c1 = zH, zH, zH, zH
    for s in range(T + 1):                                    # static, fully unrolled (T small)
        h0_prev = h0
        if s < T:
            # layer-0 step s; the x_t projection has no h-dependency, so it overlaps freely.
            x_t = x_ref[:, s * Din:(s + 1) * Din]             # 128-aligned lane slice
            pre0 = mm(x_t, wih_e0_ref[...]) + mm(h0, whh_e0_ref[...]) + b_e0
            h0, c0 = lstm_cell(pre0, c0, Hp)
        if s >= 1:
            # layer-1 step s-1 consumes layer-0's hidden from the previous iteration.
            pre1 = mm(h0_prev, wih_e1_ref[...]) + mm(h1, whh_e1_ref[...]) + b_e1
            h1, c1 = lstm_cell(pre1, c1, Hp)
    encoded = h1                                              # == encoder out[:, -1, :]

    # ---------------- decoder: same interleaving; layer-0 input is time-constant -----------
    # The broadcast encoding makes decoder layer-0's input projection a single hoisted block.
    gd0 = mm(encoded, wih_d0_ref[...]) + jnp.broadcast_to(b_d0_ref[...], (Bp, 4 * Dp))
    b_d1 = jnp.broadcast_to(b_d1_ref[...], (Bp, 4 * Dp))

    zD = jnp.zeros((Bp, Dp), f32)
    hd0, cd0, hd1, cd1 = zD, zD, zD, zD
    for s in range(SEQ + 1):
        hd0_prev = hd0
        if s < SEQ:
            pre0 = gd0 + mm(hd0, whh_d0_ref[...])
            hd0, cd0 = lstm_cell(pre0, cd0, Dp)
        if s >= 1:
            pre1 = mm(hd0_prev, wih_d1_ref[...]) + mm(hd1, whh_d1_ref[...]) + b_d1
            hd1, cd1 = lstm_cell(pre1, cd1, Dp)
            # Lane-dense, 128-aligned store straight into the batch-major output block.
            out_ref[:, (s - 1) * Dp:s * Dp] = hd1


# --------------------------------- parameter preparation ---------------------------------

def _round_up(n, m):
    return ((n + m - 1) // m) * m


def prepare_lstm_layer(p, in_pad=None, hid_pad=None):
    """One-time prep of PyTorch-layout LSTM params:
       * gate-permute rows [i,f,g,o] -> [i,f,o,g] (one sigmoid over a contiguous 3*hid slice),
       * transpose to (in_dim, 4*hid) so the kernel computes x @ W,
       * fold the two biases together,
       * zero-pad the input dim to `in_pad` rows and each gate block to `hid_pad` lanes so all
         gate slices / states are full 128-lane vregs (padded hidden lanes provably stay 0).
    """
    w_ih = np.asarray(p["w_ih"], np.float32)        # (4H, in_dim)
    w_hh = np.asarray(p["w_hh"], np.float32)        # (4H, H)
    b = np.asarray(p["b_ih"], np.float32) + np.asarray(p["b_hh"], np.float32)
    H = w_hh.shape[1]
    in_dim = w_ih.shape[1]
    if in_pad is None:
        in_pad = _round_up(in_dim, 128)
    if hid_pad is None:
        hid_pad = _round_up(H, 128)
    assert in_pad >= in_dim and hid_pad >= H
    order = (0, 1, 3, 2)                            # [i, f, g, o] -> [i, f, o, g]

    def pack(w, row_pad):
        rows = w.shape[1]
        out = np.zeros((row_pad, 4 * hid_pad), np.float32)
        for k, g in enumerate(order):
            out[:rows, k * hid_pad:k * hid_pad + H] = w[g * H:(g + 1) * H, :].T
        return jnp.asarray(out)

    bias = np.zeros((1, 4 * hid_pad), np.float32)
    for k, g in enumerate(order):
        bias[0, k * hid_pad:k * hid_pad + H] = b[g * H:(g + 1) * H]

    # TODO(synk): cast wih_t / whh_t to bf16 here at the real model size (input_size=2048) to
    #             halve VMEM/HBM footprint; keep gate math in f32 (esp. on v5e: no bf16 VPU).
    return dict(wih_t=pack(w_ih, in_pad), whh_t=pack(w_hh, hid_pad),
                b=jnp.asarray(bias), hid=H)


def prepare_autoencoder_params(enc_params, dec_params):
    """Chain per-layer padding so layer k+1's input pad equals layer k's hidden pad."""
    Din = enc_params[0]["w_ih"].shape[1]
    Hp = _round_up(enc_params[0]["w_hh"].shape[1], 128)
    Dp = _round_up(dec_params[0]["w_hh"].shape[1], 128)
    enc_prep = [prepare_lstm_layer(enc_params[0], in_pad=Din, hid_pad=Hp),
                prepare_lstm_layer(enc_params[1], in_pad=Hp, hid_pad=Hp)]
    dec_prep = [prepare_lstm_layer(dec_params[0], in_pad=Hp, hid_pad=Dp),
                prepare_lstm_layer(dec_params[1], in_pad=Dp, hid_pad=Dp)]
    return enc_prep, dec_prep


# --------------------------------------- wrapper ---------------------------------------

def autoencoder_forward(x, enc_prep, dec_prep, sequence_length):
    """x: (B, T, input_size) batch-first, like nn.LSTM(batch_first=True)."""
    B, T, Din = x.shape
    Dp = dec_prep[0]["whh_t"].shape[0]
    D_out = dec_prep[-1]["hid"]
    SEQ = int(sequence_length)
    Bp = max(8, _round_up(B, 8))                     # pad batch to a sublane multiple
    assert enc_prep[0]["wih_t"].shape[0] == Din

    # Batch-major end to end: (B, T, Din) -> (Bp, T*Din) is a free row-major reshape plus a
    # batch pad; no (B,T,.) <-> (T,B,.) transposes around the kernel.
    x2 = jnp.reshape(x.astype(jnp.float32), (B, T * Din))
    if Bp != B:
        x2 = jnp.pad(x2, ((0, Bp - B), (0, 0)))

    weights = []
    for p in (*enc_prep, *dec_prep):
        weights += [p["wih_t"], p["whh_t"], p["b"]]

    # Grid-less pallas_call: one invocation, every operand (input, weights, output) gets
    # exactly one whole-array VMEM buffer — no pipeline, hence no double-buffered weights.
    out2 = pl.pallas_call(
        _autoencoder_kernel,
        out_shape=jax.ShapeDtypeStruct((Bp, SEQ * Dp), jnp.float32),
    )(x2, *weights)

    # (Bp, SEQ*Dp) -> (B, SEQ, D_out): leading-dim slice + free trailing reshape, no transpose.
    return out2[:B].reshape(B, SEQ, Dp)[:, :, :D_out]


# ------------------------------ deterministic params ------------------------------

def init_lstm_params(key, input_size, hidden_size, num_layers):
    # Deterministic synthetic init (uniform +-1/sqrt(H)); the original orthogonal init of the
    # l0 weights only changes values, not forward semantics.
    params = []
    k = 1.0 / np.sqrt(hidden_size)
    for layer in range(num_layers):
        in_dim = input_size if layer == 0 else hidden_size
        key, k1, k2, k3, k4 = jax.random.split(key, 5)
        params.append(dict(
            w_ih=jax.random.uniform(k1, (4 * hidden_size, in_dim), jnp.float32, -k, k),
            w_hh=jax.random.uniform(k2, (4 * hidden_size, hidden_size), jnp.float32, -k, k),
            b_ih=jax.random.uniform(k3, (4 * hidden_size,), jnp.float32, -k, k),
            b_hh=jax.random.uniform(k4, (4 * hidden_size,), jnp.float32, -k, k),
        ))
    return params


# --------------------------------- pure-JAX reference ---------------------------------

def _lstm_layer_ref(x, w_ih, w_hh, b_ih, b_hh):
    B, T, _ = x.shape
    H = w_hh.shape[1]
    h = jnp.zeros((B, H), jnp.float32)
    c = jnp.zeros((B, H), jnp.float32)
    outs = []
    hi = jax.lax.Precision.HIGHEST
    for t in range(T):
        gates = (jnp.dot(x[:, t, :], w_ih.T, precision=hi)
                 + jnp.dot(h, w_hh.T, precision=hi) + b_ih + b_hh)
        i_g = jax.nn.sigmoid(gates[:, :H])
        f_g = jax.nn.sigmoid(gates[:, H:2 * H])
        g_g = jnp.tanh(gates[:, 2 * H:3 * H])
        o_g = jax.nn.sigmoid(gates[:, 3 * H:4 * H])
        c = f_g * c + i_g * g_g
        h = o_g * jnp.tanh(c)
        outs.append(h)
    return jnp.stack(outs, axis=1)


def _autoencoder_ref(x, enc_params, dec_params, sequence_length):
    h = x
    for p in enc_params:
        h = _lstm_layer_ref(h, p["w_ih"], p["w_hh"], p["b_ih"], p["b_hh"])
    encoded = h[:, -1, :]
    B, H = encoded.shape
    d = jnp.broadcast_to(encoded[:, None, :], (B, sequence_length, H))
    for p in dec_params:
        d = _lstm_layer_ref(d, p["w_ih"], p["w_hh"], p["b_ih"], p["b_hh"])
    return d


# --------------------------------------- main ---------------------------------------

if __name__ == "__main__":
    # Small shapes consistent with the module (original: input_size=2048, hidden=32,
    # num_layers=2, sequence_length=6); scaled-down input_size for the demo.
    B, T, D_IN, H, NUM_LAYERS, SEQ_LEN = 2, 6, 128, 32, 2, 6

    key = jax.random.PRNGKey(0)
    kx, ke, kd = jax.random.split(key, 3)
    x = jax.random.normal(kx, (B, T, D_IN), dtype=jnp.float32)

    enc_params = init_lstm_params(ke, D_IN, H, NUM_LAYERS)          # encoder: D_IN -> H
    dec_params = init_lstm_params(kd, H, D_IN, NUM_LAYERS)          # decoder: H -> D_IN

    # One-time weight prep (gate permute / transpose / bias fold / lane padding).
    enc_prep, dec_prep = prepare_autoencoder_params(enc_params, dec_params)

    out = autoencoder_forward(x, enc_prep, dec_prep, SEQ_LEN)
    out = jax.block_until_ready(out)
    assert out.shape == (B, SEQ_LEN, D_IN), out.shape

    ref = jax.block_until_ready(_autoencoder_ref(x, enc_params, dec_params, SEQ_LEN))
    np.testing.assert_allclose(np.asarray(out), np.asarray(ref), rtol=1e-2, atol=1e-2)

    print("KERNEL_OK")
</pallas_src>

<mosaic_0001>
module attributes {stable_mosaic.version = 11 : i64} {
  func.func @_autoencoder_kernel(%arg0: memref<8x768xf32, #tpu.memory_space<vmem>>, %arg1: memref<128x512xf32, #tpu.memory_space<vmem>>, %arg2: memref<128x512xf32, #tpu.memory_space<vmem>>, %arg3: memref<1x512xf32, #tpu.memory_space<vmem>>, %arg4: memref<128x512xf32, #tpu.memory_space<vmem>>, %arg5: memref<128x512xf32, #tpu.memory_space<vmem>>, %arg6: memref<1x512xf32, #tpu.memory_space<vmem>>, %arg7: memref<128x512xf32, #tpu.memory_space<vmem>>, %arg8: memref<128x512xf32, #tpu.memory_space<vmem>>, %arg9: memref<1x512xf32, #tpu.memory_space<vmem>>, %arg10: memref<128x512xf32, #tpu.memory_space<vmem>>, %arg11: memref<128x512xf32, #tpu.memory_space<vmem>>, %arg12: memref<1x512xf32, #tpu.memory_space<vmem>>, %arg13: memref<8x768xf32, #tpu.memory_space<vmem>>) attributes {dimension_semantics = [], scalar_prefetch = 0 : i64, scratch_operands = 0 : i64, tpu.core_type = #tpu.core_type<tc>} {
    %c0 = arith.constant 0 : index
    %c0_0 = arith.constant 0 : index
    %0 = vector.load %arg3[%c0, %c0_0] : memref<1x512xf32, #tpu.memory_space<vmem>>, vector<1x512xf32>
    %1 = vector.shape_cast %0 : vector<1x512xf32> to vector<1x512xf32>
    %2 = vector.broadcast %1 : vector<1x512xf32> to vector<8x512xf32>
    %c0_1 = arith.constant 0 : index
    %c0_2 = arith.constant 0 : index
    %3 = vector.load %arg6[%c0_1, %c0_2] : memref<1x512xf32, #tpu.memory_space<vmem>>, vector<1x512xf32>
    %4 = vector.shape_cast %3 : vector<1x512xf32> to vector<1x512xf32>
    %5 = vector.broadcast %4 : vector<1x512xf32> to vector<8x512xf32>
    %cst = arith.constant 0.000000e+00 : f32
    %6 = vector.broadcast %cst : f32 to vector<8x128xf32>
    %c0_3 = arith.constant 0 : index
    %c0_4 = arith.constant 0 : index
    %7 = vector.load %arg0[%c0_3, %c0_4] : memref<8x768xf32, #tpu.memory_space<vmem>>, vector<8x128xf32>
    %c0_5 = arith.constant 0 : index
    %c0_6 = arith.constant 0 : index
    %8 = vector.load %arg1[%c0_5, %c0_6] : memref<128x512xf32, #tpu.memory_space<vmem>>, vector<128x512xf32>
    %cst_7 = arith.constant dense<0.000000e+00> : vector<8x512xf32>
    %9 = tpu.matmul %7, %8, %cst_7 {dimension_numbers = #tpu.dot_dimension_numbers<[1], [0], [0], [1], [0, 0, 1, 1], [], []>} : vector<8x128xf32>, vector<128x512xf32>, vector<8x512xf32> -> vector<8x512xf32>
    %c0_8 = arith.constant 0 : index
    %c0_9 = arith.constant 0 : index
    %10 = vector.load %arg2[%c0_8, %c0_9] : memref<128x512xf32, #tpu.memory_space<vmem>>, vector<128x512xf32>
    %cst_10 = arith.constant dense<0.000000e+00> : vector<8x512xf32>
    %11 = tpu.matmul %6, %10, %cst_10 {dimension_numbers = #tpu.dot_dimension_numbers<[1], [0], [0], [1], [0, 0, 1, 1], [], []>} : vector<8x128xf32>, vector<128x512xf32>, vector<8x512xf32> -> vector<8x512xf32>
    %12 = arith.addf %9, %11 : vector<8x512xf32>
    %13 = arith.addf %12, %2 : vector<8x512xf32>
    %14 = vector.extract_strided_slice %13 {offsets = [0, 0], sizes = [8, 384], strides = [1, 1]} : vector<8x512xf32> to vector<8x384xf32>
    %15 = arith.negf %14 : vector<8x384xf32>
    %16 = math.exp %15 : vector<8x384xf32>
    %cst_11 = arith.constant 1.000000e+00 : f32
    %17 = vector.broadcast %cst_11 : f32 to vector<8x384xf32>
    %18 = arith.addf %17, %16 : vector<8x384xf32>
    %19 = arith.divf %17, %18 : vector<8x384xf32>
    %20 = vector.extract_strided_slice %19 {offsets = [0, 0], sizes = [8, 128], strides = [1, 1]} : vector<8x384xf32> to vector<8x128xf32>
    %21 = vector.extract_strided_slice %19 {offsets = [0, 128], sizes = [8, 128], strides = [1, 1]} : vector<8x384xf32> to vector<8x128xf32>
    %22 = vector.extract_strided_slice %19 {offsets = [0, 256], sizes = [8, 128], strides = [1, 1]} : vector<8x384xf32> to vector<8x128xf32>
    %23 = vector.extract_strided_slice %13 {offsets = [0, 384], sizes = [8, 128], strides = [1, 1]} : vector<8x512xf32> to vector<8x128xf32>
    %24 = math.tanh %23 : vector<8x128xf32>
    %25 = arith.mulf %21, %6 : vector<8x128xf32>
    %26 = arith.mulf %20, %24 : vector<8x128xf32>
    %27 = arith.addf %25, %26 : vector<8x128xf32>
    %28 = math.tanh %27 : vector<8x128xf32>
    %29 = arith.mulf %22, %28 : vector<8x128xf32>
    %c0_12 = arith.constant 0 : index
    %c128 = arith.constant 128 : index
    %30 = vector.load %arg0[%c0_12, %c128] : memref<8x768xf32, #tpu.memory_space<vmem>>, vector<8x128xf32>
    %c0_13 = arith.constant 0 : index
    %c0_14 = arith.constant 0 : index
    %31 = vector.load %arg1[%c0_13, %c0_14] : memref<128x512xf32, #tpu.memory_space<vmem>>, vector<128x512xf32>
    %cst_15 = arith.constant dense<0.000000e+00> : vector<8x512xf32>
    %32 = tpu.matmul %30, %31, %cst_15 {dimension_numbers = #tpu.dot_dimension_numbers<[1], [0], [0], [1], [0, 0, 1, 1], [], []>} : vector<8x128xf32>, vector<128x512xf32>, vector<8x512xf32> -> vector<8x512xf32>
    %c0_16 = arith.constant 0 : index
    %c0_17 = arith.constant 0 : index
    %33 = vector.load %arg2[%c0_16, %c0_17] : memref<128x512xf32, #tpu.memory_space<vmem>>, vector<128x512xf32>
    %cst_18 = arith.constant dense<0.000000e+00> : vector<8x512xf32>
    %34 = tpu.matmul %29, %33, %cst_18 {dimension_numbers = #tpu.dot_dimension_numbers<[1], [0], [0], [1], [0, 0, 1, 1], [], []>} : vector<8x128xf32>, vector<128x512xf32>, vector<8x512xf32> -> vector<8x512xf32>
    %35 = arith.addf %32, %34 : vector<8x512xf32>
    %36 = arith.addf %35, %2 : vector<8x512xf32>
    %37 = vector.extract_strided_slice %36 {offsets = [0, 0], sizes = [8, 384], strides = [1, 1]} : vector<8x512xf32> to vector<8x384xf32>
    %38 = arith.negf %37 : vector<8x384xf32>
    %39 = math.exp %38 : vector<8x384xf32>
    %cst_19 = arith.constant 1.000000e+00 : f32
    %40 = vector.broadcast %cst_19 : f32 to vector<8x384xf32>
    %41 = arith.addf %40, %39 : vector<8x384xf32>
    %42 = arith.divf %40, %41 : vector<8x384xf32>
    %43 = vector.extract_strided_slice %42 {offsets = [0, 0], sizes = [8, 128], strides = [1, 1]} : vector<8x384xf32> to vector<8x128xf32>
    %44 = vector.extract_strided_slice %42 {offsets = [0, 128], sizes = [8, 128], strides = [1, 1]} : vector<8x384xf32> to vector<8x128xf32>
    %45 = vector.extract_strided_slice %42 {offsets = [0, 256], sizes = [8, 128], strides = [1, 1]} : vector<8x384xf32> to vector<8x128xf32>
    %46 = vector.extract_strided_slice %36 {offsets = [0, 384], sizes = [8, 128], strides = [1, 1]} : vector<8x512xf32> to vector<8x128xf32>
    %47 = math.tanh %46 : vector<8x128xf32>
    %48 = arith.mulf %44, %27 : vector<8x128xf32>
    %49 = arith.mulf %43, %47 : vector<8x128xf32>
    %50 = arith.addf %48, %49 : vector<8x128xf32>
    %51 = math.tanh %50 : vector<8x128xf32>
    %52 = arith.mulf %45, %51 : vector<8x128xf32>
    %c0_20 = arith.constant 0 : index
    %c0_21 = arith.constant 0 : index
    %53 = vector.load %arg4[%c0_20, %c0_21] : memref<128x512xf32, #tpu.memory_space<vmem>>, vector<128x512xf32>
    %cst_22 = arith.constant dense<0.000000e+00> : vector<8x512xf32>
    %54 = tpu.matmul %29, %53, %cst_22 {dimension_numbers = #tpu.dot_dimension_numbers<[1], [0], [0], [1], [0, 0, 1, 1], [], []>} : vector<8x128xf32>, vector<128x512xf32>, vector<8x512xf32> -> vector<8x512xf32>
    %c0_23 = arith.constant 0 : index
    %c0_24 = arith.constant 0 : index
    %55 = vector.load %arg5[%c0_23, %c0_24] : memref<128x512xf32, #tpu.memory_space<vmem>>, vector<128x512xf32>
    %cst_25 = arith.constant dense<0.000000e+00> : vector<8x512xf32>
    %56 = tpu.matmul %6, %55, %cst_25 {dimension_numbers = #tpu.dot_dimension_numbers<[1], [0], [0], [1], [0, 0, 1, 1], [], []>} : vector<8x128xf32>, vector<128x512xf32>, vector<8x512xf32> -> vector<8x512xf32>
    %57 = arith.addf %54, %56 : vector<8x512xf32>
    %58 = arith.addf %57, %5 : vector<8x512xf32>
    %59 = vector.extract_strided_slice %58 {offsets = [0, 0], sizes = [8, 384], strides = [1, 1]} : vector<8x512xf32> to vector<8x384xf32>
    %60 = arith.negf %59 : vector<8x384xf32>
    %61 = math.exp %60 : vector<8x384xf32>
    %cst_26 = arith.constant 1.000000e+00 : f32
    %62 = vector.broadcast %cst_26 : f32 to vector<8x384xf32>
    %63 = arith.addf %62, %61 : vector<8x384xf32>
    %64 = arith.divf %62, %63 : vector<8x384xf32>
    %65 = vector.extract_strided_slice %64 {offsets = [0, 0], sizes = [8, 128], strides = [1, 1]} : vector<8x384xf32> to vector<8x128xf32>
    %66 = vector.extract_strided_slice %64 {offsets = [0, 128], sizes = [8, 128], strides = [1, 1]} : vector<8x384xf32> to vector<8x128xf32>
    %67 = vector.extract_strided_slice %64 {offsets = [0, 256], sizes = [8, 128], strides = [1, 1]} : vector<8x384xf32> to vector<8x128xf32>
    %68 = vector.extract_strided_slice %58 {offsets = [0, 384], sizes = [8, 128], strides = [1, 1]} : vector<8x512xf32> to vector<8x128xf32>
    %69 = math.tanh %68 : vector<8x128xf32>
    %70 = arith.mulf %66, %6 : vector<8x128xf32>
    %71 = arith.mulf %65, %69 : vector<8x128xf32>
    %72 = arith.addf %70, %71 : vector<8x128xf32>
    %73 = math.tanh %72 : vector<8x128xf32>
    %74 = arith.mulf %67, %73 : vector<8x128xf32>
    %c0_27 = arith.constant 0 : index
    %c256 = arith.constant 256 : index
    %75 = vector.load %arg0[%c0_27, %c256] : memref<8x768xf32, #tpu.memory_space<vmem>>, vector<8x128xf32>
    %c0_28 = arith.constant 0 : index
    %c0_29 = arith.constant 0 : index
    %76 = vector.load %arg1[%c0_28, %c0_29] : memref<128x512xf32, #tpu.memory_space<vmem>>, vector<128x512xf32>
    %cst_30 = arith.constant dense<0.000000e+00> : vector<8x512xf32>
    %77 = tpu.matmul %75, %76, %cst_30 {dimension_numbers = #tpu.dot_dimension_numbers<[1], [0], [0], [1], [0, 0, 1, 1], [], []>} : vector<8x128xf32>, vector<128x512xf32>, vector<8x512xf32> -> vector<8x512xf32>
    %c0_31 = arith.constant 0 : index
    %c0_32 = arith.constant 0 : index
    %78 = vector.load %arg2[%c0_31, %c0_32] : memref<128x512xf32, #tpu.memory_space<vmem>>, vector<128x512xf32>
    %cst_33 = arith.constant dense<0.000000e+00> : vector<8x512xf32>
    %79 = tpu.matmul %52, %78, %cst_33 {dimension_numbers = #tpu.dot_dimension_numbers<[1], [0], [0], [1], [0, 0, 1, 1], [], []>} : vector<8x128xf32>, vector<128x512xf32>, vector<8x512xf32> -> vector<8x512xf32>
    %80 = arith.addf %77, %79 : vector<8x512xf32>
    %81 = arith.addf %80, %2 : vector<8x512xf32>
    %82 = vector.extract_strided_slice %81 {offsets = [0, 0], sizes = [8, 384], strides = [1, 1]} : vector<8x512xf32> to vector<8x384xf32>
    %83 = arith.negf %82 : vector<8x384xf32>
    %84 = math.exp %83 : vector<8x384xf32>
    %cst_34 = arith.constant 1.000000e+00 : f32
    %85 = vector.broadcast %cst_34 : f32 to vector<8x384xf32>
    %86 = arith.addf %85, %84 : vector<8x384xf32>
    %87 = arith.divf %85, %86 : vector<8x384xf32>
    %88 = vector.extract_strided_slice %87 {offsets = [0, 0], sizes = [8, 128], strides = [1, 1]} : vector<8x384xf32> to vector<8x128xf32>
    %89 = vector.extract_strided_slice %87 {offsets = [0, 128], sizes = [8, 128], strides = [1, 1]} : vector<8x384xf32> to vector<8x128xf32>
    %90 = vector.extract_strided_slice %87 {offsets = [0, 256], sizes = [8, 128], strides = [1, 1]} : vector<8x384xf32> to vector<8x128xf32>
    %91 = vector.extract_strided_slice %81 {offsets = [0, 384], sizes = [8, 128], strides = [1, 1]} : vector<8x512xf32> to vector<8x128xf32>
    %92 = math.tanh %91 : vector<8x128xf32>
    %93 = arith.mulf %89, %50 : vector<8x128xf32>
    %94 = arith.mulf %88, %92 : vector<8x128xf32>
    %95 = arith.addf %93, %94 : vector<8x128xf32>
    %96 = math.tanh %95 : vector<8x128xf32>
    %97 = arith.mulf %90, %96 : vector<8x128xf32>
    %c0_35 = arith.constant 0 : index
    %c0_36 = arith.constant 0 : index
    %98 = vector.load %arg4[%c0_35, %c0_36] : memref<128x512xf32, #tpu.memory_space<vmem>>, vector<128x512xf32>
    %cst_37 = arith.constant dense<0.000000e+00> : vector<8x512xf32>
    %99 = tpu.matmul %52, %98, %cst_37 {dimension_numbers = #tpu.dot_dimension_numbers<[1], [0], [0], [1], [0, 0, 1, 1], [], []>} : vector<8x128xf32>, vector<128x512xf32>, vector<8x512xf32> -> vector<8x512xf32>
    %c0_38 = arith.constant 0 : index
    %c0_39 = arith.constant 0 : index
    %100 = vector.load %arg5[%c0_38, %c0_39] : memref<128x512xf32, #tpu.memory_space<vmem>>, vector<128x512xf32>
    %cst_40 = arith.constant dense<0.000000e+00> : vector<8x512xf32>
    %101 = tpu.matmul %74, %100, %cst_40 {dimension_numbers = #tpu.dot_dimension_numbers<[1], [0], [0], [1], [0, 0, 1, 1], [], []>} : vector<8x128xf32>, vector<128x512xf32>, vector<8x512xf32> -> vector<8x512xf32>
    %102 = arith.addf %99, %101 : vector<8x512xf32>
    %103 = arith.addf %102, %5 : vector<8x512xf32>
    %104 = vector.extract_strided_slice %103 {offsets = [0, 0], sizes = [8, 384], strides = [1, 1]} : vector<8x512xf32> to vector<8x384xf32>
    %105 = arith.negf %104 : vector<8x384xf32>
    %106 = math.exp %105 : vector<8x384xf32>
    %cst_41 = arith.constant 1.000000e+00 : f32
    %107 = vector.broadcast %cst_41 : f32 to vector<8x384xf32>
    %108 = arith.addf %107, %106 : vector<8x384xf32>
    %109 = arith.divf %107, %108 : vector<8x384xf32>
    %110 = vector.extract_strided_slice %109 {offsets = [0, 0], sizes = [8, 128], strides = [1, 1]} : vector<8x384xf32> to vector<8x128xf32>
    %111 = vector.extract_strided_slice %109 {offsets = [0, 128], sizes = [8, 128], strides = [1, 1]} : vector<8x384xf32> to vector<8x128xf32>
    %112 = vector.extract_strided_slice %109 {offsets = [0, 256], sizes = [8, 128], strides = [1, 1]} : vector<8x384xf32> to vector<8x128xf32>
    %113 = vector.extract_strided_slice %103 {offsets = [0, 384], sizes = [8, 128], strides = [1, 1]} : vector<8x512xf32> to vector<8x128xf32>
    %114 = math.tanh %113 : vector<8x128xf32>
    %115 = arith.mulf %111, %72 : vector<8x128xf32>
    %116 = arith.mulf %110, %114 : vector<8x128xf32>
    %117 = arith.addf %115, %116 : vector<8x128xf32>
    %118 = math.tanh %117 : vector<8x128xf32>
    %119 = arith.mulf %112, %118 : vector<8x128xf32>
    %c0_42 = arith.constant 0 : index
    %c384 = arith.constant 384 : index
    %120 = vector.load %arg0[%c0_42, %c384] : memref<8x768xf32, #tpu.memory_space<vmem>>, vector<8x128xf32>
    %c0_43 = arith.constant 0 : index
    %c0_44 = arith.constant 0 : index
    %121 = vector.load %arg1[%c0_43, %c0_44] : memref<128x512xf32, #tpu.memory_space<vmem>>, vector<128x512xf32>
    %cst_45 = arith.constant dense<0.000000e+00> : vector<8x512xf32>
    %122 = tpu.matmul %120, %121, %cst_45 {dimension_numbers = #tpu.dot_dimension_numbers<[1], [0], [0], [1], [0, 0, 1, 1], [], []>} : vector<8x128xf32>, vector<128x512xf32>, vector<8x512xf32> -> vector<8x512xf32>
    %c0_46 = arith.constant 0 : index
    %c0_47 = arith.constant 0 : index
    %123 = vector.load %arg2[%c0_46, %c0_47] : memref<128x512xf32, #tpu.memory_space<vmem>>, vector<128x512xf32>
    %cst_48 = arith.constant dense<0.000000e+00> : vector<8x512xf32>
    %124 = tpu.matmul %97, %123, %cst_48 {dimension_numbers = #tpu.dot_dimension_numbers<[1], [0], [0], [1], [0, 0, 1, 1], [], []>} : vector<8x128xf32>, vector<128x512xf32>, vector<8x512xf32> -> vector<8x512xf32>
    %125 = arith.addf %122, %124 : vector<8x512xf32>
    %126 = arith.addf %125, %2 : vector<8x512xf32>
    %127 = vector.extract_strided_slice %126 {offsets = [0, 0], sizes = [8, 384], strides = [1, 1]} : vector<8x512xf32> to vector<8x384xf32>
    %128 = arith.negf %127 : vector<8x384xf32>
    %129 = math.exp %128 : vector<8x384xf32>
    %cst_49 = arith.constant 1.000000e+00 : f32
    %130 = vector.broadcast %cst_49 : f32 to vector<8x384xf32>
    %131 = arith.addf %130, %129 : vector<8x384xf32>
    %132 = arith.divf %130, %131 : vector<8x384xf32>
    %133 = vector.extract_strided_slice %132 {offsets = [0, 0], sizes = [8, 128], strides = [1, 1]} : vector<8x384xf32> to vector<8x128xf32>
    %134 = vector.extract_strided_slice %132 {offsets = [0, 128], sizes = [8, 128], strides = [1, 1]} : vector<8x384xf32> to vector<8x128xf32>
    %135 = vector.extract_strided_slice %132 {offsets = [0, 256], sizes = [8, 128], strides = [1, 1]} : vector<8x384xf32> to vector<8x128xf32>
    %136 = vector.extract_strided_slice %126 {offsets = [0, 384], sizes = [8, 128], strides = [1, 1]} : vector<8x512xf32> to vector<8x128xf32>
    %137 = math.tanh %136 : vector<8x128xf32>
    %138 = arith.mulf %134, %95 : vector<8x128xf32>
    %139 = arith.mulf %133, %137 : vector<8x128xf32>
    %140 = arith.addf %138, %139 : vector<8x128xf32>
    %141 = math.tanh %140 : vector<8x128xf32>
    %142 = arith.mulf %135, %141 : vector<8x128xf32>
    %c0_50 = arith.constant 0 : index
    %c0_51 = arith.constant 0 : index
    %143 = vector.load %arg4[%c0_50, %c0_51] : memref<128x512xf32, #tpu.memory_space<vmem>>, vector<128x512xf32>
    %cst_52 = arith.constant dense<0.000000e+00> : vector<8x512xf32>
    %144 = tpu.matmul %97, %143, %cst_52 {dimension_numbers = #tpu.dot_dimension_numbers<[1], [0], [0], [1], [0, 0, 1, 1], [], []>} : vector<8x128xf32>, vector<128x512xf32>, vector<8x512xf32> -> vector<8x512xf32>
    %c0_53 = arith.constant 0 : index
    %c0_54 = arith.constant 0 : index
    %145 = vector.load %arg5[%c0_53, %c0_54] : memref<128x512xf32, #tpu.memory_space<vmem>>, vector<128x512xf32>
    %cst_55 = arith.constant dense<0.000000e+00> : vector<8x512xf32>
    %146 = tpu.matmul %119, %145, %cst_55 {dimension_numbers = #tpu.dot_dimension_numbers<[1], [0], [0], [1], [0, 0, 1, 1], [], []>} : vector<8x128xf32>, vector<128x512xf32>, vector<8x512xf32> -> vector<8x512xf32>
    %147 = arith.addf %144, %146 : vector<8x512xf32>
    %148 = arith.addf %147, %5 : vector<8x512xf32>
    %149 = vector.extract_strided_slice %148 {offsets = [0, 0], sizes = [8, 384], strides = [1, 1]} : vector<8x512xf32> to vector<8x384xf32>
    %150 = arith.negf %149 : vector<8x384xf32>
    %151 = math.exp %150 : vector<8x384xf32>
    %cst_56 = arith.constant 1.000000e+00 : f32
    %152 = vector.broadcast %cst_56 : f32 to vector<8x384xf32>
    %153 = arith.addf %152, %151 : vector<8x384xf32>
    %154 = arith.divf %152, %153 : vector<8x384xf32>
    %155 = vector.extract_strided_slice %154 {offsets = [0, 0], sizes = [8, 128], strides = [1, 1]} : vector<8x384xf32> to vector<8x128xf32>
    %156 = vector.extract_strided_slice %154 {offsets = [0, 128], sizes = [8, 128], strides = [1, 1]} : vector<8x384xf32> to vector<8x128xf32>
    %157 = vector.extract_strided_slice %154 {offsets = [0, 256], sizes = [8, 128], strides = [1, 1]} : vector<8x384xf32> to vector<8x128xf32>
    %158 = vector.extract_strided_slice %148 {offsets = [0, 384], sizes = [8, 128], strides = [1, 1]} : vector<8x512xf32> to vector<8x128xf32>
    %159 = math.tanh %158 : vector<8x128xf32>
    %160 = arith.mulf %156, %117 : vector<8x128xf32>
    %161 = arith.mulf %155, %159 : vector<8x128xf32>
    %162 = arith.addf %160, %161 : vector<8x128xf32>
    %163 = math.tanh %162 : vector<8x128xf32>
    %164 = arith.mulf %157, %163 : vector<8x128xf32>
    %c0_57 = arith.constant 0 : index
    %c512 = arith.constant 512 : index
    %165 = vector.load %arg0[%c0_57, %c512] : memref<8x768xf32, #tpu.memory_space<vmem>>, vector<8x128xf32>
    %c0_58 = arith.constant 0 : index
    %c0_59 = arith.constant 0 : index
    %166 = vector.load %arg1[%c0_58, %c0_59] : memref<128x512xf32, #tpu.memory_space<vmem>>, vector<128x512xf32>
    %cst_60 = arith.constant dense<0.000000e+00> : vector<8x512xf32>
    %167 = tpu.matmul %165, %166, %cst_60 {dimension_numbers = #tpu.dot_dimension_numbers<[1], [0], [0], [1], [0, 0, 1, 1], [], []>} : vector<8x128xf32>, vector<128x512xf32>, vector<8x512xf32> -> vector<8x512xf32>
    %c0_61 = arith.constant 0 : index
    %c0_62 = arith.constant 0 : index
    %168 = vector.load %arg2[%c0_61, %c0_62] : memref<128x512xf32, #tpu.memory_space<vmem>>, vector<128x512xf32>
    %cst_63 = arith.constant dense<0.000000e+00> : vector<8x512xf32>
    %169 = tpu.matmul %142, %168, %cst_63 {dimension_numbers = #tpu.dot_dimension_numbers<[1], [0], [0], [1], [0, 0, 1, 1], [], []>} : vector<8x128xf32>, vector<128x512xf32>, vector<8x512xf32> -> vector<8x512xf32>
    %170 = arith.addf %167, %169 : vector<8x512xf32>
    %171 = arith.addf %170, %2 : vector<8x512xf32>
    %172 = vector.extract_strided_slice %171 {offsets = [0, 0], sizes = [8, 384], strides = [1, 1]} : vector<8x512xf32> to vector<8x384xf32>
    %173 = arith.negf %172 : vector<8x384xf32>
    %174 = math.exp %173 : vector<8x384xf32>
    %cst_64 = arith.constant 1.000000e+00 : f32
    %175 = vector.broadcast %cst_64 : f32 to vector<8x384xf32>
    %176 = arith.addf %175, %174 : vector<8x384xf32>
    %177 = arith.divf %175, %176 : vector<8x384xf32>
    %178 = vector.extract_strided_slice %177 {offsets = [0, 0], sizes = [8, 128], strides = [1, 1]} : vector<8x384xf32> to vector<8x128xf32>
    %179 = vector.extract_strided_slice %177 {offsets = [0, 128], sizes = [8, 128], strides = [1, 1]} : vector<8x384xf32> to vector<8x128xf32>
    %180 = vector.extract_strided_slice %177 {offsets = [0, 256], sizes = [8, 128], strides = [1, 1]} : vector<8x384xf32> to vector<8x128xf32>
    %181 = vector.extract_strided_slice %171 {offsets = [0, 384], sizes = [8, 128], strides = [1, 1]} : vector<8x512xf32> to vector<8x128xf32>
    %182 = math.tanh %181 : vector<8x128xf32>
    %183 = arith.mulf %179, %140 : vector<8x128xf32>
    %184 = arith.mulf %178, %182 : vector<8x128xf32>
    %185 = arith.addf %183, %184 : vector<8x128xf32>
    %186 = math.tanh %185 : vector<8x128xf32>
    %187 = arith.mulf %180, %186 : vector<8x128xf32>
    %c0_65 = arith.constant 0 : index
    %c0_66 = arith.constant 0 : index
    %188 = vector.load %arg4[%c0_65, %c0_66] : memref<128x512xf32, #tpu.memory_space<vmem>>, vector<128x512xf32>
    %cst_67 = arith.constant dense<0.000000e+00> : vector<8x512xf32>
    %189 = tpu.matmul %142, %188, %cst_67 {dimension_numbers = #tpu.dot_dimension_numbers<[1], [0], [0], [1], [0, 0, 1, 1], [], []>} : vector<8x128xf32>, vector<128x512xf32>, vector<8x512xf32> -> vector<8x512xf32>
    %c0_68 = arith.constant 0 : index
    %c0_69 = arith.constant 0 : index
    %190 = vector.load %arg5[%c0_68, %c0_69] : memref<128x512xf32, #tpu.memory_space<vmem>>, vector<128x512xf32>
    %cst_70 = arith.constant dense<0.000000e+00> : vector<8x512xf32>
    %191 = tpu.matmul %164, %190, %cst_70 {dimension_numbers = #tpu.dot_dimension_numbers<[1], [0], [0], [1], [0, 0, 1, 1], [], []>} : vector<8x128xf32>, vector<128x512xf32>, vector<8x512xf32> -> vector<8x512xf32>
    %192 = arith.addf %189, %191 : vector<8x512xf32>
    %193 = arith.addf %192, %5 : vector<8x512xf32>
    %194 = vector.extract_strided_slice %193 {offsets = [0, 0], sizes = [8, 384], strides = [1, 1]} : vector<8x512xf32> to vector<8x384xf32>
    %195 = arith.negf %194 : vector<8x384xf32>
    %196 = math.exp %195 : vector<8x384xf32>
    %cst_71 = arith.constant 1.000000e+00 : f32
    %197 = vector.broadcast %cst_71 : f32 to vector<8x384xf32>
    %198 = arith.addf %197, %196 : vector<8x384xf32>
    %199 = arith.divf %197, %198 : vector<8x384xf32>
    %200 = vector.extract_strided_slice %199 {offsets = [0, 0], sizes = [8, 128], strides = [1, 1]} : vector<8x384xf32> to vector<8x128xf32>
    %201 = vector.extract_strided_slice %199 {offsets = [0, 128], sizes = [8, 128], strides = [1, 1]} : vector<8x384xf32> to vector<8x128xf32>
    %202 = vector.extract_strided_slice %199 {offsets = [0, 256], sizes = [8, 128], strides = [1, 1]} : vector<8x384xf32> to vector<8x128xf32>
    %203 = vector.extract_strided_slice %193 {offsets = [0, 384], sizes = [8, 128], strides = [1, 1]} : vector<8x512xf32> to vector<8x128xf32>
    %204 = math.tanh %203 : vector<8x128xf32>
    %205 = arith.mulf %201, %162 : vector<8x128xf32>
    %206 = arith.mulf %200, %204 : vector<8x128xf32>
    %207 = arith.addf %205, %206 : vector<8x128xf32>
    %208 = math.tanh %207 : vector<8x128xf32>
    %209 = arith.mulf %202, %208 : vector<8x128xf32>
    %c0_72 = arith.constant 0 : index
    %c640 = arith.constant 640 : index
    %210 = vector.load %arg0[%c0_72, %c640] : memref<8x768xf32, #tpu.memory_space<vmem>>, vector<8x128xf32>
    %c0_73 = arith.constant 0 : index
    %c0_74 = arith.constant 0 : index
    %211 = vector.load %arg1[%c0_73, %c0_74] : memref<128x512xf32, #tpu.memory_space<vmem>>, vector<128x512xf32>
    %cst_75 = arith.constant dense<0.000000e+00> : vector<8x512xf32>
    %212 = tpu.matmul %210, %211, %cst_75 {dimension_numbers = #tpu.dot_dimension_numbers<[1], [0], [0], [1], [0, 0, 1, 1], [], []>} : vector<8x128xf32>, vector<128x512xf32>, vector<8x512xf32> -> vector<8x512xf32>
    %c0_76 = arith.constant 0 : index
    %c0_77 = arith.constant 0 : index
    %213 = vector.load %arg2[%c0_76, %c0_77] : memref<128x512xf32, #tpu.memory_space<vmem>>, vector<128x512xf32>
    %cst_78 = arith.constant dense<0.000000e+00> : vector<8x512xf32>
    %214 = tpu.matmul %187, %213, %cst_78 {dimension_numbers = #tpu.dot_dimension_numbers<[1], [0], [0], [1], [0, 0, 1, 1], [], []>} : vector<8x128xf32>, vector<128x512xf32>, vector<8x512xf32> -> vector<8x512xf32>
    %215 = arith.addf %212, %214 : vector<8x512xf32>
    %216 = arith.addf %215, %2 : vector<8x512xf32>
    %217 = vector.extract_strided_slice %216 {offsets = [0, 0], sizes = [8, 384], strides = [1, 1]} : vector<8x512xf32> to vector<8x384xf32>
    %218 = arith.negf %217 : vector<8x384xf32>
    %219 = math.exp %218 : vector<8x384xf32>
    %cst_79 = arith.constant 1.000000e+00 : f32
    %220 = vector.broadcast %cst_79 : f32 to vector<8x384xf32>
    %221 = arith.addf %220, %219 : vector<8x384xf32>
    %222 = arith.divf %220, %221 : vector<8x384xf32>
    %223 = vector.extract_strided_slice %222 {offsets = [0, 0], sizes = [8, 128], strides = [1, 1]} : vector<8x384xf32> to vector<8x128xf32>
    %224 = vector.extract_strided_slice %222 {offsets = [0, 128], sizes = [8, 128], strides = [1, 1]} : vector<8x384xf32> to vector<8x128xf32>
    %225 = vector.extract_strided_slice %222 {offsets = [0, 256], sizes = [8, 128], strides = [1, 1]} : vector<8x384xf32> to vector<8x128xf32>
    %226 = vector.extract_strided_slice %216 {offsets = [0, 384], sizes = [8, 128], strides = [1, 1]} : vector<8x512xf32> to vector<8x128xf32>
    %227 = math.tanh %226 : vector<8x128xf32>
    %228 = arith.mulf %224, %185 : vector<8x128xf32>
    %229 = arith.mulf %223, %227 : vector<8x128xf32>
    %230 = arith.addf %228, %229 : vector<8x128xf32>
    %231 = math.tanh %230 : vector<8x128xf32>
    %232 = arith.mulf %225, %231 : vector<8x128xf32>
    %c0_80 = arith.constant 0 : index
    %c0_81 = arith.constant 0 : index
    %233 = vector.load %arg4[%c0_80, %c0_81] : memref<128x512xf32, #tpu.memory_space<vmem>>, vector<128x512xf32>
    %cst_82 = arith.constant dense<0.000000e+00> : vector<8x512xf32>
    %234 = tpu.matmul %187, %233, %cst_82 {dimension_numbers = #tpu.dot_dimension_numbers<[1], [0], [0], [1], [0, 0, 1, 1], [], []>} : vector<8x128xf32>, vector<128x512xf32>, vector<8x512xf32> -> vector<8x512xf32>
    %c0_83 = arith.constant 0 : index
    %c0_84 = arith.constant 0 : index
    %235 = vector.load %arg5[%c0_83, %c0_84] : memref<128x512xf32, #tpu.memory_space<vmem>>, vector<128x512xf32>
    %cst_85 = arith.constant dense<0.000000e+00> : vector<8x512xf32>
    %236 = tpu.matmul %209, %235, %cst_85 {dimension_numbers = #tpu.dot_dimension_numbers<[1], [0], [0], [1], [0, 0, 1, 1], [], []>} : vector<8x128xf32>, vector<128x512xf32>, vector<8x512xf32> -> vector<8x512xf32>
    %237 = arith.addf %234, %236 : vector<8x512xf32>
    %238 = arith.addf %237, %5 : vector<8x512xf32>
    %239 = vector.extract_strided_slice %238 {offsets = [0, 0], sizes = [8, 384], strides = [1, 1]} : vector<8x512xf32> to vector<8x384xf32>
    %240 = arith.negf %239 : vector<8x384xf32>
    %241 = math.exp %240 : vector<8x384xf32>
    %cst_86 = arith.constant 1.000000e+00 : f32
    %242 = vector.broadcast %cst_86 : f32 to vector<8x384xf32>
    %243 = arith.addf %242, %241 : vector<8x384xf32>
    %244 = arith.divf %242, %243 : vector<8x384xf32>
    %245 = vector.extract_strided_slice %244 {offsets = [0, 0], sizes = [8, 128], strides = [1, 1]} : vector<8x384xf32> to vector<8x128xf32>
    %246 = vector.extract_strided_slice %244 {offsets = [0, 128], sizes = [8, 128], strides = [1, 1]} : vector<8x384xf32> to vector<8x128xf32>
    %247 = vector.extract_strided_slice %244 {offsets = [0, 256], sizes = [8, 128], strides = [1, 1]} : vector<8x384xf32> to vector<8x128xf32>
    %248 = vector.extract_strided_slice %238 {offsets = [0, 384], sizes = [8, 128], strides = [1, 1]} : vector<8x512xf32> to vector<8x128xf32>
    %249 = math.tanh %248 : vector<8x128xf32>
    %250 = arith.mulf %246, %207 : vector<8x128xf32>
    %251 = arith.mulf %245, %249 : vector<8x128xf32>
    %252 = arith.addf %250, %251 : vector<8x128xf32>
    %253 = math.tanh %252 : vector<8x128xf32>
    %254 = arith.mulf %247, %253 : vector<8x128xf32>
    %c0_87 = arith.constant 0 : index
    %c0_88 = arith.constant 0 : index
    %255 = vector.load %arg4[%c0_87, %c0_88] : memref<128x512xf32, #tpu.memory_space<vmem>>, vector<128x512xf32>
    %cst_89 = arith.constant dense<0.000000e+00> : vector<8x512xf32>
    %256 = tpu.matmul %232, %255, %cst_89 {dimension_numbers = #tpu.dot_dimension_numbers<[1], [0], [0], [1], [0, 0, 1, 1], [], []>} : vector<8x128xf32>, vector<128x512xf32>, vector<8x512xf32> -> vector<8x512xf32>
    %c0_90 = arith.constant 0 : index
    %c0_91 = arith.constant 0 : index
    %257 = vector.load %arg5[%c0_90, %c0_91] : memref<128x512xf32, #tpu.memory_space<vmem>>, vector<128x512xf32>
    %cst_92 = arith.constant dense<0.000000e+00> : vector<8x512xf32>
    %258 = tpu.matmul %254, %257, %cst_92 {dimension_numbers = #tpu.dot_dimension_numbers<[1], [0], [0], [1], [0, 0, 1, 1], [], []>} : vector<8x128xf32>, vector<128x512xf32>, vector<8x512xf32> -> vector<8x512xf32>
    %259 = arith.addf %256, %258 : vector<8x512xf32>
    %260 = arith.addf %259, %5 : vector<8x512xf32>
    %261 = vector.extract_strided_slice %260 {offsets = [0, 0], sizes = [8, 384], strides = [1, 1]} : vector<8x512xf32> to vector<8x384xf32>
    %262 = arith.negf %261 : vector<8x384xf32>
    %263 = math.exp %262 : vector<8x384xf32>
    %cst_93 = arith.constant 1.000000e+00 : f32
    %264 = vector.broadcast %cst_93 : f32 to vector<8x384xf32>
    %265 = arith.addf %264, %263 : vector<8x384xf32>
    %266 = arith.divf %264, %265 : vector<8x384xf32>
    %267 = vector.extract_strided_slice %266 {offsets = [0, 0], sizes = [8, 128], strides = [1, 1]} : vector<8x384xf32> to vector<8x128xf32>
    %268 = vector.extract_strided_slice %266 {offsets = [0, 128], sizes = [8, 128], strides = [1, 1]} : vector<8x384xf32> to vector<8x128xf32>
    %269 = vector.extract_strided_slice %266 {offsets = [0, 256], sizes = [8, 128], strides = [1, 1]} : vector<8x384xf32> to vector<8x128xf32>
    %270 = vector.extract_strided_slice %260 {offsets = [0, 384], sizes = [8, 128], strides = [1, 1]} : vector<8x512xf32> to vector<8x128xf32>
    %271 = math.tanh %270 : vector<8x128xf32>
    %272 = arith.mulf %268, %252 : vector<8x128xf32>
    %273 = arith.mulf %267, %271 : vector<8x128xf32>
    %274 = arith.addf %272, %273 : vector<8x128xf32>
    %275 = math.tanh %274 : vector<8x128xf32>
    %276 = arith.mulf %269, %275 : vector<8x128xf32>
    %c0_94 = arith.constant 0 : index
    %c0_95 = arith.constant 0 : index
    %277 = vector.load %arg7[%c0_94, %c0_95] : memref<128x512xf32, #tpu.memory_space<vmem>>, vector<128x512xf32>
    %cst_96 = arith.constant dense<0.000000e+00> : vector<8x512xf32>
    %278 = tpu.matmul %276, %277, %cst_96 {dimension_numbers = #tpu.dot_dimension_numbers<[1], [0], [0], [1], [0, 0, 1, 1], [], []>} : vector<8x128xf32>, vector<128x512xf32>, vector<8x512xf32> -> vector<8x512xf32>
    %c0_97 = arith.constant 0 : index
    %c0_98 = arith.constant 0 : index
    %279 = vector.load %arg9[%c0_97, %c0_98] : memref<1x512xf32, #tpu.memory_space<vmem>>, vector<1x512xf32>
    %280 = vector.shape_cast %279 : vector<1x512xf32> to vector<1x512xf32>
    %281 = vector.broadcast %280 : vector<1x512xf32> to vector<8x512xf32>
    %282 = arith.addf %278, %281 : vector<8x512xf32>
    %c0_99 = arith.constant 0 : index
    %c0_100 = arith.constant 0 : index
    %283 = vector.load %arg12[%c0_99, %c0_100] : memref<1x512xf32, #tpu.memory_space<vmem>>, vector<1x512xf32>
    %284 = vector.shape_cast %283 : vector<1x512xf32> to vector<1x512xf32>
    %285 = vector.broadcast %284 : vector<1x512xf32> to vector<8x512xf32>
    %cst_101 = arith.constant 0.000000e+00 : f32
    %286 = vector.broadcast %cst_101 : f32 to vector<8x128xf32>
    %c0_102 = arith.constant 0 : index
    %c0_103 = arith.constant 0 : index
    %287 = vector.load %arg8[%c0_102, %c0_103] : memref<128x512xf32, #tpu.memory_space<vmem>>, vector<128x512xf32>
    %cst_104 = arith.constant dense<0.000000e+00> : vector<8x512xf32>
    %288 = tpu.matmul %286, %287, %cst_104 {dimension_numbers = #tpu.dot_dimension_numbers<[1], [0], [0], [1], [0, 0, 1, 1], [], []>} : vector<8x128xf32>, vector<128x512xf32>, vector<8x512xf32> -> vector<8x512xf32>
    %289 = arith.addf %282, %288 : vector<8x512xf32>
    %290 = vector.extract_strided_slice %289 {offsets = [0, 0], sizes = [8, 384], strides = [1, 1]} : vector<8x512xf32> to vector<8x384xf32>
    %291 = arith.negf %290 : vector<8x384xf32>
    %292 = math.exp %291 : vector<8x384xf32>
    %cst_105 = arith.constant 1.000000e+00 : f32
    %293 = vector.broadcast %cst_105 : f32 to vector<8x384xf32>
    %294 = arith.addf %293, %292 : vector<8x384xf32>
    %295 = arith.divf %293, %294 : vector<8x384xf32>
    %296 = vector.extract_strided_slice %295 {offsets = [0, 0], sizes = [8, 128], strides = [1, 1]} : vector<8x384xf32> to vector<8x128xf32>
    %297 = vector.extract_strided_slice %295 {offsets = [0, 128], sizes = [8, 128], strides = [1, 1]} : vector<8x384xf32> to vector<8x128xf32>
    %298 = vector.extract_strided_slice %295 {offsets = [0, 256], sizes = [8, 128], strides = [1, 1]} : vector<8x384xf32> to vector<8x128xf32>
    %299 = vector.extract_strided_slice %289 {offsets = [0, 384], sizes = [8, 128], strides = [1, 1]} : vector<8x512xf32> to vector<8x128xf32>
    %300 = math.tanh %299 : vector<8x128xf32>
    %301 = arith.mulf %297, %286 : vector<8x128xf32>
    %302 = arith.mulf %296, %300 : vector<8x128xf32>
    %303 = arith.addf %301, %302 : vector<8x128xf32>
    %304 = math.tanh %303 : vector<8x128xf32>
    %305 = arith.mulf %298, %304 : vector<8x128xf32>
    %c0_106 = arith.constant 0 : index
    %c0_107 = arith.constant 0 : index
    %306 = vector.load %arg8[%c0_106, %c0_107] : memref<128x512xf32, #tpu.memory_space<vmem>>, vector<128x512xf32>
    %cst_108 = arith.constant dense<0.000000e+00> : vector<8x512xf32>
    %307 = tpu.matmul %305, %306, %cst_108 {dimension_numbers = #tpu.dot_dimension_numbers<[1], [0], [0], [1], [0, 0, 1, 1], [], []>} : vector<8x128xf32>, vector<128x512xf32>, vector<8x512xf32> -> vector<8x512xf32>
    %308 = arith.addf %282, %307 : vector<8x512xf32>
    %309 = vector.extract_strided_slice %308 {offsets = [0, 0], sizes = [8, 384], strides = [1, 1]} : vector<8x512xf32> to vector<8x384xf32>
    %310 = arith.negf %309 : vector<8x384xf32>
    %311 = math.exp %310 : vector<8x384xf32>
    %cst_109 = arith.constant 1.000000e+00 : f32
    %312 = vector.broadcast %cst_109 : f32 to vector<8x384xf32>
    %313 = arith.addf %312, %311 : vector<8x384xf32>
    %314 = arith.divf %312, %313 : vector<8x384xf32>
    %315 = vector.extract_strided_slice %314 {offsets = [0, 0], sizes = [8, 128], strides = [1, 1]} : vector<8x384xf32> to vector<8x128xf32>
    %316 = vector.extract_strided_slice %314 {offsets = [0, 128], sizes = [8, 128], strides = [1, 1]} : vector<8x384xf32> to vector<8x128xf32>
    %317 = vector.extract_strided_slice %314 {offsets = [0, 256], sizes = [8, 128], strides = [1, 1]} : vector<8x384xf32> to vector<8x128xf32>
    %318 = vector.extract_strided_slice %308 {offsets = [0, 384], sizes = [8, 128], strides = [1, 1]} : vector<8x512xf32> to vector<8x128xf32>
    %319 = math.tanh %318 : vector<8x128xf32>
    %320 = arith.mulf %316, %303 : vector<8x128xf32>
    %321 = arith.mulf %315, %319 : vector<8x128xf32>
    %322 = arith.addf %320, %321 : vector<8x128xf32>
    %323 = math.tanh %322 : vector<8x128xf32>
    %324 = arith.mulf %317, %323 : vector<8x128xf32>
    %c0_110 = arith.constant 0 : index
    %c0_111 = arith.constant 0 : index
    %325 = vector.load %arg10[%c0_110, %c0_111] : memref<128x512xf32, #tpu.memory_space<vmem>>, vector<128x512xf32>
    %cst_112 = arith.constant dense<0.000000e+00> : vector<8x512xf32>
    %326 = tpu.matmul %305, %325, %cst_112 {dimension_numbers = #tpu.dot_dimension_numbers<[1], [0], [0], [1], [0, 0, 1, 1], [], []>} : vector<8x128xf32>, vector<128x512xf32>, vector<8x512xf32> -> vector<8x512xf32>
    %c0_113 = arith.constant 0 : index
    %c0_114 = arith.constant 0 : index
    %327 = vector.load %arg11[%c0_113, %c0_114] : memref<128x512xf32, #tpu.memory_space<vmem>>, vector<128x512xf32>
    %cst_115 = arith.constant dense<0.000000e+00> : vector<8x512xf32>
    %328 = tpu.matmul %286, %327, %cst_115 {dimension_numbers = #tpu.dot_dimension_numbers<[1], [0], [0], [1], [0, 0, 1, 1], [], []>} : vector<8x128xf32>, vector<128x512xf32>, vector<8x512xf32> -> vector<8x512xf32>
    %329 = arith.addf %326, %328 : vector<8x512xf32>
    %330 = arith.addf %329, %285 : vector<8x512xf32>
    %331 = vector.extract_strided_slice %330 {offsets = [0, 0], sizes = [8, 384], strides = [1, 1]} : vector<8x512xf32> to vector<8x384xf32>
    %332 = arith.negf %331 : vector<8x384xf32>
    %333 = math.exp %332 : vector<8x384xf32>
    %cst_116 = arith.constant 1.000000e+00 : f32
    %334 = vector.broadcast %cst_116 : f32 to vector<8x384xf32>
    %335 = arith.addf %334, %333 : vector<8x384xf32>
    %336 = arith.divf %334, %335 : vector<8x384xf32>
    %337 = vector.extract_strided_slice %336 {offsets = [0, 0], sizes = [8, 128], strides = [1, 1]} : vector<8x384xf32> to vector<8x128xf32>
    %338 = vector.extract_strided_slice %336 {offsets = [0, 128], sizes = [8, 128], strides = [1, 1]} : vector<8x384xf32> to vector<8x128xf32>
    %339 = vector.extract_strided_slice %336 {offsets = [0, 256], sizes = [8, 128], strides = [1, 1]} : vector<8x384xf32> to vector<8x128xf32>
    %340 = vector.extract_strided_slice %330 {offsets = [0, 384], sizes = [8, 128], strides = [1, 1]} : vector<8x512xf32> to vector<8x128xf32>
    %341 = math.tanh %340 : vector<8x128xf32>
    %342 = arith.mulf %338, %286 : vector<8x128xf32>
    %343 = arith.mulf %337, %341 : vector<8x128xf32>
    %344 = arith.addf %342, %343 : vector<8x128xf32>
    %345 = math.tanh %344 : vector<8x128xf32>
    %346 = arith.mulf %339, %345 : vector<8x128xf32>
    %c0_117 = arith.constant 0 : index
    %c0_118 = arith.constant 0 : index
    %347 = vector.load %arg13[%c0_117, %c0_118] : memref<8x768xf32, #tpu.memory_space<vmem>>, vector<8x128xf32>
    tpu.vector_store %arg13[%c0_117, %c0_118], %346 {strides = array<i32>} : memref<8x768xf32, #tpu.memory_space<vmem>>, vector<8x128xf32>,
    %c0_119 = arith.constant 0 : index
    %c0_120 = arith.constant 0 : index
    %348 = vector.load %arg8[%c0_119, %c0_120] : memref<128x512xf32, #tpu.memory_space<vmem>>, vector<128x512xf32>
    %cst_121 = arith.constant dense<0.000000e+00> : vector<8x512xf32>
    %349 = tpu.matmul %324, %348, %cst_121 {dimension_numbers = #tpu.dot_dimension_numbers<[1], [0], [0], [1], [0, 0, 1, 1], [], []>} : vector<8x128xf32>, vector<128x512xf32>, vector<8x512xf32> -> vector<8x512xf32>
    %350 = arith.addf %282, %349 : vector<8x512xf32>
    %351 = vector.extract_strided_slice %350 {offsets = [0, 0], sizes = [8, 384], strides = [1, 1]} : vector<8x512xf32> to vector<8x384xf32>
    %352 = arith.negf %351 : vector<8x384xf32>
    %353 = math.exp %352 : vector<8x384xf32>
    %cst_122 = arith.constant 1.000000e+00 : f32
    %354 = vector.broadcast %cst_122 : f32 to vector<8x384xf32>
    %355 = arith.addf %354, %353 : vector<8x384xf32>
    %356 = arith.divf %354, %355 : vector<8x384xf32>
    %357 = vector.extract_strided_slice %356 {offsets = [0, 0], sizes = [8, 128], strides = [1, 1]} : vector<8x384xf32> to vector<8x128xf32>
    %358 = vector.extract_strided_slice %356 {offsets = [0, 128], sizes = [8, 128], strides = [1, 1]} : vector<8x384xf32> to vector<8x128xf32>
    %359 = vector.extract_strided_slice %356 {offsets = [0, 256], sizes = [8, 128], strides = [1, 1]} : vector<8x384xf32> to vector<8x128xf32>
    %360 = vector.extract_strided_slice %350 {offsets = [0, 384], sizes = [8, 128], strides = [1, 1]} : vector<8x512xf32> to vector<8x128xf32>
    %361 = math.tanh %360 : vector<8x128xf32>
    %362 = arith.mulf %358, %322 : vector<8x128xf32>
    %363 = arith.mulf %357, %361 : vector<8x128xf32>
    %364 = arith.addf %362, %363 : vector<8x128xf32>
    %365 = math.tanh %364 : vector<8x128xf32>
    %366 = arith.mulf %359, %365 : vector<8x128xf32>
    %c0_123 = arith.constant 0 : index
    %c0_124 = arith.constant 0 : index
    %367 = vector.load %arg10[%c0_123, %c0_124] : memref<128x512xf32, #tpu.memory_space<vmem>>, vector<128x512xf32>
    %cst_125 = arith.constant dense<0.000000e+00> : vector<8x512xf32>
    %368 = tpu.matmul %324, %367, %cst_125 {dimension_numbers = #tpu.dot_dimension_numbers<[1], [0], [0], [1], [0, 0, 1, 1], [], []>} : vector<8x128xf32>, vector<128x512xf32>, vector<8x512xf32> -> vector<8x512xf32>
    %c0_126 = arith.constant 0 : index
    %c0_127 = arith.constant 0 : index
    %369 = vector.load %arg11[%c0_126, %c0_127] : memref<128x512xf32, #tpu.memory_space<vmem>>, vector<128x512xf32>
    %cst_128 = arith.constant dense<0.000000e+00> : vector<8x512xf32>
    %370 = tpu.matmul %346, %369, %cst_128 {dimension_numbers = #tpu.dot_dimension_numbers<[1], [0], [0], [1], [0, 0, 1, 1], [], []>} : vector<8x128xf32>, vector<128x512xf32>, vector<8x512xf32> -> vector<8x512xf32>
    %371 = arith.addf %368, %370 : vector<8x512xf32>
    %372 = arith.addf %371, %285 : vector<8x512xf32>
    %373 = vector.extract_strided_slice %372 {offsets = [0, 0], sizes = [8, 384], strides = [1, 1]} : vector<8x512xf32> to vector<8x384xf32>
    %374 = arith.negf %373 : vector<8x384xf32>
    %375 = math.exp %374 : vector<8x384xf32>
    %cst_129 = arith.constant 1.000000e+00 : f32
    %376 = vector.broadcast %cst_129 : f32 to vector<8x384xf32>
    %377 = arith.addf %376, %375 : vector<8x384xf32>
    %378 = arith.divf %376, %377 : vector<8x384xf32>
    %379 = vector.extract_strided_slice %378 {offsets = [0, 0], sizes = [8, 128], strides = [1, 1]} : vector<8x384xf32> to vector<8x128xf32>
    %380 = vector.extract_strided_slice %378 {offsets = [0, 128], sizes = [8, 128], strides = [1, 1]} : vector<8x384xf32> to vector<8x128xf32>
    %381 = vector.extract_strided_slice %378 {offsets = [0, 256], sizes = [8, 128], strides = [1, 1]} : vector<8x384xf32> to vector<8x128xf32>
    %382 = vector.extract_strided_slice %372 {offsets = [0, 384], sizes = [8, 128], strides = [1, 1]} : vector<8x512xf32> to vector<8x128xf32>
    %383 = math.tanh %382 : vector<8x128xf32>
    %384 = arith.mulf %380, %344 : vector<8x128xf32>
    %385 = arith.mulf %379, %383 : vector<8x128xf32>
    %386 = arith.addf %384, %385 : vector<8x128xf32>
    %387 = math.tanh %386 : vector<8x128xf32>
    %388 = arith.mulf %381, %387 : vector<8x128xf32>
    %c0_130 = arith.constant 0 : index
    %c128_131 = arith.constant 128 : index
    %389 = vector.load %arg13[%c0_130, %c128_131] : memref<8x768xf32, #tpu.memory_space<vmem>>, vector<8x128xf32>
    tpu.vector_store %arg13[%c0_130, %c128_131], %388 {strides = array<i32>} : memref<8x768xf32, #tpu.memory_space<vmem>>, vector<8x128xf32>,
    %c0_132 = arith.constant 0 : index
    %c0_133 = arith.constant 0 : index
    %390 = vector.load %arg8[%c0_132, %c0_133] : memref<128x512xf32, #tpu.memory_space<vmem>>, vector<128x512xf32>
    %cst_134 = arith.constant dense<0.000000e+00> : vector<8x512xf32>
    %391 = tpu.matmul %366, %390, %cst_134 {dimension_numbers = #tpu.dot_dimension_numbers<[1], [0], [0], [1], [0, 0, 1, 1], [], []>} : vector<8x128xf32>, vector<128x512xf32>, vector<8x512xf32> -> vector<8x512xf32>
    %392 = arith.addf %282, %391 : vector<8x512xf32>
    %393 = vector.extract_strided_slice %392 {offsets = [0, 0], sizes = [8, 384], strides = [1, 1]} : vector<8x512xf32> to vector<8x384xf32>
    %394 = arith.negf %393 : vector<8x384xf32>
    %395 = math.exp %394 : vector<8x384xf32>
    %cst_135 = arith.constant 1.000000e+00 : f32
    %396 = vector.broadcast %cst_135 : f32 to vector<8x384xf32>
    %397 = arith.addf %396, %395 : vector<8x384xf32>
    %398 = arith.divf %396, %397 : vector<8x384xf32>
    %399 = vector.extract_strided_slice %398 {offsets = [0, 0], sizes = [8, 128], strides = [1, 1]} : vector<8x384xf32> to vector<8x128xf32>
    %400 = vector.extract_strided_slice %398 {offsets = [0, 128], sizes = [8, 128], strides = [1, 1]} : vector<8x384xf32> to vector<8x128xf32>
    %401 = vector.extract_strided_slice %398 {offsets = [0, 256], sizes = [8, 128], strides = [1, 1]} : vector<8x384xf32> to vector<8x128xf32>
    %402 = vector.extract_strided_slice %392 {offsets = [0, 384], sizes = [8, 128], strides = [1, 1]} : vector<8x512xf32> to vector<8x128xf32>
    %403 = math.tanh %402 : vector<8x128xf32>
    %404 = arith.mulf %400, %364 : vector<8x128xf32>
    %405 = arith.mulf %399, %403 : vector<8x128xf32>
    %406 = arith.addf %404, %405 : vector<8x128xf32>
    %407 = math.tanh %406 : vector<8x128xf32>
    %408 = arith.mulf %401, %407 : vector<8x128xf32>
    %c0_136 = arith.constant 0 : index
    %c0_137 = arith.constant 0 : index
    %409 = vector.load %arg10[%c0_136, %c0_137] : memref<128x512xf32, #tpu.memory_space<vmem>>, vector<128x512xf32>
    %cst_138 = arith.constant dense<0.000000e+00> : vector<8x512xf32>
    %410 = tpu.matmul %366, %409, %cst_138 {dimension_numbers = #tpu.dot_dimension_numbers<[1], [0], [0], [1], [0, 0, 1, 1], [], []>} : vector<8x128xf32>, vector<128x512xf32>, vector<8x512xf32> -> vector<8x512xf32>
    %c0_139 = arith.constant 0 : index
    %c0_140 = arith.constant 0 : index
    %411 = vector.load %arg11[%c0_139, %c0_140] : memref<128x512xf32, #tpu.memory_space<vmem>>, vector<128x512xf32>
    %cst_141 = arith.constant dense<0.000000e+00> : vector<8x512xf32>
    %412 = tpu.matmul %388, %411, %cst_141 {dimension_numbers = #tpu.dot_dimension_numbers<[1], [0], [0], [1], [0, 0, 1, 1], [], []>} : vector<8x128xf32>, vector<128x512xf32>, vector<8x512xf32> -> vector<8x512xf32>
    %413 = arith.addf %410, %412 : vector<8x512xf32>
    %414 = arith.addf %413, %285 : vector<8x512xf32>
    %415 = vector.extract_strided_slice %414 {offsets = [0, 0], sizes = [8, 384], strides = [1, 1]} : vector<8x512xf32> to vector<8x384xf32>
    %416 = arith.negf %415 : vector<8x384xf32>
    %417 = math.exp %416 : vector<8x384xf32>
    %cst_142 = arith.constant 1.000000e+00 : f32
    %418 = vector.broadcast %cst_142 : f32 to vector<8x384xf32>
    %419 = arith.addf %418, %417 : vector<8x384xf32>
    %420 = arith.divf %418, %419 : vector<8x384xf32>
    %421 = vector.extract_strided_slice %420 {offsets = [0, 0], sizes = [8, 128], strides = [1, 1]} : vector<8x384xf32> to vector<8x128xf32>
    %422 = vector.extract_strided_slice %420 {offsets = [0, 128], sizes = [8, 128], strides = [1, 1]} : vector<8x384xf32> to vector<8x128xf32>
    %423 = vector.extract_strided_slice %420 {offsets = [0, 256], sizes = [8, 128], strides = [1, 1]} : vector<8x384xf32> to vector<8x128xf32>
    %424 = vector.extract_strided_slice %414 {offsets = [0, 384], sizes = [8, 128], strides = [1, 1]} : vector<8x512xf32> to vector<8x128xf32>
    %425 = math.tanh %424 : vector<8x128xf32>
    %426 = arith.mulf %422, %386 : vector<8x128xf32>
    %427 = arith.mulf %421, %425 : vector<8x128xf32>
    %428 = arith.addf %426, %427 : vector<8x128xf32>
    %429 = math.tanh %428 : vector<8x128xf32>
    %430 = arith.mulf %423, %429 : vector<8x128xf32>
    %c0_143 = arith.constant 0 : index
    %c256_144 = arith.constant 256 : index
    %431 = vector.load %arg13[%c0_143, %c256_144] : memref<8x768xf32, #tpu.memory_space<vmem>>, vector<8x128xf32>
    tpu.vector_store %arg13[%c0_143, %c256_144], %430 {strides = array<i32>} : memref<8x768xf32, #tpu.memory_space<vmem>>, vector<8x128xf32>,
    %c0_145 = arith.constant 0 : index
    %c0_146 = arith.constant 0 : index
    %432 = vector.load %arg8[%c0_145, %c0_146] : memref<128x512xf32, #tpu.memory_space<vmem>>, vector<128x512xf32>
    %cst_147 = arith.constant dense<0.000000e+00> : vector<8x512xf32>
    %433 = tpu.matmul %408, %432, %cst_147 {dimension_numbers = #tpu.dot_dimension_numbers<[1], [0], [0], [1], [0, 0, 1, 1], [], []>} : vector<8x128xf32>, vector<128x512xf32>, vector<8x512xf32> -> vector<8x512xf32>
    %434 = arith.addf %282, %433 : vector<8x512xf32>
    %435 = vector.extract_strided_slice %434 {offsets = [0, 0], sizes = [8, 384], strides = [1, 1]} : vector<8x512xf32> to vector<8x384xf32>
    %436 = arith.negf %435 : vector<8x384xf32>
    %437 = math.exp %436 : vector<8x384xf32>
    %cst_148 = arith.constant 1.000000e+00 : f32
    %438 = vector.broadcast %cst_148 : f32 to vector<8x384xf32>
    %439 = arith.addf %438, %437 : vector<8x384xf32>
    %440 = arith.divf %438, %439 : vector<8x384xf32>
    %441 = vector.extract_strided_slice %440 {offsets = [0, 0], sizes = [8, 128], strides = [1, 1]} : vector<8x384xf32> to vector<8x128xf32>
    %442 = vector.extract_strided_slice %440 {offsets = [0, 128], sizes = [8, 128], strides = [1, 1]} : vector<8x384xf32> to vector<8x128xf32>
    %443 = vector.extract_strided_slice %440 {offsets = [0, 256], sizes = [8, 128], strides = [1, 1]} : vector<8x384xf32> to vector<8x128xf32>
    %444 = vector.extract_strided_slice %434 {offsets = [0, 384], sizes = [8, 128], strides = [1, 1]} : vector<8x512xf32> to vector<8x128xf32>
    %445 = math.tanh %444 : vector<8x128xf32>
    %446 = arith.mulf %442, %406 : vector<8x128xf32>
    %447 = arith.mulf %441, %445 : vector<8x128xf32>
    %448 = arith.addf %446, %447 : vector<8x128xf32>
    %449 = math.tanh %448 : vector<8x128xf32>
    %450 = arith.mulf %443, %449 : vector<8x128xf32>
    %c0_149 = arith.constant 0 : index
    %c0_150 = arith.constant 0 : index
    %451 = vector.load %arg10[%c0_149, %c0_150] : memref<128x512xf32, #tpu.memory_space<vmem>>, vector<128x512xf32>
    %cst_151 = arith.constant dense<0.000000e+00> : vector<8x512xf32>
    %452 = tpu.matmul %408, %451, %cst_151 {dimension_numbers = #tpu.dot_dimension_numbers<[1], [0], [0], [1], [0, 0, 1, 1], [], []>} : vector<8x128xf32>, vector<128x512xf32>, vector<8x512xf32> -> vector<8x512xf32>
    %c0_152 = arith.constant 0 : index
    %c0_153 = arith.constant 0 : index
    %453 = vector.load %arg11[%c0_152, %c0_153] : memref<128x512xf32, #tpu.memory_space<vmem>>, vector<128x512xf32>
    %cst_154 = arith.constant dense<0.000000e+00> : vector<8x512xf32>
    %454 = tpu.matmul %430, %453, %cst_154 {dimension_numbers = #tpu.dot_dimension_numbers<[1], [0], [0], [1], [0, 0, 1, 1], [], []>} : vector<8x128xf32>, vector<128x512xf32>, vector<8x512xf32> -> vector<8x512xf32>
    %455 = arith.addf %452, %454 : vector<8x512xf32>
    %456 = arith.addf %455, %285 : vector<8x512xf32>
    %457 = vector.extract_strided_slice %456 {offsets = [0, 0], sizes = [8, 384], strides = [1, 1]} : vector<8x512xf32> to vector<8x384xf32>
    %458 = arith.negf %457 : vector<8x384xf32>
    %459 = math.exp %458 : vector<8x384xf32>
    %cst_155 = arith.constant 1.000000e+00 : f32
    %460 = vector.broadcast %cst_155 : f32 to vector<8x384xf32>
    %461 = arith.addf %460, %459 : vector<8x384xf32>
    %462 = arith.divf %460, %461 : vector<8x384xf32>
    %463 = vector.extract_strided_slice %462 {offsets = [0, 0], sizes = [8, 128], strides = [1, 1]} : vector<8x384xf32> to vector<8x128xf32>
    %464 = vector.extract_strided_slice %462 {offsets = [0, 128], sizes = [8, 128], strides = [1, 1]} : vector<8x384xf32> to vector<8x128xf32>
    %465 = vector.extract_strided_slice %462 {offsets = [0, 256], sizes = [8, 128], strides = [1, 1]} : vector<8x384xf32> to vector<8x128xf32>
    %466 = vector.extract_strided_slice %456 {offsets = [0, 384], sizes = [8, 128], strides = [1, 1]} : vector<8x512xf32> to vector<8x128xf32>
    %467 = math.tanh %466 : vector<8x128xf32>
    %468 = arith.mulf %464, %428 : vector<8x128xf32>
    %469 = arith.mulf %463, %467 : vector<8x128xf32>
    %470 = arith.addf %468, %469 : vector<8x128xf32>
    %471 = math.tanh %470 : vector<8x128xf32>
    %472 = arith.mulf %465, %471 : vector<8x128xf32>
    %c0_156 = arith.constant 0 : index
    %c384_157 = arith.constant 384 : index
    %473 = vector.load %arg13[%c0_156, %c384_157] : memref<8x768xf32, #tpu.memory_space<vmem>>, vector<8x128xf32>
    tpu.vector_store %arg13[%c0_156, %c384_157], %472 {strides = array<i32>} : memref<8x768xf32, #tpu.memory_space<vmem>>, vector<8x128xf32>,
    %c0_158 = arith.constant 0 : index
    %c0_159 = arith.constant 0 : index
    %474 = vector.load %arg8[%c0_158, %c0_159] : memref<128x512xf32, #tpu.memory_space<vmem>>, vector<128x512xf32>
    %cst_160 = arith.constant dense<0.000000e+00> : vector<8x512xf32>
    %475 = tpu.matmul %450, %474, %cst_160 {dimension_numbers = #tpu.dot_dimension_numbers<[1], [0], [0], [1], [0, 0, 1, 1], [], []>} : vector<8x128xf32>, vector<128x512xf32>, vector<8x512xf32> -> vector<8x512xf32>
    %476 = arith.addf %282, %475 : vector<8x512xf32>
    %477 = vector.extract_strided_slice %476 {offsets = [0, 0], sizes = [8, 384], strides = [1, 1]} : vector<8x512xf32> to vector<8x384xf32>
    %478 = arith.negf %477 : vector<8x384xf32>
    %479 = math.exp %478 : vector<8x384xf32>
    %cst_161 = arith.constant 1.000000e+00 : f32
    %480 = vector.broadcast %cst_161 : f32 to vector<8x384xf32>
    %481 = arith.addf %480, %479 : vector<8x384xf32>
    %482 = arith.divf %480, %481 : vector<8x384xf32>
    %483 = vector.extract_strided_slice %482 {offsets = [0, 0], sizes = [8, 128], strides = [1, 1]} : vector<8x384xf32> to vector<8x128xf32>
    %484 = vector.extract_strided_slice %482 {offsets = [0, 128], sizes = [8, 128], strides = [1, 1]} : vector<8x384xf32> to vector<8x128xf32>
    %485 = vector.extract_strided_slice %482 {offsets = [0, 256], sizes = [8, 128], strides = [1, 1]} : vector<8x384xf32> to vector<8x128xf32>
    %486 = vector.extract_strided_slice %476 {offsets = [0, 384], sizes = [8, 128], strides = [1, 1]} : vector<8x512xf32> to vector<8x128xf32>
    %487 = math.tanh %486 : vector<8x128xf32>
    %488 = arith.mulf %484, %448 : vector<8x128xf32>
    %489 = arith.mulf %483, %487 : vector<8x128xf32>
    %490 = arith.addf %488, %489 : vector<8x128xf32>
    %491 = math.tanh %490 : vector<8x128xf32>
    %492 = arith.mulf %485, %491 : vector<8x128xf32>
    %c0_162 = arith.constant 0 : index
    %c0_163 = arith.constant 0 : index
    %493 = vector.load %arg10[%c0_162, %c0_163] : memref<128x512xf32, #tpu.memory_space<vmem>>, vector<128x512xf32>
    %cst_164 = arith.constant dense<0.000000e+00> : vector<8x512xf32>
    %494 = tpu.matmul %450, %493, %cst_164 {dimension_numbers = #tpu.dot_dimension_numbers<[1], [0], [0], [1], [0, 0, 1, 1], [], []>} : vector<8x128xf32>, vector<128x512xf32>, vector<8x512xf32> -> vector<8x512xf32>
    %c0_165 = arith.constant 0 : index
    %c0_166 = arith.constant 0 : index
    %495 = vector.load %arg11[%c0_165, %c0_166] : memref<128x512xf32, #tpu.memory_space<vmem>>, vector<128x512xf32>
    %cst_167 = arith.constant dense<0.000000e+00> : vector<8x512xf32>
    %496 = tpu.matmul %472, %495, %cst_167 {dimension_numbers = #tpu.dot_dimension_numbers<[1], [0], [0], [1], [0, 0, 1, 1], [], []>} : vector<8x128xf32>, vector<128x512xf32>, vector<8x512xf32> -> vector<8x512xf32>
    %497 = arith.addf %494, %496 : vector<8x512xf32>
    %498 = arith.addf %497, %285 : vector<8x512xf32>
    %499 = vector.extract_strided_slice %498 {offsets = [0, 0], sizes = [8, 384], strides = [1, 1]} : vector<8x512xf32> to vector<8x384xf32>
    %500 = arith.negf %499 : vector<8x384xf32>
    %501 = math.exp %500 : vector<8x384xf32>
    %cst_168 = arith.constant 1.000000e+00 : f32
    %502 = vector.broadcast %cst_168 : f32 to vector<8x384xf32>
    %503 = arith.addf %502, %501 : vector<8x384xf32>
    %504 = arith.divf %502, %503 : vector<8x384xf32>
    %505 = vector.extract_strided_slice %504 {offsets = [0, 0], sizes = [8, 128], strides = [1, 1]} : vector<8x384xf32> to vector<8x128xf32>
    %506 = vector.extract_strided_slice %504 {offsets = [0, 128], sizes = [8, 128], strides = [1, 1]} : vector<8x384xf32> to vector<8x128xf32>
    %507 = vector.extract_strided_slice %504 {offsets = [0, 256], sizes = [8, 128], strides = [1, 1]} : vector<8x384xf32> to vector<8x128xf32>
    %508 = vector.extract_strided_slice %498 {offsets = [0, 384], sizes = [8, 128], strides = [1, 1]} : vector<8x512xf32> to vector<8x128xf32>
    %509 = math.tanh %508 : vector<8x128xf32>
    %510 = arith.mulf %506, %470 : vector<8x128xf32>
    %511 = arith.mulf %505, %509 : vector<8x128xf32>
    %512 = arith.addf %510, %511 : vector<8x128xf32>
    %513 = math.tanh %512 : vector<8x128xf32>
    %514 = arith.mulf %507, %513 : vector<8x128xf32>
    %c0_169 = arith.constant 0 : index
    %c512_170 = arith.constant 512 : index
    %515 = vector.load %arg13[%c0_169, %c512_170] : memref<8x768xf32, #tpu.memory_space<vmem>>, vector<8x128xf32>
    tpu.vector_store %arg13[%c0_169, %c512_170], %514 {strides = array<i32>} : memref<8x768xf32, #tpu.memory_space<vmem>>, vector<8x128xf32>,
    %c0_171 = arith.constant 0 : index
    %c0_172 = arith.constant 0 : index
    %516 = vector.load %arg10[%c0_171, %c0_172] : memref<128x512xf32, #tpu.memory_space<vmem>>, vector<128x512xf32>
    %cst_173 = arith.constant dense<0.000000e+00> : vector<8x512xf32>
    %517 = tpu.matmul %492, %516, %cst_173 {dimension_numbers = #tpu.dot_dimension_numbers<[1], [0], [0], [1], [0, 0, 1, 1], [], []>} : vector<8x128xf32>, vector<128x512xf32>, vector<8x512xf32> -> vector<8x512xf32>
    %c0_174 = arith.constant 0 : index
    %c0_175 = arith.constant 0 : index
    %518 = vector.load %arg11[%c0_174, %c0_175] : memref<128x512xf32, #tpu.memory_space<vmem>>, vector<128x512xf32>
    %cst_176 = arith.constant dense<0.000000e+00> : vector<8x512xf32>
    %519 = tpu.matmul %514, %518, %cst_176 {dimension_numbers = #tpu.dot_dimension_numbers<[1], [0], [0], [1], [0, 0, 1, 1], [], []>} : vector<8x128xf32>, vector<128x512xf32>, vector<8x512xf32> -> vector<8x512xf32>
    %520 = arith.addf %517, %519 : vector<8x512xf32>
    %521 = arith.addf %520, %285 : vector<8x512xf32>
    %522 = vector.extract_strided_slice %521 {offsets = [0, 0], sizes = [8, 384], strides = [1, 1]} : vector<8x512xf32> to vector<8x384xf32>
    %523 = arith.negf %522 : vector<8x384xf32>
    %524 = math.exp %523 : vector<8x384xf32>
    %cst_177 = arith.constant 1.000000e+00 : f32
    %525 = vector.broadcast %cst_177 : f32 to vector<8x384xf32>
    %526 = arith.addf %525, %524 : vector<8x384xf32>
    %527 = arith.divf %525, %526 : vector<8x384xf32>
    %528 = vector.extract_strided_slice %527 {offsets = [0, 0], sizes = [8, 128], strides = [1, 1]} : vector<8x384xf32> to vector<8x128xf32>
    %529 = vector.extract_strided_slice %527 {offsets = [0, 128], sizes = [8, 128], strides = [1, 1]} : vector<8x384xf32> to vector<8x128xf32>
    %530 = vector.extract_strided_slice %527 {offsets = [0, 256], sizes = [8, 128], strides = [1, 1]} : vector<8x384xf32> to vector<8x128xf32>
    %531 = vector.extract_strided_slice %521 {offsets = [0, 384], sizes = [8, 128], strides = [1, 1]} : vector<8x512xf32> to vector<8x128xf32>
    %532 = math.tanh %531 : vector<8x128xf32>
    %533 = arith.mulf %529, %512 : vector<8x128xf32>
    %534 = arith.mulf %528, %532 : vector<8x128xf32>
    %535 = arith.addf %533, %534 : vector<8x128xf32>
    %536 = math.tanh %535 : vector<8x128xf32>
    %537 = arith.mulf %530, %536 : vector<8x128xf32>
    %c0_178 = arith.constant 0 : index
    %c640_179 = arith.constant 640 : index
    %538 = vector.load %arg13[%c0_178, %c640_179] : memref<8x768xf32, #tpu.memory_space<vmem>>, vector<8x128xf32>
    tpu.vector_store %arg13[%c0_178, %c640_179], %537 {strides = array<i32>} : memref<8x768xf32, #tpu.memory_space<vmem>>, vector<8x128xf32>,
    return
  }
}

</mosaic_0001>

<llo_original>
// kernel: tpu_custom_call.1
$region0: #{tpu_custom_call.1}
  #allocation0 [shape = 'u32[]', space=smem, size = 0x4, offset = 0x4, fixed_abs, tag = 'smem constant byte address 0x4 - core index']
  #allocation1 [shape = 'u32[144,128]{1,0:T(1,128)}', space=vmem, size = 0x12000, scoped, tag = 'internal scratch']
  %s0 = inlined_call_operand.hbm [shape: f32[8,768], index: 0, kind: input, shape index: {}]
  %s1 = inlined_call_operand.hbm [shape: f32[128,512], index: 1, kind: input, shape index: {}]
  %s2 = inlined_call_operand.hbm [shape: f32[128,512], index: 2, kind: input, shape index: {}]
  %s3 = inlined_call_operand.vmem [shape: f32[1,512], index: 3, kind: input, shape index: {}]
  %s4 = inlined_call_operand.hbm [shape: f32[128,512], index: 4, kind: input, shape index: {}]
  %s5 = inlined_call_operand.hbm [shape: f32[128,512], index: 5, kind: input, shape index: {}]
  %s6 = inlined_call_operand.vmem [shape: f32[1,512], index: 6, kind: input, shape index: {}]
  %s7 = inlined_call_operand.hbm [shape: f32[128,512], index: 7, kind: input, shape index: {}]
  %s8 = inlined_call_operand.hbm [shape: f32[128,512], index: 8, kind: input, shape index: {}]
  %s9 = inlined_call_operand.vmem [shape: f32[1,512], index: 9, kind: input, shape index: {}]
  %s10 = inlined_call_operand.hbm [shape: f32[128,512], index: 10, kind: input, shape index: {}]
  %s11 = inlined_call_operand.hbm [shape: f32[128,512], index: 11, kind: input, shape index: {}]
  %s12 = inlined_call_operand.vmem [shape: f32[1,512], index: 12, kind: input, shape index: {}]
  %s13 = inlined_call_operand.hbm [shape: f32[8,768], index: 13, kind: output, shape index: {}]
  %s14 = sld [smem:[#allocation0]]
  $region98: #{tpu_custom_call.1} parent=0
    _
  %s16 = ssub.s32 1, %s14
  %s17 = scalar_select 0, %s16, %s14
  $region1: #{tpu_custom_call.1} parent=0
    #allocation2 [shape = 'u8[24576]{0}', space=vmem, size = 0x6000, scoped, tag = 'input window, operand 0, single buffered']
    #allocation3 [shape = 's32[1]{0}', space=sflag, size = 0x4, scoped, tag = 'scoped memory for tpu_custom_call.1']
    #allocation4 [shape = 's32[1]{0}', space=sflag, size = 0x4, scoped, tag = 'scoped memory for tpu_custom_call.1']
    #allocation5 [shape = 'u8[262144]{0}', space=vmem, size = 0x40000, scoped, tag = 'input window, operand 1, single buffered']
    #allocation6 [shape = 's32[1]{0}', space=sflag, size = 0x4, scoped, tag = 'scoped memory for tpu_custom_call.1']
    #allocation7 [shape = 'u8[262144]{0}', space=vmem, size = 0x40000, scoped, tag = 'input window, operand 2, single buffered']
    #allocation8 [shape = 'u8[262144]{0}', space=vmem, size = 0x40000, scoped, tag = 'input window, operand 4, single buffered']
    #allocation9 [shape = 's32[1]{0}', space=sflag, size = 0x4, scoped, tag = 'scoped memory for tpu_custom_call.1']
    #allocation10 [shape = 'u8[262144]{0}', space=vmem, size = 0x40000, scoped, tag = 'input window, operand 5, single buffered']
    #allocation11 [shape = 'u8[262144]{0}', space=vmem, size = 0x40000, scoped, tag = 'input window, operand 7, single buffered']
    #allocation12 [shape = 's32[1]{0}', space=sflag, size = 0x4, scoped, tag = 'scoped memory for tpu_custom_call.1']
    #allocation13 [shape = 'u8[262144]{0}', space=vmem, size = 0x40000, scoped, tag = 'input window, operand 8, single buffered']
    #allocation14 [shape = 'u8[262144]{0}', space=vmem, size = 0x40000, scoped, tag = 'input window, operand 10, single buffered']
    #allocation15 [shape = 's32[1]{0}', space=sflag, size = 0x4, scoped, tag = 'scoped memory for tpu_custom_call.1']
    #allocation16 [shape = 'u8[262144]{0}', space=vmem, size = 0x40000, scoped, tag = 'input window, operand 11, single buffered']
    #allocation17 [shape = 'u8[24576]{0}', space=vmem, size = 0x6000, scoped, tag = 'output window, operand 0, single buffered']
    %18 = vsyncpa [#allocation3], 0
    %19 = vsyncpa [#allocation6], 0
    %20 = vsyncpa [#allocation9], 0
    %21 = vsyncpa [#allocation12], 0
    %22 = vsyncpa [#allocation15], 0
    %23 = vsyncpa [#allocation4], 0
    // Predicated region
    $region2: #{tpu_custom_call.1} parent=1 // pred_check
      _
    $region3: #{tpu_custom_call.1} parent=1 // pred_check_branch
      %25 = sbr.rel (0) target = $region5
    $region4: #{tpu_custom_call.1} parent=1 // pred_region
      %s27 = ssub.s32 768, 768
      %28 = vsyncadd [#allocation3], %s27
      %s30 = sshll.u32 [#allocation2], 4
      %s31 = int_to_ptr.vmem [resolvable:$true] %s30
      %33 = dma.hbm_to_vmem [thread:$0]  %s0, 768, %s31, [#allocation3]
    $region5: #{tpu_custom_call.1} parent=1 // pred_fallthru
      _
    // Predicated region
    $region6: #{tpu_custom_call.1} parent=1 // pred_check
      _
    $region7: #{tpu_custom_call.1} parent=1 // pred_check_branch
      %35 = sbr.rel (0) target = $region9
    $region8: #{tpu_custom_call.1} parent=1 // pred_region
      %s37 = ssub.s32 8192, 8192
      %38 = vsyncadd [#allocation6], %s37
      %s39 = sshll.u32 [#allocation5], 4
      %s40 = int_to_ptr.vmem [resolvable:$true] %s39
      %45 = dma.hbm_to_vmem [thread:$0]  %s1, 8192, %s40, [#allocation6], 512, 512, 32
    $region9: #{tpu_custom_call.1} parent=1 // pred_fallthru
      _
    // Predicated region
    $region10: #{tpu_custom_call.1} parent=1 // pred_check
      _
    $region11: #{tpu_custom_call.1} parent=1 // pred_check_branch
      %47 = sbr.rel (0) target = $region13
    $region12: #{tpu_custom_call.1} parent=1 // pred_region
      %s49 = ssub.s32 8192, 8192
      %50 = vsyncadd [#allocation6], %s49
      %s51 = sshll.u32 [#allocation7], 4
      %s52 = int_to_ptr.vmem [resolvable:$true] %s51
      %57 = dma.hbm_to_vmem [thread:$0]  %s2, 8192, %s52, [#allocation6], 512, 512, 32
    $region13: #{tpu_custom_call.1} parent=1 // pred_fallthru
      _
    // Predicated region
    $region14: #{tpu_custom_call.1} parent=1 // pred_check
      _
    $region15: #{tpu_custom_call.1} parent=1 // pred_check_branch
      %59 = sbr.rel (0) target = $region17
    $region16: #{tpu_custom_call.1} parent=1 // pred_region
      _
    $region17: #{tpu_custom_call.1} parent=1 // pred_fallthru
      _
    // Predicated region
    $region18: #{tpu_custom_call.1} parent=1 // pred_check
      _
    $region19: #{tpu_custom_call.1} parent=1 // pred_check_branch
      %61 = sbr.rel (0) target = $region21
    $region20: #{tpu_custom_call.1} parent=1 // pred_region
      %s63 = ssub.s32 8192, 8192
      %64 = vsyncadd [#allocation9], %s63
      %s65 = sshll.u32 [#allocation8], 4
      %s66 = int_to_ptr.vmem [resolvable:$true] %s65
      %71 = dma.hbm_to_vmem [thread:$0]  %s4, 8192, %s66, [#allocation9], 512, 512, 32
    $region21: #{tpu_custom_call.1} parent=1 // pred_fallthru
      _
    // Predicated region
    $region22: #{tpu_custom_call.1} parent=1 // pred_check
      _
    $region23: #{tpu_custom_call.1} parent=1 // pred_check_branch
      %73 = sbr.rel (0) target = $region25
    $region24: #{tpu_custom_call.1} parent=1 // pred_region
      %s75 = ssub.s32 8192, 8192
      %76 = vsyncadd [#allocation9], %s75
      %s77 = sshll.u32 [#allocation10], 4
      %s78 = int_to_ptr.vmem [resolvable:$true] %s77
      %83 = dma.hbm_to_vmem [thread:$0]  %s5, 8192, %s78, [#allocation9], 512, 512, 32
    $region25: #{tpu_custom_call.1} parent=1 // pred_fallthru
      _
    // Predicated region
    $region26: #{tpu_custom_call.1} parent=1 // pred_check
      _
    $region27: #{tpu_custom_call.1} parent=1 // pred_check_branch
      %85 = sbr.rel (0) target = $region29
    $region28: #{tpu_custom_call.1} parent=1 // pred_region
      _
    $region29: #{tpu_custom_call.1} parent=1 // pred_fallthru
      _
    // Predicated region
    $region30: #{tpu_custom_call.1} parent=1 // pred_check
      _
    $region31: #{tpu_custom_call.1} parent=1 // pred_check_branch
      %87 = sbr.rel (0) target = $region33
    $region32: #{tpu_custom_call.1} parent=1 // pred_region
      %s89 = ssub.s32 8192, 8192
      %90 = vsyncadd [#allocation12], %s89
      %s91 = sshll.u32 [#allocation11], 4
      %s92 = int_to_ptr.vmem [resolvable:$true] %s91
      %97 = dma.hbm_to_vmem [thread:$0]  %s7, 8192, %s92, [#allocation12], 512, 512, 32
    $region33: #{tpu_custom_call.1} parent=1 // pred_fallthru
      _
    // Predicated region
    $region34: #{tpu_custom_call.1} parent=1 // pred_check
      _
    $region35: #{tpu_custom_call.1} parent=1 // pred_check_branch
      %99 = sbr.rel (0) target = $region37
    $region36: #{tpu_custom_call.1} parent=1 // pred_region
      %s101 = ssub.s32 8192, 8192
      %102 = vsyncadd [#allocation12], %s101
      %s103 = sshll.u32 [#allocation13], 4
      %s104 = int_to_ptr.vmem [resolvable:$true] %s103
      %109 = dma.hbm_to_vmem [thread:$0]  %s8, 8192, %s104, [#allocation12], 512, 512, 32
    $region37: #{tpu_custom_call.1} parent=1 // pred_fallthru
      _
    // Predicated region
    $region38: #{tpu_custom_call.1} parent=1 // pred_check
      _
    $region39: #{tpu_custom_call.1} parent=1 // pred_check_branch
      %111 = sbr.rel (0) target = $region41
    $region40: #{tpu_custom_call.1} parent=1 // pred_region
      _
    $region41: #{tpu_custom_call.1} parent=1 // pred_fallthru
      _
    // Predicated region
    $region42: #{tpu_custom_call.1} parent=1 // pred_check
      _
    $region43: #{tpu_custom_call.1} parent=1 // pred_check_branch
      %113 = sbr.rel (0) target = $region45
    $region44: #{tpu_custom_call.1} parent=1 // pred_region
      %s115 = ssub.s32 8192, 8192
      %116 = vsyncadd [#allocation15], %s115
      %s117 = sshll.u32 [#allocation14], 4
      %s118 = int_to_ptr.vmem [resolvable:$true] %s117
      %123 = dma.hbm_to_vmem [thread:$0]  %s10, 8192, %s118, [#allocation15], 512, 512, 32
    $region45: #{tpu_custom_call.1} parent=1 // pred_fallthru
      _
    // Predicated region
    $region46: #{tpu_custom_call.1} parent=1 // pred_check
      _
    $region47: #{tpu_custom_call.1} parent=1 // pred_check_branch
      %125 = sbr.rel (0) target = $region49
    $region48: #{tpu_custom_call.1} parent=1 // pred_region
      %s127 = ssub.s32 8192, 8192
      %128 = vsyncadd [#allocation15], %s127
      %s129 = sshll.u32 [#allocation16], 4
      %s130 = int_to_ptr.vmem [resolvable:$true] %s129
      %135 = dma.hbm_to_vmem [thread:$0]  %s11, 8192, %s130, [#allocation15], 512, 512, 32
    $region49: #{tpu_custom_call.1} parent=1 // pred_fallthru
      _
    // Predicated region
    $region50: #{tpu_custom_call.1} parent=1 // pred_check
      _
    $region51: #{tpu_custom_call.1} parent=1 // pred_check_branch
      %137 = sbr.rel (0) target = $region53
    $region52: #{tpu_custom_call.1} parent=1 // pred_region
      _
    $region53: #{tpu_custom_call.1} parent=1 // pred_fallthru
      _
    // Predicated region
    $region54: #{tpu_custom_call.1} parent=1 // pred_check
      _
    $region55: #{tpu_custom_call.1} parent=1 // pred_check_branch
      %139 = sbr.rel (0) target = $region57
    $region56: #{tpu_custom_call.1} parent=1 // pred_region
      %140 = dma.done [#allocation3], 768
    $region57: #{tpu_custom_call.1} parent=1 // pred_fallthru
      _
    // Predicated region
    $region58: #{tpu_custom_call.1} parent=1 // pred_check
      _
    $region59: #{tpu_custom_call.1} parent=1 // pred_check_branch
      %142 = sbr.rel (0) target = $region61
    $region60: #{tpu_custom_call.1} parent=1 // pred_region
      %143 = dma.done [#allocation6], 8192
    $region61: #{tpu_custom_call.1} parent=1 // pred_fallthru
      _
    // Predicated region
    $region62: #{tpu_custom_call.1} parent=1 // pred_check
      _
    $region63: #{tpu_custom_call.1} parent=1 // pred_check_branch
      %145 = sbr.rel (0) target = $region65
    $region64: #{tpu_custom_call.1} parent=1 // pred_region
      %146 = dma.done [#allocation6], 8192
    $region65: #{tpu_custom_call.1} parent=1 // pred_fallthru
      _
    // Predicated region
    $region66: #{tpu_custom_call.1} parent=1 // pred_check
      _
    $region67: #{tpu_custom_call.1} parent=1 // pred_check_branch
      %148 = sbr.rel (0) target = $region69
    $region68: #{tpu_custom_call.1} parent=1 // pred_region
      %149 = dma.done [#allocation9], 8192
    $region69: #{tpu_custom_call.1} parent=1 // pred_fallthru
      _
    // Predicated region
    $region70: #{tpu_custom_call.1} parent=1 // pred_check
      _
    $region71: #{tpu_custom_call.1} parent=1 // pred_check_branch
      %151 = sbr.rel (0) target = $region73
    $region72: #{tpu_custom_call.1} parent=1 // pred_region
      %152 = dma.done [#allocation9], 8192
    $region73: #{tpu_custom_call.1} parent=1 // pred_fallthru
      _
    // Predicated region
    $region74: #{tpu_custom_call.1} parent=1 // pred_check
      _
    $region75: #{tpu_custom_call.1} parent=1 // pred_check_branch
      %154 = sbr.rel (0) target = $region77
    $region76: #{tpu_custom_call.1} parent=1 // pred_region
      %155 = dma.done [#allocation12], 8192
    $region77: #{tpu_custom_call.1} parent=1 // pred_fallthru
      _
    // Predicated region
    $region78: #{tpu_custom_call.1} parent=1 // pred_check
      _
    $region79: #{tpu_custom_call.1} parent=1 // pred_check_branch
      %157 = sbr.rel (0) target = $region81
    $region80: #{tpu_custom_call.1} parent=1 // pred_region
      %158 = dma.done [#allocation12], 8192
    $region81: #{tpu_custom_call.1} parent=1 // pred_fallthru
      _
    // Predicated region
    $region82: #{tpu_custom_call.1} parent=1 // pred_check
      _
    $region83: #{tpu_custom_call.1} parent=1 // pred_check_branch
      %160 = sbr.rel (0) target = $region85
    $region84: #{tpu_custom_call.1} parent=1 // pred_region
      %161 = dma.done [#allocation15], 8192
    $region85: #{tpu_custom_call.1} parent=1 // pred_fallthru
      _
    // Predicated region
    $region86: #{tpu_custom_call.1} parent=1 // pred_check
      _
    $region87: #{tpu_custom_call.1} parent=1 // pred_check_branch
      %163 = sbr.rel (0) target = $region89
    $region88: #{tpu_custom_call.1} parent=1 // pred_region
      %164 = dma.done [#allocation15], 8192
    $region89: #{tpu_custom_call.1} parent=1 // pred_fallthru
      _
    %v165 = vld [vmem:[%s3] sm:$0xf]
    %v167 = vlaneseq
    %v168 = vshrl.u32 %v167, 7
    %v169 = vsub.s32 0, %v168
    %v170 = vrot.slane %v165, %v169
    %v171 = vlaneseq
    %v172 = vshrl.u32 %v171, 7
    %v173 = vsub.s32 1, %v172
    %v174 = vrot.slane %v165, %v173
    %v175 = vlaneseq
    %v176 = vshrl.u32 %v175, 7
    %v177 = vsub.s32 2, %v176
    %v178 = vrot.slane %v165, %v177
    %v179 = vlaneseq
    %v180 = vshrl.u32 %v179, 7
    %v181 = vsub.s32 3, %v180
    %v182 = vrot.slane %v165, %v181
    %v187 = vld [vmem:[%s6] sm:$0xf]
    %v189 = vlaneseq
    %v190 = vshrl.u32 %v189, 7
    %v191 = vsub.s32 0, %v190
    %v192 = vrot.slane %v187, %v191
    %v193 = vlaneseq
    %v194 = vshrl.u32 %v193, 7
    %v195 = vsub.s32 1, %v194
    %v196 = vrot.slane %v187, %v195
    %v197 = vlaneseq
    %v198 = vshrl.u32 %v197, 7
    %v199 = vsub.s32 2, %v198
    %v200 = vrot.slane %v187, %v199
    %v201 = vlaneseq
    %v202 = vshrl.u32 %v201, 7
    %v203 = vsub.s32 3, %v202
    %v204 = vrot.slane %v187, %v203
    %v209 = vld [vmem:[#allocation2] sm:$0xff]
    %v210 = vld [vmem:[#allocation5] sm:$0xff]
    %v211 = vld [vmem:[#allocation5 + $0x8] sm:$0xff]
    %v212 = vld [vmem:[#allocation5 + $0x10] sm:$0xff]
    %v213 = vld [vmem:[#allocation5 + $0x18] sm:$0xff]
    %v214 = vld [vmem:[#allocation5 + $0x20] sm:$0xff]
    %v215 = vld [vmem:[#allocation5 + $0x28] sm:$0xff]
    %v216 = vld [vmem:[#allocation5 + $0x30] sm:$0xff]
    %v217 = vld [vmem:[#allocation5 + $0x38] sm:$0xff]
    %v218 = vld [vmem:[#allocation5 + $0x40] sm:$0xff]
    %v219 = vld [vmem:[#allocation5 + $0x48] sm:$0xff]
    %v220 = vld [vmem:[#allocation5 + $0x50] sm:$0xff]
    %v221 = vld [vmem:[#allocation5 + $0x58] sm:$0xff]
    %v222 = vld [vmem:[#allocation5 + $0x60] sm:$0xff]
    %v223 = vld [vmem:[#allocation5 + $0x68] sm:$0xff]
    %v224 = vld [vmem:[#allocation5 + $0x70] sm:$0xff]
    %v225 = vld [vmem:[#allocation5 + $0x78] sm:$0xff]
    %v226 = vld [vmem:[#allocation5 + $0x80] sm:$0xff]
    %v227 = vld [vmem:[#allocation5 + $0x88] sm:$0xff]
    %v228 = vld [vmem:[#allocation5 + $0x90] sm:$0xff]
    %v229 = vld [vmem:[#allocation5 + $0x98] sm:$0xff]
    %v230 = vld [vmem:[#allocation5 + $0xa0] sm:$0xff]
    %v231 = vld [vmem:[#allocation5 + $0xa8] sm:$0xff]
    %v232 = vld [vmem:[#allocation5 + $0xb0] sm:$0xff]
    %v233 = vld [vmem:[#allocation5 + $0xb8] sm:$0xff]
    %v234 = vld [vmem:[#allocation5 + $0xc0] sm:$0xff]
    %v235 = vld [vmem:[#allocation5 + $0xc8] sm:$0xff]
    %v236 = vld [vmem:[#allocation5 + $0xd0] sm:$0xff]
    %v237 = vld [vmem:[#allocation5 + $0xd8] sm:$0xff]
    %v238 = vld [vmem:[#allocation5 + $0xe0] sm:$0xff]
    %v239 = vld [vmem:[#allocation5 + $0xe8] sm:$0xff]
    %v240 = vld [vmem:[#allocation5 + $0xf0] sm:$0xff]
    %v241 = vld [vmem:[#allocation5 + $0xf8] sm:$0xff]
    %v242 = vld [vmem:[#allocation5 + $0x100] sm:$0xff]
    %v243 = vld [vmem:[#allocation5 + $0x108] sm:$0xff]
    %v244 = vld [vmem:[#allocation5 + $0x110] sm:$0xff]
    %v245 = vld [vmem:[#allocation5 + $0x118] sm:$0xff]
    %v246 = vld [vmem:[#allocation5 + $0x120] sm:$0xff]
    %v247 = vld [vmem:[#allocation5 + $0x128] sm:$0xff]
    %v248 = vld [vmem:[#allocation5 + $0x130] sm:$0xff]
    %v249 = vld [vmem:[#allocation5 + $0x138] sm:$0xff]
    %v250 = vld [vmem:[#allocation5 + $0x140] sm:$0xff]
    %v251 = vld [vmem:[#allocation5 + $0x148] sm:$0xff]
    %v252 = vld [vmem:[#allocation5 + $0x150] sm:$0xff]
    %v253 = vld [vmem:[#allocation5 + $0x158] sm:$0xff]
    %v254 = vld [vmem:[#allocation5 + $0x160] sm:$0xff]
    %v255 = vld [vmem:[#allocation5 + $0x168] sm:$0xff]
    %v256 = vld [vmem:[#allocation5 + $0x170] sm:$0xff]
    %v257 = vld [vmem:[#allocation5 + $0x178] sm:$0xff]
    %v258 = vld [vmem:[#allocation5 + $0x180] sm:$0xff]
    %v259 = vld [vmem:[#allocation5 + $0x188] sm:$0xff]
    %v260 = vld [vmem:[#allocation5 + $0x190] sm:$0xff]
    %v261 = vld [vmem:[#allocation5 + $0x198] sm:$0xff]
    %v262 = vld [vmem:[#allocation5 + $0x1a0] sm:$0xff]
    %v263 = vld [vmem:[#allocation5 + $0x1a8] sm:$0xff]
    %v264 = vld [vmem:[#allocation5 + $0x1b0] sm:$0xff]
    %v265 = vld [vmem:[#allocation5 + $0x1b8] sm:$0xff]
    %v266 = vld [vmem:[#allocation5 + $0x1c0] sm:$0xff]
    %v267 = vld [vmem:[#allocation5 + $0x1c8] sm:$0xff]
    %v268 = vld [vmem:[#allocation5 + $0x1d0] sm:$0xff]
    %v269 = vld [vmem:[#allocation5 + $0x1d8] sm:$0xff]
    %v270 = vld [vmem:[#allocation5 + $0x1e0] sm:$0xff]
    %v271 = vld [vmem:[#allocation5 + $0x1e8] sm:$0xff]
    %v272 = vld [vmem:[#allocation5 + $0x1f0] sm:$0xff]
    %v273 = vld [vmem:[#allocation5 + $0x1f8] sm:$0xff]
    %v274 = vld [vmem:[#allocation7] sm:$0xff]
    %v275 = vld [vmem:[#allocation7 + $0x8] sm:$0xff]
    %v276 = vld [vmem:[#allocation7 + $0x10] sm:$0xff]
    %v277 = vld [vmem:[#allocation7 + $0x18] sm:$0xff]
    %v278 = vld [vmem:[#allocation7 + $0x20] sm:$0xff]
    %v279 = vld [vmem:[#allocation7 + $0x28] sm:$0xff]
    %v280 = vld [vmem:[#allocation7 + $0x30] sm:$0xff]
    %v281 = vld [vmem:[#allocation7 + $0x38] sm:$0xff]
    %v282 = vld [vmem:[#allocation7 + $0x40] sm:$0xff]
    %v283 = vld [vmem:[#allocation7 + $0x48] sm:$0xff]
    %v284 = vld [vmem:[#allocation7 + $0x50] sm:$0xff]
    %v285 = vld [vmem:[#allocation7 + $0x58] sm:$0xff]
    %v286 = vld [vmem:[#allocation7 + $0x60] sm:$0xff]
    %v287 = vld [vmem:[#allocation7 + $0x68] sm:$0xff]
    %v288 = vld [vmem:[#allocation7 + $0x70] sm:$0xff]
    %v289 = vld [vmem:[#allocation7 + $0x78] sm:$0xff]
    %v290 = vld [vmem:[#allocation7 + $0x80] sm:$0xff]
    %v291 = vld [vmem:[#allocation7 + $0x88] sm:$0xff]
    %v292 = vld [vmem:[#allocation7 + $0x90] sm:$0xff]
    %v293 = vld [vmem:[#allocation7 + $0x98] sm:$0xff]
    %v294 = vld [vmem:[#allocation7 + $0xa0] sm:$0xff]
    %v295 = vld [vmem:[#allocation7 + $0xa8] sm:$0xff]
    %v296 = vld [vmem:[#allocation7 + $0xb0] sm:$0xff]
    %v297 = vld [vmem:[#allocation7 + $0xb8] sm:$0xff]
    %v298 = vld [vmem:[#allocation7 + $0xc0] sm:$0xff]
    %v299 = vld [vmem:[#allocation7 + $0xc8] sm:$0xff]
    %v300 = vld [vmem:[#allocation7 + $0xd0] sm:$0xff]
    %v301 = vld [vmem:[#allocation7 + $0xd8] sm:$0xff]
    %v302 = vld [vmem:[#allocation7 + $0xe0] sm:$0xff]
    %v303 = vld [vmem:[#allocation7 + $0xe8] sm:$0xff]
    %v304 = vld [vmem:[#allocation7 + $0xf0] sm:$0xff]
    %v305 = vld [vmem:[#allocation7 + $0xf8] sm:$0xff]
    %v306 = vld [vmem:[#allocation7 + $0x100] sm:$0xff]
    %v307 = vld [vmem:[#allocation7 + $0x108] sm:$0xff]
    %v308 = vld [vmem:[#allocation7 + $0x110] sm:$0xff]
    %v309 = vld [vmem:[#allocation7 + $0x118] sm:$0xff]
    %v310 = vld [vmem:[#allocation7 + $0x120] sm:$0xff]
    %v311 = vld [vmem:[#allocation7 + $0x128] sm:$0xff]
    %v312 = vld [vmem:[#allocation7 + $0x130] sm:$0xff]
    %v313 = vld [vmem:[#allocation7 + $0x138] sm:$0xff]
    %v314 = vld [vmem:[#allocation7 + $0x140] sm:$0xff]
    %v315 = vld [vmem:[#allocation7 + $0x148] sm:$0xff]
    %v316 = vld [vmem:[#allocation7 + $0x150] sm:$0xff]
    %v317 = vld [vmem:[#allocation7 + $0x158] sm:$0xff]
    %v318 = vld [vmem:[#allocation7 + $0x160] sm:$0xff]
    %v319 = vld [vmem:[#allocation7 + $0x168] sm:$0xff]
    %v320 = vld [vmem:[#allocation7 + $0x170] sm:$0xff]
    %v321 = vld [vmem:[#allocation7 + $0x178] sm:$0xff]
    %v322 = vld [vmem:[#allocation7 + $0x180] sm:$0xff]
    %v323 = vld [vmem:[#allocation7 + $0x188] sm:$0xff]
    %v324 = vld [vmem:[#allocation7 + $0x190] sm:$0xff]
    %v325 = vld [vmem:[#allocation7 + $0x198] sm:$0xff]
    %v326 = vld [vmem:[#allocation7 + $0x1a0] sm:$0xff]
    %v327 = vld [vmem:[#allocation7 + $0x1a8] sm:$0xff]
    %v328 = vld [vmem:[#allocation7 + $0x1b0] sm:$0xff]
    %v329 = vld [vmem:[#allocation7 + $0x1b8] sm:$0xff]
    %v330 = vld [vmem:[#allocation7 + $0x1c0] sm:$0xff]
    %v331 = vld [vmem:[#allocation7 + $0x1c8] sm:$0xff]
    %v332 = vld [vmem:[#allocation7 + $0x1d0] sm:$0xff]
    %v333 = vld [vmem:[#allocation7 + $0x1d8] sm:$0xff]
    %v334 = vld [vmem:[#allocation7 + $0x1e0] sm:$0xff]
    %v335 = vld [vmem:[#allocation7 + $0x1e8] sm:$0xff]
    %v336 = vld [vmem:[#allocation7 + $0x1f0] sm:$0xff]
    %v337 = vld [vmem:[#allocation7 + $0x1f8] sm:$0xff]
    %338 = vmatprep.subr.mxu0 %v275
    %339 = vmatpush1.msra.mxu0 %v274
    %340 = vmatprep.subr.mxu0 %v279
    %341 = vmatpush1.msra.mxu0 %v278
    %342 = vmatprep.subr.mxu0 %v283
    %343 = vmatpush1.msra.mxu0 %v282
    %344 = vmatprep.subr.mxu0 %v287
    %345 = vmatpush1.msra.mxu0 %v286
    %346 = vmatprep.subr.mxu0 %v291
    %347 = vmatpush1.msra.mxu0 %v290
    %348 = vmatprep.subr.mxu0 %v295
    %349 = vmatpush1.msra.mxu0 %v294
    %350 = vmatprep.subr.mxu0 %v299
    %351 = vmatpush1.msra.mxu0 %v298
    %352 = vmatprep.subr.mxu0 %v303
    %353 = vmatpush1.msra.mxu0 %v302
    %354 = vmatprep.subr.mxu0 %v307
    %355 = vmatpush1.msra.mxu0 %v306
    %356 = vmatprep.subr.mxu0 %v311
    %357 = vmatpush1.msra.mxu0 %v310
    %358 = vmatprep.subr.mxu0 %v315
    %359 = vmatpush1.msra.mxu0 %v314
    %360 = vmatprep.subr.mxu0 %v319
    %361 = vmatpush1.msra.mxu0 %v318
    %362 = vmatprep.subr.mxu0 %v323
    %363 = vmatpush1.msra.mxu0 %v322
    %364 = vmatprep.subr.mxu0 %v327
    %365 = vmatpush1.msra.mxu0 %v326
    %366 = vmatprep.subr.mxu0 %v331
    %367 = vmatpush1.msra.mxu0 %v330
    %368 = vmatprep.subr.mxu0 %v335
    %369 = vmatpush1.msra.mxu0 %v334
    %370 = vmatprep.subr.mxu0 0.0
    %371 = vmatpush1.msra.mxu0 0.0
    %372 = vmatprep.subr.mxu0 0.0
    %373 = vmatpush1.msra.mxu0 0.0
    %374 = vmatprep.subr.mxu0 0.0
    %375 = vmatpush1.msra.mxu0 0.0
    %376 = vmatprep.subr.mxu0 0.0
    %377 = vmatpush1.msra.mxu0 0.0
    %378 = vmatprep.subr.mxu0 0.0
    %379 = vmatpush1.msra.mxu0 0.0
    %380 = vmatprep.subr.mxu0 0.0
    %381 = vmatpush1.msra.mxu0 0.0
    %382 = vmatprep.subr.mxu0 0.0
    %383 = vmatpush1.msra.mxu0 0.0
    %384 = vmatprep.subr.mxu0 0.0
    %385 = vmatpush1.msra.mxu0 0.0
    %386 = vmatprep.subr.mxu0 0.0
    %387 = vmatpush1.msra.mxu0 0.0
    %388 = vmatprep.subr.mxu0 0.0
    %389 = vmatpush1.msra.mxu0 0.0
    %390 = vmatprep.subr.mxu0 0.0
    %391 = vmatpush1.msra.mxu0 0.0
    %392 = vmatprep.subr.mxu0 0.0
    %393 = vmatpush1.msra.mxu0 0.0
    %394 = vmatprep.subr.mxu0 0.0
    %395 = vmatpush1.msra.mxu0 0.0
    %396 = vmatprep.subr.mxu0 0.0
    %397 = vmatpush1.msra.mxu0 0.0
    %398 = vmatprep.subr.mxu0 0.0
    %399 = vmatpush1.msra.mxu0 0.0
    %400 = vmatprep.subr.mxu0 0.0
    %401 = vmatpush1.msra.mxu0 0.0
    %402 = vmatprep.mubr.f32.mxu0 0.0
    %403 = vmatmul.mubr.f32.gmra.mrb[0].mxu0 0.0
    %v404 = vpop.f32.mrb[0].mxu0
    %v405 = vadd.f32 0.0, %v404
    %v406 = vpop.f32.mrb[0].mxu0
    %v407 = vadd.f32 0.0, %v406
    %408 = vdwg.mxu0
    %409 = vmatprep.subr.mxu0 %v277
    %410 = vmatpush1.msra.mxu0 %v276
    %411 = vmatprep.subr.mxu0 %v281
    %412 = vmatpush1.msra.mxu0 %v280
    %413 = vmatprep.subr.mxu0 %v285
    %414 = vmatpush1.msra.mxu0 %v284
    %415 = vmatprep.subr.mxu0 %v289
    %416 = vmatpush1.msra.mxu0 %v288
    %417 = vmatprep.subr.mxu0 %v293
    %418 = vmatpush1.msra.mxu0 %v292
    %419 = vmatprep.subr.mxu0 %v297
    %420 = vmatpush1.msra.mxu0 %v296
    %421 = vmatprep.subr.mxu0 %v301
    %422 = vmatpush1.msra.mxu0 %v300
    %423 = vmatprep.subr.mxu0 %v305
    %424 = vmatpush1.msra.mxu0 %v304
    %425 = vmatprep.subr.mxu0 %v309
    %426 = vmatpush1.msra.mxu0 %v308
    %427 = vmatprep.subr.mxu0 %v313
    %428 = vmatpush1.msra.mxu0 %v312
    %429 = vmatprep.subr.mxu0 %v317
    %430 = vmatpush1.msra.mxu0 %v316
    %431 = vmatprep.subr.mxu0 %v321
    %432 = vmatpush1.msra.mxu0 %v320
    %433 = vmatprep.subr.mxu0 %v325
    %434 = vmatpush1.msra.mxu0 %v324
    %435 = vmatprep.subr.mxu0 %v329
    %436 = vmatpush1.msra.mxu0 %v328
    %437 = vmatprep.subr.mxu0 %v333
    %438 = vmatpush1.msra.mxu0 %v332
    %439 = vmatprep.subr.mxu0 %v337
    %440 = vmatpush1.msra.mxu0 %v336
    %441 = vmatprep.subr.mxu0 0.0
    %442 = vmatpush1.msra.mxu0 0.0
    %443 = vmatprep.subr.mxu0 0.0
    %444 = vmatpush1.msra.mxu0 0.0
    %445 = vmatprep.subr.mxu0 0.0
    %446 = vmatpush1.msra.mxu0 0.0
    %447 = vmatprep.subr.mxu0 0.0
    %448 = vmatpush1.msra.mxu0 0.0
    %449 = vmatprep.subr.mxu0 0.0
    %450 = vmatpush1.msra.mxu0 0.0
    %451 = vmatprep.subr.mxu0 0.0
    %452 = vmatpush1.msra.mxu0 0.0
    %453 = vmatprep.subr.mxu0 0.0
    %454 = vmatpush1.msra.mxu0 0.0
    %455 = vmatprep.subr.mxu0 0.0
    %456 = vmatpush1.msra.mxu0 0.0
    %457 = vmatprep.subr.mxu0 0.0
    %458 = vmatpush1.msra.mxu0 0.0
    %459 = vmatprep.subr.mxu0 0.0
    %460 = vmatpush1.msra.mxu0 0.0
    %461 = vmatprep.subr.mxu0 0.0
    %462 = vmatpush1.msra.mxu0 0.0
    %463 = vmatprep.subr.mxu0 0.0
    %464 = vmatpush1.msra.mxu0 0.0
    %465 = vmatprep.subr.mxu0 0.0
    %466 = vmatpush1.msra.mxu0 0.0
    %467 = vmatprep.subr.mxu0 0.0
    %468 = vmatpush1.msra.mxu0 0.0
    %469 = vmatprep.subr.mxu0 0.0
    %470 = vmatpush1.msra.mxu0 0.0
    %471 = vmatprep.subr.mxu0 0.0
    %472 = vmatpush1.msra.mxu0 0.0
    %473 = vmatprep.mubr.f32.mxu0 0.0
    %474 = vmatmul.mubr.f32.gmra.mrb[0].mxu0 0.0
    %v475 = vpop.f32.mrb[0].mxu0
    %v476 = vadd.f32 0.0, %v475
    %v477 = vpop.f32.mrb[0].mxu0
    %v478 = vadd.f32 0.0, %v477
    %479 = vdwg.mxu0
    %480 = vmatprep.subr.mxu0 %v211
    %481 = vmatpush1.msra.mxu0 %v210
    %482 = vmatprep.subr.mxu0 %v215
    %483 = vmatpush1.msra.mxu0 %v214
    %484 = vmatprep.subr.mxu0 %v219
    %485 = vmatpush1.msra.mxu0 %v218
    %486 = vmatprep.subr.mxu0 %v223
    %487 = vmatpush1.msra.mxu0 %v222
    %488 = vmatprep.subr.mxu0 %v227
    %489 = vmatpush1.msra.mxu0 %v226
    %490 = vmatprep.subr.mxu0 %v231
    %491 = vmatpush1.msra.mxu0 %v230
    %492 = vmatprep.subr.mxu0 %v235
    %493 = vmatpush1.msra.mxu0 %v234
    %494 = vmatprep.subr.mxu0 %v239
    %495 = vmatpush1.msra.mxu0 %v238
    %496 = vmatprep.subr.mxu0 %v243
    %497 = vmatpush1.msra.mxu0 %v242
    %498 = vmatprep.subr.mxu0 %v247
    %499 = vmatpush1.msra.mxu0 %v246
    %500 = vmatprep.subr.mxu0 %v251
    %501 = vmatpush1.msra.mxu0 %v250
    %502 = vmatprep.subr.mxu0 %v255
    %503 = vmatpush1.msra.mxu0 %v254
    %504 = vmatprep.subr.mxu0 %v259
    %505 = vmatpush1.msra.mxu0 %v258
    %506 = vmatprep.subr.mxu0 %v263
    %507 = vmatpush1.msra.mxu0 %v262
    %508 = vmatprep.subr.mxu0 %v267
    %509 = vmatpush1.msra.mxu0 %v266
    %510 = vmatprep.subr.mxu0 %v271
    %511 = vmatpush1.msra.mxu0 %v270
    %512 = vmatprep.subr.mxu0 0.0
    %513 = vmatpush1.msra.mxu0 0.0
    %514 = vmatprep.subr.mxu0 0.0
    %515 = vmatpush1.msra.mxu0 0.0
    %516 = vmatprep.subr.mxu0 0.0
    %517 = vmatpush1.msra.mxu0 0.0
    %518 = vmatprep.subr.mxu0 0.0
    %519 = vmatpush1.msra.mxu0 0.0
    %520 = vmatprep.subr.mxu0 0.0
    %521 = vmatpush1.msra.mxu0 0.0
    %522 = vmatprep.subr.mxu0 0.0
    %523 = vmatpush1.msra.mxu0 0.0
    %524 = vmatprep.subr.mxu0 0.0
    %525 = vmatpush1.msra.mxu0 0.0
    %526 = vmatprep.subr.mxu0 0.0
    %527 = vmatpush1.msra.mxu0 0.0
    %528 = vmatprep.subr.mxu0 0.0
    %529 = vmatpush1.msra.mxu0 0.0
    %530 = vmatprep.subr.mxu0 0.0
    %531 = vmatpush1.msra.mxu0 0.0
    %532 = vmatprep.subr.mxu0 0.0
    %533 = vmatpush1.msra.mxu0 0.0
    %534 = vmatprep.subr.mxu0 0.0
    %535 = vmatpush1.msra.mxu0 0.0
    %536 = vmatprep.subr.mxu0 0.0
    %537 = vmatpush1.msra.mxu0 0.0
    %538 = vmatprep.subr.mxu0 0.0
    %539 = vmatpush1.msra.mxu0 0.0
    %540 = vmatprep.subr.mxu0 0.0
    %541 = vmatpush1.msra.mxu0 0.0
    %542 = vmatprep.subr.mxu0 0.0
    %543 = vmatpush1.msra.mxu0 0.0
    %544 = vmatprep.mubr.f32.mxu0 0.0
    %545 = vmatmul.mubr.f32.gmra.mrb[0].mxu0 %v209
    %v546 = vpop.f32.mrb[0].mxu0
    %v547 = vadd.f32 %v405, %v546
    %v548 = vpop.f32.mrb[0].mxu0
    %v549 = vadd.f32 %v407, %v548
    %550 = vdwg.mxu0
    %551 = vmatprep.subr.mxu0 %v213
    %552 = vmatpush1.msra.mxu0 %v212
    %553 = vmatprep.subr.mxu0 %v217
    %554 = vmatpush1.msra.mxu0 %v216
    %555 = vmatprep.subr.mxu0 %v221
    %556 = vmatpush1.msra.mxu0 %v220
    %557 = vmatprep.subr.mxu0 %v225
    %558 = vmatpush1.msra.mxu0 %v224
    %559 = vmatprep.subr.mxu0 %v229
    %560 = vmatpush1.msra.mxu0 %v228
    %561 = vmatprep.subr.mxu0 %v233
    %562 = vmatpush1.msra.mxu0 %v232
    %563 = vmatprep.subr.mxu0 %v237
    %564 = vmatpush1.msra.mxu0 %v236
    %565 = vmatprep.subr.mxu0 %v241
    %566 = vmatpush1.msra.mxu0 %v240
    %567 = vmatprep.subr.mxu0 %v245
    %568 = vmatpush1.msra.mxu0 %v244
    %569 = vmatprep.subr.mxu0 %v249
    %570 = vmatpush1.msra.mxu0 %v248
    %571 = vmatprep.subr.mxu0 %v253
    %572 = vmatpush1.msra.mxu0 %v252
    %573 = vmatprep.subr.mxu0 %v257
    %574 = vmatpush1.msra.mxu0 %v256
    %575 = vmatprep.subr.mxu0 %v261
    %576 = vmatpush1.msra.mxu0 %v260
    %577 = vmatprep.subr.mxu0 %v265
    %578 = vmatpush1.msra.mxu0 %v264
    %579 = vmatprep.subr.mxu0 %v269
    %580 = vmatpush1.msra.mxu0 %v268
    %581 = vmatprep.subr.mxu0 %v273
    %582 = vmatpush1.msra.mxu0 %v272
    %583 = vmatprep.subr.mxu0 0.0
    %584 = vmatpush1.msra.mxu0 0.0
    %585 = vmatprep.subr.mxu0 0.0
    %586 = vmatpush1.msra.mxu0 0.0
    %587 = vmatprep.subr.mxu0 0.0
    %588 = vmatpush1.msra.mxu0 0.0
    %589 = vmatprep.subr.mxu0 0.0
    %590 = vmatpush1.msra.mxu0 0.0
    %591 = vmatprep.subr.mxu0 0.0
    %592 = vmatpush1.msra.mxu0 0.0
    %593 = vmatprep.subr.mxu0 0.0
    %594 = vmatpush1.msra.mxu0 0.0
    %595 = vmatprep.subr.mxu0 0.0
    %596 = vmatpush1.msra.mxu0 0.0
    %597 = vmatprep.subr.mxu0 0.0
    %598 = vmatpush1.msra.mxu0 0.0
    %599 = vmatprep.subr.mxu0 0.0
    %600 = vmatpush1.msra.mxu0 0.0
    %601 = vmatprep.subr.mxu0 0.0
    %602 = vmatpush1.msra.mxu0 0.0
    %603 = vmatprep.subr.mxu0 0.0
    %604 = vmatpush1.msra.mxu0 0.0
    %605 = vmatprep.subr.mxu0 0.0
    %606 = vmatpush1.msra.mxu0 0.0
    %607 = vmatprep.subr.mxu0 0.0
    %608 = vmatpush1.msra.mxu0 0.0
    %609 = vmatprep.subr.mxu0 0.0
    %610 = vmatpush1.msra.mxu0 0.0
    %611 = vmatprep.subr.mxu0 0.0
    %612 = vmatpush1.msra.mxu0 0.0
    %613 = vmatprep.subr.mxu0 0.0
    %614 = vmatpush1.msra.mxu0 0.0
    %615 = vmatprep.mubr.f32.mxu0 0.0
    %616 = vmatmul.mubr.f32.gmra.mrb[0].mxu0 %v209
    %v617 = vpop.f32.mrb[0].mxu0
    %v618 = vadd.f32 %v476, %v617
    %v619 = vpop.f32.mrb[0].mxu0
    %v620 = vadd.f32 %v478, %v619
    %621 = vdwg.mxu0
    %v622 = vadd.f32 %v547, %v170
    %v623 = vadd.f32 %v549, %v174
    %v624 = vadd.f32 %v618, %v178
    %v625 = vadd.f32 %v620, %v182
    %v626 = vxor.u32 %v622, 2147483648
    %v627 = vxor.u32 %v623, 2147483648
    %v628 = vxor.u32 %v624, 2147483648
    %v629 = vmul.f32 %v626, 1.442695
    %v630 = vpow.pop %v629
    %v631 = vmul.f32 %v627, 1.442695
    %v632 = vpow.pop %v631
    %v633 = vmul.f32 %v628, 1.442695
    %v634 = vpow.pop %v633
    %v635 = vadd.f32 %v630, 1.0
    %v636 = vadd.f32 %v632, 1.0
    %v637 = vadd.f32 %v634, 1.0
    %v638 = vrcp.pop %v635
    %v639 = vmul.f32 1.0, %v638
    %v640 = vrcp.pop %v636
    %v641 = vmul.f32 1.0, %v640
    %v642 = vrcp.pop %v637
    %v643 = vmul.f32 1.0, %v642
    %v644 = vtanh.pop %v625
    %v645 = vmul.f32 %v641, 0.0
    %v646 = vmul.f32 %v639, %v644
    %v647 = vadd.f32 %v645, %v646
    %v648 = vtanh.pop %v647
    %v649 = vmul.f32 %v643, %v648
    %v650 = vld [vmem:[#allocation2 + $0x8] sm:$0xff]
    %651 = vmatprep.subr.mxu0 %v275
    %652 = vmatpush1.msra.mxu0 %v274
    %653 = vmatprep.subr.mxu0 %v279
    %654 = vmatpush1.msra.mxu0 %v278
    %655 = vmatprep.subr.mxu0 %v283
    %656 = vmatpush1.msra.mxu0 %v282
    %657 = vmatprep.subr.mxu0 %v287
    %658 = vmatpush1.msra.mxu0 %v286
    %659 = vmatprep.subr.mxu0 %v291
    %660 = vmatpush1.msra.mxu0 %v290
    %661 = vmatprep.subr.mxu0 %v295
    %662 = vmatpush1.msra.mxu0 %v294
    %663 = vmatprep.subr.mxu0 %v299
    %664 = vmatpush1.msra.mxu0 %v298
    %665 = vmatprep.subr.mxu0 %v303
    %666 = vmatpush1.msra.mxu0 %v302
    %667 = vmatprep.subr.mxu0 %v307
    %668 = vmatpush1.msra.mxu0 %v306
    %669 = vmatprep.subr.mxu0 %v311
    %670 = vmatpush1.msra.mxu0 %v310
    %671 = vmatprep.subr.mxu0 %v315
    %672 = vmatpush1.msra.mxu0 %v314
    %673 = vmatprep.subr.mxu0 %v319
    %674 = vmatpush1.msra.mxu0 %v318
    %675 = vmatprep.subr.mxu0 %v323
    %676 = vmatpush1.msra.mxu0 %v322
    %677 = vmatprep.subr.mxu0 %v327
    %678 = vmatpush1.msra.mxu0 %v326
    %679 = vmatprep.subr.mxu0 %v331
    %680 = vmatpush1.msra.mxu0 %v330
    %681 = vmatprep.subr.mxu0 %v335
    %682 = vmatpush1.msra.mxu0 %v334
    %683 = vmatprep.subr.mxu0 0.0
    %684 = vmatpush1.msra.mxu0 0.0
    %685 = vmatprep.subr.mxu0 0.0
    %686 = vmatpush1.msra.mxu0 0.0
    %687 = vmatprep.subr.mxu0 0.0
    %688 = vmatpush1.msra.mxu0 0.0
    %689 = vmatprep.subr.mxu0 0.0
    %690 = vmatpush1.msra.mxu0 0.0
    %691 = vmatprep.subr.mxu0 0.0
    %692 = vmatpush1.msra.mxu0 0.0
    %693 = vmatprep.subr.mxu0 0.0
    %694 = vmatpush1.msra.mxu0 0.0
    %695 = vmatprep.subr.mxu0 0.0
    %696 = vmatpush1.msra.mxu0 0.0
    %697 = vmatprep.subr.mxu0 0.0
    %698 = vmatpush1.msra.mxu0 0.0
    %699 = vmatprep.subr.mxu0 0.0
    %700 = vmatpush1.msra.mxu0 0.0
    %701 = vmatprep.subr.mxu0 0.0
    %702 = vmatpush1.msra.mxu0 0.0
    %703 = vmatprep.subr.mxu0 0.0
    %704 = vmatpush1.msra.mxu0 0.0
    %705 = vmatprep.subr.mxu0 0.0
    %706 = vmatpush1.msra.mxu0 0.0
    %707 = vmatprep.subr.mxu0 0.0
    %708 = vmatpush1.msra.mxu0 0.0
    %709 = vmatprep.subr.mxu0 0.0
    %710 = vmatpush1.msra.mxu0 0.0
    %711 = vmatprep.subr.mxu0 0.0
    %712 = vmatpush1.msra.mxu0 0.0
    %713 = vmatprep.subr.mxu0 0.0
    %714 = vmatpush1.msra.mxu0 0.0
    %715 = vmatprep.mubr.f32.mxu0 0.0
    %716 = vmatmul.mubr.f32.gmra.mrb[0].mxu0 %v649
    %v717 = vpop.f32.mrb[0].mxu0
    %v718 = vadd.f32 0.0, %v717
    %v719 = vpop.f32.mrb[0].mxu0
    %v720 = vadd.f32 0.0, %v719
    %721 = vdwg.mxu0
    %722 = vmatprep.subr.mxu0 %v277
    %723 = vmatpush1.msra.mxu0 %v276
    %724 = vmatprep.subr.mxu0 %v281
    %725 = vmatpush1.msra.mxu0 %v280
    %726 = vmatprep.subr.mxu0 %v285
    %727 = vmatpush1.msra.mxu0 %v284
    %728 = vmatprep.subr.mxu0 %v289
    %729 = vmatpush1.msra.mxu0 %v288
    %730 = vmatprep.subr.mxu0 %v293
    %731 = vmatpush1.msra.mxu0 %v292
    %732 = vmatprep.subr.mxu0 %v297
    %733 = vmatpush1.msra.mxu0 %v296
    %734 = vmatprep.subr.mxu0 %v301
    %735 = vmatpush1.msra.mxu0 %v300
    %736 = vmatprep.subr.mxu0 %v305
    %737 = vmatpush1.msra.mxu0 %v304
    %738 = vmatprep.subr.mxu0 %v309
    %739 = vmatpush1.msra.mxu0 %v308
    %740 = vmatprep.subr.mxu0 %v313
    %741 = vmatpush1.msra.mxu0 %v312
    %742 = vmatprep.subr.mxu0 %v317
    %743 = vmatpush1.msra.mxu0 %v316
    %744 = vmatprep.subr.mxu0 %v321
    %745 = vmatpush1.msra.mxu0 %v320
    %746 = vmatprep.subr.mxu0 %v325
    %747 = vmatpush1.msra.mxu0 %v324
    %748 = vmatprep.subr.mxu0 %v329
    %749 = vmatpush1.msra.mxu0 %v328
    %750 = vmatprep.subr.mxu0 %v333
    %751 = vmatpush1.msra.mxu0 %v332
    %752 = vmatprep.subr.mxu0 %v337
    %753 = vmatpush1.msra.mxu0 %v336
    %754 = vmatprep.subr.mxu0 0.0
    %755 = vmatpush1.msra.mxu0 0.0
    %756 = vmatprep.subr.mxu0 0.0
    %757 = vmatpush1.msra.mxu0 0.0
    %758 = vmatprep.subr.mxu0 0.0
    %759 = vmatpush1.msra.mxu0 0.0
    %760 = vmatprep.subr.mxu0 0.0
    %761 = vmatpush1.msra.mxu0 0.0
    %762 = vmatprep.subr.mxu0 0.0
    %763 = vmatpush1.msra.mxu0 0.0
    %764 = vmatprep.subr.mxu0 0.0
    %765 = vmatpush1.msra.mxu0 0.0
    %766 = vmatprep.subr.mxu0 0.0
    %767 = vmatpush1.msra.mxu0 0.0
    %768 = vmatprep.subr.mxu0 0.0
    %769 = vmatpush1.msra.mxu0 0.0
    %770 = vmatprep.subr.mxu0 0.0
    %771 = vmatpush1.msra.mxu0 0.0
    %772 = vmatprep.subr.mxu0 0.0
    %773 = vmatpush1.msra.mxu0 0.0
    %774 = vmatprep.subr.mxu0 0.0
    %775 = vmatpush1.msra.mxu0 0.0
    %776 = vmatprep.subr.mxu0 0.0
    %777 = vmatpush1.msra.mxu0 0.0
    %778 = vmatprep.subr.mxu0 0.0
    %779 = vmatpush1.msra.mxu0 0.0
    %780 = vmatprep.subr.mxu0 0.0
    %781 = vmatpush1.msra.mxu0 0.0
    %782 = vmatprep.subr.mxu0 0.0
    %783 = vmatpush1.msra.mxu0 0.0
    %784 = vmatprep.subr.mxu0 0.0
    %785 = vmatpush1.msra.mxu0 0.0
    %786 = vmatprep.mubr.f32.mxu0 0.0
    %787 = vmatmul.mubr.f32.gmra.mrb[0].mxu0 %v649
    %v788 = vpop.f32.mrb[0].mxu0
    %v789 = vadd.f32 0.0, %v788
    %v790 = vpop.f32.mrb[0].mxu0
    %v791 = vadd.f32 0.0, %v790
    %792 = vdwg.mxu0
    %793 = vmatprep.subr.mxu0 %v211
    %794 = vmatpush1.msra.mxu0 %v210
    %795 = vmatprep.subr.mxu0 %v215
    %796 = vmatpush1.msra.mxu0 %v214
    %797 = vmatprep.subr.mxu0 %v219
    %798 = vmatpush1.msra.mxu0 %v218
    %799 = vmatprep.subr.mxu0 %v223
    %800 = vmatpush1.msra.mxu0 %v222
    %801 = vmatprep.subr.mxu0 %v227
    %802 = vmatpush1.msra.mxu0 %v226
    %803 = vmatprep.subr.mxu0 %v231
    %804 = vmatpush1.msra.mxu0 %v230
    %805 = vmatprep.subr.mxu0 %v235
    %806 = vmatpush1.msra.mxu0 %v234
    %807 = vmatprep.subr.mxu0 %v239
    %808 = vmatpush1.msra.mxu0 %v238
    %809 = vmatprep.subr.mxu0 %v243
    %810 = vmatpush1.msra.mxu0 %v242
    %811 = vmatprep.subr.mxu0 %v247
    %812 = vmatpush1.msra.mxu0 %v246
    %813 = vmatprep.subr.mxu0 %v251
    %814 = vmatpush1.msra.mxu0 %v250
    %815 = vmatprep.subr.mxu0 %v255
    %816 = vmatpush1.msra.mxu0 %v254
    %817 = vmatprep.subr.mxu0 %v259
    %818 = vmatpush1.msra.mxu0 %v258
    %819 = vmatprep.subr.mxu0 %v263
    %820 = vmatpush1.msra.mxu0 %v262
    %821 = vmatprep.subr.mxu0 %v267
    %822 = vmatpush1.msra.mxu0 %v266
    %823 = vmatprep.subr.mxu0 %v271
    %824 = vmatpush1.msra.mxu0 %v270
    %825 = vmatprep.subr.mxu0 0.0
    %826 = vmatpush1.msra.mxu0 0.0
    %827 = vmatprep.subr.mxu0 0.0
    %828 = vmatpush1.msra.mxu0 0.0
    %829 = vmatprep.subr.mxu0 0.0
    %830 = vmatpush1.msra.mxu0 0.0
    %831 = vmatprep.subr.mxu0 0.0
    %832 = vmatpush1.msra.mxu0 0.0
    %833 = vmatprep.subr.mxu0 0.0
    %834 = vmatpush1.msra.mxu0 0.0
    %835 = vmatprep.subr.mxu0 0.0
    %836 = vmatpush1.msra.mxu0 0.0
    %837 = vmatprep.subr.mxu0 0.0
    %838 = vmatpush1.msra.mxu0 0.0
    %839 = vmatprep.subr.mxu0 0.0
    %840 = vmatpush1.msra.mxu0 0.0
    %841 = vmatprep.subr.mxu0 0.0
    %842 = vmatpush1.msra.mxu0 0.0
    %843 = vmatprep.subr.mxu0 0.0
    %844 = vmatpush1.msra.mxu0 0.0
    %845 = vmatprep.subr.mxu0 0.0
    %846 = vmatpush1.msra.mxu0 0.0
    %847 = vmatprep.subr.mxu0 0.0
    %848 = vmatpush1.msra.mxu0 0.0
    %849 = vmatprep.subr.mxu0 0.0
    %850 = vmatpush1.msra.mxu0 0.0
    %851 = vmatprep.subr.mxu0 0.0
    %852 = vmatpush1.msra.mxu0 0.0
    %853 = vmatprep.subr.mxu0 0.0
    %854 = vmatpush1.msra.mxu0 0.0
    %855 = vmatprep.subr.mxu0 0.0
    %856 = vmatpush1.msra.mxu0 0.0
    %857 = vmatprep.mubr.f32.mxu0 0.0
    %858 = vmatmul.mubr.f32.gmra.mrb[0].mxu0 %v650
    %v859 = vpop.f32.mrb[0].mxu0
    %v860 = vadd.f32 %v718, %v859
    %v861 = vpop.f32.mrb[0].mxu0
    %v862 = vadd.f32 %v720, %v861
    %863 = vdwg.mxu0
    %864 = vmatprep.subr.mxu0 %v213
    %865 = vmatpush1.msra.mxu0 %v212
    %866 = vmatprep.subr.mxu0 %v217
    %867 = vmatpush1.msra.mxu0 %v216
    %868 = vmatprep.subr.mxu0 %v221
    %869 = vmatpush1.msra.mxu0 %v220
    %870 = vmatprep.subr.mxu0 %v225
    %871 = vmatpush1.msra.mxu0 %v224
    %872 = vmatprep.subr.mxu0 %v229
    %873 = vmatpush1.msra.mxu0 %v228
    %874 = vmatprep.subr.mxu0 %v233
    %875 = vmatpush1.msra.mxu0 %v232
    %876 = vmatprep.subr.mxu0 %v237
    %877 = vmatpush1.msra.mxu0 %v236
    %878 = vmatprep.subr.mxu0 %v241
    %879 = vmatpush1.msra.mxu0 %v240
    %880 = vmatprep.subr.mxu0 %v245
    %881 = vmatpush1.msra.mxu0 %v244
    %882 = vmatprep.subr.mxu0 %v249
    %883 = vmatpush1.msra.mxu0 %v248
    %884 = vmatprep.subr.mxu0 %v253
    %885 = vmatpush1.msra.mxu0 %v252
    %886 = vmatprep.subr.mxu0 %v257
    %887 = vmatpush1.msra.mxu0 %v256
    %888 = vmatprep.subr.mxu0 %v261
    %889 = vmatpush1.msra.mxu0 %v260
    %890 = vmatprep.subr.mxu0 %v265
    %891 = vmatpush1.msra.mxu0 %v264
    %892 = vmatprep.subr.mxu0 %v269
    %893 = vmatpush1.msra.mxu0 %v268
    %894 = vmatprep.subr.mxu0 %v273
    %895 = vmatpush1.msra.mxu0 %v272
    %896 = vmatprep.subr.mxu0 0.0
    %897 = vmatpush1.msra.mxu0 0.0
    %898 = vmatprep.subr.mxu0 0.0
    %899 = vmatpush1.msra.mxu0 0.0
    %900 = vmatprep.subr.mxu0 0.0
    %901 = vmatpush1.msra.mxu0 0.0
    %902 = vmatprep.subr.mxu0 0.0
    %903 = vmatpush1.msra.mxu0 0.0
    %904 = vmatprep.subr.mxu0 0.0
    %905 = vmatpush1.msra.mxu0 0.0
    %906 = vmatprep.subr.mxu0 0.0
    %907 = vmatpush1.msra.mxu0 0.0
    %908 = vmatprep.subr.mxu0 0.0
    %909 = vmatpush1.msra.mxu0 0.0
    %910 = vmatprep.subr.mxu0 0.0
    %911 = vmatpush1.msra.mxu0 0.0
    %912 = vmatprep.subr.mxu0 0.0
    %913 = vmatpush1.msra.mxu0 0.0
    %914 = vmatprep.subr.mxu0 0.0
    %915 = vmatpush1.msra.mxu0 0.0
    %916 = vmatprep.subr.mxu0 0.0
    %917 = vmatpush1.msra.mxu0 0.0
    %918 = vmatprep.subr.mxu0 0.0
    %919 = vmatpush1.msra.mxu0 0.0
    %920 = vmatprep.subr.mxu0 0.0
    %921 = vmatpush1.msra.mxu0 0.0
    %922 = vmatprep.subr.mxu0 0.0
    %923 = vmatpush1.msra.mxu0 0.0
    %924 = vmatprep.subr.mxu0 0.0
    %925 = vmatpush1.msra.mxu0 0.0
    %926 = vmatprep.subr.mxu0 0.0
    %927 = vmatpush1.msra.mxu0 0.0
    %928 = vmatprep.mubr.f32.mxu0 0.0
    %929 = vmatmul.mubr.f32.gmra.mrb[0].mxu0 %v650
    %v930 = vpop.f32.mrb[0].mxu0
    %v931 = vadd.f32 %v789, %v930
    %v932 = vpop.f32.mrb[0].mxu0
    %v933 = vadd.f32 %v791, %v932
    %934 = vdwg.mxu0
    %v935 = vadd.f32 %v860, %v170
    %v936 = vadd.f32 %v862, %v174
    %v937 = vadd.f32 %v931, %v178
    %v938 = vadd.f32 %v933, %v182
    %v939 = vxor.u32 %v935, 2147483648
    %v940 = vxor.u32 %v936, 2147483648
    %v941 = vxor.u32 %v937, 2147483648
    %v942 = vmul.f32 %v939, 1.442695
    %v943 = vpow.pop %v942
    %v944 = vmul.f32 %v940, 1.442695
    %v945 = vpow.pop %v944
    %v946 = vmul.f32 %v941, 1.442695
    %v947 = vpow.pop %v946
    %v948 = vadd.f32 %v943, 1.0
    %v949 = vadd.f32 %v945, 1.0
    %v950 = vadd.f32 %v947, 1.0
    %v951 = vrcp.pop %v948
    %v952 = vmul.f32 1.0, %v951
    %v953 = vrcp.pop %v949
    %v954 = vmul.f32 1.0, %v953
    %v955 = vrcp.pop %v950
    %v956 = vmul.f32 1.0, %v955
    %v957 = vtanh.pop %v938
    %v958 = vmul.f32 %v954, %v647
    %v959 = vmul.f32 %v952, %v957
    %v960 = vadd.f32 %v958, %v959
    %v961 = vtanh.pop %v960
    %v962 = vmul.f32 %v956, %v961
    %v963 = vld [vmem:[#allocation8] sm:$0xff]
    %v964 = vld [vmem:[#allocation8 + $0x8] sm:$0xff]
    %v965 = vld [vmem:[#allocation8 + $0x10] sm:$0xff]
    %v966 = vld [vmem:[#allocation8 + $0x18] sm:$0xff]
    %v967 = vld [vmem:[#allocation8 + $0x20] sm:$0xff]
    %v968 = vld [vmem:[#allocation8 + $0x28] sm:$0xff]
    %v969 = vld [vmem:[#allocation8 + $0x30] sm:$0xff]
    %v970 = vld [vmem:[#allocation8 + $0x38] sm:$0xff]
    %v971 = vld [vmem:[#allocation8 + $0x40] sm:$0xff]
    %v972 = vld [vmem:[#allocation8 + $0x48] sm:$0xff]
    %v973 = vld [vmem:[#allocation8 + $0x50] sm:$0xff]
    %v974 = vld [vmem:[#allocation8 + $0x58] sm:$0xff]
    %v975 = vld [vmem:[#allocation8 + $0x60] sm:$0xff]
    %v976 = vld [vmem:[#allocation8 + $0x68] sm:$0xff]
    %v977 = vld [vmem:[#allocation8 + $0x70] sm:$0xff]
    %v978 = vld [vmem:[#allocation8 + $0x78] sm:$0xff]
    %v979 = vld [vmem:[#allocation8 + $0x80] sm:$0xff]
    %v980 = vld [vmem:[#allocation8 + $0x88] sm:$0xff]
    %v981 = vld [vmem:[#allocation8 + $0x90] sm:$0xff]
    %v982 = vld [vmem:[#allocation8 + $0x98] sm:$0xff]
    %v983 = vld [vmem:[#allocation8 + $0xa0] sm:$0xff]
    %v984 = vld [vmem:[#allocation8 + $0xa8] sm:$0xff]
    %v985 = vld [vmem:[#allocation8 + $0xb0] sm:$0xff]
    %v986 = vld [vmem:[#allocation8 + $0xb8] sm:$0xff]
    %v987 = vld [vmem:[#allocation8 + $0xc0] sm:$0xff]
    %v988 = vld [vmem:[#allocation8 + $0xc8] sm:$0xff]
    %v989 = vld [vmem:[#allocation8 + $0xd0] sm:$0xff]
    %v990 = vld [vmem:[#allocation8 + $0xd8] sm:$0xff]
    %v991 = vld [vmem:[#allocation8 + $0xe0] sm:$0xff]
    %v992 = vld [vmem:[#allocation8 + $0xe8] sm:$0xff]
    %v993 = vld [vmem:[#allocation8 + $0xf0] sm:$0xff]
    %v994 = vld [vmem:[#allocation8 + $0xf8] sm:$0xff]
    %v995 = vld [vmem:[#allocation8 + $0x100] sm:$0xff]
    %v996 = vld [vmem:[#allocation8 + $0x108] sm:$0xff]
    %v997 = vld [vmem:[#allocation8 + $0x110] sm:$0xff]
    %v998 = vld [vmem:[#allocation8 + $0x118] sm:$0xff]
    %v999 = vld [vmem:[#allocation8 + $0x120] sm:$0xff]
    %v1000 = vld [vmem:[#allocation8 + $0x128] sm:$0xff]
    %v1001 = vld [vmem:[#allocation8 + $0x130] sm:$0xff]
    %v1002 = vld [vmem:[#allocation8 + $0x138] sm:$0xff]
    %v1003 = vld [vmem:[#allocation8 + $0x140] sm:$0xff]
    %v1004 = vld [vmem:[#allocation8 + $0x148] sm:$0xff]
    %v1005 = vld [vmem:[#allocation8 + $0x150] sm:$0xff]
    %v1006 = vld [vmem:[#allocation8 + $0x158] sm:$0xff]
    %v1007 = vld [vmem:[#allocation8 + $0x160] sm:$0xff]
    %v1008 = vld [vmem:[#allocation8 + $0x168] sm:$0xff]
    %v1009 = vld [vmem:[#allocation8 + $0x170] sm:$0xff]
    %v1010 = vld [vmem:[#allocation8 + $0x178] sm:$0xff]
    %v1011 = vld [vmem:[#allocation8 + $0x180] sm:$0xff]
    %v1012 = vld [vmem:[#allocation8 + $0x188] sm:$0xff]
    %v1013 = vld [vmem:[#allocation8 + $0x190] sm:$0xff]
    %v1014 = vld [vmem:[#allocation8 + $0x198] sm:$0xff]
    %v1015 = vld [vmem:[#allocation8 + $0x1a0] sm:$0xff]
    %v1016 = vld [vmem:[#allocation8 + $0x1a8] sm:$0xff]
    %v1017 = vld [vmem:[#allocation8 + $0x1b0] sm:$0xff]
    %v1018 = vld [vmem:[#allocation8 + $0x1b8] sm:$0xff]
    %v1019 = vld [vmem:[#allocation8 + $0x1c0] sm:$0xff]
    %v1020 = vld [vmem:[#allocation8 + $0x1c8] sm:$0xff]
    %v1021 = vld [vmem:[#allocation8 + $0x1d0] sm:$0xff]
    %v1022 = vld [vmem:[#allocation8 + $0x1d8] sm:$0xff]
    %v1023 = vld [vmem:[#allocation8 + $0x1e0] sm:$0xff]
    %v1024 = vld [vmem:[#allocation8 + $0x1e8] sm:$0xff]
    %v1025 = vld [vmem:[#allocation8 + $0x1f0] sm:$0xff]
    %v1026 = vld [vmem:[#allocation8 + $0x1f8] sm:$0xff]
    %v1027 = vld [vmem:[#allocation10] sm:$0xff]
    %v1028 = vld [vmem:[#allocation10 + $0x8] sm:$0xff]
    %v1029 = vld [vmem:[#allocation10 + $0x10] sm:$0xff]
    %v1030 = vld [vmem:[#allocation10 + $0x18] sm:$0xff]
    %v1031 = vld [vmem:[#allocation10 + $0x20] sm:$0xff]
    %v1032 = vld [vmem:[#allocation10 + $0x28] sm:$0xff]
    %v1033 = vld [vmem:[#allocation10 + $0x30] sm:$0xff]
    %v1034 = vld [vmem:[#allocation10 + $0x38] sm:$0xff]
    %v1035 = vld [vmem:[#allocation10 + $0x40] sm:$0xff]
    %v1036 = vld [vmem:[#allocation10 + $0x48] sm:$0xff]
    %v1037 = vld [vmem:[#allocation10 + $0x50] sm:$0xff]
    %v1038 = vld [vmem:[#allocation10 + $0x58] sm:$0xff]
    %v1039 = vld [vmem:[#allocation10 + $0x60] sm:$0xff]
    %v1040 = vld [vmem:[#allocation10 + $0x68] sm:$0xff]
    %v1041 = vld [vmem:[#allocation10 + $0x70] sm:$0xff]
    %v1042 = vld [vmem:[#allocation10 + $0x78] sm:$0xff]
    %v1043 = vld [vmem:[#allocation10 + $0x80] sm:$0xff]
    %v1044 = vld [vmem:[#allocation10 + $0x88] sm:$0xff]
    %v1045 = vld [vmem:[#allocation10 + $0x90] sm:$0xff]
    %v1046 = vld [vmem:[#allocation10 + $0x98] sm:$0xff]
    %v1047 = vld [vmem:[#allocation10 + $0xa0] sm:$0xff]
    %v1048 = vld [vmem:[#allocation10 + $0xa8] sm:$0xff]
    %v1049 = vld [vmem:[#allocation10 + $0xb0] sm:$0xff]
    %v1050 = vld [vmem:[#allocation10 + $0xb8] sm:$0xff]
    %v1051 = vld [vmem:[#allocation10 + $0xc0] sm:$0xff]
    %v1052 = vld [vmem:[#allocation10 + $0xc8] sm:$0xff]
    %v1053 = vld [vmem:[#allocation10 + $0xd0] sm:$0xff]
    %v1054 = vld [vmem:[#allocation10 + $0xd8] sm:$0xff]
    %v1055 = vld [vmem:[#allocation10 + $0xe0] sm:$0xff]
    %v1056 = vld [vmem:[#allocation10 + $0xe8] sm:$0xff]
    %v1057 = vld [vmem:[#allocation10 + $0xf0] sm:$0xff]
    %v1058 = vld [vmem:[#allocation10 + $0xf8] sm:$0xff]
    %v1059 = vld [vmem:[#allocation10 + $0x100] sm:$0xff]
    %v1060 = vld [vmem:[#allocation10 + $0x108] sm:$0xff]
    %v1061 = vld [vmem:[#allocation10 + $0x110] sm:$0xff]
    %v1062 = vld [vmem:[#allocation10 + $0x118] sm:$0xff]
    %v1063 = vld [vmem:[#allocation10 + $0x120] sm:$0xff]
    %v1064 = vld [vmem:[#allocation10 + $0x128] sm:$0xff]
    %v1065 = vld [vmem:[#allocation10 + $0x130] sm:$0xff]
    %v1066 = vld [vmem:[#allocation10 + $0x138] sm:$0xff]
    %v1067 = vld [vmem:[#allocation10 + $0x140] sm:$0xff]
    %v1068 = vld [vmem:[#allocation10 + $0x148] sm:$0xff]
    %v1069 = vld [vmem:[#allocation10 + $0x150] sm:$0xff]
    %v1070 = vld [vmem:[#allocation10 + $0x158] sm:$0xff]
    %v1071 = vld [vmem:[#allocation10 + $0x160] sm:$0xff]
    %v1072 = vld [vmem:[#allocation10 + $0x168] sm:$0xff]
    %v1073 = vld [vmem:[#allocation10 + $0x170] sm:$0xff]
    %v1074 = vld [vmem:[#allocation10 + $0x178] sm:$0xff]
    %v1075 = vld [vmem:[#allocation10 + $0x180] sm:$0xff]
    %v1076 = vld [vmem:[#allocation10 + $0x188] sm:$0xff]
    %v1077 = vld [vmem:[#allocation10 + $0x190] sm:$0xff]
    %v1078 = vld [vmem:[#allocation10 + $0x198] sm:$0xff]
    %v1079 = vld [vmem:[#allocation10 + $0x1a0] sm:$0xff]
    %v1080 = vld [vmem:[#allocation10 + $0x1a8] sm:$0xff]
    %v1081 = vld [vmem:[#allocation10 + $0x1b0] sm:$0xff]
    %v1082 = vld [vmem:[#allocation10 + $0x1b8] sm:$0xff]
    %v1083 = vld [vmem:[#allocation10 + $0x1c0] sm:$0xff]
    %v1084 = vld [vmem:[#allocation10 + $0x1c8] sm:$0xff]
    %v1085 = vld [vmem:[#allocation10 + $0x1d0] sm:$0xff]
    %v1086 = vld [vmem:[#allocation10 + $0x1d8] sm:$0xff]
    %v1087 = vld [vmem:[#allocation10 + $0x1e0] sm:$0xff]
    %v1088 = vld [vmem:[#allocation10 + $0x1e8] sm:$0xff]
    %v1089 = vld [vmem:[#allocation10 + $0x1f0] sm:$0xff]
    %v1090 = vld [vmem:[#allocation10 + $0x1f8] sm:$0xff]
    %1091 = vmatprep.subr.mxu0 %v1028
    %1092 = vmatpush1.msra.mxu0 %v1027
    %1093 = vmatprep.subr.mxu0 %v1032
    %1094 = vmatpush1.msra.mxu0 %v1031
    %1095 = vmatprep.subr.mxu0 %v1036
    %1096 = vmatpush1.msra.mxu0 %v1035
    %1097 = vmatprep.subr.mxu0 %v1040
    %1098 = vmatpush1.msra.mxu0 %v1039
    %1099 = vmatprep.subr.mxu0 %v1044
    %1100 = vmatpush1.msra.mxu0 %v1043
    %1101 = vmatprep.subr.mxu0 %v1048
    %1102 = vmatpush1.msra.mxu0 %v1047
    %1103 = vmatprep.subr.mxu0 %v1052
    %1104 = vmatpush1.msra.mxu0 %v1051
    %1105 = vmatprep.subr.mxu0 %v1056
    %1106 = vmatpush1.msra.mxu0 %v1055
    %1107 = vmatprep.subr.mxu0 %v1060
    %1108 = vmatpush1.msra.mxu0 %v1059
    %1109 = vmatprep.subr.mxu0 %v1064
    %1110 = vmatpush1.msra.mxu0 %v1063
    %1111 = vmatprep.subr.mxu0 %v1068
    %1112 = vmatpush1.msra.mxu0 %v1067
    %1113 = vmatprep.subr.mxu0 %v1072
    %1114 = vmatpush1.msra.mxu0 %v1071
    %1115 = vmatprep.subr.mxu0 %v1076
    %1116 = vmatpush1.msra.mxu0 %v1075
    %1117 = vmatprep.subr.mxu0 %v1080
    %1118 = vmatpush1.msra.mxu0 %v1079
    %1119 = vmatprep.subr.mxu0 %v1084
    %1120 = vmatpush1.msra.mxu0 %v1083
    %1121 = vmatprep.subr.mxu0 %v1088
    %1122 = vmatpush1.msra.mxu0 %v1087
    %1123 = vmatprep.subr.mxu0 0.0
    %1124 = vmatpush1.msra.mxu0 0.0
    %1125 = vmatprep.subr.mxu0 0.0
    %1126 = vmatpush1.msra.mxu0 0.0
    %1127 = vmatprep.subr.mxu0 0.0
    %1128 = vmatpush1.msra.mxu0 0.0
    %1129 = vmatprep.subr.mxu0 0.0
    %1130 = vmatpush1.msra.mxu0 0.0
    %1131 = vmatprep.subr.mxu0 0.0
    %1132 = vmatpush1.msra.mxu0 0.0
    %1133 = vmatprep.subr.mxu0 0.0
    %1134 = vmatpush1.msra.mxu0 0.0
    %1135 = vmatprep.subr.mxu0 0.0
    %1136 = vmatpush1.msra.mxu0 0.0
    %1137 = vmatprep.subr.mxu0 0.0
    %1138 = vmatpush1.msra.mxu0 0.0
    %1139 = vmatprep.subr.mxu0 0.0
    %1140 = vmatpush1.msra.mxu0 0.0
    %1141 = vmatprep.subr.mxu0 0.0
    %1142 = vmatpush1.msra.mxu0 0.0
    %1143 = vmatprep.subr.mxu0 0.0
    %1144 = vmatpush1.msra.mxu0 0.0
    %1145 = vmatprep.subr.mxu0 0.0
    %1146 = vmatpush1.msra.mxu0 0.0
    %1147 = vmatprep.subr.mxu0 0.0
    %1148 = vmatpush1.msra.mxu0 0.0
    %1149 = vmatprep.subr.mxu0 0.0
    %1150 = vmatpush1.msra.mxu0 0.0
    %1151 = vmatprep.subr.mxu0 0.0
    %1152 = vmatpush1.msra.mxu0 0.0
    %1153 = vmatprep.subr.mxu0 0.0
    %1154 = vmatpush1.msra.mxu0 0.0
    %1155 = vmatprep.mubr.f32.mxu0 0.0
    %1156 = vmatmul.mubr.f32.gmra.mrb[0].mxu0 0.0
    %v1157 = vpop.f32.mrb[0].mxu0
    %v1158 = vadd.f32 0.0, %v1157
    %v1159 = vpop.f32.mrb[0].mxu0
    %v1160 = vadd.f32 0.0, %v1159
    %1161 = vdwg.mxu0
    %1162 = vmatprep.subr.mxu0 %v1030
    %1163 = vmatpush1.msra.mxu0 %v1029
    %1164 = vmatprep.subr.mxu0 %v1034
    %1165 = vmatpush1.msra.mxu0 %v1033
    %1166 = vmatprep.subr.mxu0 %v1038
    %1167 = vmatpush1.msra.mxu0 %v1037
    %1168 = vmatprep.subr.mxu0 %v1042
    %1169 = vmatpush1.msra.mxu0 %v1041
    %1170 = vmatprep.subr.mxu0 %v1046
    %1171 = vmatpush1.msra.mxu0 %v1045
    %1172 = vmatprep.subr.mxu0 %v1050
    %1173 = vmatpush1.msra.mxu0 %v1049
    %1174 = vmatprep.subr.mxu0 %v1054
    %1175 = vmatpush1.msra.mxu0 %v1053
    %1176 = vmatprep.subr.mxu0 %v1058
    %1177 = vmatpush1.msra.mxu0 %v1057
    %1178 = vmatprep.subr.mxu0 %v1062
    %1179 = vmatpush1.msra.mxu0 %v1061
    %1180 = vmatprep.subr.mxu0 %v1066
    %1181 = vmatpush1.msra.mxu0 %v1065
    %1182 = vmatprep.subr.mxu0 %v1070
    %1183 = vmatpush1.msra.mxu0 %v1069
    %1184 = vmatprep.subr.mxu0 %v1074
    %1185 = vmatpush1.msra.mxu0 %v1073
    %1186 = vmatprep.subr.mxu0 %v1078
    %1187 = vmatpush1.msra.mxu0 %v1077
    %1188 = vmatprep.subr.mxu0 %v1082
    %1189 = vmatpush1.msra.mxu0 %v1081
    %1190 = vmatprep.subr.mxu0 %v1086
    %1191 = vmatpush1.msra.mxu0 %v1085
    %1192 = vmatprep.subr.mxu0 %v1090
    %1193 = vmatpush1.msra.mxu0 %v1089
    %1194 = vmatprep.subr.mxu0 0.0
    %1195 = vmatpush1.msra.mxu0 0.0
    %1196 = vmatprep.subr.mxu0 0.0
    %1197 = vmatpush1.msra.mxu0 0.0
    %1198 = vmatprep.subr.mxu0 0.0
    %1199 = vmatpush1.msra.mxu0 0.0
    %1200 = vmatprep.subr.mxu0 0.0
    %1201 = vmatpush1.msra.mxu0 0.0
    %1202 = vmatprep.subr.mxu0 0.0
    %1203 = vmatpush1.msra.mxu0 0.0
    %1204 = vmatprep.subr.mxu0 0.0
    %1205 = vmatpush1.msra.mxu0 0.0
    %1206 = vmatprep.subr.mxu0 0.0
    %1207 = vmatpush1.msra.mxu0 0.0
    %1208 = vmatprep.subr.mxu0 0.0
    %1209 = vmatpush1.msra.mxu0 0.0
    %1210 = vmatprep.subr.mxu0 0.0
    %1211 = vmatpush1.msra.mxu0 0.0
    %1212 = vmatprep.subr.mxu0 0.0
    %1213 = vmatpush1.msra.mxu0 0.0
    %1214 = vmatprep.subr.mxu0 0.0
    %1215 = vmatpush1.msra.mxu0 0.0
    %1216 = vmatprep.subr.mxu0 0.0
    %1217 = vmatpush1.msra.mxu0 0.0
    %1218 = vmatprep.subr.mxu0 0.0
    %1219 = vmatpush1.msra.mxu0 0.0
    %1220 = vmatprep.subr.mxu0 0.0
    %1221 = vmatpush1.msra.mxu0 0.0
    %1222 = vmatprep.subr.mxu0 0.0
    %1223 = vmatpush1.msra.mxu0 0.0
    %1224 = vmatprep.subr.mxu0 0.0
    %1225 = vmatpush1.msra.mxu0 0.0
    %1226 = vmatprep.mubr.f32.mxu0 0.0
    %1227 = vmatmul.mubr.f32.gmra.mrb[0].mxu0 0.0
    %v1228 = vpop.f32.mrb[0].mxu0
    %v1229 = vadd.f32 0.0, %v1228
    %v1230 = vpop.f32.mrb[0].mxu0
    %v1231 = vadd.f32 0.0, %v1230
    %1232 = vdwg.mxu0
    %1233 = vmatprep.subr.mxu0 %v964
    %1234 = vmatpush1.msra.mxu0 %v963
    %1235 = vmatprep.subr.mxu0 %v968
    %1236 = vmatpush1.msra.mxu0 %v967
    %1237 = vmatprep.subr.mxu0 %v972
    %1238 = vmatpush1.msra.mxu0 %v971
    %1239 = vmatprep.subr.mxu0 %v976
    %1240 = vmatpush1.msra.mxu0 %v975
    %1241 = vmatprep.subr.mxu0 %v980
    %1242 = vmatpush1.msra.mxu0 %v979
    %1243 = vmatprep.subr.mxu0 %v984
    %1244 = vmatpush1.msra.mxu0 %v983
    %1245 = vmatprep.subr.mxu0 %v988
    %1246 = vmatpush1.msra.mxu0 %v987
    %1247 = vmatprep.subr.mxu0 %v992
    %1248 = vmatpush1.msra.mxu0 %v991
    %1249 = vmatprep.subr.mxu0 %v996
    %1250 = vmatpush1.msra.mxu0 %v995
    %1251 = vmatprep.subr.mxu0 %v1000
    %1252 = vmatpush1.msra.mxu0 %v999
    %1253 = vmatprep.subr.mxu0 %v1004
    %1254 = vmatpush1.msra.mxu0 %v1003
    %1255 = vmatprep.subr.mxu0 %v1008
    %1256 = vmatpush1.msra.mxu0 %v1007
    %1257 = vmatprep.subr.mxu0 %v1012
    %1258 = vmatpush1.msra.mxu0 %v1011
    %1259 = vmatprep.subr.mxu0 %v1016
    %1260 = vmatpush1.msra.mxu0 %v1015
    %1261 = vmatprep.subr.mxu0 %v1020
    %1262 = vmatpush1.msra.mxu0 %v1019
    %1263 = vmatprep.subr.mxu0 %v1024
    %1264 = vmatpush1.msra.mxu0 %v1023
    %1265 = vmatprep.subr.mxu0 0.0
    %1266 = vmatpush1.msra.mxu0 0.0
    %1267 = vmatprep.subr.mxu0 0.0
    %1268 = vmatpush1.msra.mxu0 0.0
    %1269 = vmatprep.subr.mxu0 0.0
    %1270 = vmatpush1.msra.mxu0 0.0
    %1271 = vmatprep.subr.mxu0 0.0
    %1272 = vmatpush1.msra.mxu0 0.0
    %1273 = vmatprep.subr.mxu0 0.0
    %1274 = vmatpush1.msra.mxu0 0.0
    %1275 = vmatprep.subr.mxu0 0.0
    %1276 = vmatpush1.msra.mxu0 0.0
    %1277 = vmatprep.subr.mxu0 0.0
    %1278 = vmatpush1.msra.mxu0 0.0
    %1279 = vmatprep.subr.mxu0 0.0
    %1280 = vmatpush1.msra.mxu0 0.0
    %1281 = vmatprep.subr.mxu0 0.0
    %1282 = vmatpush1.msra.mxu0 0.0
    %1283 = vmatprep.subr.mxu0 0.0
    %1284 = vmatpush1.msra.mxu0 0.0
    %1285 = vmatprep.subr.mxu0 0.0
    %1286 = vmatpush1.msra.mxu0 0.0
    %1287 = vmatprep.subr.mxu0 0.0
    %1288 = vmatpush1.msra.mxu0 0.0
    %1289 = vmatprep.subr.mxu0 0.0
    %1290 = vmatpush1.msra.mxu0 0.0
    %1291 = vmatprep.subr.mxu0 0.0
    %1292 = vmatpush1.msra.mxu0 0.0
    %1293 = vmatprep.subr.mxu0 0.0
    %1294 = vmatpush1.msra.mxu0 0.0
    %1295 = vmatprep.subr.mxu0 0.0
    %1296 = vmatpush1.msra.mxu0 0.0
    %1297 = vmatprep.mubr.f32.mxu0 0.0
    %1298 = vmatmul.mubr.f32.gmra.mrb[0].mxu0 %v649
    %v1299 = vpop.f32.mrb[0].mxu0
    %v1300 = vadd.f32 %v1158, %v1299
    %v1301 = vpop.f32.mrb[0].mxu0
    %v1302 = vadd.f32 %v1160, %v1301
    %1303 = vdwg.mxu0
    %1304 = vmatprep.subr.mxu0 %v966
    %1305 = vmatpush1.msra.mxu0 %v965
    %1306 = vmatprep.subr.mxu0 %v970
    %1307 = vmatpush1.msra.mxu0 %v969
    %1308 = vmatprep.subr.mxu0 %v974
    %1309 = vmatpush1.msra.mxu0 %v973
    %1310 = vmatprep.subr.mxu0 %v978
    %1311 = vmatpush1.msra.mxu0 %v977
    %1312 = vmatprep.subr.mxu0 %v982
    %1313 = vmatpush1.msra.mxu0 %v981
    %1314 = vmatprep.subr.mxu0 %v986
    %1315 = vmatpush1.msra.mxu0 %v985
    %1316 = vmatprep.subr.mxu0 %v990
    %1317 = vmatpush1.msra.mxu0 %v989
    %1318 = vmatprep.subr.mxu0 %v994
    %1319 = vmatpush1.msra.mxu0 %v993
    %1320 = vmatprep.subr.mxu0 %v998
    %1321 = vmatpush1.msra.mxu0 %v997
    %1322 = vmatprep.subr.mxu0 %v1002
    %1323 = vmatpush1.msra.mxu0 %v1001
    %1324 = vmatprep.subr.mxu0 %v1006
    %1325 = vmatpush1.msra.mxu0 %v1005
    %1326 = vmatprep.subr.mxu0 %v1010
    %1327 = vmatpush1.msra.mxu0 %v1009
    %1328 = vmatprep.subr.mxu0 %v1014
    %1329 = vmatpush1.msra.mxu0 %v1013
    %1330 = vmatprep.subr.mxu0 %v1018
    %1331 = vmatpush1.msra.mxu0 %v1017
    %1332 = vmatprep.subr.mxu0 %v1022
    %1333 = vmatpush1.msra.mxu0 %v1021
    %1334 = vmatprep.subr.mxu0 %v1026
    %1335 = vmatpush1.msra.mxu0 %v1025
    %1336 = vmatprep.subr.mxu0 0.0
    %1337 = vmatpush1.msra.mxu0 0.0
    %1338 = vmatprep.subr.mxu0 0.0
    %1339 = vmatpush1.msra.mxu0 0.0
    %1340 = vmatprep.subr.mxu0 0.0
    %1341 = vmatpush1.msra.mxu0 0.0
    %1342 = vmatprep.subr.mxu0 0.0
    %1343 = vmatpush1.msra.mxu0 0.0
    %1344 = vmatprep.subr.mxu0 0.0
    %1345 = vmatpush1.msra.mxu0 0.0
    %1346 = vmatprep.subr.mxu0 0.0
    %1347 = vmatpush1.msra.mxu0 0.0
    %1348 = vmatprep.subr.mxu0 0.0
    %1349 = vmatpush1.msra.mxu0 0.0
    %1350 = vmatprep.subr.mxu0 0.0
    %1351 = vmatpush1.msra.mxu0 0.0
    %1352 = vmatprep.subr.mxu0 0.0
    %1353 = vmatpush1.msra.mxu0 0.0
    %1354 = vmatprep.subr.mxu0 0.0
    %1355 = vmatpush1.msra.mxu0 0.0
    %1356 = vmatprep.subr.mxu0 0.0
    %1357 = vmatpush1.msra.mxu0 0.0
    %1358 = vmatprep.subr.mxu0 0.0
    %1359 = vmatpush1.msra.mxu0 0.0
    %1360 = vmatprep.subr.mxu0 0.0
    %1361 = vmatpush1.msra.mxu0 0.0
    %1362 = vmatprep.subr.mxu0 0.0
    %1363 = vmatpush1.msra.mxu0 0.0
    %1364 = vmatprep.subr.mxu0 0.0
    %1365 = vmatpush1.msra.mxu0 0.0
    %1366 = vmatprep.subr.mxu0 0.0
    %1367 = vmatpush1.msra.mxu0 0.0
    %1368 = vmatprep.mubr.f32.mxu0 0.0
    %1369 = vmatmul.mubr.f32.gmra.mrb[0].mxu0 %v649
    %v1370 = vpop.f32.mrb[0].mxu0
    %v1371 = vadd.f32 %v1229, %v1370
    %v1372 = vpop.f32.mrb[0].mxu0
    %v1373 = vadd.f32 %v1231, %v1372
    %1374 = vdwg.mxu0
    %v1375 = vadd.f32 %v1300, %v192
    %v1376 = vadd.f32 %v1302, %v196
    %v1377 = vadd.f32 %v1371, %v200
    %v1378 = vadd.f32 %v1373, %v204
    %v1379 = vxor.u32 %v1375, 2147483648
    %v1380 = vxor.u32 %v1376, 2147483648
    %v1381 = vxor.u32 %v1377, 2147483648
    %v1382 = vmul.f32 %v1379, 1.442695
    %v1383 = vpow.pop %v1382
    %v1384 = vmul.f32 %v1380, 1.442695
    %v1385 = vpow.pop %v1384
    %v1386 = vmul.f32 %v1381, 1.442695
    %v1387 = vpow.pop %v1386
    %v1388 = vadd.f32 %v1383, 1.0
    %v1389 = vadd.f32 %v1385, 1.0
    %v1390 = vadd.f32 %v1387, 1.0
    %v1391 = vrcp.pop %v1388
    %v1392 = vmul.f32 1.0, %v1391
    %v1393 = vrcp.pop %v1389
    %v1394 = vmul.f32 1.0, %v1393
    %v1395 = vrcp.pop %v1390
    %v1396 = vmul.f32 1.0, %v1395
    %v1397 = vtanh.pop %v1378
    %v1398 = vmul.f32 %v1394, 0.0
    %v1399 = vmul.f32 %v1392, %v1397
    %v1400 = vadd.f32 %v1398, %v1399
    %v1401 = vtanh.pop %v1400
    %v1402 = vmul.f32 %v1396, %v1401
    %v1403 = vld [vmem:[#allocation2 + $0x10] sm:$0xff]
    %1404 = vmatprep.subr.mxu0 %v275
    %1405 = vmatpush1.msra.mxu0 %v274
    %1406 = vmatprep.subr.mxu0 %v279
    %1407 = vmatpush1.msra.mxu0 %v278
    %1408 = vmatprep.subr.mxu0 %v283
    %1409 = vmatpush1.msra.mxu0 %v282
    %1410 = vmatprep.subr.mxu0 %v287
    %1411 = vmatpush1.msra.mxu0 %v286
    %1412 = vmatprep.subr.mxu0 %v291
    %1413 = vmatpush1.msra.mxu0 %v290
    %1414 = vmatprep.subr.mxu0 %v295
    %1415 = vmatpush1.msra.mxu0 %v294
    %1416 = vmatprep.subr.mxu0 %v299
    %1417 = vmatpush1.msra.mxu0 %v298
    %1418 = vmatprep.subr.mxu0 %v303
    %1419 = vmatpush1.msra.mxu0 %v302
    %1420 = vmatprep.subr.mxu0 %v307
    %1421 = vmatpush1.msra.mxu0 %v306
    %1422 = vmatprep.subr.mxu0 %v311
    %1423 = vmatpush1.msra.mxu0 %v310
    %1424 = vmatprep.subr.mxu0 %v315
    %1425 = vmatpush1.msra.mxu0 %v314
    %1426 = vmatprep.subr.mxu0 %v319
    %1427 = vmatpush1.msra.mxu0 %v318
    %1428 = vmatprep.subr.mxu0 %v323
    %1429 = vmatpush1.msra.mxu0 %v322
    %1430 = vmatprep.subr.mxu0 %v327
    %1431 = vmatpush1.msra.mxu0 %v326
    %1432 = vmatprep.subr.mxu0 %v331
    %1433 = vmatpush1.msra.mxu0 %v330
    %1434 = vmatprep.subr.mxu0 %v335
    %1435 = vmatpush1.msra.mxu0 %v334
    %1436 = vmatprep.subr.mxu0 0.0
    %1437 = vmatpush1.msra.mxu0 0.0
    %1438 = vmatprep.subr.mxu0 0.0
    %1439 = vmatpush1.msra.mxu0 0.0
    %1440 = vmatprep.subr.mxu0 0.0
    %1441 = vmatpush1.msra.mxu0 0.0
    %1442 = vmatprep.subr.mxu0 0.0
    %1443 = vmatpush1.msra.mxu0 0.0
    %1444 = vmatprep.subr.mxu0 0.0
    %1445 = vmatpush1.msra.mxu0 0.0
    %1446 = vmatprep.subr.mxu0 0.0
    %1447 = vmatpush1.msra.mxu0 0.0
    %1448 = vmatprep.subr.mxu0 0.0
    %1449 = vmatpush1.msra.mxu0 0.0
    %1450 = vmatprep.subr.mxu0 0.0
    %1451 = vmatpush1.msra.mxu0 0.0
    %1452 = vmatprep.subr.mxu0 0.0
    %1453 = vmatpush1.msra.mxu0 0.0
    %1454 = vmatprep.subr.mxu0 0.0
    %1455 = vmatpush1.msra.mxu0 0.0
    %1456 = vmatprep.subr.mxu0 0.0
    %1457 = vmatpush1.msra.mxu0 0.0
    %1458 = vmatprep.subr.mxu0 0.0
    %1459 = vmatpush1.msra.mxu0 0.0
    %1460 = vmatprep.subr.mxu0 0.0
    %1461 = vmatpush1.msra.mxu0 0.0
    %1462 = vmatprep.subr.mxu0 0.0
    %1463 = vmatpush1.msra.mxu0 0.0
    %1464 = vmatprep.subr.mxu0 0.0
    %1465 = vmatpush1.msra.mxu0 0.0
    %1466 = vmatprep.subr.mxu0 0.0
    %1467 = vmatpush1.msra.mxu0 0.0
    %1468 = vmatprep.mubr.f32.mxu0 0.0
    %1469 = vmatmul.mubr.f32.gmra.mrb[0].mxu0 %v962
    %v1470 = vpop.f32.mrb[0].mxu0
    %v1471 = vadd.f32 0.0, %v1470
    %v1472 = vpop.f32.mrb[0].mxu0
    %v1473 = vadd.f32 0.0, %v1472
    %1474 = vdwg.mxu0
    %1475 = vmatprep.subr.mxu0 %v277
    %1476 = vmatpush1.msra.mxu0 %v276
    %1477 = vmatprep.subr.mxu0 %v281
    %1478 = vmatpush1.msra.mxu0 %v280
    %1479 = vmatprep.subr.mxu0 %v285
    %1480 = vmatpush1.msra.mxu0 %v284
    %1481 = vmatprep.subr.mxu0 %v289
    %1482 = vmatpush1.msra.mxu0 %v288
    %1483 = vmatprep.subr.mxu0 %v293
    %1484 = vmatpush1.msra.mxu0 %v292
    %1485 = vmatprep.subr.mxu0 %v297
    %1486 = vmatpush1.msra.mxu0 %v296
    %1487 = vmatprep.subr.mxu0 %v301
    %1488 = vmatpush1.msra.mxu0 %v300
    %1489 = vmatprep.subr.mxu0 %v305
    %1490 = vmatpush1.msra.mxu0 %v304
    %1491 = vmatprep.subr.mxu0 %v309
    %1492 = vmatpush1.msra.mxu0 %v308
    %1493 = vmatprep.subr.mxu0 %v313
    %1494 = vmatpush1.msra.mxu0 %v312
    %1495 = vmatprep.subr.mxu0 %v317
    %1496 = vmatpush1.msra.mxu0 %v316
    %1497 = vmatprep.subr.mxu0 %v321
    %1498 = vmatpush1.msra.mxu0 %v320
    %1499 = vmatprep.subr.mxu0 %v325
    %1500 = vmatpush1.msra.mxu0 %v324
    %1501 = vmatprep.subr.mxu0 %v329
    %1502 = vmatpush1.msra.mxu0 %v328
    %1503 = vmatprep.subr.mxu0 %v333
    %1504 = vmatpush1.msra.mxu0 %v332
    %1505 = vmatprep.subr.mxu0 %v337
    %1506 = vmatpush1.msra.mxu0 %v336
    %1507 = vmatprep.subr.mxu0 0.0
    %1508 = vmatpush1.msra.mxu0 0.0
    %1509 = vmatprep.subr.mxu0 0.0
    %1510 = vmatpush1.msra.mxu0 0.0
    %1511 = vmatprep.subr.mxu0 0.0
    %1512 = vmatpush1.msra.mxu0 0.0
    %1513 = vmatprep.subr.mxu0 0.0
    %1514 = vmatpush1.msra.mxu0 0.0
    %1515 = vmatprep.subr.mxu0 0.0
    %1516 = vmatpush1.msra.mxu0 0.0
    %1517 = vmatprep.subr.mxu0 0.0
    %1518 = vmatpush1.msra.mxu0 0.0
    %1519 = vmatprep.subr.mxu0 0.0
    %1520 = vmatpush1.msra.mxu0 0.0
    %1521 = vmatprep.subr.mxu0 0.0
    %1522 = vmatpush1.msra.mxu0 0.0
    %1523 = vmatprep.subr.mxu0 0.0
    %1524 = vmatpush1.msra.mxu0 0.0
    %1525 = vmatprep.subr.mxu0 0.0
    %1526 = vmatpush1.msra.mxu0 0.0
    %1527 = vmatprep.subr.mxu0 0.0
    %1528 = vmatpush1.msra.mxu0 0.0
    %1529 = vmatprep.subr.mxu0 0.0
    %1530 = vmatpush1.msra.mxu0 0.0
    %1531 = vmatprep.subr.mxu0 0.0
    %1532 = vmatpush1.msra.mxu0 0.0
    %1533 = vmatprep.subr.mxu0 0.0
    %1534 = vmatpush1.msra.mxu0 0.0
    %1535 = vmatprep.subr.mxu0 0.0
    %1536 = vmatpush1.msra.mxu0 0.0
    %1537 = vmatprep.subr.mxu0 0.0
    %1538 = vmatpush1.msra.mxu0 0.0
    %1539 = vmatprep.mubr.f32.mxu0 0.0
    %1540 = vmatmul.mubr.f32.gmra.mrb[0].mxu0 %v962
    %v1541 = vpop.f32.mrb[0].mxu0
    %v1542 = vadd.f32 0.0, %v1541
    %v1543 = vpop.f32.mrb[0].mxu0
    %v1544 = vadd.f32 0.0, %v1543
    %1545 = vdwg.mxu0
    %1546 = vmatprep.subr.mxu0 %v211
    %1547 = vmatpush1.msra.mxu0 %v210
    %1548 = vmatprep.subr.mxu0 %v215
    %1549 = vmatpush1.msra.mxu0 %v214
    %1550 = vmatprep.subr.mxu0 %v219
    %1551 = vmatpush1.msra.mxu0 %v218
    %1552 = vmatprep.subr.mxu0 %v223
    %1553 = vmatpush1.msra.mxu0 %v222
    %1554 = vmatprep.subr.mxu0 %v227
    %1555 = vmatpush1.msra.mxu0 %v226
    %1556 = vmatprep.subr.mxu0 %v231
    %1557 = vmatpush1.msra.mxu0 %v230
    %1558 = vmatprep.subr.mxu0 %v235
    %1559 = vmatpush1.msra.mxu0 %v234
    %1560 = vmatprep.subr.mxu0 %v239
    %1561 = vmatpush1.msra.mxu0 %v238
    %1562 = vmatprep.subr.mxu0 %v243
    %1563 = vmatpush1.msra.mxu0 %v242
    %1564 = vmatprep.subr.mxu0 %v247
    %1565 = vmatpush1.msra.mxu0 %v246
    %1566 = vmatprep.subr.mxu0 %v251
    %1567 = vmatpush1.msra.mxu0 %v250
    %1568 = vmatprep.subr.mxu0 %v255
    %1569 = vmatpush1.msra.mxu0 %v254
    %1570 = vmatprep.subr.mxu0 %v259
    %1571 = vmatpush1.msra.mxu0 %v258
    %1572 = vmatprep.subr.mxu0 %v263
    %1573 = vmatpush1.msra.mxu0 %v262
    %1574 = vmatprep.subr.mxu0 %v267
    %1575 = vmatpush1.msra.mxu0 %v266
    %1576 = vmatprep.subr.mxu0 %v271
    %1577 = vmatpush1.msra.mxu0 %v270
    %1578 = vmatprep.subr.mxu0 0.0
    %1579 = vmatpush1.msra.mxu0 0.0
    %1580 = vmatprep.subr.mxu0 0.0
    %1581 = vmatpush1.msra.mxu0 0.0
    %1582 = vmatprep.subr.mxu0 0.0
    %1583 = vmatpush1.msra.mxu0 0.0
    %1584 = vmatprep.subr.mxu0 0.0
    %1585 = vmatpush1.msra.mxu0 0.0
    %1586 = vmatprep.subr.mxu0 0.0
    %1587 = vmatpush1.msra.mxu0 0.0
    %1588 = vmatprep.subr.mxu0 0.0
    %1589 = vmatpush1.msra.mxu0 0.0
    %1590 = vmatprep.subr.mxu0 0.0
    %1591 = vmatpush1.msra.mxu0 0.0
    %1592 = vmatprep.subr.mxu0 0.0
    %1593 = vmatpush1.msra.mxu0 0.0
    %1594 = vmatprep.subr.mxu0 0.0
    %1595 = vmatpush1.msra.mxu0 0.0
    %1596 = vmatprep.subr.mxu0 0.0
    %1597 = vmatpush1.msra.mxu0 0.0
    %1598 = vmatprep.subr.mxu0 0.0
    %1599 = vmatpush1.msra.mxu0 0.0
    %1600 = vmatprep.subr.mxu0 0.0
    %1601 = vmatpush1.msra.mxu0 0.0
    %1602 = vmatprep.subr.mxu0 0.0
    %1603 = vmatpush1.msra.mxu0 0.0
    %1604 = vmatprep.subr.mxu0 0.0
    %1605 = vmatpush1.msra.mxu0 0.0
    %1606 = vmatprep.subr.mxu0 0.0
    %1607 = vmatpush1.msra.mxu0 0.0
    %1608 = vmatprep.subr.mxu0 0.0
    %1609 = vmatpush1.msra.mxu0 0.0
    %1610 = vmatprep.mubr.f32.mxu0 0.0
    %1611 = vmatmul.mubr.f32.gmra.mrb[0].mxu0 %v1403
    %v1612 = vpop.f32.mrb[0].mxu0
    %v1613 = vadd.f32 %v1471, %v1612
    %v1614 = vpop.f32.mrb[0].mxu0
    %v1615 = vadd.f32 %v1473, %v1614
    %1616 = vdwg.mxu0
    %1617 = vmatprep.subr.mxu0 %v213
    %1618 = vmatpush1.msra.mxu0 %v212
    %1619 = vmatprep.subr.mxu0 %v217
    %1620 = vmatpush1.msra.mxu0 %v216
    %1621 = vmatprep.subr.mxu0 %v221
    %1622 = vmatpush1.msra.mxu0 %v220
    %1623 = vmatprep.subr.mxu0 %v225
    %1624 = vmatpush1.msra.mxu0 %v224
    %1625 = vmatprep.subr.mxu0 %v229
    %1626 = vmatpush1.msra.mxu0 %v228
    %1627 = vmatprep.subr.mxu0 %v233
    %1628 = vmatpush1.msra.mxu0 %v232
    %1629 = vmatprep.subr.mxu0 %v237
    %1630 = vmatpush1.msra.mxu0 %v236
    %1631 = vmatprep.subr.mxu0 %v241
    %1632 = vmatpush1.msra.mxu0 %v240
    %1633 = vmatprep.subr.mxu0 %v245
    %1634 = vmatpush1.msra.mxu0 %v244
    %1635 = vmatprep.subr.mxu0 %v249
    %1636 = vmatpush1.msra.mxu0 %v248
    %1637 = vmatprep.subr.mxu0 %v253
    %1638 = vmatpush1.msra.mxu0 %v252
    %1639 = vmatprep.subr.mxu0 %v257
    %1640 = vmatpush1.msra.mxu0 %v256
    %1641 = vmatprep.subr.mxu0 %v261
    %1642 = vmatpush1.msra.mxu0 %v260
    %1643 = vmatprep.subr.mxu0 %v265
    %1644 = vmatpush1.msra.mxu0 %v264
    %1645 = vmatprep.subr.mxu0 %v269
    %1646 = vmatpush1.msra.mxu0 %v268
    %1647 = vmatprep.subr.mxu0 %v273
    %1648 = vmatpush1.msra.mxu0 %v272
    %1649 = vmatprep.subr.mxu0 0.0
    %1650 = vmatpush1.msra.mxu0 0.0
    %1651 = vmatprep.subr.mxu0 0.0
    %1652 = vmatpush1.msra.mxu0 0.0
    %1653 = vmatprep.subr.mxu0 0.0
    %1654 = vmatpush1.msra.mxu0 0.0
    %1655 = vmatprep.subr.mxu0 0.0
    %1656 = vmatpush1.msra.mxu0 0.0
    %1657 = vmatprep.subr.mxu0 0.0
    %1658 = vmatpush1.msra.mxu0 0.0
    %1659 = vmatprep.subr.mxu0 0.0
    %1660 = vmatpush1.msra.mxu0 0.0
    %1661 = vmatprep.subr.mxu0 0.0
    %1662 = vmatpush1.msra.mxu0 0.0
    %1663 = vmatprep.subr.mxu0 0.0
    %1664 = vmatpush1.msra.mxu0 0.0
    %1665 = vmatprep.subr.mxu0 0.0
    %1666 = vmatpush1.msra.mxu0 0.0
    %1667 = vmatprep.subr.mxu0 0.0
    %1668 = vmatpush1.msra.mxu0 0.0
    %1669 = vmatprep.subr.mxu0 0.0
    %1670 = vmatpush1.msra.mxu0 0.0
    %1671 = vmatprep.subr.mxu0 0.0
    %1672 = vmatpush1.msra.mxu0 0.0
    %1673 = vmatprep.subr.mxu0 0.0
    %1674 = vmatpush1.msra.mxu0 0.0
    %1675 = vmatprep.subr.mxu0 0.0
    %1676 = vmatpush1.msra.mxu0 0.0
    %1677 = vmatprep.subr.mxu0 0.0
    %1678 = vmatpush1.msra.mxu0 0.0
    %1679 = vmatprep.subr.mxu0 0.0
    %1680 = vmatpush1.msra.mxu0 0.0
    %1681 = vmatprep.mubr.f32.mxu0 0.0
    %1682 = vmatmul.mubr.f32.gmra.mrb[0].mxu0 %v1403
    %v1683 = vpop.f32.mrb[0].mxu0
    %v1684 = vadd.f32 %v1542, %v1683
    %v1685 = vpop.f32.mrb[0].mxu0
    %v1686 = vadd.f32 %v1544, %v1685
    %1687 = vdwg.mxu0
    %v1688 = vadd.f32 %v1613, %v170
    %v1689 = vadd.f32 %v1615, %v174
    %v1690 = vadd.f32 %v1684, %v178
    %v1691 = vadd.f32 %v1686, %v182
    %v1692 = vxor.u32 %v1688, 2147483648
    %v1693 = vxor.u32 %v1689, 2147483648
    %v1694 = vxor.u32 %v1690, 2147483648
    %v1695 = vmul.f32 %v1692, 1.442695
    %v1696 = vpow.pop %v1695
    %v1697 = vmul.f32 %v1693, 1.442695
    %v1698 = vpow.pop %v1697
    %v1699 = vmul.f32 %v1694, 1.442695
    %v1700 = vpow.pop %v1699
    %v1701 = vadd.f32 %v1696, 1.0
    %v1702 = vadd.f32 %v1698, 1.0
    %v1703 = vadd.f32 %v1700, 1.0
    %v1704 = vrcp.pop %v1701
    %v1705 = vmul.f32 1.0, %v1704
    %v1706 = vrcp.pop %v1702
    %v1707 = vmul.f32 1.0, %v1706
    %v1708 = vrcp.pop %v1703
    %v1709 = vmul.f32 1.0, %v1708
    %v1710 = vtanh.pop %v1691
    %v1711 = vmul.f32 %v1707, %v960
    %v1712 = vmul.f32 %v1705, %v1710
    %v1713 = vadd.f32 %v1711, %v1712
    %v1714 = vtanh.pop %v1713
    %v1715 = vmul.f32 %v1709, %v1714
    %1716 = vmatprep.subr.mxu0 %v1028
    %1717 = vmatpush1.msra.mxu0 %v1027
    %1718 = vmatprep.subr.mxu0 %v1032
    %1719 = vmatpush1.msra.mxu0 %v1031
    %1720 = vmatprep.subr.mxu0 %v1036
    %1721 = vmatpush1.msra.mxu0 %v1035
    %1722 = vmatprep.subr.mxu0 %v1040
    %1723 = vmatpush1.msra.mxu0 %v1039
    %1724 = vmatprep.subr.mxu0 %v1044
    %1725 = vmatpush1.msra.mxu0 %v1043
    %1726 = vmatprep.subr.mxu0 %v1048
    %1727 = vmatpush1.msra.mxu0 %v1047
    %1728 = vmatprep.subr.mxu0 %v1052
    %1729 = vmatpush1.msra.mxu0 %v1051
    %1730 = vmatprep.subr.mxu0 %v1056
    %1731 = vmatpush1.msra.mxu0 %v1055
    %1732 = vmatprep.subr.mxu0 %v1060
    %1733 = vmatpush1.msra.mxu0 %v1059
    %1734 = vmatprep.subr.mxu0 %v1064
    %1735 = vmatpush1.msra.mxu0 %v1063
    %1736 = vmatprep.subr.mxu0 %v1068
    %1737 = vmatpush1.msra.mxu0 %v1067
    %1738 = vmatprep.subr.mxu0 %v1072
    %1739 = vmatpush1.msra.mxu0 %v1071
    %1740 = vmatprep.subr.mxu0 %v1076
    %1741 = vmatpush1.msra.mxu0 %v1075
    %1742 = vmatprep.subr.mxu0 %v1080
    %1743 = vmatpush1.msra.mxu0 %v1079
    %1744 = vmatprep.subr.mxu0 %v1084
    %1745 = vmatpush1.msra.mxu0 %v1083
    %1746 = vmatprep.subr.mxu0 %v1088
    %1747 = vmatpush1.msra.mxu0 %v1087
    %1748 = vmatprep.subr.mxu0 0.0
    %1749 = vmatpush1.msra.mxu0 0.0
    %1750 = vmatprep.subr.mxu0 0.0
    %1751 = vmatpush1.msra.mxu0 0.0
    %1752 = vmatprep.subr.mxu0 0.0
    %1753 = vmatpush1.msra.mxu0 0.0
    %1754 = vmatprep.subr.mxu0 0.0
    %1755 = vmatpush1.msra.mxu0 0.0
    %1756 = vmatprep.subr.mxu0 0.0
    %1757 = vmatpush1.msra.mxu0 0.0
    %1758 = vmatprep.subr.mxu0 0.0
    %1759 = vmatpush1.msra.mxu0 0.0
    %1760 = vmatprep.subr.mxu0 0.0
    %1761 = vmatpush1.msra.mxu0 0.0
    %1762 = vmatprep.subr.mxu0 0.0
    %1763 = vmatpush1.msra.mxu0 0.0
    %1764 = vmatprep.subr.mxu0 0.0
    %1765 = vmatpush1.msra.mxu0 0.0
    %1766 = vmatprep.subr.mxu0 0.0
    %1767 = vmatpush1.msra.mxu0 0.0
    %1768 = vmatprep.subr.mxu0 0.0
    %1769 = vmatpush1.msra.mxu0 0.0
    %1770 = vmatprep.subr.mxu0 0.0
    %1771 = vmatpush1.msra.mxu0 0.0
    %1772 = vmatprep.subr.mxu0 0.0
    %1773 = vmatpush1.msra.mxu0 0.0
    %1774 = vmatprep.subr.mxu0 0.0
    %1775 = vmatpush1.msra.mxu0 0.0
    %1776 = vmatprep.subr.mxu0 0.0
    %1777 = vmatpush1.msra.mxu0 0.0
    %1778 = vmatprep.subr.mxu0 0.0
    %1779 = vmatpush1.msra.mxu0 0.0
    %1780 = vmatprep.mubr.f32.mxu0 0.0
    %1781 = vmatmul.mubr.f32.gmra.mrb[0].mxu0 %v1402
    %v1782 = vpop.f32.mrb[0].mxu0
    %v1783 = vadd.f32 0.0, %v1782
    %v1784 = vpop.f32.mrb[0].mxu0
    %v1785 = vadd.f32 0.0, %v1784
    %1786 = vdwg.mxu0
    %1787 = vmatprep.subr.mxu0 %v1030
    %1788 = vmatpush1.msra.mxu0 %v1029
    %1789 = vmatprep.subr.mxu0 %v1034
    %1790 = vmatpush1.msra.mxu0 %v1033
    %1791 = vmatprep.subr.mxu0 %v1038
    %1792 = vmatpush1.msra.mxu0 %v1037
    %1793 = vmatprep.subr.mxu0 %v1042
    %1794 = vmatpush1.msra.mxu0 %v1041
    %1795 = vmatprep.subr.mxu0 %v1046
    %1796 = vmatpush1.msra.mxu0 %v1045
    %1797 = vmatprep.subr.mxu0 %v1050
    %1798 = vmatpush1.msra.mxu0 %v1049
    %1799 = vmatprep.subr.mxu0 %v1054
    %1800 = vmatpush1.msra.mxu0 %v1053
    %1801 = vmatprep.subr.mxu0 %v1058
    %1802 = vmatpush1.msra.mxu0 %v1057
    %1803 = vmatprep.subr.mxu0 %v1062
    %1804 = vmatpush1.msra.mxu0 %v1061
    %1805 = vmatprep.subr.mxu0 %v1066
    %1806 = vmatpush1.msra.mxu0 %v1065
    %1807 = vmatprep.subr.mxu0 %v1070
    %1808 = vmatpush1.msra.mxu0 %v1069
    %1809 = vmatprep.subr.mxu0 %v1074
    %1810 = vmatpush1.msra.mxu0 %v1073
    %1811 = vmatprep.subr.mxu0 %v1078
    %1812 = vmatpush1.msra.mxu0 %v1077
    %1813 = vmatprep.subr.mxu0 %v1082
    %1814 = vmatpush1.msra.mxu0 %v1081
    %1815 = vmatprep.subr.mxu0 %v1086
    %1816 = vmatpush1.msra.mxu0 %v1085
    %1817 = vmatprep.subr.mxu0 %v1090
    %1818 = vmatpush1.msra.mxu0 %v1089
    %1819 = vmatprep.subr.mxu0 0.0
    %1820 = vmatpush1.msra.mxu0 0.0
    %1821 = vmatprep.subr.mxu0 0.0
    %1822 = vmatpush1.msra.mxu0 0.0
    %1823 = vmatprep.subr.mxu0 0.0
    %1824 = vmatpush1.msra.mxu0 0.0
    %1825 = vmatprep.subr.mxu0 0.0
    %1826 = vmatpush1.msra.mxu0 0.0
    %1827 = vmatprep.subr.mxu0 0.0
    %1828 = vmatpush1.msra.mxu0 0.0
    %1829 = vmatprep.subr.mxu0 0.0
    %1830 = vmatpush1.msra.mxu0 0.0
    %1831 = vmatprep.subr.mxu0 0.0
    %1832 = vmatpush1.msra.mxu0 0.0
    %1833 = vmatprep.subr.mxu0 0.0
    %1834 = vmatpush1.msra.mxu0 0.0
    %1835 = vmatprep.subr.mxu0 0.0
    %1836 = vmatpush1.msra.mxu0 0.0
    %1837 = vmatprep.subr.mxu0 0.0
    %1838 = vmatpush1.msra.mxu0 0.0
    %1839 = vmatprep.subr.mxu0 0.0
    %1840 = vmatpush1.msra.mxu0 0.0
    %1841 = vmatprep.subr.mxu0 0.0
    %1842 = vmatpush1.msra.mxu0 0.0
    %1843 = vmatprep.subr.mxu0 0.0
    %1844 = vmatpush1.msra.mxu0 0.0
    %1845 = vmatprep.subr.mxu0 0.0
    %1846 = vmatpush1.msra.mxu0 0.0
    %1847 = vmatprep.subr.mxu0 0.0
    %1848 = vmatpush1.msra.mxu0 0.0
    %1849 = vmatprep.subr.mxu0 0.0
    %1850 = vmatpush1.msra.mxu0 0.0
    %1851 = vmatprep.mubr.f32.mxu0 0.0
    %1852 = vmatmul.mubr.f32.gmra.mrb[0].mxu0 %v1402
    %v1853 = vpop.f32.mrb[0].mxu0
    %v1854 = vadd.f32 0.0, %v1853
    %v1855 = vpop.f32.mrb[0].mxu0
    %v1856 = vadd.f32 0.0, %v1855
    %1857 = vdwg.mxu0
    %1858 = vmatprep.subr.mxu0 %v964
    %1859 = vmatpush1.msra.mxu0 %v963
    %1860 = vmatprep.subr.mxu0 %v968
    %1861 = vmatpush1.msra.mxu0 %v967
    %1862 = vmatprep.subr.mxu0 %v972
    %1863 = vmatpush1.msra.mxu0 %v971
    %1864 = vmatprep.subr.mxu0 %v976
    %1865 = vmatpush1.msra.mxu0 %v975
    %1866 = vmatprep.subr.mxu0 %v980
    %1867 = vmatpush1.msra.mxu0 %v979
    %1868 = vmatprep.subr.mxu0 %v984
    %1869 = vmatpush1.msra.mxu0 %v983
    %1870 = vmatprep.subr.mxu0 %v988
    %1871 = vmatpush1.msra.mxu0 %v987
    %1872 = vmatprep.subr.mxu0 %v992
    %1873 = vmatpush1.msra.mxu0 %v991
    %1874 = vmatprep.subr.mxu0 %v996
    %1875 = vmatpush1.msra.mxu0 %v995
    %1876 = vmatprep.subr.mxu0 %v1000
    %1877 = vmatpush1.msra.mxu0 %v999
    %1878 = vmatprep.subr.mxu0 %v1004
    %1879 = vmatpush1.msra.mxu0 %v1003
    %1880 = vmatprep.subr.mxu0 %v1008
    %1881 = vmatpush1.msra.mxu0 %v1007
    %1882 = vmatprep.subr.mxu0 %v1012
    %1883 = vmatpush1.msra.mxu0 %v1011
    %1884 = vmatprep.subr.mxu0 %v1016
    %1885 = vmatpush1.msra.mxu0 %v1015
    %1886 = vmatprep.subr.mxu0 %v1020
    %1887 = vmatpush1.msra.mxu0 %v1019
    %1888 = vmatprep.subr.mxu0 %v1024
    %1889 = vmatpush1.msra.mxu0 %v1023
    %1890 = vmatprep.subr.mxu0 0.0
    %1891 = vmatpush1.msra.mxu0 0.0
    %1892 = vmatprep.subr.mxu0 0.0
    %1893 = vmatpush1.msra.mxu0 0.0
    %1894 = vmatprep.subr.mxu0 0.0
    %1895 = vmatpush1.msra.mxu0 0.0
    %1896 = vmatprep.subr.mxu0 0.0
    %1897 = vmatpush1.msra.mxu0 0.0
    %1898 = vmatprep.subr.mxu0 0.0
    %1899 = vmatpush1.msra.mxu0 0.0
    %1900 = vmatprep.subr.mxu0 0.0
    %1901 = vmatpush1.msra.mxu0 0.0
    %1902 = vmatprep.subr.mxu0 0.0
    %1903 = vmatpush1.msra.mxu0 0.0
    %1904 = vmatprep.subr.mxu0 0.0
    %1905 = vmatpush1.msra.mxu0 0.0
    %1906 = vmatprep.subr.mxu0 0.0
    %1907 = vmatpush1.msra.mxu0 0.0
    %1908 = vmatprep.subr.mxu0 0.0
    %1909 = vmatpush1.msra.mxu0 0.0
    %1910 = vmatprep.subr.mxu0 0.0
    %1911 = vmatpush1.msra.mxu0 0.0
    %1912 = vmatprep.subr.mxu0 0.0
    %1913 = vmatpush1.msra.mxu0 0.0
    %1914 = vmatprep.subr.mxu0 0.0
    %1915 = vmatpush1.msra.mxu0 0.0
    %1916 = vmatprep.subr.mxu0 0.0
    %1917 = vmatpush1.msra.mxu0 0.0
    %1918 = vmatprep.subr.mxu0 0.0
    %1919 = vmatpush1.msra.mxu0 0.0
    %1920 = vmatprep.subr.mxu0 0.0
    %1921 = vmatpush1.msra.mxu0 0.0
    %1922 = vmatprep.mubr.f32.mxu0 0.0
    %1923 = vmatmul.mubr.f32.gmra.mrb[0].mxu0 %v962
    %v1924 = vpop.f32.mrb[0].mxu0
    %v1925 = vadd.f32 %v1783, %v1924
    %v1926 = vpop.f32.mrb[0].mxu0
    %v1927 = vadd.f32 %v1785, %v1926
    %1928 = vdwg.mxu0
    %1929 = vmatprep.subr.mxu0 %v966
    %1930 = vmatpush1.msra.mxu0 %v965
    %1931 = vmatprep.subr.mxu0 %v970
    %1932 = vmatpush1.msra.mxu0 %v969
    %1933 = vmatprep.subr.mxu0 %v974
    %1934 = vmatpush1.msra.mxu0 %v973
    %1935 = vmatprep.subr.mxu0 %v978
    %1936 = vmatpush1.msra.mxu0 %v977
    %1937 = vmatprep.subr.mxu0 %v982
    %1938 = vmatpush1.msra.mxu0 %v981
    %1939 = vmatprep.subr.mxu0 %v986
    %1940 = vmatpush1.msra.mxu0 %v985
    %1941 = vmatprep.subr.mxu0 %v990
    %1942 = vmatpush1.msra.mxu0 %v989
    %1943 = vmatprep.subr.mxu0 %v994
    %1944 = vmatpush1.msra.mxu0 %v993
    %1945 = vmatprep.subr.mxu0 %v998
    %1946 = vmatpush1.msra.mxu0 %v997
    %1947 = vmatprep.subr.mxu0 %v1002
    %1948 = vmatpush1.msra.mxu0 %v1001
    %1949 = vmatprep.subr.mxu0 %v1006
    %1950 = vmatpush1.msra.mxu0 %v1005
    %1951 = vmatprep.subr.mxu0 %v1010
    %1952 = vmatpush1.msra.mxu0 %v1009
    %1953 = vmatprep.subr.mxu0 %v1014
    %1954 = vmatpush1.msra.mxu0 %v1013
    %1955 = vmatprep.subr.mxu0 %v1018
    %1956 = vmatpush1.msra.mxu0 %v1017
    %1957 = vmatprep.subr.mxu0 %v1022
    %1958 = vmatpush1.msra.mxu0 %v1021
    %1959 = vmatprep.subr.mxu0 %v1026
    %1960 = vmatpush1.msra.mxu0 %v1025
    %1961 = vmatprep.subr.mxu0 0.0
    %1962 = vmatpush1.msra.mxu0 0.0
    %1963 = vmatprep.subr.mxu0 0.0
    %1964 = vmatpush1.msra.mxu0 0.0
    %1965 = vmatprep.subr.mxu0 0.0
    %1966 = vmatpush1.msra.mxu0 0.0
    %1967 = vmatprep.subr.mxu0 0.0
    %1968 = vmatpush1.msra.mxu0 0.0
    %1969 = vmatprep.subr.mxu0 0.0
    %1970 = vmatpush1.msra.mxu0 0.0
    %1971 = vmatprep.subr.mxu0 0.0
    %1972 = vmatpush1.msra.mxu0 0.0
    %1973 = vmatprep.subr.mxu0 0.0
    %1974 = vmatpush1.msra.mxu0 0.0
    %1975 = vmatprep.subr.mxu0 0.0
    %1976 = vmatpush1.msra.mxu0 0.0
    %1977 = vmatprep.subr.mxu0 0.0
    %1978 = vmatpush1.msra.mxu0 0.0
    %1979 = vmatprep.subr.mxu0 0.0
    %1980 = vmatpush1.msra.mxu0 0.0
    %1981 = vmatprep.subr.mxu0 0.0
    %1982 = vmatpush1.msra.mxu0 0.0
    %1983 = vmatprep.subr.mxu0 0.0
    %1984 = vmatpush1.msra.mxu0 0.0
    %1985 = vmatprep.subr.mxu0 0.0
    %1986 = vmatpush1.msra.mxu0 0.0
    %1987 = vmatprep.subr.mxu0 0.0
    %1988 = vmatpush1.msra.mxu0 0.0
    %1989 = vmatprep.subr.mxu0 0.0
    %1990 = vmatpush1.msra.mxu0 0.0
    %1991 = vmatprep.subr.mxu0 0.0
    %1992 = vmatpush1.msra.mxu0 0.0
    %1993 = vmatprep.mubr.f32.mxu0 0.0
    %1994 = vmatmul.mubr.f32.gmra.mrb[0].mxu0 %v962
    %v1995 = vpop.f32.mrb[0].mxu0
    %v1996 = vadd.f32 %v1854, %v1995
    %v1997 = vpop.f32.mrb[0].mxu0
    %v1998 = vadd.f32 %v1856, %v1997
    %1999 = vdwg.mxu0
    %v2000 = vadd.f32 %v1925, %v192
    %v2001 = vadd.f32 %v1927, %v196
    %v2002 = vadd.f32 %v1996, %v200
    %v2003 = vadd.f32 %v1998, %v204
    %v2004 = vxor.u32 %v2000, 2147483648
    %v2005 = vxor.u32 %v2001, 2147483648
    %v2006 = vxor.u32 %v2002, 2147483648
    %v2007 = vmul.f32 %v2004, 1.442695
    %v2008 = vpow.pop %v2007
    %v2009 = vmul.f32 %v2005, 1.442695
    %v2010 = vpow.pop %v2009
    %v2011 = vmul.f32 %v2006, 1.442695
    %v2012 = vpow.pop %v2011
    %v2013 = vadd.f32 %v2008, 1.0
    %v2014 = vadd.f32 %v2010, 1.0
    %v2015 = vadd.f32 %v2012, 1.0
    %v2016 = vrcp.pop %v2013
    %v2017 = vmul.f32 1.0, %v2016
    %v2018 = vrcp.pop %v2014
    %v2019 = vmul.f32 1.0, %v2018
    %v2020 = vrcp.pop %v2015
    %v2021 = vmul.f32 1.0, %v2020
    %v2022 = vtanh.pop %v2003
    %v2023 = vmul.f32 %v2019, %v1400
    %v2024 = vmul.f32 %v2017, %v2022
    %v2025 = vadd.f32 %v2023, %v2024
    %v2026 = vtanh.pop %v2025
    %v2027 = vmul.f32 %v2021, %v2026
    %v2028 = vld [vmem:[#allocation2 + $0x18] sm:$0xff]
    %2029 = vmatprep.subr.mxu0 %v275
    %2030 = vmatpush1.msra.mxu0 %v274
    %2031 = vmatprep.subr.mxu0 %v279
    %2032 = vmatpush1.msra.mxu0 %v278
    %2033 = vmatprep.subr.mxu0 %v283
    %2034 = vmatpush1.msra.mxu0 %v282
    %2035 = vmatprep.subr.mxu0 %v287
    %2036 = vmatpush1.msra.mxu0 %v286
    %2037 = vmatprep.subr.mxu0 %v291
    %2038 = vmatpush1.msra.mxu0 %v290
    %2039 = vmatprep.subr.mxu0 %v295
    %2040 = vmatpush1.msra.mxu0 %v294
    %2041 = vmatprep.subr.mxu0 %v299
    %2042 = vmatpush1.msra.mxu0 %v298
    %2043 = vmatprep.subr.mxu0 %v303
    %2044 = vmatpush1.msra.mxu0 %v302
    %2045 = vmatprep.subr.mxu0 %v307
    %2046 = vmatpush1.msra.mxu0 %v306
    %2047 = vmatprep.subr.mxu0 %v311
    %2048 = vmatpush1.msra.mxu0 %v310
    %2049 = vmatprep.subr.mxu0 %v315
    %2050 = vmatpush1.msra.mxu0 %v314
    %2051 = vmatprep.subr.mxu0 %v319
    %2052 = vmatpush1.msra.mxu0 %v318
    %2053 = vmatprep.subr.mxu0 %v323
    %2054 = vmatpush1.msra.mxu0 %v322
    %2055 = vmatprep.subr.mxu0 %v327
    %2056 = vmatpush1.msra.mxu0 %v326
    %2057 = vmatprep.subr.mxu0 %v331
    %2058 = vmatpush1.msra.mxu0 %v330
    %2059 = vmatprep.subr.mxu0 %v335
    %2060 = vmatpush1.msra.mxu0 %v334
    %2061 = vmatprep.subr.mxu0 0.0
    %2062 = vmatpush1.msra.mxu0 0.0
    %2063 = vmatprep.subr.mxu0 0.0
    %2064 = vmatpush1.msra.mxu0 0.0
    %2065 = vmatprep.subr.mxu0 0.0
    %2066 = vmatpush1.msra.mxu0 0.0
    %2067 = vmatprep.subr.mxu0 0.0
    %2068 = vmatpush1.msra.mxu0 0.0
    %2069 = vmatprep.subr.mxu0 0.0
    %2070 = vmatpush1.msra.mxu0 0.0
    %2071 = vmatprep.subr.mxu0 0.0
    %2072 = vmatpush1.msra.mxu0 0.0
    %2073 = vmatprep.subr.mxu0 0.0
    %2074 = vmatpush1.msra.mxu0 0.0
    %2075 = vmatprep.subr.mxu0 0.0
    %2076 = vmatpush1.msra.mxu0 0.0
    %2077 = vmatprep.subr.mxu0 0.0
    %2078 = vmatpush1.msra.mxu0 0.0
    %2079 = vmatprep.subr.mxu0 0.0
    %2080 = vmatpush1.msra.mxu0 0.0
    %2081 = vmatprep.subr.mxu0 0.0
    %2082 = vmatpush1.msra.mxu0 0.0
    %2083 = vmatprep.subr.mxu0 0.0
    %2084 = vmatpush1.msra.mxu0 0.0
    %2085 = vmatprep.subr.mxu0 0.0
    %2086 = vmatpush1.msra.mxu0 0.0
    %2087 = vmatprep.subr.mxu0 0.0
    %2088 = vmatpush1.msra.mxu0 0.0
    %2089 = vmatprep.subr.mxu0 0.0
    %2090 = vmatpush1.msra.mxu0 0.0
    %2091 = vmatprep.subr.mxu0 0.0
    %2092 = vmatpush1.msra.mxu0 0.0
    %2093 = vmatprep.mubr.f32.mxu0 0.0
    %2094 = vmatmul.mubr.f32.gmra.mrb[0].mxu0 %v1715
    %v2095 = vpop.f32.mrb[0].mxu0
    %v2096 = vadd.f32 0.0, %v2095
    %v2097 = vpop.f32.mrb[0].mxu0
    %v2098 = vadd.f32 0.0, %v2097
    %2099 = vdwg.mxu0
    %2100 = vmatprep.subr.mxu0 %v277
    %2101 = vmatpush1.msra.mxu0 %v276
    %2102 = vmatprep.subr.mxu0 %v281
    %2103 = vmatpush1.msra.mxu0 %v280
    %2104 = vmatprep.subr.mxu0 %v285
    %2105 = vmatpush1.msra.mxu0 %v284
    %2106 = vmatprep.subr.mxu0 %v289
    %2107 = vmatpush1.msra.mxu0 %v288
    %2108 = vmatprep.subr.mxu0 %v293
    %2109 = vmatpush1.msra.mxu0 %v292
    %2110 = vmatprep.subr.mxu0 %v297
    %2111 = vmatpush1.msra.mxu0 %v296
    %2112 = vmatprep.subr.mxu0 %v301
    %2113 = vmatpush1.msra.mxu0 %v300
    %2114 = vmatprep.subr.mxu0 %v305
    %2115 = vmatpush1.msra.mxu0 %v304
    %2116 = vmatprep.subr.mxu0 %v309
    %2117 = vmatpush1.msra.mxu0 %v308
    %2118 = vmatprep.subr.mxu0 %v313
    %2119 = vmatpush1.msra.mxu0 %v312
    %2120 = vmatprep.subr.mxu0 %v317
    %2121 = vmatpush1.msra.mxu0 %v316
    %2122 = vmatprep.subr.mxu0 %v321
    %2123 = vmatpush1.msra.mxu0 %v320
    %2124 = vmatprep.subr.mxu0 %v325
    %2125 = vmatpush1.msra.mxu0 %v324
    %2126 = vmatprep.subr.mxu0 %v329
    %2127 = vmatpush1.msra.mxu0 %v328
    %2128 = vmatprep.subr.mxu0 %v333
    %2129 = vmatpush1.msra.mxu0 %v332
    %2130 = vmatprep.subr.mxu0 %v337
    %2131 = vmatpush1.msra.mxu0 %v336
    %2132 = vmatprep.subr.mxu0 0.0
    %2133 = vmatpush1.msra.mxu0 0.0
    %2134 = vmatprep.subr.mxu0 0.0
    %2135 = vmatpush1.msra.mxu0 0.0
    %2136 = vmatprep.subr.mxu0 0.0
    %2137 = vmatpush1.msra.mxu0 0.0
    %2138 = vmatprep.subr.mxu0 0.0
    %2139 = vmatpush1.msra.mxu0 0.0
    %2140 = vmatprep.subr.mxu0 0.0
    %2141 = vmatpush1.msra.mxu0 0.0
    %2142 = vmatprep.subr.mxu0 0.0
    %2143 = vmatpush1.msra.mxu0 0.0
    %2144 = vmatprep.subr.mxu0 0.0
    %2145 = vmatpush1.msra.mxu0 0.0
    %2146 = vmatprep.subr.mxu0 0.0
    %2147 = vmatpush1.msra.mxu0 0.0
    %2148 = vmatprep.subr.mxu0 0.0
    %2149 = vmatpush1.msra.mxu0 0.0
    %2150 = vmatprep.subr.mxu0 0.0
    %2151 = vmatpush1.msra.mxu0 0.0
    %2152 = vmatprep.subr.mxu0 0.0
    %2153 = vmatpush1.msra.mxu0 0.0
    %2154 = vmatprep.subr.mxu0 0.0
    %2155 = vmatpush1.msra.mxu0 0.0
    %2156 = vmatprep.subr.mxu0 0.0
    %2157 = vmatpush1.msra.mxu0 0.0
    %2158 = vmatprep.subr.mxu0 0.0
    %2159 = vmatpush1.msra.mxu0 0.0
    %2160 = vmatprep.subr.mxu0 0.0
    %2161 = vmatpush1.msra.mxu0 0.0
    %2162 = vmatprep.subr.mxu0 0.0
    %2163 = vmatpush1.msra.mxu0 0.0
    %2164 = vmatprep.mubr.f32.mxu0 0.0
    %2165 = vmatmul.mubr.f32.gmra.mrb[0].mxu0 %v1715
    %v2166 = vpop.f32.mrb[0].mxu0
    %v2167 = vadd.f32 0.0, %v2166
    %v2168 = vpop.f32.mrb[0].mxu0
    %v2169 = vadd.f32 0.0, %v2168
    %2170 = vdwg.mxu0
    %2171 = vmatprep.subr.mxu0 %v211
    %2172 = vmatpush1.msra.mxu0 %v210
    %2173 = vmatprep.subr.mxu0 %v215
    %2174 = vmatpush1.msra.mxu0 %v214
    %2175 = vmatprep.subr.mxu0 %v219
    %2176 = vmatpush1.msra.mxu0 %v218
    %2177 = vmatprep.subr.mxu0 %v223
    %2178 = vmatpush1.msra.mxu0 %v222
    %2179 = vmatprep.subr.mxu0 %v227
    %2180 = vmatpush1.msra.mxu0 %v226
    %2181 = vmatprep.subr.mxu0 %v231
    %2182 = vmatpush1.msra.mxu0 %v230
    %2183 = vmatprep.subr.mxu0 %v235
    %2184 = vmatpush1.msra.mxu0 %v234
    %2185 = vmatprep.subr.mxu0 %v239
    %2186 = vmatpush1.msra.mxu0 %v238
    %2187 = vmatprep.subr.mxu0 %v243
    %2188 = vmatpush1.msra.mxu0 %v242
    %2189 = vmatprep.subr.mxu0 %v247
    %2190 = vmatpush1.msra.mxu0 %v246
    %2191 = vmatprep.subr.mxu0 %v251
    %2192 = vmatpush1.msra.mxu0 %v250
    %2193 = vmatprep.subr.mxu0 %v255
    %2194 = vmatpush1.msra.mxu0 %v254
    %2195 = vmatprep.subr.mxu0 %v259
    %2196 = vmatpush1.msra.mxu0 %v258
    %2197 = vmatprep.subr.mxu0 %v263
    %2198 = vmatpush1.msra.mxu0 %v262
    %2199 = vmatprep.subr.mxu0 %v267
    %2200 = vmatpush1.msra.mxu0 %v266
    %2201 = vmatprep.subr.mxu0 %v271
    %2202 = vmatpush1.msra.mxu0 %v270
    %2203 = vmatprep.subr.mxu0 0.0
    %2204 = vmatpush1.msra.mxu0 0.0
    %2205 = vmatprep.subr.mxu0 0.0
    %2206 = vmatpush1.msra.mxu0 0.0
    %2207 = vmatprep.subr.mxu0 0.0
    %2208 = vmatpush1.msra.mxu0 0.0
    %2209 = vmatprep.subr.mxu0 0.0
    %2210 = vmatpush1.msra.mxu0 0.0
    %2211 = vmatprep.subr.mxu0 0.0
    %2212 = vmatpush1.msra.mxu0 0.0
    %2213 = vmatprep.subr.mxu0 0.0
    %2214 = vmatpush1.msra.mxu0 0.0
    %2215 = vmatprep.subr.mxu0 0.0
    %2216 = vmatpush1.msra.mxu0 0.0
    %2217 = vmatprep.subr.mxu0 0.0
    %2218 = vmatpush1.msra.mxu0 0.0
    %2219 = vmatprep.subr.mxu0 0.0
    %2220 = vmatpush1.msra.mxu0 0.0
    %2221 = vmatprep.subr.mxu0 0.0
    %2222 = vmatpush1.msra.mxu0 0.0
    %2223 = vmatprep.subr.mxu0 0.0
    %2224 = vmatpush1.msra.mxu0 0.0
    %2225 = vmatprep.subr.mxu0 0.0
    %2226 = vmatpush1.msra.mxu0 0.0
    %2227 = vmatprep.subr.mxu0 0.0
    %2228 = vmatpush1.msra.mxu0 0.0
    %2229 = vmatprep.subr.mxu0 0.0
    %2230 = vmatpush1.msra.mxu0 0.0
    %2231 = vmatprep.subr.mxu0 0.0
    %2232 = vmatpush1.msra.mxu0 0.0
    %2233 = vmatprep.subr.mxu0 0.0
    %2234 = vmatpush1.msra.mxu0 0.0
    %2235 = vmatprep.mubr.f32.mxu0 0.0
    %2236 = vmatmul.mubr.f32.gmra.mrb[0].mxu0 %v2028
    %v2237 = vpop.f32.mrb[0].mxu0
    %v2238 = vadd.f32 %v2096, %v2237
    %v2239 = vpop.f32.mrb[0].mxu0
    %v2240 = vadd.f32 %v2098, %v2239
    %2241 = vdwg.mxu0
    %2242 = vmatprep.subr.mxu0 %v213
    %2243 = vmatpush1.msra.mxu0 %v212
    %2244 = vmatprep.subr.mxu0 %v217
    %2245 = vmatpush1.msra.mxu0 %v216
    %2246 = vmatprep.subr.mxu0 %v221
    %2247 = vmatpush1.msra.mxu0 %v220
    %2248 = vmatprep.subr.mxu0 %v225
    %2249 = vmatpush1.msra.mxu0 %v224
    %2250 = vmatprep.subr.mxu0 %v229
    %2251 = vmatpush1.msra.mxu0 %v228
    %2252 = vmatprep.subr.mxu0 %v233
    %2253 = vmatpush1.msra.mxu0 %v232
    %2254 = vmatprep.subr.mxu0 %v237
    %2255 = vmatpush1.msra.mxu0 %v236
    %2256 = vmatprep.subr.mxu0 %v241
    %2257 = vmatpush1.msra.mxu0 %v240
    %2258 = vmatprep.subr.mxu0 %v245
    %2259 = vmatpush1.msra.mxu0 %v244
    %2260 = vmatprep.subr.mxu0 %v249
    %2261 = vmatpush1.msra.mxu0 %v248
    %2262 = vmatprep.subr.mxu0 %v253
    %2263 = vmatpush1.msra.mxu0 %v252
    %2264 = vmatprep.subr.mxu0 %v257
    %2265 = vmatpush1.msra.mxu0 %v256
    %2266 = vmatprep.subr.mxu0 %v261
    %2267 = vmatpush1.msra.mxu0 %v260
    %2268 = vmatprep.subr.mxu0 %v265
    %2269 = vmatpush1.msra.mxu0 %v264
    %2270 = vmatprep.subr.mxu0 %v269
    %2271 = vmatpush1.msra.mxu0 %v268
    %2272 = vmatprep.subr.mxu0 %v273
    %2273 = vmatpush1.msra.mxu0 %v272
    %2274 = vmatprep.subr.mxu0 0.0
    %2275 = vmatpush1.msra.mxu0 0.0
    %2276 = vmatprep.subr.mxu0 0.0
    %2277 = vmatpush1.msra.mxu0 0.0
    %2278 = vmatprep.subr.mxu0 0.0
    %2279 = vmatpush1.msra.mxu0 0.0
    %2280 = vmatprep.subr.mxu0 0.0
    %2281 = vmatpush1.msra.mxu0 0.0
    %2282 = vmatprep.subr.mxu0 0.0
    %2283 = vmatpush1.msra.mxu0 0.0
    %2284 = vmatprep.subr.mxu0 0.0
    %2285 = vmatpush1.msra.mxu0 0.0
    %2286 = vmatprep.subr.mxu0 0.0
    %2287 = vmatpush1.msra.mxu0 0.0
    %2288 = vmatprep.subr.mxu0 0.0
    %2289 = vmatpush1.msra.mxu0 0.0
    %2290 = vmatprep.subr.mxu0 0.0
    %2291 = vmatpush1.msra.mxu0 0.0
    %2292 = vmatprep.subr.mxu0 0.0
    %2293 = vmatpush1.msra.mxu0 0.0
    %2294 = vmatprep.subr.mxu0 0.0
    %2295 = vmatpush1.msra.mxu0 0.0
    %2296 = vmatprep.subr.mxu0 0.0
    %2297 = vmatpush1.msra.mxu0 0.0
    %2298 = vmatprep.subr.mxu0 0.0
    %2299 = vmatpush1.msra.mxu0 0.0
    %2300 = vmatprep.subr.mxu0 0.0
    %2301 = vmatpush1.msra.mxu0 0.0
    %2302 = vmatprep.subr.mxu0 0.0
    %2303 = vmatpush1.msra.mxu0 0.0
    %2304 = vmatprep.subr.mxu0 0.0
    %2305 = vmatpush1.msra.mxu0 0.0
    %2306 = vmatprep.mubr.f32.mxu0 0.0
    %2307 = vmatmul.mubr.f32.gmra.mrb[0].mxu0 %v2028
    %v2308 = vpop.f32.mrb[0].mxu0
    %v2309 = vadd.f32 %v2167, %v2308
    %v2310 = vpop.f32.mrb[0].mxu0
    %v2311 = vadd.f32 %v2169, %v2310
    %2312 = vdwg.mxu0
    %v2313 = vadd.f32 %v2238, %v170
    %v2314 = vadd.f32 %v2240, %v174
    %v2315 = vadd.f32 %v2309, %v178
    %v2316 = vadd.f32 %v2311, %v182
    %v2317 = vxor.u32 %v2313, 2147483648
    %v2318 = vxor.u32 %v2314, 2147483648
    %v2319 = vxor.u32 %v2315, 2147483648
    %v2320 = vmul.f32 %v2317, 1.442695
    %v2321 = vpow.pop %v2320
    %v2322 = vmul.f32 %v2318, 1.442695
    %v2323 = vpow.pop %v2322
    %v2324 = vmul.f32 %v2319, 1.442695
    %v2325 = vpow.pop %v2324
    %v2326 = vadd.f32 %v2321, 1.0
    %v2327 = vadd.f32 %v2323, 1.0
    %v2328 = vadd.f32 %v2325, 1.0
    %v2329 = vrcp.pop %v2326
    %v2330 = vmul.f32 1.0, %v2329
    %v2331 = vrcp.pop %v2327
    %v2332 = vmul.f32 1.0, %v2331
    %v2333 = vrcp.pop %v2328
    %v2334 = vmul.f32 1.0, %v2333
    %v2335 = vtanh.pop %v2316
    %v2336 = vmul.f32 %v2332, %v1713
    %v2337 = vmul.f32 %v2330, %v2335
    %v2338 = vadd.f32 %v2336, %v2337
    %v2339 = vtanh.pop %v2338
    %v2340 = vmul.f32 %v2334, %v2339
    %2341 = vmatprep.subr.mxu0 %v1028
    %2342 = vmatpush1.msra.mxu0 %v1027
    %2343 = vmatprep.subr.mxu0 %v1032
    %2344 = vmatpush1.msra.mxu0 %v1031
    %2345 = vmatprep.subr.mxu0 %v1036
    %2346 = vmatpush1.msra.mxu0 %v1035
    %2347 = vmatprep.subr.mxu0 %v1040
    %2348 = vmatpush1.msra.mxu0 %v1039
    %2349 = vmatprep.subr.mxu0 %v1044
    %2350 = vmatpush1.msra.mxu0 %v1043
    %2351 = vmatprep.subr.mxu0 %v1048
    %2352 = vmatpush1.msra.mxu0 %v1047
    %2353 = vmatprep.subr.mxu0 %v1052
    %2354 = vmatpush1.msra.mxu0 %v1051
    %2355 = vmatprep.subr.mxu0 %v1056
    %2356 = vmatpush1.msra.mxu0 %v1055
    %2357 = vmatprep.subr.mxu0 %v1060
    %2358 = vmatpush1.msra.mxu0 %v1059
    %2359 = vmatprep.subr.mxu0 %v1064
    %2360 = vmatpush1.msra.mxu0 %v1063
    %2361 = vmatprep.subr.mxu0 %v1068
    %2362 = vmatpush1.msra.mxu0 %v1067
    %2363 = vmatprep.subr.mxu0 %v1072
    %2364 = vmatpush1.msra.mxu0 %v1071
    %2365 = vmatprep.subr.mxu0 %v1076
    %2366 = vmatpush1.msra.mxu0 %v1075
    %2367 = vmatprep.subr.mxu0 %v1080
    %2368 = vmatpush1.msra.mxu0 %v1079
    %2369 = vmatprep.subr.mxu0 %v1084
    %2370 = vmatpush1.msra.mxu0 %v1083
    %2371 = vmatprep.subr.mxu0 %v1088
    %2372 = vmatpush1.msra.mxu0 %v1087
    %2373 = vmatprep.subr.mxu0 0.0
    %2374 = vmatpush1.msra.mxu0 0.0
    %2375 = vmatprep.subr.mxu0 0.0
    %2376 = vmatpush1.msra.mxu0 0.0
    %2377 = vmatprep.subr.mxu0 0.0
    %2378 = vmatpush1.msra.mxu0 0.0
    %2379 = vmatprep.subr.mxu0 0.0
    %2380 = vmatpush1.msra.mxu0 0.0
    %2381 = vmatprep.subr.mxu0 0.0
    %2382 = vmatpush1.msra.mxu0 0.0
    %2383 = vmatprep.subr.mxu0 0.0
    %2384 = vmatpush1.msra.mxu0 0.0
    %2385 = vmatprep.subr.mxu0 0.0
    %2386 = vmatpush1.msra.mxu0 0.0
    %2387 = vmatprep.subr.mxu0 0.0
    %2388 = vmatpush1.msra.mxu0 0.0
    %2389 = vmatprep.subr.mxu0 0.0
    %2390 = vmatpush1.msra.mxu0 0.0
    %2391 = vmatprep.subr.mxu0 0.0
    %2392 = vmatpush1.msra.mxu0 0.0
    %2393 = vmatprep.subr.mxu0 0.0
    %2394 = vmatpush1.msra.mxu0 0.0
    %2395 = vmatprep.subr.mxu0 0.0
    %2396 = vmatpush1.msra.mxu0 0.0
    %2397 = vmatprep.subr.mxu0 0.0
    %2398 = vmatpush1.msra.mxu0 0.0
    %2399 = vmatprep.subr.mxu0 0.0
    %2400 = vmatpush1.msra.mxu0 0.0
    %2401 = vmatprep.subr.mxu0 0.0
    %2402 = vmatpush1.msra.mxu0 0.0
    %2403 = vmatprep.subr.mxu0 0.0
    %2404 = vmatpush1.msra.mxu0 0.0
    %2405 = vmatprep.mubr.f32.mxu0 0.0
    %2406 = vmatmul.mubr.f32.gmra.mrb[0].mxu0 %v2027
    %v2407 = vpop.f32.mrb[0].mxu0
    %v2408 = vadd.f32 0.0, %v2407
    %v2409 = vpop.f32.mrb[0].mxu0
    %v2410 = vadd.f32 0.0, %v2409
    %2411 = vdwg.mxu0
    %2412 = vmatprep.subr.mxu0 %v1030
    %2413 = vmatpush1.msra.mxu0 %v1029
    %2414 = vmatprep.subr.mxu0 %v1034
    %2415 = vmatpush1.msra.mxu0 %v1033
    %2416 = vmatprep.subr.mxu0 %v1038
    %2417 = vmatpush1.msra.mxu0 %v1037
    %2418 = vmatprep.subr.mxu0 %v1042
    %2419 = vmatpush1.msra.mxu0 %v1041
    %2420 = vmatprep.subr.mxu0 %v1046
    %2421 = vmatpush1.msra.mxu0 %v1045
    %2422 = vmatprep.subr.mxu0 %v1050
    %2423 = vmatpush1.msra.mxu0 %v1049
    %2424 = vmatprep.subr.mxu0 %v1054
    %2425 = vmatpush1.msra.mxu0 %v1053
    %2426 = vmatprep.subr.mxu0 %v1058
    %2427 = vmatpush1.msra.mxu0 %v1057
    %2428 = vmatprep.subr.mxu0 %v1062
    %2429 = vmatpush1.msra.mxu0 %v1061
    %2430 = vmatprep.subr.mxu0 %v1066
    %2431 = vmatpush1.msra.mxu0 %v1065
    %2432 = vmatprep.subr.mxu0 %v1070
    %2433 = vmatpush1.msra.mxu0 %v1069
    %2434 = vmatprep.subr.mxu0 %v1074
    %2435 = vmatpush1.msra.mxu0 %v1073
    %2436 = vmatprep.subr.mxu0 %v1078
    %2437 = vmatpush1.msra.mxu0 %v1077
    %2438 = vmatprep.subr.mxu0 %v1082
    %2439 = vmatpush1.msra.mxu0 %v1081
    %2440 = vmatprep.subr.mxu0 %v1086
    %2441 = vmatpush1.msra.mxu0 %v1085
    %2442 = vmatprep.subr.mxu0 %v1090
    %2443 = vmatpush1.msra.mxu0 %v1089
    %2444 = vmatprep.subr.mxu0 0.0
    %2445 = vmatpush1.msra.mxu0 0.0
    %2446 = vmatprep.subr.mxu0 0.0
    %2447 = vmatpush1.msra.mxu0 0.0
    %2448 = vmatprep.subr.mxu0 0.0
    %2449 = vmatpush1.msra.mxu0 0.0
    %2450 = vmatprep.subr.mxu0 0.0
    %2451 = vmatpush1.msra.mxu0 0.0
    %2452 = vmatprep.subr.mxu0 0.0
    %2453 = vmatpush1.msra.mxu0 0.0
    %2454 = vmatprep.subr.mxu0 0.0
    %2455 = vmatpush1.msra.mxu0 0.0
    %2456 = vmatprep.subr.mxu0 0.0
    %2457 = vmatpush1.msra.mxu0 0.0
    %2458 = vmatprep.subr.mxu0 0.0
    %2459 = vmatpush1.msra.mxu0 0.0
    %2460 = vmatprep.subr.mxu0 0.0
    %2461 = vmatpush1.msra.mxu0 0.0
    %2462 = vmatprep.subr.mxu0 0.0
    %2463 = vmatpush1.msra.mxu0 0.0
    %2464 = vmatprep.subr.mxu0 0.0
    %2465 = vmatpush1.msra.mxu0 0.0
    %2466 = vmatprep.subr.mxu0 0.0
    %2467 = vmatpush1.msra.mxu0 0.0
    %2468 = vmatprep.subr.mxu0 0.0
    %2469 = vmatpush1.msra.mxu0 0.0
    %2470 = vmatprep.subr.mxu0 0.0
    %2471 = vmatpush1.msra.mxu0 0.0
    %2472 = vmatprep.subr.mxu0 0.0
    %2473 = vmatpush1.msra.mxu0 0.0
    %2474 = vmatprep.subr.mxu0 0.0
    %2475 = vmatpush1.msra.mxu0 0.0
    %2476 = vmatprep.mubr.f32.mxu0 0.0
    %2477 = vmatmul.mubr.f32.gmra.mrb[0].mxu0 %v2027
    %v2478 = vpop.f32.mrb[0].mxu0
    %v2479 = vadd.f32 0.0, %v2478
    %v2480 = vpop.f32.mrb[0].mxu0
    %v2481 = vadd.f32 0.0, %v2480
    %2482 = vdwg.mxu0
    %2483 = vmatprep.subr.mxu0 %v964
    %2484 = vmatpush1.msra.mxu0 %v963
    %2485 = vmatprep.subr.mxu0 %v968
    %2486 = vmatpush1.msra.mxu0 %v967
    %2487 = vmatprep.subr.mxu0 %v972
    %2488 = vmatpush1.msra.mxu0 %v971
    %2489 = vmatprep.subr.mxu0 %v976
    %2490 = vmatpush1.msra.mxu0 %v975
    %2491 = vmatprep.subr.mxu0 %v980
    %2492 = vmatpush1.msra.mxu0 %v979
    %2493 = vmatprep.subr.mxu0 %v984
    %2494 = vmatpush1.msra.mxu0 %v983
    %2495 = vmatprep.subr.mxu0 %v988
    %2496 = vmatpush1.msra.mxu0 %v987
    %2497 = vmatprep.subr.mxu0 %v992
    %2498 = vmatpush1.msra.mxu0 %v991
    %2499 = vmatprep.subr.mxu0 %v996
    %2500 = vmatpush1.msra.mxu0 %v995
    %2501 = vmatprep.subr.mxu0 %v1000
    %2502 = vmatpush1.msra.mxu0 %v999
    %2503 = vmatprep.subr.mxu0 %v1004
    %2504 = vmatpush1.msra.mxu0 %v1003
    %2505 = vmatprep.subr.mxu0 %v1008
    %2506 = vmatpush1.msra.mxu0 %v1007
    %2507 = vmatprep.subr.mxu0 %v1012
    %2508 = vmatpush1.msra.mxu0 %v1011
    %2509 = vmatprep.subr.mxu0 %v1016
    %2510 = vmatpush1.msra.mxu0 %v1015
    %2511 = vmatprep.subr.mxu0 %v1020
    %2512 = vmatpush1.msra.mxu0 %v1019
    %2513 = vmatprep.subr.mxu0 %v1024
    %2514 = vmatpush1.msra.mxu0 %v1023
    %2515 = vmatprep.subr.mxu0 0.0
    %2516 = vmatpush1.msra.mxu0 0.0
    %2517 = vmatprep.subr.mxu0 0.0
    %2518 = vmatpush1.msra.mxu0 0.0
    %2519 = vmatprep.subr.mxu0 0.0
    %2520 = vmatpush1.msra.mxu0 0.0
    %2521 = vmatprep.subr.mxu0 0.0
    %2522 = vmatpush1.msra.mxu0 0.0
    %2523 = vmatprep.subr.mxu0 0.0
    %2524 = vmatpush1.msra.mxu0 0.0
    %2525 = vmatprep.subr.mxu0 0.0
    %2526 = vmatpush1.msra.mxu0 0.0
    %2527 = vmatprep.subr.mxu0 0.0
    %2528 = vmatpush1.msra.mxu0 0.0
    %2529 = vmatprep.subr.mxu0 0.0
    %2530 = vmatpush1.msra.mxu0 0.0
    %2531 = vmatprep.subr.mxu0 0.0
    %2532 = vmatpush1.msra.mxu0 0.0
    %2533 = vmatprep.subr.mxu0 0.0
    %2534 = vmatpush1.msra.mxu0 0.0
    %2535 = vmatprep.subr.mxu0 0.0
    %2536 = vmatpush1.msra.mxu0 0.0
    %2537 = vmatprep.subr.mxu0 0.0
    %2538 = vmatpush1.msra.mxu0 0.0
    %2539 = vmatprep.subr.mxu0 0.0
    %2540 = vmatpush1.msra.mxu0 0.0
    %2541 = vmatprep.subr.mxu0 0.0
    %2542 = vmatpush1.msra.mxu0 0.0
    %2543 = vmatprep.subr.mxu0 0.0
    %2544 = vmatpush1.msra.mxu0 0.0
    %2545 = vmatprep.subr.mxu0 0.0
    %2546 = vmatpush1.msra.mxu0 0.0
    %2547 = vmatprep.mubr.f32.mxu0 0.0
    %2548 = vmatmul.mubr.f32.gmra.mrb[0].mxu0 %v1715
    %v2549 = vpop.f32.mrb[0].mxu0
    %v2550 = vadd.f32 %v2408, %v2549
    %v2551 = vpop.f32.mrb[0].mxu0
    %v2552 = vadd.f32 %v2410, %v2551
    %2553 = vdwg.mxu0
    %2554 = vmatprep.subr.mxu0 %v966
    %2555 = vmatpush1.msra.mxu0 %v965
    %2556 = vmatprep.subr.mxu0 %v970
    %2557 = vmatpush1.msra.mxu0 %v969
    %2558 = vmatprep.subr.mxu0 %v974
    %2559 = vmatpush1.msra.mxu0 %v973
    %2560 = vmatprep.subr.mxu0 %v978
    %2561 = vmatpush1.msra.mxu0 %v977
    %2562 = vmatprep.subr.mxu0 %v982
    %2563 = vmatpush1.msra.mxu0 %v981
    %2564 = vmatprep.subr.mxu0 %v986
    %2565 = vmatpush1.msra.mxu0 %v985
    %2566 = vmatprep.subr.mxu0 %v990
    %2567 = vmatpush1.msra.mxu0 %v989
    %2568 = vmatprep.subr.mxu0 %v994
    %2569 = vmatpush1.msra.mxu0 %v993
    %2570 = vmatprep.subr.mxu0 %v998
    %2571 = vmatpush1.msra.mxu0 %v997
    %2572 = vmatprep.subr.mxu0 %v1002
    %2573 = vmatpush1.msra.mxu0 %v1001
    %2574 = vmatprep.subr.mxu0 %v1006
    %2575 = vmatpush1.msra.mxu0 %v1005
    %2576 = vmatprep.subr.mxu0 %v1010
    %2577 = vmatpush1.msra.mxu0 %v1009
    %2578 = vmatprep.subr.mxu0 %v1014
    %2579 = vmatpush1.msra.mxu0 %v1013
    %2580 = vmatprep.subr.mxu0 %v1018
    %2581 = vmatpush1.msra.mxu0 %v1017
    %2582 = vmatprep.subr.mxu0 %v1022
    %2583 = vmatpush1.msra.mxu0 %v1021
    %2584 = vmatprep.subr.mxu0 %v1026
    %2585 = vmatpush1.msra.mxu0 %v1025
    %2586 = vmatprep.subr.mxu0 0.0
    %2587 = vmatpush1.msra.mxu0 0.0
    %2588 = vmatprep.subr.mxu0 0.0
    %2589 = vmatpush1.msra.mxu0 0.0
    %2590 = vmatprep.subr.mxu0 0.0
    %2591 = vmatpush1.msra.mxu0 0.0
    %2592 = vmatprep.subr.mxu0 0.0
    %2593 = vmatpush1.msra.mxu0 0.0
    %2594 = vmatprep.subr.mxu0 0.0
    %2595 = vmatpush1.msra.mxu0 0.0
    %2596 = vmatprep.subr.mxu0 0.0
    %2597 = vmatpush1.msra.mxu0 0.0
    %2598 = vmatprep.subr.mxu0 0.0
    %2599 = vmatpush1.msra.mxu0 0.0
    %2600 = vmatprep.subr.mxu0 0.0
    %2601 = vmatpush1.msra.mxu0 0.0
    %2602 = vmatprep.subr.mxu0 0.0
    %2603 = vmatpush1.msra.mxu0 0.0
    %2604 = vmatprep.subr.mxu0 0.0
    %2605 = vmatpush1.msra.mxu0 0.0
    %2606 = vmatprep.subr.mxu0 0.0
    %2607 = vmatpush1.msra.mxu0 0.0
    %2608 = vmatprep.subr.mxu0 0.0
    %2609 = vmatpush1.msra.mxu0 0.0
    %2610 = vmatprep.subr.mxu0 0.0
    %2611 = vmatpush1.msra.mxu0 0.0
    %2612 = vmatprep.subr.mxu0 0.0
    %2613 = vmatpush1.msra.mxu0 0.0
    %2614 = vmatprep.subr.mxu0 0.0
    %2615 = vmatpush1.msra.mxu0 0.0
    %2616 = vmatprep.subr.mxu0 0.0
    %2617 = vmatpush1.msra.mxu0 0.0
    %2618 = vmatprep.mubr.f32.mxu0 0.0
    %2619 = vmatmul.mubr.f32.gmra.mrb[0].mxu0 %v1715
    %v2620 = vpop.f32.mrb[0].mxu0
    %v2621 = vadd.f32 %v2479, %v2620
    %v2622 = vpop.f32.mrb[0].mxu0
    %v2623 = vadd.f32 %v2481, %v2622
    %2624 = vdwg.mxu0
    %v2625 = vadd.f32 %v2550, %v192
    %v2626 = vadd.f32 %v2552, %v196
    %v2627 = vadd.f32 %v2621, %v200
    %v2628 = vadd.f32 %v2623, %v204
    %v2629 = vxor.u32 %v2625, 2147483648
    %v2630 = vxor.u32 %v2626, 2147483648
    %v2631 = vxor.u32 %v2627, 2147483648
    %v2632 = vmul.f32 %v2629, 1.442695
    %v2633 = vpow.pop %v2632
    %v2634 = vmul.f32 %v2630, 1.442695
    %v2635 = vpow.pop %v2634
    %v2636 = vmul.f32 %v2631, 1.442695
    %v2637 = vpow.pop %v2636
    %v2638 = vadd.f32 %v2633, 1.0
    %v2639 = vadd.f32 %v2635, 1.0
    %v2640 = vadd.f32 %v2637, 1.0
    %v2641 = vrcp.pop %v2638
    %v2642 = vmul.f32 1.0, %v2641
    %v2643 = vrcp.pop %v2639
    %v2644 = vmul.f32 1.0, %v2643
    %v2645 = vrcp.pop %v2640
    %v2646 = vmul.f32 1.0, %v2645
    %v2647 = vtanh.pop %v2628
    %v2648 = vmul.f32 %v2644, %v2025
    %v2649 = vmul.f32 %v2642, %v2647
    %v2650 = vadd.f32 %v2648, %v2649
    %v2651 = vtanh.pop %v2650
    %v2652 = vmul.f32 %v2646, %v2651
    %v2653 = vld [vmem:[#allocation2 + $0x20] sm:$0xff]
    %2654 = vmatprep.subr.mxu0 %v275
    %2655 = vmatpush1.msra.mxu0 %v274
    %2656 = vmatprep.subr.mxu0 %v279
    %2657 = vmatpush1.msra.mxu0 %v278
    %2658 = vmatprep.subr.mxu0 %v283
    %2659 = vmatpush1.msra.mxu0 %v282
    %2660 = vmatprep.subr.mxu0 %v287
    %2661 = vmatpush1.msra.mxu0 %v286
    %2662 = vmatprep.subr.mxu0 %v291
    %2663 = vmatpush1.msra.mxu0 %v290
    %2664 = vmatprep.subr.mxu0 %v295
    %2665 = vmatpush1.msra.mxu0 %v294
    %2666 = vmatprep.subr.mxu0 %v299
    %2667 = vmatpush1.msra.mxu0 %v298
    %2668 = vmatprep.subr.mxu0 %v303
    %2669 = vmatpush1.msra.mxu0 %v302
    %2670 = vmatprep.subr.mxu0 %v307
    %2671 = vmatpush1.msra.mxu0 %v306
    %2672 = vmatprep.subr.mxu0 %v311
    %2673 = vmatpush1.msra.mxu0 %v310
    %2674 = vmatprep.subr.mxu0 %v315
    %2675 = vmatpush1.msra.mxu0 %v314
    %2676 = vmatprep.subr.mxu0 %v319
    %2677 = vmatpush1.msra.mxu0 %v318
    %2678 = vmatprep.subr.mxu0 %v323
    %2679 = vmatpush1.msra.mxu0 %v322
    %2680 = vmatprep.subr.mxu0 %v327
    %2681 = vmatpush1.msra.mxu0 %v326
    %2682 = vmatprep.subr.mxu0 %v331
    %2683 = vmatpush1.msra.mxu0 %v330
    %2684 = vmatprep.subr.mxu0 %v335
    %2685 = vmatpush1.msra.mxu0 %v334
    %2686 = vmatprep.subr.mxu0 0.0
    %2687 = vmatpush1.msra.mxu0 0.0
    %2688 = vmatprep.subr.mxu0 0.0
    %2689 = vmatpush1.msra.mxu0 0.0
    %2690 = vmatprep.subr.mxu0 0.0
    %2691 = vmatpush1.msra.mxu0 0.0
    %2692 = vmatprep.subr.mxu0 0.0
    %2693 = vmatpush1.msra.mxu0 0.0
    %2694 = vmatprep.subr.mxu0 0.0
    %2695 = vmatpush1.msra.mxu0 0.0
    %2696 = vmatprep.subr.mxu0 0.0
    %2697 = vmatpush1.msra.mxu0 0.0
    %2698 = vmatprep.subr.mxu0 0.0
    %2699 = vmatpush1.msra.mxu0 0.0
    %2700 = vmatprep.subr.mxu0 0.0
    %2701 = vmatpush1.msra.mxu0 0.0
    %2702 = vmatprep.subr.mxu0 0.0
    %2703 = vmatpush1.msra.mxu0 0.0
    %2704 = vmatprep.subr.mxu0 0.0
    %2705 = vmatpush1.msra.mxu0 0.0
    %2706 = vmatprep.subr.mxu0 0.0
    %2707 = vmatpush1.msra.mxu0 0.0
    %2708 = vmatprep.subr.mxu0 0.0
    %2709 = vmatpush1.msra.mxu0 0.0
    %2710 = vmatprep.subr.mxu0 0.0
    %2711 = vmatpush1.msra.mxu0 0.0
    %2712 = vmatprep.subr.mxu0 0.0
    %2713 = vmatpush1.msra.mxu0 0.0
    %2714 = vmatprep.subr.mxu0 0.0
    %2715 = vmatpush1.msra.mxu0 0.0
    %2716 = vmatprep.subr.mxu0 0.0
    %2717 = vmatpush1.msra.mxu0 0.0
    %2718 = vmatprep.mubr.f32.mxu0 0.0
    %2719 = vmatmul.mubr.f32.gmra.mrb[0].mxu0 %v2340
    %v2720 = vpop.f32.mrb[0].mxu0
    %v2721 = vadd.f32 0.0, %v2720
    %v2722 = vpop.f32.mrb[0].mxu0
    %v2723 = vadd.f32 0.0, %v2722
    %2724 = vdwg.mxu0
    %2725 = vmatprep.subr.mxu0 %v277
    %2726 = vmatpush1.msra.mxu0 %v276
    %2727 = vmatprep.subr.mxu0 %v281
    %2728 = vmatpush1.msra.mxu0 %v280
    %2729 = vmatprep.subr.mxu0 %v285
    %2730 = vmatpush1.msra.mxu0 %v284
    %2731 = vmatprep.subr.mxu0 %v289
    %2732 = vmatpush1.msra.mxu0 %v288
    %2733 = vmatprep.subr.mxu0 %v293
    %2734 = vmatpush1.msra.mxu0 %v292
    %2735 = vmatprep.subr.mxu0 %v297
    %2736 = vmatpush1.msra.mxu0 %v296
    %2737 = vmatprep.subr.mxu0 %v301
    %2738 = vmatpush1.msra.mxu0 %v300
    %2739 = vmatprep.subr.mxu0 %v305
    %2740 = vmatpush1.msra.mxu0 %v304
    %2741 = vmatprep.subr.mxu0 %v309
    %2742 = vmatpush1.msra.mxu0 %v308
    %2743 = vmatprep.subr.mxu0 %v313
    %2744 = vmatpush1.msra.mxu0 %v312
    %2745 = vmatprep.subr.mxu0 %v317
    %2746 = vmatpush1.msra.mxu0 %v316
    %2747 = vmatprep.subr.mxu0 %v321
    %2748 = vmatpush1.msra.mxu0 %v320
    %2749 = vmatprep.subr.mxu0 %v325
    %2750 = vmatpush1.msra.mxu0 %v324
    %2751 = vmatprep.subr.mxu0 %v329
    %2752 = vmatpush1.msra.mxu0 %v328
    %2753 = vmatprep.subr.mxu0 %v333
    %2754 = vmatpush1.msra.mxu0 %v332
    %2755 = vmatprep.subr.mxu0 %v337
    %2756 = vmatpush1.msra.mxu0 %v336
    %2757 = vmatprep.subr.mxu0 0.0
    %2758 = vmatpush1.msra.mxu0 0.0
    %2759 = vmatprep.subr.mxu0 0.0
    %2760 = vmatpush1.msra.mxu0 0.0
    %2761 = vmatprep.subr.mxu0 0.0
    %2762 = vmatpush1.msra.mxu0 0.0
    %2763 = vmatprep.subr.mxu0 0.0
    %2764 = vmatpush1.msra.mxu0 0.0
    %2765 = vmatprep.subr.mxu0 0.0
    %2766 = vmatpush1.msra.mxu0 0.0
    %2767 = vmatprep.subr.mxu0 0.0
    %2768 = vmatpush1.msra.mxu0 0.0
    %2769 = vmatprep.subr.mxu0 0.0
    %2770 = vmatpush1.msra.mxu0 0.0
    %2771 = vmatprep.subr.mxu0 0.0
    %2772 = vmatpush1.msra.mxu0 0.0
    %2773 = vmatprep.subr.mxu0 0.0
    %2774 = vmatpush1.msra.mxu0 0.0
    %2775 = vmatprep.subr.mxu0 0.0
    %2776 = vmatpush1.msra.mxu0 0.0
    %2777 = vmatprep.subr.mxu0 0.0
    %2778 = vmatpush1.msra.mxu0 0.0
    %2779 = vmatprep.subr.mxu0 0.0
    %2780 = vmatpush1.msra.mxu0 0.0
    %2781 = vmatprep.subr.mxu0 0.0
    %2782 = vmatpush1.msra.mxu0 0.0
    %2783 = vmatprep.subr.mxu0 0.0
    %2784 = vmatpush1.msra.mxu0 0.0
    %2785 = vmatprep.subr.mxu0 0.0
    %2786 = vmatpush1.msra.mxu0 0.0
    %2787 = vmatprep.subr.mxu0 0.0
    %2788 = vmatpush1.msra.mxu0 0.0
    %2789 = vmatprep.mubr.f32.mxu0 0.0
    %2790 = vmatmul.mubr.f32.gmra.mrb[0].mxu0 %v2340
    %v2791 = vpop.f32.mrb[0].mxu0
    %v2792 = vadd.f32 0.0, %v2791
    %v2793 = vpop.f32.mrb[0].mxu0
    %v2794 = vadd.f32 0.0, %v2793
    %2795 = vdwg.mxu0
    %2796 = vmatprep.subr.mxu0 %v211
    %2797 = vmatpush1.msra.mxu0 %v210
    %2798 = vmatprep.subr.mxu0 %v215
    %2799 = vmatpush1.msra.mxu0 %v214
    %2800 = vmatprep.subr.mxu0 %v219
    %2801 = vmatpush1.msra.mxu0 %v218
    %2802 = vmatprep.subr.mxu0 %v223
    %2803 = vmatpush1.msra.mxu0 %v222
    %2804 = vmatprep.subr.mxu0 %v227
    %2805 = vmatpush1.msra.mxu0 %v226
    %2806 = vmatprep.subr.mxu0 %v231
    %2807 = vmatpush1.msra.mxu0 %v230
    %2808 = vmatprep.subr.mxu0 %v235
    %2809 = vmatpush1.msra.mxu0 %v234
    %2810 = vmatprep.subr.mxu0 %v239
    %2811 = vmatpush1.msra.mxu0 %v238
    %2812 = vmatprep.subr.mxu0 %v243
    %2813 = vmatpush1.msra.mxu0 %v242
    %2814 = vmatprep.subr.mxu0 %v247
    %2815 = vmatpush1.msra.mxu0 %v246
    %2816 = vmatprep.subr.mxu0 %v251
    %2817 = vmatpush1.msra.mxu0 %v250
    %2818 = vmatprep.subr.mxu0 %v255
    %2819 = vmatpush1.msra.mxu0 %v254
    %2820 = vmatprep.subr.mxu0 %v259
    %2821 = vmatpush1.msra.mxu0 %v258
    %2822 = vmatprep.subr.mxu0 %v263
    %2823 = vmatpush1.msra.mxu0 %v262
    %2824 = vmatprep.subr.mxu0 %v267
    %2825 = vmatpush1.msra.mxu0 %v266
    %2826 = vmatprep.subr.mxu0 %v271
    %2827 = vmatpush1.msra.mxu0 %v270
    %2828 = vmatprep.subr.mxu0 0.0
    %2829 = vmatpush1.msra.mxu0 0.0
    %2830 = vmatprep.subr.mxu0 0.0
    %2831 = vmatpush1.msra.mxu0 0.0
    %2832 = vmatprep.subr.mxu0 0.0
    %2833 = vmatpush1.msra.mxu0 0.0
    %2834 = vmatprep.subr.mxu0 0.0
    %2835 = vmatpush1.msra.mxu0 0.0
    %2836 = vmatprep.subr.mxu0 0.0
    %2837 = vmatpush1.msra.mxu0 0.0
    %2838 = vmatprep.subr.mxu0 0.0
    %2839 = vmatpush1.msra.mxu0 0.0
    %2840 = vmatprep.subr.mxu0 0.0
    %2841 = vmatpush1.msra.mxu0 0.0
    %2842 = vmatprep.subr.mxu0 0.0
    %2843 = vmatpush1.msra.mxu0 0.0
    %2844 = vmatprep.subr.mxu0 0.0
    %2845 = vmatpush1.msra.mxu0 0.0
    %2846 = vmatprep.subr.mxu0 0.0
    %2847 = vmatpush1.msra.mxu0 0.0
    %2848 = vmatprep.subr.mxu0 0.0
    %2849 = vmatpush1.msra.mxu0 0.0
    %2850 = vmatprep.subr.mxu0 0.0
    %2851 = vmatpush1.msra.mxu0 0.0
    %2852 = vmatprep.subr.mxu0 0.0
    %2853 = vmatpush1.msra.mxu0 0.0
    %2854 = vmatprep.subr.mxu0 0.0
    %2855 = vmatpush1.msra.mxu0 0.0
    %2856 = vmatprep.subr.mxu0 0.0
    %2857 = vmatpush1.msra.mxu0 0.0
    %2858 = vmatprep.subr.mxu0 0.0
    %2859 = vmatpush1.msra.mxu0 0.0
    %2860 = vmatprep.mubr.f32.mxu0 0.0
    %2861 = vmatmul.mubr.f32.gmra.mrb[0].mxu0 %v2653
    %v2862 = vpop.f32.mrb[0].mxu0
    %v2863 = vadd.f32 %v2721, %v2862
    %v2864 = vpop.f32.mrb[0].mxu0
    %v2865 = vadd.f32 %v2723, %v2864
    %2866 = vdwg.mxu0
    %2867 = vmatprep.subr.mxu0 %v213
    %2868 = vmatpush1.msra.mxu0 %v212
    %2869 = vmatprep.subr.mxu0 %v217
    %2870 = vmatpush1.msra.mxu0 %v216
    %2871 = vmatprep.subr.mxu0 %v221
    %2872 = vmatpush1.msra.mxu0 %v220
    %2873 = vmatprep.subr.mxu0 %v225
    %2874 = vmatpush1.msra.mxu0 %v224
    %2875 = vmatprep.subr.mxu0 %v229
    %2876 = vmatpush1.msra.mxu0 %v228
    %2877 = vmatprep.subr.mxu0 %v233
    %2878 = vmatpush1.msra.mxu0 %v232
    %2879 = vmatprep.subr.mxu0 %v237
    %2880 = vmatpush1.msra.mxu0 %v236
    %2881 = vmatprep.subr.mxu0 %v241
    %2882 = vmatpush1.msra.mxu0 %v240
    %2883 = vmatprep.subr.mxu0 %v245
    %2884 = vmatpush1.msra.mxu0 %v244
    %2885 = vmatprep.subr.mxu0 %v249
    %2886 = vmatpush1.msra.mxu0 %v248
    %2887 = vmatprep.subr.mxu0 %v253
    %2888 = vmatpush1.msra.mxu0 %v252
    %2889 = vmatprep.subr.mxu0 %v257
    %2890 = vmatpush1.msra.mxu0 %v256
    %2891 = vmatprep.subr.mxu0 %v261
    %2892 = vmatpush1.msra.mxu0 %v260
    %2893 = vmatprep.subr.mxu0 %v265
    %2894 = vmatpush1.msra.mxu0 %v264
    %2895 = vmatprep.subr.mxu0 %v269
    %2896 = vmatpush1.msra.mxu0 %v268
    %2897 = vmatprep.subr.mxu0 %v273
    %2898 = vmatpush1.msra.mxu0 %v272
    %2899 = vmatprep.subr.mxu0 0.0
    %2900 = vmatpush1.msra.mxu0 0.0
    %2901 = vmatprep.subr.mxu0 0.0
    %2902 = vmatpush1.msra.mxu0 0.0
    %2903 = vmatprep.subr.mxu0 0.0
    %2904 = vmatpush1.msra.mxu0 0.0
    %2905 = vmatprep.subr.mxu0 0.0
    %2906 = vmatpush1.msra.mxu0 0.0
    %2907 = vmatprep.subr.mxu0 0.0
    %2908 = vmatpush1.msra.mxu0 0.0
    %2909 = vmatprep.subr.mxu0 0.0
    %2910 = vmatpush1.msra.mxu0 0.0
    %2911 = vmatprep.subr.mxu0 0.0
    %2912 = vmatpush1.msra.mxu0 0.0
    %2913 = vmatprep.subr.mxu0 0.0
    %2914 = vmatpush1.msra.mxu0 0.0
    %2915 = vmatprep.subr.mxu0 0.0
    %2916 = vmatpush1.msra.mxu0 0.0
    %2917 = vmatprep.subr.mxu0 0.0
    %2918 = vmatpush1.msra.mxu0 0.0
    %2919 = vmatprep.subr.mxu0 0.0
    %2920 = vmatpush1.msra.mxu0 0.0
    %2921 = vmatprep.subr.mxu0 0.0
    %2922 = vmatpush1.msra.mxu0 0.0
    %2923 = vmatprep.subr.mxu0 0.0
    %2924 = vmatpush1.msra.mxu0 0.0
    %2925 = vmatprep.subr.mxu0 0.0
    %2926 = vmatpush1.msra.mxu0 0.0
    %2927 = vmatprep.subr.mxu0 0.0
    %2928 = vmatpush1.msra.mxu0 0.0
    %2929 = vmatprep.subr.mxu0 0.0
    %2930 = vmatpush1.msra.mxu0 0.0
    %2931 = vmatprep.mubr.f32.mxu0 0.0
    %2932 = vmatmul.mubr.f32.gmra.mrb[0].mxu0 %v2653
    %v2933 = vpop.f32.mrb[0].mxu0
    %v2934 = vadd.f32 %v2792, %v2933
    %v2935 = vpop.f32.mrb[0].mxu0
    %v2936 = vadd.f32 %v2794, %v2935
    %2937 = vdwg.mxu0
    %v2938 = vadd.f32 %v2863, %v170
    %v2939 = vadd.f32 %v2865, %v174
    %v2940 = vadd.f32 %v2934, %v178
    %v2941 = vadd.f32 %v2936, %v182
    %v2942 = vxor.u32 %v2938, 2147483648
    %v2943 = vxor.u32 %v2939, 2147483648
    %v2944 = vxor.u32 %v2940, 2147483648
    %v2945 = vmul.f32 %v2942, 1.442695
    %v2946 = vpow.pop %v2945
    %v2947 = vmul.f32 %v2943, 1.442695
    %v2948 = vpow.pop %v2947
    %v2949 = vmul.f32 %v2944, 1.442695
    %v2950 = vpow.pop %v2949
    %v2951 = vadd.f32 %v2946, 1.0
    %v2952 = vadd.f32 %v2948, 1.0
    %v2953 = vadd.f32 %v2950, 1.0
    %v2954 = vrcp.pop %v2951
    %v2955 = vmul.f32 1.0, %v2954
    %v2956 = vrcp.pop %v2952
    %v2957 = vmul.f32 1.0, %v2956
    %v2958 = vrcp.pop %v2953
    %v2959 = vmul.f32 1.0, %v2958
    %v2960 = vtanh.pop %v2941
    %v2961 = vmul.f32 %v2957, %v2338
    %v2962 = vmul.f32 %v2955, %v2960
    %v2963 = vadd.f32 %v2961, %v2962
    %v2964 = vtanh.pop %v2963
    %v2965 = vmul.f32 %v2959, %v2964
    %2966 = vmatprep.subr.mxu0 %v1028
    %2967 = vmatpush1.msra.mxu0 %v1027
    %2968 = vmatprep.subr.mxu0 %v1032
    %2969 = vmatpush1.msra.mxu0 %v1031
    %2970 = vmatprep.subr.mxu0 %v1036
    %2971 = vmatpush1.msra.mxu0 %v1035
    %2972 = vmatprep.subr.mxu0 %v1040
    %2973 = vmatpush1.msra.mxu0 %v1039
    %2974 = vmatprep.subr.mxu0 %v1044
    %2975 = vmatpush1.msra.mxu0 %v1043
    %2976 = vmatprep.subr.mxu0 %v1048
    %2977 = vmatpush1.msra.mxu0 %v1047
    %2978 = vmatprep.subr.mxu0 %v1052
    %2979 = vmatpush1.msra.mxu0 %v1051
    %2980 = vmatprep.subr.mxu0 %v1056
    %2981 = vmatpush1.msra.mxu0 %v1055
    %2982 = vmatprep.subr.mxu0 %v1060
    %2983 = vmatpush1.msra.mxu0 %v1059
    %2984 = vmatprep.subr.mxu0 %v1064
    %2985 = vmatpush1.msra.mxu0 %v1063
    %2986 = vmatprep.subr.mxu0 %v1068
    %2987 = vmatpush1.msra.mxu0 %v1067
    %2988 = vmatprep.subr.mxu0 %v1072
    %2989 = vmatpush1.msra.mxu0 %v1071
    %2990 = vmatprep.subr.mxu0 %v1076
    %2991 = vmatpush1.msra.mxu0 %v1075
    %2992 = vmatprep.subr.mxu0 %v1080
    %2993 = vmatpush1.msra.mxu0 %v1079
    %2994 = vmatprep.subr.mxu0 %v1084
    %2995 = vmatpush1.msra.mxu0 %v1083
    %2996 = vmatprep.subr.mxu0 %v1088
    %2997 = vmatpush1.msra.mxu0 %v1087
    %2998 = vmatprep.subr.mxu0 0.0
    %2999 = vmatpush1.msra.mxu0 0.0
    %3000 = vmatprep.subr.mxu0 0.0
    %3001 = vmatpush1.msra.mxu0 0.0
    %3002 = vmatprep.subr.mxu0 0.0
    %3003 = vmatpush1.msra.mxu0 0.0
    %3004 = vmatprep.subr.mxu0 0.0
    %3005 = vmatpush1.msra.mxu0 0.0
    %3006 = vmatprep.subr.mxu0 0.0
    %3007 = vmatpush1.msra.mxu0 0.0
    %3008 = vmatprep.subr.mxu0 0.0
    %3009 = vmatpush1.msra.mxu0 0.0
    %3010 = vmatprep.subr.mxu0 0.0
    %3011 = vmatpush1.msra.mxu0 0.0
    %3012 = vmatprep.subr.mxu0 0.0
    %3013 = vmatpush1.msra.mxu0 0.0
    %3014 = vmatprep.subr.mxu0 0.0
    %3015 = vmatpush1.msra.mxu0 0.0
    %3016 = vmatprep.subr.mxu0 0.0
    %3017 = vmatpush1.msra.mxu0 0.0
    %3018 = vmatprep.subr.mxu0 0.0
    %3019 = vmatpush1.msra.mxu0 0.0
    %3020 = vmatprep.subr.mxu0 0.0
    %3021 = vmatpush1.msra.mxu0 0.0
    %3022 = vmatprep.subr.mxu0 0.0
    %3023 = vmatpush1.msra.mxu0 0.0
    %3024 = vmatprep.subr.mxu0 0.0
    %3025 = vmatpush1.msra.mxu0 0.0
    %3026 = vmatprep.subr.mxu0 0.0
    %3027 = vmatpush1.msra.mxu0 0.0
    %3028 = vmatprep.subr.mxu0 0.0
    %3029 = vmatpush1.msra.mxu0 0.0
    %3030 = vmatprep.mubr.f32.mxu0 0.0
    %3031 = vmatmul.mubr.f32.gmra.mrb[0].mxu0 %v2652
    %v3032 = vpop.f32.mrb[0].mxu0
    %v3033 = vadd.f32 0.0, %v3032
    %v3034 = vpop.f32.mrb[0].mxu0
    %v3035 = vadd.f32 0.0, %v3034
    %3036 = vdwg.mxu0
    %3037 = vmatprep.subr.mxu0 %v1030
    %3038 = vmatpush1.msra.mxu0 %v1029
    %3039 = vmatprep.subr.mxu0 %v1034
    %3040 = vmatpush1.msra.mxu0 %v1033
    %3041 = vmatprep.subr.mxu0 %v1038
    %3042 = vmatpush1.msra.mxu0 %v1037
    %3043 = vmatprep.subr.mxu0 %v1042
    %3044 = vmatpush1.msra.mxu0 %v1041
    %3045 = vmatprep.subr.mxu0 %v1046
    %3046 = vmatpush1.msra.mxu0 %v1045
    %3047 = vmatprep.subr.mxu0 %v1050
    %3048 = vmatpush1.msra.mxu0 %v1049
    %3049 = vmatprep.subr.mxu0 %v1054
    %3050 = vmatpush1.msra.mxu0 %v1053
    %3051 = vmatprep.subr.mxu0 %v1058
    %3052 = vmatpush1.msra.mxu0 %v1057
    %3053 = vmatprep.subr.mxu0 %v1062
    %3054 = vmatpush1.msra.mxu0 %v1061
    %3055 = vmatprep.subr.mxu0 %v1066
    %3056 = vmatpush1.msra.mxu0 %v1065
    %3057 = vmatprep.subr.mxu0 %v1070
    %3058 = vmatpush1.msra.mxu0 %v1069
    %3059 = vmatprep.subr.mxu0 %v1074
    %3060 = vmatpush1.msra.mxu0 %v1073
    %3061 = vmatprep.subr.mxu0 %v1078
    %3062 = vmatpush1.msra.mxu0 %v1077
    %3063 = vmatprep.subr.mxu0 %v1082
    %3064 = vmatpush1.msra.mxu0 %v1081
    %3065 = vmatprep.subr.mxu0 %v1086
    %3066 = vmatpush1.msra.mxu0 %v1085
    %3067 = vmatprep.subr.mxu0 %v1090
    %3068 = vmatpush1.msra.mxu0 %v1089
    %3069 = vmatprep.subr.mxu0 0.0
    %3070 = vmatpush1.msra.mxu0 0.0
    %3071 = vmatprep.subr.mxu0 0.0
    %3072 = vmatpush1.msra.mxu0 0.0
    %3073 = vmatprep.subr.mxu0 0.0
    %3074 = vmatpush1.msra.mxu0 0.0
    %3075 = vmatprep.subr.mxu0 0.0
    %3076 = vmatpush1.msra.mxu0 0.0
    %3077 = vmatprep.subr.mxu0 0.0
    %3078 = vmatpush1.msra.mxu0 0.0
    %3079 = vmatprep.subr.mxu0 0.0
    %3080 = vmatpush1.msra.mxu0 0.0
    %3081 = vmatprep.subr.mxu0 0.0
    %3082 = vmatpush1.msra.mxu0 0.0
    %3083 = vmatprep.subr.mxu0 0.0
    %3084 = vmatpush1.msra.mxu0 0.0
    %3085 = vmatprep.subr.mxu0 0.0
    %3086 = vmatpush1.msra.mxu0 0.0
    %3087 = vmatprep.subr.mxu0 0.0
    %3088 = vmatpush1.msra.mxu0 0.0
    %3089 = vmatprep.subr.mxu0 0.0
    %3090 = vmatpush1.msra.mxu0 0.0
    %3091 = vmatprep.subr.mxu0 0.0
    %3092 = vmatpush1.msra.mxu0 0.0
    %3093 = vmatprep.subr.mxu0 0.0
    %3094 = vmatpush1.msra.mxu0 0.0
    %3095 = vmatprep.subr.mxu0 0.0
    %3096 = vmatpush1.msra.mxu0 0.0
    %3097 = vmatprep.subr.mxu0 0.0
    %3098 = vmatpush1.msra.mxu0 0.0
    %3099 = vmatprep.subr.mxu0 0.0
    %3100 = vmatpush1.msra.mxu0 0.0
    %3101 = vmatprep.mubr.f32.mxu0 0.0
    %3102 = vmatmul.mubr.f32.gmra.mrb[0].mxu0 %v2652
    %v3103 = vpop.f32.mrb[0].mxu0
    %v3104 = vadd.f32 0.0, %v3103
    %v3105 = vpop.f32.mrb[0].mxu0
    %v3106 = vadd.f32 0.0, %v3105
    %3107 = vdwg.mxu0
    %3108 = vmatprep.subr.mxu0 %v964
    %3109 = vmatpush1.msra.mxu0 %v963
    %3110 = vmatprep.subr.mxu0 %v968
    %3111 = vmatpush1.msra.mxu0 %v967
    %3112 = vmatprep.subr.mxu0 %v972
    %3113 = vmatpush1.msra.mxu0 %v971
    %3114 = vmatprep.subr.mxu0 %v976
    %3115 = vmatpush1.msra.mxu0 %v975
    %3116 = vmatprep.subr.mxu0 %v980
    %3117 = vmatpush1.msra.mxu0 %v979
    %3118 = vmatprep.subr.mxu0 %v984
    %3119 = vmatpush1.msra.mxu0 %v983
    %3120 = vmatprep.subr.mxu0 %v988
    %3121 = vmatpush1.msra.mxu0 %v987
    %3122 = vmatprep.subr.mxu0 %v992
    %3123 = vmatpush1.msra.mxu0 %v991
    %3124 = vmatprep.subr.mxu0 %v996
    %3125 = vmatpush1.msra.mxu0 %v995
    %3126 = vmatprep.subr.mxu0 %v1000
    %3127 = vmatpush1.msra.mxu0 %v999
    %3128 = vmatprep.subr.mxu0 %v1004
    %3129 = vmatpush1.msra.mxu0 %v1003
    %3130 = vmatprep.subr.mxu0 %v1008
    %3131 = vmatpush1.msra.mxu0 %v1007
    %3132 = vmatprep.subr.mxu0 %v1012
    %3133 = vmatpush1.msra.mxu0 %v1011
    %3134 = vmatprep.subr.mxu0 %v1016
    %3135 = vmatpush1.msra.mxu0 %v1015
    %3136 = vmatprep.subr.mxu0 %v1020
    %3137 = vmatpush1.msra.mxu0 %v1019
    %3138 = vmatprep.subr.mxu0 %v1024
    %3139 = vmatpush1.msra.mxu0 %v1023
    %3140 = vmatprep.subr.mxu0 0.0
    %3141 = vmatpush1.msra.mxu0 0.0
    %3142 = vmatprep.subr.mxu0 0.0
    %3143 = vmatpush1.msra.mxu0 0.0
    %3144 = vmatprep.subr.mxu0 0.0
    %3145 = vmatpush1.msra.mxu0 0.0
    %3146 = vmatprep.subr.mxu0 0.0
    %3147 = vmatpush1.msra.mxu0 0.0
    %3148 = vmatprep.subr.mxu0 0.0
    %3149 = vmatpush1.msra.mxu0 0.0
    %3150 = vmatprep.subr.mxu0 0.0
    %3151 = vmatpush1.msra.mxu0 0.0
    %3152 = vmatprep.subr.mxu0 0.0
    %3153 = vmatpush1.msra.mxu0 0.0
    %3154 = vmatprep.subr.mxu0 0.0
    %3155 = vmatpush1.msra.mxu0 0.0
    %3156 = vmatprep.subr.mxu0 0.0
    %3157 = vmatpush1.msra.mxu0 0.0
    %3158 = vmatprep.subr.mxu0 0.0
    %3159 = vmatpush1.msra.mxu0 0.0
    %3160 = vmatprep.subr.mxu0 0.0
    %3161 = vmatpush1.msra.mxu0 0.0
    %3162 = vmatprep.subr.mxu0 0.0
    %3163 = vmatpush1.msra.mxu0 0.0
    %3164 = vmatprep.subr.mxu0 0.0
    %3165 = vmatpush1.msra.mxu0 0.0
    %3166 = vmatprep.subr.mxu0 0.0
    %3167 = vmatpush1.msra.mxu0 0.0
    %3168 = vmatprep.subr.mxu0 0.0
    %3169 = vmatpush1.msra.mxu0 0.0
    %3170 = vmatprep.subr.mxu0 0.0
    %3171 = vmatpush1.msra.mxu0 0.0
    %3172 = vmatprep.mubr.f32.mxu0 0.0
    %3173 = vmatmul.mubr.f32.gmra.mrb[0].mxu0 %v2340
    %v3174 = vpop.f32.mrb[0].mxu0
    %v3175 = vadd.f32 %v3033, %v3174
    %v3176 = vpop.f32.mrb[0].mxu0
    %v3177 = vadd.f32 %v3035, %v3176
    %3178 = vdwg.mxu0
    %3179 = vmatprep.subr.mxu0 %v966
    %3180 = vmatpush1.msra.mxu0 %v965
    %3181 = vmatprep.subr.mxu0 %v970
    %3182 = vmatpush1.msra.mxu0 %v969
    %3183 = vmatprep.subr.mxu0 %v974
    %3184 = vmatpush1.msra.mxu0 %v973
    %3185 = vmatprep.subr.mxu0 %v978
    %3186 = vmatpush1.msra.mxu0 %v977
    %3187 = vmatprep.subr.mxu0 %v982
    %3188 = vmatpush1.msra.mxu0 %v981
    %3189 = vmatprep.subr.mxu0 %v986
    %3190 = vmatpush1.msra.mxu0 %v985
    %3191 = vmatprep.subr.mxu0 %v990
    %3192 = vmatpush1.msra.mxu0 %v989
    %3193 = vmatprep.subr.mxu0 %v994
    %3194 = vmatpush1.msra.mxu0 %v993
    %3195 = vmatprep.subr.mxu0 %v998
    %3196 = vmatpush1.msra.mxu0 %v997
    %3197 = vmatprep.subr.mxu0 %v1002
    %3198 = vmatpush1.msra.mxu0 %v1001
    %3199 = vmatprep.subr.mxu0 %v1006
    %3200 = vmatpush1.msra.mxu0 %v1005
    %3201 = vmatprep.subr.mxu0 %v1010
    %3202 = vmatpush1.msra.mxu0 %v1009
    %3203 = vmatprep.subr.mxu0 %v1014
    %3204 = vmatpush1.msra.mxu0 %v1013
    %3205 = vmatprep.subr.mxu0 %v1018
    %3206 = vmatpush1.msra.mxu0 %v1017
    %3207 = vmatprep.subr.mxu0 %v1022
    %3208 = vmatpush1.msra.mxu0 %v1021
    %3209 = vmatprep.subr.mxu0 %v1026
    %3210 = vmatpush1.msra.mxu0 %v1025
    %3211 = vmatprep.subr.mxu0 0.0
    %3212 = vmatpush1.msra.mxu0 0.0
    %3213 = vmatprep.subr.mxu0 0.0
    %3214 = vmatpush1.msra.mxu0 0.0
    %3215 = vmatprep.subr.mxu0 0.0
    %3216 = vmatpush1.msra.mxu0 0.0
    %3217 = vmatprep.subr.mxu0 0.0
    %3218 = vmatpush1.msra.mxu0 0.0
    %3219 = vmatprep.subr.mxu0 0.0
    %3220 = vmatpush1.msra.mxu0 0.0
    %3221 = vmatprep.subr.mxu0 0.0
    %3222 = vmatpush1.msra.mxu0 0.0
    %3223 = vmatprep.subr.mxu0 0.0
    %3224 = vmatpush1.msra.mxu0 0.0
    %3225 = vmatprep.subr.mxu0 0.0
    %3226 = vmatpush1.msra.mxu0 0.0
    %3227 = vmatprep.subr.mxu0 0.0
    %3228 = vmatpush1.msra.mxu0 0.0
    %3229 = vmatprep.subr.mxu0 0.0
    %3230 = vmatpush1.msra.mxu0 0.0
    %3231 = vmatprep.subr.mxu0 0.0
    %3232 = vmatpush1.msra.mxu0 0.0
    %3233 = vmatprep.subr.mxu0 0.0
    %3234 = vmatpush1.msra.mxu0 0.0
    %3235 = vmatprep.subr.mxu0 0.0
    %3236 = vmatpush1.msra.mxu0 0.0
    %3237 = vmatprep.subr.mxu0 0.0
    %3238 = vmatpush1.msra.mxu0 0.0
    %3239 = vmatprep.subr.mxu0 0.0
    %3240 = vmatpush1.msra.mxu0 0.0
    %3241 = vmatprep.subr.mxu0 0.0
    %3242 = vmatpush1.msra.mxu0 0.0
    %3243 = vmatprep.mubr.f32.mxu0 0.0
    %3244 = vmatmul.mubr.f32.gmra.mrb[0].mxu0 %v2340
    %v3245 = vpop.f32.mrb[0].mxu0
    %v3246 = vadd.f32 %v3104, %v3245
    %v3247 = vpop.f32.mrb[0].mxu0
    %v3248 = vadd.f32 %v3106, %v3247
    %3249 = vdwg.mxu0
    %v3250 = vadd.f32 %v3175, %v192
    %v3251 = vadd.f32 %v3177, %v196
    %v3252 = vadd.f32 %v3246, %v200
    %v3253 = vadd.f32 %v3248, %v204
    %v3254 = vxor.u32 %v3250, 2147483648
    %v3255 = vxor.u32 %v3251, 2147483648
    %v3256 = vxor.u32 %v3252, 2147483648
    %v3257 = vmul.f32 %v3254, 1.442695
    %v3258 = vpow.pop %v3257
    %v3259 = vmul.f32 %v3255, 1.442695
    %v3260 = vpow.pop %v3259
    %v3261 = vmul.f32 %v3256, 1.442695
    %v3262 = vpow.pop %v3261
    %v3263 = vadd.f32 %v3258, 1.0
    %v3264 = vadd.f32 %v3260, 1.0
    %v3265 = vadd.f32 %v3262, 1.0
    %v3266 = vrcp.pop %v3263
    %v3267 = vmul.f32 1.0, %v3266
    %v3268 = vrcp.pop %v3264
    %v3269 = vmul.f32 1.0, %v3268
    %v3270 = vrcp.pop %v3265
    %v3271 = vmul.f32 1.0, %v3270
    %v3272 = vtanh.pop %v3253
    %v3273 = vmul.f32 %v3269, %v2650
    %v3274 = vmul.f32 %v3267, %v3272
    %v3275 = vadd.f32 %v3273, %v3274
    %v3276 = vtanh.pop %v3275
    %v3277 = vmul.f32 %v3271, %v3276
    %v3278 = vld [vmem:[#allocation2 + $0x28] sm:$0xff]
    %3279 = vmatprep.subr.mxu0 %v275
    %3280 = vmatpush1.msra.mxu0 %v274
    %3281 = vmatprep.subr.mxu0 %v279
    %3282 = vmatpush1.msra.mxu0 %v278
    %3283 = vmatprep.subr.mxu0 %v283
    %3284 = vmatpush1.msra.mxu0 %v282
    %3285 = vmatprep.subr.mxu0 %v287
    %3286 = vmatpush1.msra.mxu0 %v286
    %3287 = vmatprep.subr.mxu0 %v291
    %3288 = vmatpush1.msra.mxu0 %v290
    %3289 = vmatprep.subr.mxu0 %v295
    %3290 = vmatpush1.msra.mxu0 %v294
    %3291 = vmatprep.subr.mxu0 %v299
    %3292 = vmatpush1.msra.mxu0 %v298
    %3293 = vmatprep.subr.mxu0 %v303
    %3294 = vmatpush1.msra.mxu0 %v302
    %3295 = vmatprep.subr.mxu0 %v307
    %3296 = vmatpush1.msra.mxu0 %v306
    %3297 = vmatprep.subr.mxu0 %v311
    %3298 = vmatpush1.msra.mxu0 %v310
    %3299 = vmatprep.subr.mxu0 %v315
    %3300 = vmatpush1.msra.mxu0 %v314
    %3301 = vmatprep.subr.mxu0 %v319
    %3302 = vmatpush1.msra.mxu0 %v318
    %3303 = vmatprep.subr.mxu0 %v323
    %3304 = vmatpush1.msra.mxu0 %v322
    %3305 = vmatprep.subr.mxu0 %v327
    %3306 = vmatpush1.msra.mxu0 %v326
    %3307 = vmatprep.subr.mxu0 %v331
    %3308 = vmatpush1.msra.mxu0 %v330
    %3309 = vmatprep.subr.mxu0 %v335
    %3310 = vmatpush1.msra.mxu0 %v334
    %3311 = vmatprep.subr.mxu0 0.0
    %3312 = vmatpush1.msra.mxu0 0.0
    %3313 = vmatprep.subr.mxu0 0.0
    %3314 = vmatpush1.msra.mxu0 0.0
    %3315 = vmatprep.subr.mxu0 0.0
    %3316 = vmatpush1.msra.mxu0 0.0
    %3317 = vmatprep.subr.mxu0 0.0
    %3318 = vmatpush1.msra.mxu0 0.0
    %3319 = vmatprep.subr.mxu0 0.0
    %3320 = vmatpush1.msra.mxu0 0.0
    %3321 = vmatprep.subr.mxu0 0.0
    %3322 = vmatpush1.msra.mxu0 0.0
    %3323 = vmatprep.subr.mxu0 0.0
    %3324 = vmatpush1.msra.mxu0 0.0
    %3325 = vmatprep.subr.mxu0 0.0
    %3326 = vmatpush1.msra.mxu0 0.0
    %3327 = vmatprep.subr.mxu0 0.0
    %3328 = vmatpush1.msra.mxu0 0.0
    %3329 = vmatprep.subr.mxu0 0.0
    %3330 = vmatpush1.msra.mxu0 0.0
    %3331 = vmatprep.subr.mxu0 0.0
    %3332 = vmatpush1.msra.mxu0 0.0
    %3333 = vmatprep.subr.mxu0 0.0
    %3334 = vmatpush1.msra.mxu0 0.0
    %3335 = vmatprep.subr.mxu0 0.0
    %3336 = vmatpush1.msra.mxu0 0.0
    %3337 = vmatprep.subr.mxu0 0.0
    %3338 = vmatpush1.msra.mxu0 0.0
    %3339 = vmatprep.subr.mxu0 0.0
    %3340 = vmatpush1.msra.mxu0 0.0
    %3341 = vmatprep.subr.mxu0 0.0
    %3342 = vmatpush1.msra.mxu0 0.0
    %3343 = vmatprep.mubr.f32.mxu0 0.0
    %3344 = vmatmul.mubr.f32.gmra.mrb[0].mxu0 %v2965
    %v3345 = vpop.f32.mrb[0].mxu0
    %v3346 = vadd.f32 0.0, %v3345
    %v3347 = vpop.f32.mrb[0].mxu0
    %v3348 = vadd.f32 0.0, %v3347
    %3349 = vdwg.mxu0
    %3350 = vmatprep.subr.mxu0 %v277
    %3351 = vmatpush1.msra.mxu0 %v276
    %3352 = vmatprep.subr.mxu0 %v281
    %3353 = vmatpush1.msra.mxu0 %v280
    %3354 = vmatprep.subr.mxu0 %v285
    %3355 = vmatpush1.msra.mxu0 %v284
    %3356 = vmatprep.subr.mxu0 %v289
    %3357 = vmatpush1.msra.mxu0 %v288
    %3358 = vmatprep.subr.mxu0 %v293
    %3359 = vmatpush1.msra.mxu0 %v292
    %3360 = vmatprep.subr.mxu0 %v297
    %3361 = vmatpush1.msra.mxu0 %v296
    %3362 = vmatprep.subr.mxu0 %v301
    %3363 = vmatpush1.msra.mxu0 %v300
    %3364 = vmatprep.subr.mxu0 %v305
    %3365 = vmatpush1.msra.mxu0 %v304
    %3366 = vmatprep.subr.mxu0 %v309
    %3367 = vmatpush1.msra.mxu0 %v308
    %3368 = vmatprep.subr.mxu0 %v313
    %3369 = vmatpush1.msra.mxu0 %v312
    %3370 = vmatprep.subr.mxu0 %v317
    %3371 = vmatpush1.msra.mxu0 %v316
    %3372 = vmatprep.subr.mxu0 %v321
    %3373 = vmatpush1.msra.mxu0 %v320
    %3374 = vmatprep.subr.mxu0 %v325
    %3375 = vmatpush1.msra.mxu0 %v324
    %3376 = vmatprep.subr.mxu0 %v329
    %3377 = vmatpush1.msra.mxu0 %v328
    %3378 = vmatprep.subr.mxu0 %v333
    %3379 = vmatpush1.msra.mxu0 %v332
    %3380 = vmatprep.subr.mxu0 %v337
    %3381 = vmatpush1.msra.mxu0 %v336
    %3382 = vmatprep.subr.mxu0 0.0
    %3383 = vmatpush1.msra.mxu0 0.0
    %3384 = vmatprep.subr.mxu0 0.0
    %3385 = vmatpush1.msra.mxu0 0.0
    %3386 = vmatprep.subr.mxu0 0.0
    %3387 = vmatpush1.msra.mxu0 0.0
    %3388 = vmatprep.subr.mxu0 0.0
    %3389 = vmatpush1.msra.mxu0 0.0
    %3390 = vmatprep.subr.mxu0 0.0
    %3391 = vmatpush1.msra.mxu0 0.0
    %3392 = vmatprep.subr.mxu0 0.0
    %3393 = vmatpush1.msra.mxu0 0.0
    %3394 = vmatprep.subr.mxu0 0.0
    %3395 = vmatpush1.msra.mxu0 0.0
    %3396 = vmatprep.subr.mxu0 0.0
    %3397 = vmatpush1.msra.mxu0 0.0
    %3398 = vmatprep.subr.mxu0 0.0
    %3399 = vmatpush1.msra.mxu0 0.0
    %3400 = vmatprep.subr.mxu0 0.0
    %3401 = vmatpush1.msra.mxu0 0.0
    %3402 = vmatprep.subr.mxu0 0.0
    %3403 = vmatpush1.msra.mxu0 0.0
    %3404 = vmatprep.subr.mxu0 0.0
    %3405 = vmatpush1.msra.mxu0 0.0
    %3406 = vmatprep.subr.mxu0 0.0
    %3407 = vmatpush1.msra.mxu0 0.0
    %3408 = vmatprep.subr.mxu0 0.0
    %3409 = vmatpush1.msra.mxu0 0.0
    %3410 = vmatprep.subr.mxu0 0.0
    %3411 = vmatpush1.msra.mxu0 0.0
    %3412 = vmatprep.subr.mxu0 0.0
    %3413 = vmatpush1.msra.mxu0 0.0
    %3414 = vmatprep.mubr.f32.mxu0 0.0
    %3415 = vmatmul.mubr.f32.gmra.mrb[0].mxu0 %v2965
    %v3416 = vpop.f32.mrb[0].mxu0
    %v3417 = vadd.f32 0.0, %v3416
    %v3418 = vpop.f32.mrb[0].mxu0
    %v3419 = vadd.f32 0.0, %v3418
    %3420 = vdwg.mxu0
    %3421 = vmatprep.subr.mxu0 %v211
    %3422 = vmatpush1.msra.mxu0 %v210
    %3423 = vmatprep.subr.mxu0 %v215
    %3424 = vmatpush1.msra.mxu0 %v214
    %3425 = vmatprep.subr.mxu0 %v219
    %3426 = vmatpush1.msra.mxu0 %v218
    %3427 = vmatprep.subr.mxu0 %v223
    %3428 = vmatpush1.msra.mxu0 %v222
    %3429 = vmatprep.subr.mxu0 %v227
    %3430 = vmatpush1.msra.mxu0 %v226
    %3431 = vmatprep.subr.mxu0 %v231
    %3432 = vmatpush1.msra.mxu0 %v230
    %3433 = vmatprep.subr.mxu0 %v235
    %3434 = vmatpush1.msra.mxu0 %v234
    %3435 = vmatprep.subr.mxu0 %v239
    %3436 = vmatpush1.msra.mxu0 %v238
    %3437 = vmatprep.subr.mxu0 %v243
    %3438 = vmatpush1.msra.mxu0 %v242
    %3439 = vmatprep.subr.mxu0 %v247
    %3440 = vmatpush1.msra.mxu0 %v246
    %3441 = vmatprep.subr.mxu0 %v251
    %3442 = vmatpush1.msra.mxu0 %v250
    %3443 = vmatprep.subr.mxu0 %v255
    %3444 = vmatpush1.msra.mxu0 %v254
    %3445 = vmatprep.subr.mxu0 %v259
    %3446 = vmatpush1.msra.mxu0 %v258
    %3447 = vmatprep.subr.mxu0 %v263
    %3448 = vmatpush1.msra.mxu0 %v262
    %3449 = vmatprep.subr.mxu0 %v267
    %3450 = vmatpush1.msra.mxu0 %v266
    %3451 = vmatprep.subr.mxu0 %v271
    %3452 = vmatpush1.msra.mxu0 %v270
    %3453 = vmatprep.subr.mxu0 0.0
    %3454 = vmatpush1.msra.mxu0 0.0
    %3455 = vmatprep.subr.mxu0 0.0
    %3456 = vmatpush1.msra.mxu0 0.0
    %3457 = vmatprep.subr.mxu0 0.0
    %3458 = vmatpush1.msra.mxu0 0.0
    %3459 = vmatprep.subr.mxu0 0.0
    %3460 = vmatpush1.msra.mxu0 0.0
    %3461 = vmatprep.subr.mxu0 0.0
    %3462 = vmatpush1.msra.mxu0 0.0
    %3463 = vmatprep.subr.mxu0 0.0
    %3464 = vmatpush1.msra.mxu0 0.0
    %3465 = vmatprep.subr.mxu0 0.0
    %3466 = vmatpush1.msra.mxu0 0.0
    %3467 = vmatprep.subr.mxu0 0.0
    %3468 = vmatpush1.msra.mxu0 0.0
    %3469 = vmatprep.subr.mxu0 0.0
    %3470 = vmatpush1.msra.mxu0 0.0
    %3471 = vmatprep.subr.mxu0 0.0
    %3472 = vmatpush1.msra.mxu0 0.0
    %3473 = vmatprep.subr.mxu0 0.0
    %3474 = vmatpush1.msra.mxu0 0.0
    %3475 = vmatprep.subr.mxu0 0.0
    %3476 = vmatpush1.msra.mxu0 0.0
    %3477 = vmatprep.subr.mxu0 0.0
    %3478 = vmatpush1.msra.mxu0 0.0
    %3479 = vmatprep.subr.mxu0 0.0
    %3480 = vmatpush1.msra.mxu0 0.0
    %3481 = vmatprep.subr.mxu0 0.0
    %3482 = vmatpush1.msra.mxu0 0.0
    %3483 = vmatprep.subr.mxu0 0.0
    %3484 = vmatpush1.msra.mxu0 0.0
    %3485 = vmatprep.mubr.f32.mxu0 0.0
    %3486 = vmatmul.mubr.f32.gmra.mrb[0].mxu0 %v3278
    %v3487 = vpop.f32.mrb[0].mxu0
    %v3488 = vadd.f32 %v3346, %v3487
    %v3489 = vpop.f32.mrb[0].mxu0
    %v3490 = vadd.f32 %v3348, %v3489
    %3491 = vdwg.mxu0
    %3492 = vmatprep.subr.mxu0 %v213
    %3493 = vmatpush1.msra.mxu0 %v212
    %3494 = vmatprep.subr.mxu0 %v217
    %3495 = vmatpush1.msra.mxu0 %v216
    %3496 = vmatprep.subr.mxu0 %v221
    %3497 = vmatpush1.msra.mxu0 %v220
    %3498 = vmatprep.subr.mxu0 %v225
    %3499 = vmatpush1.msra.mxu0 %v224
    %3500 = vmatprep.subr.mxu0 %v229
    %3501 = vmatpush1.msra.mxu0 %v228
    %3502 = vmatprep.subr.mxu0 %v233
    %3503 = vmatpush1.msra.mxu0 %v232
    %3504 = vmatprep.subr.mxu0 %v237
    %3505 = vmatpush1.msra.mxu0 %v236
    %3506 = vmatprep.subr.mxu0 %v241
    %3507 = vmatpush1.msra.mxu0 %v240
    %3508 = vmatprep.subr.mxu0 %v245
    %3509 = vmatpush1.msra.mxu0 %v244
    %3510 = vmatprep.subr.mxu0 %v249
    %3511 = vmatpush1.msra.mxu0 %v248
    %3512 = vmatprep.subr.mxu0 %v253
    %3513 = vmatpush1.msra.mxu0 %v252
    %3514 = vmatprep.subr.mxu0 %v257
    %3515 = vmatpush1.msra.mxu0 %v256
    %3516 = vmatprep.subr.mxu0 %v261
    %3517 = vmatpush1.msra.mxu0 %v260
    %3518 = vmatprep.subr.mxu0 %v265
    %3519 = vmatpush1.msra.mxu0 %v264
    %3520 = vmatprep.subr.mxu0 %v269
    %3521 = vmatpush1.msra.mxu0 %v268
    %3522 = vmatprep.subr.mxu0 %v273
    %3523 = vmatpush1.msra.mxu0 %v272
    %3524 = vmatprep.subr.mxu0 0.0
    %3525 = vmatpush1.msra.mxu0 0.0
    %3526 = vmatprep.subr.mxu0 0.0
    %3527 = vmatpush1.msra.mxu0 0.0
    %3528 = vmatprep.subr.mxu0 0.0
    %3529 = vmatpush1.msra.mxu0 0.0
    %3530 = vmatprep.subr.mxu0 0.0
    %3531 = vmatpush1.msra.mxu0 0.0
    %3532 = vmatprep.subr.mxu0 0.0
    %3533 = vmatpush1.msra.mxu0 0.0
    %3534 = vmatprep.subr.mxu0 0.0
    %3535 = vmatpush1.msra.mxu0 0.0
    %3536 = vmatprep.subr.mxu0 0.0
    %3537 = vmatpush1.msra.mxu0 0.0
    %3538 = vmatprep.subr.mxu0 0.0
    %3539 = vmatpush1.msra.mxu0 0.0
    %3540 = vmatprep.subr.mxu0 0.0
    %3541 = vmatpush1.msra.mxu0 0.0
    %3542 = vmatprep.subr.mxu0 0.0
    %3543 = vmatpush1.msra.mxu0 0.0
    %3544 = vmatprep.subr.mxu0 0.0
    %3545 = vmatpush1.msra.mxu0 0.0
    %3546 = vmatprep.subr.mxu0 0.0
    %3547 = vmatpush1.msra.mxu0 0.0
    %3548 = vmatprep.subr.mxu0 0.0
    %3549 = vmatpush1.msra.mxu0 0.0
    %3550 = vmatprep.subr.mxu0 0.0
    %3551 = vmatpush1.msra.mxu0 0.0
    %3552 = vmatprep.subr.mxu0 0.0
    %3553 = vmatpush1.msra.mxu0 0.0
    %3554 = vmatprep.subr.mxu0 0.0
    %3555 = vmatpush1.msra.mxu0 0.0
    %3556 = vmatprep.mubr.f32.mxu0 0.0
    %3557 = vmatmul.mubr.f32.gmra.mrb[0].mxu0 %v3278
    %v3558 = vpop.f32.mrb[0].mxu0
    %v3559 = vadd.f32 %v3417, %v3558
    %v3560 = vpop.f32.mrb[0].mxu0
    %v3561 = vadd.f32 %v3419, %v3560
    %3562 = vdwg.mxu0
    %v3563 = vadd.f32 %v3488, %v170
    %v3564 = vadd.f32 %v3490, %v174
    %v3565 = vadd.f32 %v3559, %v178
    %v3566 = vadd.f32 %v3561, %v182
    %v3567 = vxor.u32 %v3563, 2147483648
    %v3568 = vxor.u32 %v3564, 2147483648
    %v3569 = vxor.u32 %v3565, 2147483648
    %v3570 = vmul.f32 %v3567, 1.442695
    %v3571 = vpow.pop %v3570
    %v3572 = vmul.f32 %v3568, 1.442695
    %v3573 = vpow.pop %v3572
    %v3574 = vmul.f32 %v3569, 1.442695
    %v3575 = vpow.pop %v3574
    %v3576 = vadd.f32 %v3571, 1.0
    %v3577 = vadd.f32 %v3573, 1.0
    %v3578 = vadd.f32 %v3575, 1.0
    %v3579 = vrcp.pop %v3576
    %v3580 = vmul.f32 1.0, %v3579
    %v3581 = vrcp.pop %v3577
    %v3582 = vmul.f32 1.0, %v3581
    %v3583 = vrcp.pop %v3578
    %v3584 = vmul.f32 1.0, %v3583
    %v3585 = vtanh.pop %v3566
    %v3586 = vmul.f32 %v3582, %v2963
    %v3587 = vmul.f32 %v3580, %v3585
    %v3588 = vadd.f32 %v3586, %v3587
    %v3589 = vtanh.pop %v3588
    %v3590 = vmul.f32 %v3584, %v3589
    %3591 = vmatprep.subr.mxu0 %v1028
    %3592 = vmatpush1.msra.mxu0 %v1027
    %3593 = vmatprep.subr.mxu0 %v1032
    %3594 = vmatpush1.msra.mxu0 %v1031
    %3595 = vmatprep.subr.mxu0 %v1036
    %3596 = vmatpush1.msra.mxu0 %v1035
    %3597 = vmatprep.subr.mxu0 %v1040
    %3598 = vmatpush1.msra.mxu0 %v1039
    %3599 = vmatprep.subr.mxu0 %v1044
    %3600 = vmatpush1.msra.mxu0 %v1043
    %3601 = vmatprep.subr.mxu0 %v1048
    %3602 = vmatpush1.msra.mxu0 %v1047
    %3603 = vmatprep.subr.mxu0 %v1052
    %3604 = vmatpush1.msra.mxu0 %v1051
    %3605 = vmatprep.subr.mxu0 %v1056
    %3606 = vmatpush1.msra.mxu0 %v1055
    %3607 = vmatprep.subr.mxu0 %v1060
    %3608 = vmatpush1.msra.mxu0 %v1059
    %3609 = vmatprep.subr.mxu0 %v1064
    %3610 = vmatpush1.msra.mxu0 %v1063
    %3611 = vmatprep.subr.mxu0 %v1068
    %3612 = vmatpush1.msra.mxu0 %v1067
    %3613 = vmatprep.subr.mxu0 %v1072
    %3614 = vmatpush1.msra.mxu0 %v1071
    %3615 = vmatprep.subr.mxu0 %v1076
    %3616 = vmatpush1.msra.mxu0 %v1075
    %3617 = vmatprep.subr.mxu0 %v1080
    %3618 = vmatpush1.msra.mxu0 %v1079
    %3619 = vmatprep.subr.mxu0 %v1084
    %3620 = vmatpush1.msra.mxu0 %v1083
    %3621 = vmatprep.subr.mxu0 %v1088
    %3622 = vmatpush1.msra.mxu0 %v1087
    %3623 = vmatprep.subr.mxu0 0.0
    %3624 = vmatpush1.msra.mxu0 0.0
    %3625 = vmatprep.subr.mxu0 0.0
    %3626 = vmatpush1.msra.mxu0 0.0
    %3627 = vmatprep.subr.mxu0 0.0
    %3628 = vmatpush1.msra.mxu0 0.0
    %3629 = vmatprep.subr.mxu0 0.0
    %3630 = vmatpush1.msra.mxu0 0.0
    %3631 = vmatprep.subr.mxu0 0.0
    %3632 = vmatpush1.msra.mxu0 0.0
    %3633 = vmatprep.subr.mxu0 0.0
    %3634 = vmatpush1.msra.mxu0 0.0
    %3635 = vmatprep.subr.mxu0 0.0
    %3636 = vmatpush1.msra.mxu0 0.0
    %3637 = vmatprep.subr.mxu0 0.0
    %3638 = vmatpush1.msra.mxu0 0.0
    %3639 = vmatprep.subr.mxu0 0.0
    %3640 = vmatpush1.msra.mxu0 0.0
    %3641 = vmatprep.subr.mxu0 0.0
    %3642 = vmatpush1.msra.mxu0 0.0
    %3643 = vmatprep.subr.mxu0 0.0
    %3644 = vmatpush1.msra.mxu0 0.0
    %3645 = vmatprep.subr.mxu0 0.0
    %3646 = vmatpush1.msra.mxu0 0.0
    %3647 = vmatprep.subr.mxu0 0.0
    %3648 = vmatpush1.msra.mxu0 0.0
    %3649 = vmatprep.subr.mxu0 0.0
    %3650 = vmatpush1.msra.mxu0 0.0
    %3651 = vmatprep.subr.mxu0 0.0
    %3652 = vmatpush1.msra.mxu0 0.0
    %3653 = vmatprep.subr.mxu0 0.0
    %3654 = vmatpush1.msra.mxu0 0.0
    %3655 = vmatprep.mubr.f32.mxu0 0.0
    %3656 = vmatmul.mubr.f32.gmra.mrb[0].mxu0 %v3277
    %v3657 = vpop.f32.mrb[0].mxu0
    %v3658 = vadd.f32 0.0, %v3657
    %v3659 = vpop.f32.mrb[0].mxu0
    %v3660 = vadd.f32 0.0, %v3659
    %3661 = vdwg.mxu0
    %3662 = vmatprep.subr.mxu0 %v1030
    %3663 = vmatpush1.msra.mxu0 %v1029
    %3664 = vmatprep.subr.mxu0 %v1034
    %3665 = vmatpush1.msra.mxu0 %v1033
    %3666 = vmatprep.subr.mxu0 %v1038
    %3667 = vmatpush1.msra.mxu0 %v1037
    %3668 = vmatprep.subr.mxu0 %v1042
    %3669 = vmatpush1.msra.mxu0 %v1041
    %3670 = vmatprep.subr.mxu0 %v1046
    %3671 = vmatpush1.msra.mxu0 %v1045
    %3672 = vmatprep.subr.mxu0 %v1050
    %3673 = vmatpush1.msra.mxu0 %v1049
    %3674 = vmatprep.subr.mxu0 %v1054
    %3675 = vmatpush1.msra.mxu0 %v1053
    %3676 = vmatprep.subr.mxu0 %v1058
    %3677 = vmatpush1.msra.mxu0 %v1057
    %3678 = vmatprep.subr.mxu0 %v1062
    %3679 = vmatpush1.msra.mxu0 %v1061
    %3680 = vmatprep.subr.mxu0 %v1066
    %3681 = vmatpush1.msra.mxu0 %v1065
    %3682 = vmatprep.subr.mxu0 %v1070
    %3683 = vmatpush1.msra.mxu0 %v1069
    %3684 = vmatprep.subr.mxu0 %v1074
    %3685 = vmatpush1.msra.mxu0 %v1073
    %3686 = vmatprep.subr.mxu0 %v1078
    %3687 = vmatpush1.msra.mxu0 %v1077
    %3688 = vmatprep.subr.mxu0 %v1082
    %3689 = vmatpush1.msra.mxu0 %v1081
    %3690 = vmatprep.subr.mxu0 %v1086
    %3691 = vmatpush1.msra.mxu0 %v1085
    %3692 = vmatprep.subr.mxu0 %v1090
    %3693 = vmatpush1.msra.mxu0 %v1089
    %3694 = vmatprep.subr.mxu0 0.0
    %3695 = vmatpush1.msra.mxu0 0.0
    %3696 = vmatprep.subr.mxu0 0.0
    %3697 = vmatpush1.msra.mxu0 0.0
    %3698 = vmatprep.subr.mxu0 0.0
    %3699 = vmatpush1.msra.mxu0 0.0
    %3700 = vmatprep.subr.mxu0 0.0
    %3701 = vmatpush1.msra.mxu0 0.0
    %3702 = vmatprep.subr.mxu0 0.0
    %3703 = vmatpush1.msra.mxu0 0.0
    %3704 = vmatprep.subr.mxu0 0.0
    %3705 = vmatpush1.msra.mxu0 0.0
    %3706 = vmatprep.subr.mxu0 0.0
    %3707 = vmatpush1.msra.mxu0 0.0
    %3708 = vmatprep.subr.mxu0 0.0
    %3709 = vmatpush1.msra.mxu0 0.0
    %3710 = vmatprep.subr.mxu0 0.0
    %3711 = vmatpush1.msra.mxu0 0.0
    %3712 = vmatprep.subr.mxu0 0.0
    %3713 = vmatpush1.msra.mxu0 0.0
    %3714 = vmatprep.subr.mxu0 0.0
    %3715 = vmatpush1.msra.mxu0 0.0
    %3716 = vmatprep.subr.mxu0 0.0
    %3717 = vmatpush1.msra.mxu0 0.0
    %3718 = vmatprep.subr.mxu0 0.0
    %3719 = vmatpush1.msra.mxu0 0.0
    %3720 = vmatprep.subr.mxu0 0.0
    %3721 = vmatpush1.msra.mxu0 0.0
    %3722 = vmatprep.subr.mxu0 0.0
    %3723 = vmatpush1.msra.mxu0 0.0
    %3724 = vmatprep.subr.mxu0 0.0
    %3725 = vmatpush1.msra.mxu0 0.0
    %3726 = vmatprep.mubr.f32.mxu0 0.0
    %3727 = vmatmul.mubr.f32.gmra.mrb[0].mxu0 %v3277
    %v3728 = vpop.f32.mrb[0].mxu0
    %v3729 = vadd.f32 0.0, %v3728
    %v3730 = vpop.f32.mrb[0].mxu0
    %v3731 = vadd.f32 0.0, %v3730
    %3732 = vdwg.mxu0
    %3733 = vmatprep.subr.mxu0 %v964
    %3734 = vmatpush1.msra.mxu0 %v963
    %3735 = vmatprep.subr.mxu0 %v968
    %3736 = vmatpush1.msra.mxu0 %v967
    %3737 = vmatprep.subr.mxu0 %v972
    %3738 = vmatpush1.msra.mxu0 %v971
    %3739 = vmatprep.subr.mxu0 %v976
    %3740 = vmatpush1.msra.mxu0 %v975
    %3741 = vmatprep.subr.mxu0 %v980
    %3742 = vmatpush1.msra.mxu0 %v979
    %3743 = vmatprep.subr.mxu0 %v984
    %3744 = vmatpush1.msra.mxu0 %v983
    %3745 = vmatprep.subr.mxu0 %v988
    %3746 = vmatpush1.msra.mxu0 %v987
    %3747 = vmatprep.subr.mxu0 %v992
    %3748 = vmatpush1.msra.mxu0 %v991
    %3749 = vmatprep.subr.mxu0 %v996
    %3750 = vmatpush1.msra.mxu0 %v995
    %3751 = vmatprep.subr.mxu0 %v1000
    %3752 = vmatpush1.msra.mxu0 %v999
    %3753 = vmatprep.subr.mxu0 %v1004
    %3754 = vmatpush1.msra.mxu0 %v1003
    %3755 = vmatprep.subr.mxu0 %v1008
    %3756 = vmatpush1.msra.mxu0 %v1007
    %3757 = vmatprep.subr.mxu0 %v1012
    %3758 = vmatpush1.msra.mxu0 %v1011
    %3759 = vmatprep.subr.mxu0 %v1016
    %3760 = vmatpush1.msra.mxu0 %v1015
    %3761 = vmatprep.subr.mxu0 %v1020
    %3762 = vmatpush1.msra.mxu0 %v1019
    %3763 = vmatprep.subr.mxu0 %v1024
    %3764 = vmatpush1.msra.mxu0 %v1023
    %3765 = vmatprep.subr.mxu0 0.0
    %3766 = vmatpush1.msra.mxu0 0.0
    %3767 = vmatprep.subr.mxu0 0.0
    %3768 = vmatpush1.msra.mxu0 0.0
    %3769 = vmatprep.subr.mxu0 0.0
    %3770 = vmatpush1.msra.mxu0 0.0
    %3771 = vmatprep.subr.mxu0 0.0
    %3772 = vmatpush1.msra.mxu0 0.0
    %3773 = vmatprep.subr.mxu0 0.0
    %3774 = vmatpush1.msra.mxu0 0.0
    %3775 = vmatprep.subr.mxu0 0.0
    %3776 = vmatpush1.msra.mxu0 0.0
    %3777 = vmatprep.subr.mxu0 0.0
    %3778 = vmatpush1.msra.mxu0 0.0
    %3779 = vmatprep.subr.mxu0 0.0
    %3780 = vmatpush1.msra.mxu0 0.0
    %3781 = vmatprep.subr.mxu0 0.0
    %3782 = vmatpush1.msra.mxu0 0.0
    %3783 = vmatprep.subr.mxu0 0.0
    %3784 = vmatpush1.msra.mxu0 0.0
    %3785 = vmatprep.subr.mxu0 0.0
    %3786 = vmatpush1.msra.mxu0 0.0
    %3787 = vmatprep.subr.mxu0 0.0
    %3788 = vmatpush1.msra.mxu0 0.0
    %3789 = vmatprep.subr.mxu0 0.0
    %3790 = vmatpush1.msra.mxu0 0.0
    %3791 = vmatprep.subr.mxu0 0.0
    %3792 = vmatpush1.msra.mxu0 0.0
    %3793 = vmatprep.subr.mxu0 0.0
    %3794 = vmatpush1.msra.mxu0 0.0
    %3795 = vmatprep.subr.mxu0 0.0
    %3796 = vmatpush1.msra.mxu0 0.0
    %3797 = vmatprep.mubr.f32.mxu0 0.0
    %3798 = vmatmul.mubr.f32.gmra.mrb[0].mxu0 %v2965
    %v3799 = vpop.f32.mrb[0].mxu0
    %v3800 = vadd.f32 %v3658, %v3799
    %v3801 = vpop.f32.mrb[0].mxu0
    %v3802 = vadd.f32 %v3660, %v3801
    %3803 = vdwg.mxu0
    %3804 = vmatprep.subr.mxu0 %v966
    %3805 = vmatpush1.msra.mxu0 %v965
    %3806 = vmatprep.subr.mxu0 %v970
    %3807 = vmatpush1.msra.mxu0 %v969
    %3808 = vmatprep.subr.mxu0 %v974
    %3809 = vmatpush1.msra.mxu0 %v973
    %3810 = vmatprep.subr.mxu0 %v978
    %3811 = vmatpush1.msra.mxu0 %v977
    %3812 = vmatprep.subr.mxu0 %v982
    %3813 = vmatpush1.msra.mxu0 %v981
    %3814 = vmatprep.subr.mxu0 %v986
    %3815 = vmatpush1.msra.mxu0 %v985
    %3816 = vmatprep.subr.mxu0 %v990
    %3817 = vmatpush1.msra.mxu0 %v989
    %3818 = vmatprep.subr.mxu0 %v994
    %3819 = vmatpush1.msra.mxu0 %v993
    %3820 = vmatprep.subr.mxu0 %v998
    %3821 = vmatpush1.msra.mxu0 %v997
    %3822 = vmatprep.subr.mxu0 %v1002
    %3823 = vmatpush1.msra.mxu0 %v1001
    %3824 = vmatprep.subr.mxu0 %v1006
    %3825 = vmatpush1.msra.mxu0 %v1005
    %3826 = vmatprep.subr.mxu0 %v1010
    %3827 = vmatpush1.msra.mxu0 %v1009
    %3828 = vmatprep.subr.mxu0 %v1014
    %3829 = vmatpush1.msra.mxu0 %v1013
    %3830 = vmatprep.subr.mxu0 %v1018
    %3831 = vmatpush1.msra.mxu0 %v1017
    %3832 = vmatprep.subr.mxu0 %v1022
    %3833 = vmatpush1.msra.mxu0 %v1021
    %3834 = vmatprep.subr.mxu0 %v1026
    %3835 = vmatpush1.msra.mxu0 %v1025
    %3836 = vmatprep.subr.mxu0 0.0
    %3837 = vmatpush1.msra.mxu0 0.0
    %3838 = vmatprep.subr.mxu0 0.0
    %3839 = vmatpush1.msra.mxu0 0.0
    %3840 = vmatprep.subr.mxu0 0.0
    %3841 = vmatpush1.msra.mxu0 0.0
    %3842 = vmatprep.subr.mxu0 0.0
    %3843 = vmatpush1.msra.mxu0 0.0
    %3844 = vmatprep.subr.mxu0 0.0
    %3845 = vmatpush1.msra.mxu0 0.0
    %3846 = vmatprep.subr.mxu0 0.0
    %3847 = vmatpush1.msra.mxu0 0.0
    %3848 = vmatprep.subr.mxu0 0.0
    %3849 = vmatpush1.msra.mxu0 0.0
    %3850 = vmatprep.subr.mxu0 0.0
    %3851 = vmatpush1.msra.mxu0 0.0
    %3852 = vmatprep.subr.mxu0 0.0
    %3853 = vmatpush1.msra.mxu0 0.0
    %3854 = vmatprep.subr.mxu0 0.0
    %3855 = vmatpush1.msra.mxu0 0.0
    %3856 = vmatprep.subr.mxu0 0.0
    %3857 = vmatpush1.msra.mxu0 0.0
    %3858 = vmatprep.subr.mxu0 0.0
    %3859 = vmatpush1.msra.mxu0 0.0
    %3860 = vmatprep.subr.mxu0 0.0
    %3861 = vmatpush1.msra.mxu0 0.0
    %3862 = vmatprep.subr.mxu0 0.0
    %3863 = vmatpush1.msra.mxu0 0.0
    %3864 = vmatprep.subr.mxu0 0.0
    %3865 = vmatpush1.msra.mxu0 0.0
    %3866 = vmatprep.subr.mxu0 0.0
    %3867 = vmatpush1.msra.mxu0 0.0
    %3868 = vmatprep.mubr.f32.mxu0 0.0
    %3869 = vmatmul.mubr.f32.gmra.mrb[0].mxu0 %v2965
    %v3870 = vpop.f32.mrb[0].mxu0
    %v3871 = vadd.f32 %v3729, %v3870
    %v3872 = vpop.f32.mrb[0].mxu0
    %v3873 = vadd.f32 %v3731, %v3872
    %3874 = vdwg.mxu0
    %v3875 = vadd.f32 %v3800, %v192
    %v3876 = vadd.f32 %v3802, %v196
    %v3877 = vadd.f32 %v3871, %v200
    %v3878 = vadd.f32 %v3873, %v204
    %v3879 = vxor.u32 %v3875, 2147483648
    %v3880 = vxor.u32 %v3876, 2147483648
    %v3881 = vxor.u32 %v3877, 2147483648
    %v3882 = vmul.f32 %v3879, 1.442695
    %v3883 = vpow.pop %v3882
    %v3884 = vmul.f32 %v3880, 1.442695
    %v3885 = vpow.pop %v3884
    %v3886 = vmul.f32 %v3881, 1.442695
    %v3887 = vpow.pop %v3886
    %v3888 = vadd.f32 %v3883, 1.0
    %v3889 = vadd.f32 %v3885, 1.0
    %v3890 = vadd.f32 %v3887, 1.0
    %v3891 = vrcp.pop %v3888
    %v3892 = vmul.f32 1.0, %v3891
    %v3893 = vrcp.pop %v3889
    %v3894 = vmul.f32 1.0, %v3893
    %v3895 = vrcp.pop %v3890
    %v3896 = vmul.f32 1.0, %v3895
    %v3897 = vtanh.pop %v3878
    %v3898 = vmul.f32 %v3894, %v3275
    %v3899 = vmul.f32 %v3892, %v3897
    %v3900 = vadd.f32 %v3898, %v3899
    %v3901 = vtanh.pop %v3900
    %v3902 = vmul.f32 %v3896, %v3901
    %3903 = vmatprep.subr.mxu0 %v1028
    %3904 = vmatpush1.msra.mxu0 %v1027
    %3905 = vmatprep.subr.mxu0 %v1032
    %3906 = vmatpush1.msra.mxu0 %v1031
    %3907 = vmatprep.subr.mxu0 %v1036
    %3908 = vmatpush1.msra.mxu0 %v1035
    %3909 = vmatprep.subr.mxu0 %v1040
    %3910 = vmatpush1.msra.mxu0 %v1039
    %3911 = vmatprep.subr.mxu0 %v1044
    %3912 = vmatpush1.msra.mxu0 %v1043
    %3913 = vmatprep.subr.mxu0 %v1048
    %3914 = vmatpush1.msra.mxu0 %v1047
    %3915 = vmatprep.subr.mxu0 %v1052
    %3916 = vmatpush1.msra.mxu0 %v1051
    %3917 = vmatprep.subr.mxu0 %v1056
    %3918 = vmatpush1.msra.mxu0 %v1055
    %3919 = vmatprep.subr.mxu0 %v1060
    %3920 = vmatpush1.msra.mxu0 %v1059
    %3921 = vmatprep.subr.mxu0 %v1064
    %3922 = vmatpush1.msra.mxu0 %v1063
    %3923 = vmatprep.subr.mxu0 %v1068
    %3924 = vmatpush1.msra.mxu0 %v1067
    %3925 = vmatprep.subr.mxu0 %v1072
    %3926 = vmatpush1.msra.mxu0 %v1071
    %3927 = vmatprep.subr.mxu0 %v1076
    %3928 = vmatpush1.msra.mxu0 %v1075
    %3929 = vmatprep.subr.mxu0 %v1080
    %3930 = vmatpush1.msra.mxu0 %v1079
    %3931 = vmatprep.subr.mxu0 %v1084
    %3932 = vmatpush1.msra.mxu0 %v1083
    %3933 = vmatprep.subr.mxu0 %v1088
    %3934 = vmatpush1.msra.mxu0 %v1087
    %3935 = vmatprep.subr.mxu0 0.0
    %3936 = vmatpush1.msra.mxu0 0.0
    %3937 = vmatprep.subr.mxu0 0.0
    %3938 = vmatpush1.msra.mxu0 0.0
    %3939 = vmatprep.subr.mxu0 0.0
    %3940 = vmatpush1.msra.mxu0 0.0
    %3941 = vmatprep.subr.mxu0 0.0
    %3942 = vmatpush1.msra.mxu0 0.0
    %3943 = vmatprep.subr.mxu0 0.0
    %3944 = vmatpush1.msra.mxu0 0.0
    %3945 = vmatprep.subr.mxu0 0.0
    %3946 = vmatpush1.msra.mxu0 0.0
    %3947 = vmatprep.subr.mxu0 0.0
    %3948 = vmatpush1.msra.mxu0 0.0
    %3949 = vmatprep.subr.mxu0 0.0
    %3950 = vmatpush1.msra.mxu0 0.0
    %3951 = vmatprep.subr.mxu0 0.0
    %3952 = vmatpush1.msra.mxu0 0.0
    %3953 = vmatprep.subr.mxu0 0.0
    %3954 = vmatpush1.msra.mxu0 0.0
    %3955 = vmatprep.subr.mxu0 0.0
    %3956 = vmatpush1.msra.mxu0 0.0
    %3957 = vmatprep.subr.mxu0 0.0
    %3958 = vmatpush1.msra.mxu0 0.0
    %3959 = vmatprep.subr.mxu0 0.0
    %3960 = vmatpush1.msra.mxu0 0.0
    %3961 = vmatprep.subr.mxu0 0.0
    %3962 = vmatpush1.msra.mxu0 0.0
    %3963 = vmatprep.subr.mxu0 0.0
    %3964 = vmatpush1.msra.mxu0 0.0
    %3965 = vmatprep.subr.mxu0 0.0
    %3966 = vmatpush1.msra.mxu0 0.0
    %3967 = vmatprep.mubr.f32.mxu0 0.0
    %3968 = vmatmul.mubr.f32.gmra.mrb[0].mxu0 %v3902
    %v3969 = vpop.f32.mrb[0].mxu0
    %v3970 = vadd.f32 0.0, %v3969
    %v3971 = vpop.f32.mrb[0].mxu0
    %v3972 = vadd.f32 0.0, %v3971
    %3973 = vdwg.mxu0
    %3974 = vmatprep.subr.mxu0 %v1030
    %3975 = vmatpush1.msra.mxu0 %v1029
    %3976 = vmatprep.subr.mxu0 %v1034
    %3977 = vmatpush1.msra.mxu0 %v1033
    %3978 = vmatprep.subr.mxu0 %v1038
    %3979 = vmatpush1.msra.mxu0 %v1037
    %3980 = vmatprep.subr.mxu0 %v1042
    %3981 = vmatpush1.msra.mxu0 %v1041
    %3982 = vmatprep.subr.mxu0 %v1046
    %3983 = vmatpush1.msra.mxu0 %v1045
    %3984 = vmatprep.subr.mxu0 %v1050
    %3985 = vmatpush1.msra.mxu0 %v1049
    %3986 = vmatprep.subr.mxu0 %v1054
    %3987 = vmatpush1.msra.mxu0 %v1053
    %3988 = vmatprep.subr.mxu0 %v1058
    %3989 = vmatpush1.msra.mxu0 %v1057
    %3990 = vmatprep.subr.mxu0 %v1062
    %3991 = vmatpush1.msra.mxu0 %v1061
    %3992 = vmatprep.subr.mxu0 %v1066
    %3993 = vmatpush1.msra.mxu0 %v1065
    %3994 = vmatprep.subr.mxu0 %v1070
    %3995 = vmatpush1.msra.mxu0 %v1069
    %3996 = vmatprep.subr.mxu0 %v1074
    %3997 = vmatpush1.msra.mxu0 %v1073
    %3998 = vmatprep.subr.mxu0 %v1078
    %3999 = vmatpush1.msra.mxu0 %v1077
    %4000 = vmatprep.subr.mxu0 %v1082
    %4001 = vmatpush1.msra.mxu0 %v1081
    %4002 = vmatprep.subr.mxu0 %v1086
    %4003 = vmatpush1.msra.mxu0 %v1085
    %4004 = vmatprep.subr.mxu0 %v1090
    %4005 = vmatpush1.msra.mxu0 %v1089
    %4006 = vmatprep.subr.mxu0 0.0
    %4007 = vmatpush1.msra.mxu0 0.0
    %4008 = vmatprep.subr.mxu0 0.0
    %4009 = vmatpush1.msra.mxu0 0.0
    %4010 = vmatprep.subr.mxu0 0.0
    %4011 = vmatpush1.msra.mxu0 0.0
    %4012 = vmatprep.subr.mxu0 0.0
    %4013 = vmatpush1.msra.mxu0 0.0
    %4014 = vmatprep.subr.mxu0 0.0
    %4015 = vmatpush1.msra.mxu0 0.0
    %4016 = vmatprep.subr.mxu0 0.0
    %4017 = vmatpush1.msra.mxu0 0.0
    %4018 = vmatprep.subr.mxu0 0.0
    %4019 = vmatpush1.msra.mxu0 0.0
    %4020 = vmatprep.subr.mxu0 0.0
    %4021 = vmatpush1.msra.mxu0 0.0
    %4022 = vmatprep.subr.mxu0 0.0
    %4023 = vmatpush1.msra.mxu0 0.0
    %4024 = vmatprep.subr.mxu0 0.0
    %4025 = vmatpush1.msra.mxu0 0.0
    %4026 = vmatprep.subr.mxu0 0.0
    %4027 = vmatpush1.msra.mxu0 0.0
    %4028 = vmatprep.subr.mxu0 0.0
    %4029 = vmatpush1.msra.mxu0 0.0
    %4030 = vmatprep.subr.mxu0 0.0
    %4031 = vmatpush1.msra.mxu0 0.0
    %4032 = vmatprep.subr.mxu0 0.0
    %4033 = vmatpush1.msra.mxu0 0.0
    %4034 = vmatprep.subr.mxu0 0.0
    %4035 = vmatpush1.msra.mxu0 0.0
    %4036 = vmatprep.subr.mxu0 0.0
    %4037 = vmatpush1.msra.mxu0 0.0
    %4038 = vmatprep.mubr.f32.mxu0 0.0
    %4039 = vmatmul.mubr.f32.gmra.mrb[0].mxu0 %v3902
    %v4040 = vpop.f32.mrb[0].mxu0
    %v4041 = vadd.f32 0.0, %v4040
    %v4042 = vpop.f32.mrb[0].mxu0
    %v4043 = vadd.f32 0.0, %v4042
    %4044 = vdwg.mxu0
    %4045 = vmatprep.subr.mxu0 %v964
    %4046 = vmatpush1.msra.mxu0 %v963
    %4047 = vmatprep.subr.mxu0 %v968
    %4048 = vmatpush1.msra.mxu0 %v967
    %4049 = vmatprep.subr.mxu0 %v972
    %4050 = vmatpush1.msra.mxu0 %v971
    %4051 = vmatprep.subr.mxu0 %v976
    %4052 = vmatpush1.msra.mxu0 %v975
    %4053 = vmatprep.subr.mxu0 %v980
    %4054 = vmatpush1.msra.mxu0 %v979
    %4055 = vmatprep.subr.mxu0 %v984
    %4056 = vmatpush1.msra.mxu0 %v983
    %4057 = vmatprep.subr.mxu0 %v988
    %4058 = vmatpush1.msra.mxu0 %v987
    %4059 = vmatprep.subr.mxu0 %v992
    %4060 = vmatpush1.msra.mxu0 %v991
    %4061 = vmatprep.subr.mxu0 %v996
    %4062 = vmatpush1.msra.mxu0 %v995
    %4063 = vmatprep.subr.mxu0 %v1000
    %4064 = vmatpush1.msra.mxu0 %v999
    %4065 = vmatprep.subr.mxu0 %v1004
    %4066 = vmatpush1.msra.mxu0 %v1003
    %4067 = vmatprep.subr.mxu0 %v1008
    %4068 = vmatpush1.msra.mxu0 %v1007
    %4069 = vmatprep.subr.mxu0 %v1012
    %4070 = vmatpush1.msra.mxu0 %v1011
    %4071 = vmatprep.subr.mxu0 %v1016
    %4072 = vmatpush1.msra.mxu0 %v1015
    %4073 = vmatprep.subr.mxu0 %v1020
    %4074 = vmatpush1.msra.mxu0 %v1019
    %4075 = vmatprep.subr.mxu0 %v1024
    %4076 = vmatpush1.msra.mxu0 %v1023
    %4077 = vmatprep.subr.mxu0 0.0
    %4078 = vmatpush1.msra.mxu0 0.0
    %4079 = vmatprep.subr.mxu0 0.0
    %4080 = vmatpush1.msra.mxu0 0.0
    %4081 = vmatprep.subr.mxu0 0.0
    %4082 = vmatpush1.msra.mxu0 0.0
    %4083 = vmatprep.subr.mxu0 0.0
    %4084 = vmatpush1.msra.mxu0 0.0
    %4085 = vmatprep.subr.mxu0 0.0
    %4086 = vmatpush1.msra.mxu0 0.0
    %4087 = vmatprep.subr.mxu0 0.0
    %4088 = vmatpush1.msra.mxu0 0.0
    %4089 = vmatprep.subr.mxu0 0.0
    %4090 = vmatpush1.msra.mxu0 0.0
    %4091 = vmatprep.subr.mxu0 0.0
    %4092 = vmatpush1.msra.mxu0 0.0
    %4093 = vmatprep.subr.mxu0 0.0
    %4094 = vmatpush1.msra.mxu0 0.0
    %4095 = vmatprep.subr.mxu0 0.0
    %4096 = vmatpush1.msra.mxu0 0.0
    %4097 = vmatprep.subr.mxu0 0.0
    %4098 = vmatpush1.msra.mxu0 0.0
    %4099 = vmatprep.subr.mxu0 0.0
    %4100 = vmatpush1.msra.mxu0 0.0
    %4101 = vmatprep.subr.mxu0 0.0
    %4102 = vmatpush1.msra.mxu0 0.0
    %4103 = vmatprep.subr.mxu0 0.0
    %4104 = vmatpush1.msra.mxu0 0.0
    %4105 = vmatprep.subr.mxu0 0.0
    %4106 = vmatpush1.msra.mxu0 0.0
    %4107 = vmatprep.subr.mxu0 0.0
    %4108 = vmatpush1.msra.mxu0 0.0
    %4109 = vmatprep.mubr.f32.mxu0 0.0
    %4110 = vmatmul.mubr.f32.gmra.mrb[0].mxu0 %v3590
    %v4111 = vpop.f32.mrb[0].mxu0
    %v4112 = vadd.f32 %v3970, %v4111
    %v4113 = vpop.f32.mrb[0].mxu0
    %v4114 = vadd.f32 %v3972, %v4113
    %4115 = vdwg.mxu0
    %4116 = vmatprep.subr.mxu0 %v966
    %4117 = vmatpush1.msra.mxu0 %v965
    %4118 = vmatprep.subr.mxu0 %v970
    %4119 = vmatpush1.msra.mxu0 %v969
    %4120 = vmatprep.subr.mxu0 %v974
    %4121 = vmatpush1.msra.mxu0 %v973
    %4122 = vmatprep.subr.mxu0 %v978
    %4123 = vmatpush1.msra.mxu0 %v977
    %4124 = vmatprep.subr.mxu0 %v982
    %4125 = vmatpush1.msra.mxu0 %v981
    %4126 = vmatprep.subr.mxu0 %v986
    %4127 = vmatpush1.msra.mxu0 %v985
    %4128 = vmatprep.subr.mxu0 %v990
    %4129 = vmatpush1.msra.mxu0 %v989
    %4130 = vmatprep.subr.mxu0 %v994
    %4131 = vmatpush1.msra.mxu0 %v993
    %4132 = vmatprep.subr.mxu0 %v998
    %4133 = vmatpush1.msra.mxu0 %v997
    %4134 = vmatprep.subr.mxu0 %v1002
    %4135 = vmatpush1.msra.mxu0 %v1001
    %4136 = vmatprep.subr.mxu0 %v1006
    %4137 = vmatpush1.msra.mxu0 %v1005
    %4138 = vmatprep.subr.mxu0 %v1010
    %4139 = vmatpush1.msra.mxu0 %v1009
    %4140 = vmatprep.subr.mxu0 %v1014
    %4141 = vmatpush1.msra.mxu0 %v1013
    %4142 = vmatprep.subr.mxu0 %v1018
    %4143 = vmatpush1.msra.mxu0 %v1017
    %4144 = vmatprep.subr.mxu0 %v1022
    %4145 = vmatpush1.msra.mxu0 %v1021
    %4146 = vmatprep.subr.mxu0 %v1026
    %4147 = vmatpush1.msra.mxu0 %v1025
    %4148 = vmatprep.subr.mxu0 0.0
    %4149 = vmatpush1.msra.mxu0 0.0
    %4150 = vmatprep.subr.mxu0 0.0
    %4151 = vmatpush1.msra.mxu0 0.0
    %4152 = vmatprep.subr.mxu0 0.0
    %4153 = vmatpush1.msra.mxu0 0.0
    %4154 = vmatprep.subr.mxu0 0.0
    %4155 = vmatpush1.msra.mxu0 0.0
    %4156 = vmatprep.subr.mxu0 0.0
    %4157 = vmatpush1.msra.mxu0 0.0
    %4158 = vmatprep.subr.mxu0 0.0
    %4159 = vmatpush1.msra.mxu0 0.0
    %4160 = vmatprep.subr.mxu0 0.0
    %4161 = vmatpush1.msra.mxu0 0.0
    %4162 = vmatprep.subr.mxu0 0.0
    %4163 = vmatpush1.msra.mxu0 0.0
    %4164 = vmatprep.subr.mxu0 0.0
    %4165 = vmatpush1.msra.mxu0 0.0
    %4166 = vmatprep.subr.mxu0 0.0
    %4167 = vmatpush1.msra.mxu0 0.0
    %4168 = vmatprep.subr.mxu0 0.0
    %4169 = vmatpush1.msra.mxu0 0.0
    %4170 = vmatprep.subr.mxu0 0.0
    %4171 = vmatpush1.msra.mxu0 0.0
    %4172 = vmatprep.subr.mxu0 0.0
    %4173 = vmatpush1.msra.mxu0 0.0
    %4174 = vmatprep.subr.mxu0 0.0
    %4175 = vmatpush1.msra.mxu0 0.0
    %4176 = vmatprep.subr.mxu0 0.0
    %4177 = vmatpush1.msra.mxu0 0.0
    %4178 = vmatprep.subr.mxu0 0.0
    %4179 = vmatpush1.msra.mxu0 0.0
    %4180 = vmatprep.mubr.f32.mxu0 0.0
    %4181 = vmatmul.mubr.f32.gmra.mrb[0].mxu0 %v3590
    %v4182 = vpop.f32.mrb[0].mxu0
    %v4183 = vadd.f32 %v4041, %v4182
    %v4184 = vpop.f32.mrb[0].mxu0
    %v4185 = vadd.f32 %v4043, %v4184
    %4186 = vdwg.mxu0
    %v4187 = vadd.f32 %v4112, %v192
    %v4188 = vadd.f32 %v4114, %v196
    %v4189 = vadd.f32 %v4183, %v200
    %v4190 = vadd.f32 %v4185, %v204
    %v4191 = vxor.u32 %v4187, 2147483648
    %v4192 = vxor.u32 %v4188, 2147483648
    %v4193 = vxor.u32 %v4189, 2147483648
    %v4194 = vmul.f32 %v4191, 1.442695
    %v4195 = vpow.pop %v4194
    %v4196 = vmul.f32 %v4192, 1.442695
    %v4197 = vpow.pop %v4196
    %v4198 = vmul.f32 %v4193, 1.442695
    %v4199 = vpow.pop %v4198
    %v4200 = vadd.f32 %v4195, 1.0
    %v4201 = vadd.f32 %v4197, 1.0
    %v4202 = vadd.f32 %v4199, 1.0
    %v4203 = vrcp.pop %v4200
    %v4204 = vmul.f32 1.0, %v4203
    %v4205 = vrcp.pop %v4201
    %v4206 = vmul.f32 1.0, %v4205
    %v4207 = vrcp.pop %v4202
    %v4208 = vmul.f32 1.0, %v4207
    %v4209 = vtanh.pop %v4190
    %v4210 = vmul.f32 %v4206, %v3900
    %v4211 = vmul.f32 %v4204, %v4209
    %v4212 = vadd.f32 %v4210, %v4211
    %v4213 = vtanh.pop %v4212
    %v4214 = vmul.f32 %v4208, %v4213
    %v4215 = vld [vmem:[#allocation11] sm:$0xff]
    %v4216 = vld [vmem:[#allocation11 + $0x8] sm:$0xff]
    %v4217 = vld [vmem:[#allocation11 + $0x10] sm:$0xff]
    %v4218 = vld [vmem:[#allocation11 + $0x18] sm:$0xff]
    %v4219 = vld [vmem:[#allocation11 + $0x20] sm:$0xff]
    %v4220 = vld [vmem:[#allocation11 + $0x28] sm:$0xff]
    %v4221 = vld [vmem:[#allocation11 + $0x30] sm:$0xff]
    %v4222 = vld [vmem:[#allocation11 + $0x38] sm:$0xff]
    %v4223 = vld [vmem:[#allocation11 + $0x40] sm:$0xff]
    %v4224 = vld [vmem:[#allocation11 + $0x48] sm:$0xff]
    %v4225 = vld [vmem:[#allocation11 + $0x50] sm:$0xff]
    %v4226 = vld [vmem:[#allocation11 + $0x58] sm:$0xff]
    %v4227 = vld [vmem:[#allocation11 + $0x60] sm:$0xff]
    %v4228 = vld [vmem:[#allocation11 + $0x68] sm:$0xff]
    %v4229 = vld [vmem:[#allocation11 + $0x70] sm:$0xff]
    %v4230 = vld [vmem:[#allocation11 + $0x78] sm:$0xff]
    %v4231 = vld [vmem:[#allocation11 + $0x80] sm:$0xff]
    %v4232 = vld [vmem:[#allocation11 + $0x88] sm:$0xff]
    %v4233 = vld [vmem:[#allocation11 + $0x90] sm:$0xff]
    %v4234 = vld [vmem:[#allocation11 + $0x98] sm:$0xff]
    %v4235 = vld [vmem:[#allocation11 + $0xa0] sm:$0xff]
    %v4236 = vld [vmem:[#allocation11 + $0xa8] sm:$0xff]
    %v4237 = vld [vmem:[#allocation11 + $0xb0] sm:$0xff]
    %v4238 = vld [vmem:[#allocation11 + $0xb8] sm:$0xff]
    %v4239 = vld [vmem:[#allocation11 + $0xc0] sm:$0xff]
    %v4240 = vld [vmem:[#allocation11 + $0xc8] sm:$0xff]
    %v4241 = vld [vmem:[#allocation11 + $0xd0] sm:$0xff]
    %v4242 = vld [vmem:[#allocation11 + $0xd8] sm:$0xff]
    %v4243 = vld [vmem:[#allocation11 + $0xe0] sm:$0xff]
    %v4244 = vld [vmem:[#allocation11 + $0xe8] sm:$0xff]
    %v4245 = vld [vmem:[#allocation11 + $0xf0] sm:$0xff]
    %v4246 = vld [vmem:[#allocation11 + $0xf8] sm:$0xff]
    %v4247 = vld [vmem:[#allocation11 + $0x100] sm:$0xff]
    %v4248 = vld [vmem:[#allocation11 + $0x108] sm:$0xff]
    %v4249 = vld [vmem:[#allocation11 + $0x110] sm:$0xff]
    %v4250 = vld [vmem:[#allocation11 + $0x118] sm:$0xff]
    %v4251 = vld [vmem:[#allocation11 + $0x120] sm:$0xff]
    %v4252 = vld [vmem:[#allocation11 + $0x128] sm:$0xff]
    %v4253 = vld [vmem:[#allocation11 + $0x130] sm:$0xff]
    %v4254 = vld [vmem:[#allocation11 + $0x138] sm:$0xff]
    %v4255 = vld [vmem:[#allocation11 + $0x140] sm:$0xff]
    %v4256 = vld [vmem:[#allocation11 + $0x148] sm:$0xff]
    %v4257 = vld [vmem:[#allocation11 + $0x150] sm:$0xff]
    %v4258 = vld [vmem:[#allocation11 + $0x158] sm:$0xff]
    %v4259 = vld [vmem:[#allocation11 + $0x160] sm:$0xff]
    %v4260 = vld [vmem:[#allocation11 + $0x168] sm:$0xff]
    %v4261 = vld [vmem:[#allocation11 + $0x170] sm:$0xff]
    %v4262 = vld [vmem:[#allocation11 + $0x178] sm:$0xff]
    %v4263 = vld [vmem:[#allocation11 + $0x180] sm:$0xff]
    %v4264 = vld [vmem:[#allocation11 + $0x188] sm:$0xff]
    %v4265 = vld [vmem:[#allocation11 + $0x190] sm:$0xff]
    %v4266 = vld [vmem:[#allocation11 + $0x198] sm:$0xff]
    %v4267 = vld [vmem:[#allocation11 + $0x1a0] sm:$0xff]
    %v4268 = vld [vmem:[#allocation11 + $0x1a8] sm:$0xff]
    %v4269 = vld [vmem:[#allocation11 + $0x1b0] sm:$0xff]
    %v4270 = vld [vmem:[#allocation11 + $0x1b8] sm:$0xff]
    %v4271 = vld [vmem:[#allocation11 + $0x1c0] sm:$0xff]
    %v4272 = vld [vmem:[#allocation11 + $0x1c8] sm:$0xff]
    %v4273 = vld [vmem:[#allocation11 + $0x1d0] sm:$0xff]
    %v4274 = vld [vmem:[#allocation11 + $0x1d8] sm:$0xff]
    %v4275 = vld [vmem:[#allocation11 + $0x1e0] sm:$0xff]
    %v4276 = vld [vmem:[#allocation11 + $0x1e8] sm:$0xff]
    %v4277 = vld [vmem:[#allocation11 + $0x1f0] sm:$0xff]
    %v4278 = vld [vmem:[#allocation11 + $0x1f8] sm:$0xff]
    %v4279 = vld [vmem:[%s9] sm:$0xf]
    %v4281 = vlaneseq
    %v4282 = vshrl.u32 %v4281, 7
    %v4283 = vsub.s32 0, %v4282
    %v4284 = vrot.slane %v4279, %v4283
    %v4285 = vlaneseq
    %v4286 = vshrl.u32 %v4285, 7
    %v4287 = vsub.s32 1, %v4286
    %v4288 = vrot.slane %v4279, %v4287
    %v4289 = vlaneseq
    %v4290 = vshrl.u32 %v4289, 7
    %v4291 = vsub.s32 2, %v4290
    %v4292 = vrot.slane %v4279, %v4291
    %v4293 = vlaneseq
    %v4294 = vshrl.u32 %v4293, 7
    %v4295 = vsub.s32 3, %v4294
    %v4296 = vrot.slane %v4279, %v4295
    %4301 = vmatprep.subr.mxu0 %v4216
    %4302 = vmatpush1.msra.mxu0 %v4215
    %4303 = vmatprep.subr.mxu0 %v4220
    %4304 = vmatpush1.msra.mxu0 %v4219
    %4305 = vmatprep.subr.mxu0 %v4224
    %4306 = vmatpush1.msra.mxu0 %v4223
    %4307 = vmatprep.subr.mxu0 %v4228
    %4308 = vmatpush1.msra.mxu0 %v4227
    %4309 = vmatprep.subr.mxu0 %v4232
    %4310 = vmatpush1.msra.mxu0 %v4231
    %4311 = vmatprep.subr.mxu0 %v4236
    %4312 = vmatpush1.msra.mxu0 %v4235
    %4313 = vmatprep.subr.mxu0 %v4240
    %4314 = vmatpush1.msra.mxu0 %v4239
    %4315 = vmatprep.subr.mxu0 %v4244
    %4316 = vmatpush1.msra.mxu0 %v4243
    %4317 = vmatprep.subr.mxu0 %v4248
    %4318 = vmatpush1.msra.mxu0 %v4247
    %4319 = vmatprep.subr.mxu0 %v4252
    %4320 = vmatpush1.msra.mxu0 %v4251
    %4321 = vmatprep.subr.mxu0 %v4256
    %4322 = vmatpush1.msra.mxu0 %v4255
    %4323 = vmatprep.subr.mxu0 %v4260
    %4324 = vmatpush1.msra.mxu0 %v4259
    %4325 = vmatprep.subr.mxu0 %v4264
    %4326 = vmatpush1.msra.mxu0 %v4263
    %4327 = vmatprep.subr.mxu0 %v4268
    %4328 = vmatpush1.msra.mxu0 %v4267
    %4329 = vmatprep.subr.mxu0 %v4272
    %4330 = vmatpush1.msra.mxu0 %v4271
    %4331 = vmatprep.subr.mxu0 %v4276
    %4332 = vmatpush1.msra.mxu0 %v4275
    %4333 = vmatprep.subr.mxu0 0.0
    %4334 = vmatpush1.msra.mxu0 0.0
    %4335 = vmatprep.subr.mxu0 0.0
    %4336 = vmatpush1.msra.mxu0 0.0
    %4337 = vmatprep.subr.mxu0 0.0
    %4338 = vmatpush1.msra.mxu0 0.0
    %4339 = vmatprep.subr.mxu0 0.0
    %4340 = vmatpush1.msra.mxu0 0.0
    %4341 = vmatprep.subr.mxu0 0.0
    %4342 = vmatpush1.msra.mxu0 0.0
    %4343 = vmatprep.subr.mxu0 0.0
    %4344 = vmatpush1.msra.mxu0 0.0
    %4345 = vmatprep.subr.mxu0 0.0
    %4346 = vmatpush1.msra.mxu0 0.0
    %4347 = vmatprep.subr.mxu0 0.0
    %4348 = vmatpush1.msra.mxu0 0.0
    %4349 = vmatprep.subr.mxu0 0.0
    %4350 = vmatpush1.msra.mxu0 0.0
    %4351 = vmatprep.subr.mxu0 0.0
    %4352 = vmatpush1.msra.mxu0 0.0
    %4353 = vmatprep.subr.mxu0 0.0
    %4354 = vmatpush1.msra.mxu0 0.0
    %4355 = vmatprep.subr.mxu0 0.0
    %4356 = vmatpush1.msra.mxu0 0.0
    %4357 = vmatprep.subr.mxu0 0.0
    %4358 = vmatpush1.msra.mxu0 0.0
    %4359 = vmatprep.subr.mxu0 0.0
    %4360 = vmatpush1.msra.mxu0 0.0
    %4361 = vmatprep.subr.mxu0 0.0
    %4362 = vmatpush1.msra.mxu0 0.0
    %4363 = vmatprep.subr.mxu0 0.0
    %4364 = vmatpush1.msra.mxu0 0.0
    %4365 = vmatprep.mubr.f32.mxu0 0.0
    %4366 = vmatmul.mubr.f32.gmra.mrb[0].mxu0 %v4214
    %v4367 = vpop.f32.mrb[0].mxu0
    %v4368 = vadd.f32 %v4284, %v4367
    %v4369 = vpop.f32.mrb[0].mxu0
    %v4370 = vadd.f32 %v4288, %v4369
    %4371 = vdwg.mxu0
    %4372 = vmatprep.subr.mxu0 %v4218
    %4373 = vmatpush1.msra.mxu0 %v4217
    %4374 = vmatprep.subr.mxu0 %v4222
    %4375 = vmatpush1.msra.mxu0 %v4221
    %4376 = vmatprep.subr.mxu0 %v4226
    %4377 = vmatpush1.msra.mxu0 %v4225
    %4378 = vmatprep.subr.mxu0 %v4230
    %4379 = vmatpush1.msra.mxu0 %v4229
    %4380 = vmatprep.subr.mxu0 %v4234
    %4381 = vmatpush1.msra.mxu0 %v4233
    %4382 = vmatprep.subr.mxu0 %v4238
    %4383 = vmatpush1.msra.mxu0 %v4237
    %4384 = vmatprep.subr.mxu0 %v4242
    %4385 = vmatpush1.msra.mxu0 %v4241
    %4386 = vmatprep.subr.mxu0 %v4246
    %4387 = vmatpush1.msra.mxu0 %v4245
    %4388 = vmatprep.subr.mxu0 %v4250
    %4389 = vmatpush1.msra.mxu0 %v4249
    %4390 = vmatprep.subr.mxu0 %v4254
    %4391 = vmatpush1.msra.mxu0 %v4253
    %4392 = vmatprep.subr.mxu0 %v4258
    %4393 = vmatpush1.msra.mxu0 %v4257
    %4394 = vmatprep.subr.mxu0 %v4262
    %4395 = vmatpush1.msra.mxu0 %v4261
    %4396 = vmatprep.subr.mxu0 %v4266
    %4397 = vmatpush1.msra.mxu0 %v4265
    %4398 = vmatprep.subr.mxu0 %v4270
    %4399 = vmatpush1.msra.mxu0 %v4269
    %4400 = vmatprep.subr.mxu0 %v4274
    %4401 = vmatpush1.msra.mxu0 %v4273
    %4402 = vmatprep.subr.mxu0 %v4278
    %4403 = vmatpush1.msra.mxu0 %v4277
    %4404 = vmatprep.subr.mxu0 0.0
    %4405 = vmatpush1.msra.mxu0 0.0
    %4406 = vmatprep.subr.mxu0 0.0
    %4407 = vmatpush1.msra.mxu0 0.0
    %4408 = vmatprep.subr.mxu0 0.0
    %4409 = vmatpush1.msra.mxu0 0.0
    %4410 = vmatprep.subr.mxu0 0.0
    %4411 = vmatpush1.msra.mxu0 0.0
    %4412 = vmatprep.subr.mxu0 0.0
    %4413 = vmatpush1.msra.mxu0 0.0
    %4414 = vmatprep.subr.mxu0 0.0
    %4415 = vmatpush1.msra.mxu0 0.0
    %4416 = vmatprep.subr.mxu0 0.0
    %4417 = vmatpush1.msra.mxu0 0.0
    %4418 = vmatprep.subr.mxu0 0.0
    %4419 = vmatpush1.msra.mxu0 0.0
    %4420 = vmatprep.subr.mxu0 0.0
    %4421 = vmatpush1.msra.mxu0 0.0
    %4422 = vmatprep.subr.mxu0 0.0
    %4423 = vmatpush1.msra.mxu0 0.0
    %4424 = vmatprep.subr.mxu0 0.0
    %4425 = vmatpush1.msra.mxu0 0.0
    %4426 = vmatprep.subr.mxu0 0.0
    %4427 = vmatpush1.msra.mxu0 0.0
    %4428 = vmatprep.subr.mxu0 0.0
    %4429 = vmatpush1.msra.mxu0 0.0
    %4430 = vmatprep.subr.mxu0 0.0
    %4431 = vmatpush1.msra.mxu0 0.0
    %4432 = vmatprep.subr.mxu0 0.0
    %4433 = vmatpush1.msra.mxu0 0.0
    %4434 = vmatprep.subr.mxu0 0.0
    %4435 = vmatpush1.msra.mxu0 0.0
    %4436 = vmatprep.mubr.f32.mxu0 0.0
    %4437 = vmatmul.mubr.f32.gmra.mrb[0].mxu0 %v4214
    %v4438 = vpop.f32.mrb[0].mxu0
    %v4439 = vadd.f32 %v4292, %v4438
    %v4440 = vpop.f32.mrb[0].mxu0
    %v4441 = vadd.f32 %v4296, %v4440
    %4442 = vdwg.mxu0
    %v4443 = vld [vmem:[%s12] sm:$0xf]
    %v4445 = vlaneseq
    %v4446 = vshrl.u32 %v4445, 7
    %v4447 = vsub.s32 0, %v4446
    %v4448 = vrot.slane %v4443, %v4447
    %v4449 = vlaneseq
    %v4450 = vshrl.u32 %v4449, 7
    %v4451 = vsub.s32 1, %v4450
    %v4452 = vrot.slane %v4443, %v4451
    %v4453 = vlaneseq
    %v4454 = vshrl.u32 %v4453, 7
    %v4455 = vsub.s32 2, %v4454
    %v4456 = vrot.slane %v4443, %v4455
    %v4457 = vlaneseq
    %v4458 = vshrl.u32 %v4457, 7
    %v4459 = vsub.s32 3, %v4458
    %v4460 = vrot.slane %v4443, %v4459
    %v4465 = vld [vmem:[#allocation13] sm:$0xff]
    %v4466 = vld [vmem:[#allocation13 + $0x8] sm:$0xff]
    %v4467 = vld [vmem:[#allocation13 + $0x10] sm:$0xff]
    %v4468 = vld [vmem:[#allocation13 + $0x18] sm:$0xff]
    %v4469 = vld [vmem:[#allocation13 + $0x20] sm:$0xff]
    %v4470 = vld [vmem:[#allocation13 + $0x28] sm:$0xff]
    %v4471 = vld [vmem:[#allocation13 + $0x30] sm:$0xff]
    %v4472 = vld [vmem:[#allocation13 + $0x38] sm:$0xff]
    %v4473 = vld [vmem:[#allocation13 + $0x40] sm:$0xff]
    %v4474 = vld [vmem:[#allocation13 + $0x48] sm:$0xff]
    %v4475 = vld [vmem:[#allocation13 + $0x50] sm:$0xff]
    %v4476 = vld [vmem:[#allocation13 + $0x58] sm:$0xff]
    %v4477 = vld [vmem:[#allocation13 + $0x60] sm:$0xff]
    %v4478 = vld [vmem:[#allocation13 + $0x68] sm:$0xff]
    %v4479 = vld [vmem:[#allocation13 + $0x70] sm:$0xff]
    %v4480 = vld [vmem:[#allocation13 + $0x78] sm:$0xff]
    %v4481 = vld [vmem:[#allocation13 + $0x80] sm:$0xff]
    %v4482 = vld [vmem:[#allocation13 + $0x88] sm:$0xff]
    %v4483 = vld [vmem:[#allocation13 + $0x90] sm:$0xff]
    %v4484 = vld [vmem:[#allocation13 + $0x98] sm:$0xff]
    %v4485 = vld [vmem:[#allocation13 + $0xa0] sm:$0xff]
    %v4486 = vld [vmem:[#allocation13 + $0xa8] sm:$0xff]
    %v4487 = vld [vmem:[#allocation13 + $0xb0] sm:$0xff]
    %v4488 = vld [vmem:[#allocation13 + $0xb8] sm:$0xff]
    %v4489 = vld [vmem:[#allocation13 + $0xc0] sm:$0xff]
    %v4490 = vld [vmem:[#allocation13 + $0xc8] sm:$0xff]
    %v4491 = vld [vmem:[#allocation13 + $0xd0] sm:$0xff]
    %v4492 = vld [vmem:[#allocation13 + $0xd8] sm:$0xff]
    %v4493 = vld [vmem:[#allocation13 + $0xe0] sm:$0xff]
    %v4494 = vld [vmem:[#allocation13 + $0xe8] sm:$0xff]
    %v4495 = vld [vmem:[#allocation13 + $0xf0] sm:$0xff]
    %v4496 = vld [vmem:[#allocation13 + $0xf8] sm:$0xff]
    %v4497 = vld [vmem:[#allocation13 + $0x100] sm:$0xff]
    %v4498 = vld [vmem:[#allocation13 + $0x108] sm:$0xff]
    %v4499 = vld [vmem:[#allocation13 + $0x110] sm:$0xff]
    %v4500 = vld [vmem:[#allocation13 + $0x118] sm:$0xff]
    %v4501 = vld [vmem:[#allocation13 + $0x120] sm:$0xff]
    %v4502 = vld [vmem:[#allocation13 + $0x128] sm:$0xff]
    %v4503 = vld [vmem:[#allocation13 + $0x130] sm:$0xff]
    %v4504 = vld [vmem:[#allocation13 + $0x138] sm:$0xff]
    %v4505 = vld [vmem:[#allocation13 + $0x140] sm:$0xff]
    %v4506 = vld [vmem:[#allocation13 + $0x148] sm:$0xff]
    %v4507 = vld [vmem:[#allocation13 + $0x150] sm:$0xff]
    %v4508 = vld [vmem:[#allocation13 + $0x158] sm:$0xff]
    %v4509 = vld [vmem:[#allocation13 + $0x160] sm:$0xff]
    %v4510 = vld [vmem:[#allocation13 + $0x168] sm:$0xff]
    %v4511 = vld [vmem:[#allocation13 + $0x170] sm:$0xff]
    %v4512 = vld [vmem:[#allocation13 + $0x178] sm:$0xff]
    %v4513 = vld [vmem:[#allocation13 + $0x180] sm:$0xff]
    %v4514 = vld [vmem:[#allocation13 + $0x188] sm:$0xff]
    %v4515 = vld [vmem:[#allocation13 + $0x190] sm:$0xff]
    %v4516 = vld [vmem:[#allocation13 + $0x198] sm:$0xff]
    %v4517 = vld [vmem:[#allocation13 + $0x1a0] sm:$0xff]
    %v4518 = vld [vmem:[#allocation13 + $0x1a8] sm:$0xff]
    %v4519 = vld [vmem:[#allocation13 + $0x1b0] sm:$0xff]
    %v4520 = vld [vmem:[#allocation13 + $0x1b8] sm:$0xff]
    %v4521 = vld [vmem:[#allocation13 + $0x1c0] sm:$0xff]
    %v4522 = vld [vmem:[#allocation13 + $0x1c8] sm:$0xff]
    %v4523 = vld [vmem:[#allocation13 + $0x1d0] sm:$0xff]
    %v4524 = vld [vmem:[#allocation13 + $0x1d8] sm:$0xff]
    %v4525 = vld [vmem:[#allocation13 + $0x1e0] sm:$0xff]
    %v4526 = vld [vmem:[#allocation13 + $0x1e8] sm:$0xff]
    %v4527 = vld [vmem:[#allocation13 + $0x1f0] sm:$0xff]
    %v4528 = vld [vmem:[#allocation13 + $0x1f8] sm:$0xff]
    %4529 = vmatprep.subr.mxu0 %v4466
    %4530 = vmatpush1.msra.mxu0 %v4465
    %4531 = vmatprep.subr.mxu0 %v4470
    %4532 = vmatpush1.msra.mxu0 %v4469
    %4533 = vmatprep.subr.mxu0 %v4474
    %4534 = vmatpush1.msra.mxu0 %v4473
    %4535 = vmatprep.subr.mxu0 %v4478
    %4536 = vmatpush1.msra.mxu0 %v4477
    %4537 = vmatprep.subr.mxu0 %v4482
    %4538 = vmatpush1.msra.mxu0 %v4481
    %4539 = vmatprep.subr.mxu0 %v4486
    %4540 = vmatpush1.msra.mxu0 %v4485
    %4541 = vmatprep.subr.mxu0 %v4490
    %4542 = vmatpush1.msra.mxu0 %v4489
    %4543 = vmatprep.subr.mxu0 %v4494
    %4544 = vmatpush1.msra.mxu0 %v4493
    %4545 = vmatprep.subr.mxu0 %v4498
    %4546 = vmatpush1.msra.mxu0 %v4497
    %4547 = vmatprep.subr.mxu0 %v4502
    %4548 = vmatpush1.msra.mxu0 %v4501
    %4549 = vmatprep.subr.mxu0 %v4506
    %4550 = vmatpush1.msra.mxu0 %v4505
    %4551 = vmatprep.subr.mxu0 %v4510
    %4552 = vmatpush1.msra.mxu0 %v4509
    %4553 = vmatprep.subr.mxu0 %v4514
    %4554 = vmatpush1.msra.mxu0 %v4513
    %4555 = vmatprep.subr.mxu0 %v4518
    %4556 = vmatpush1.msra.mxu0 %v4517
    %4557 = vmatprep.subr.mxu0 %v4522
    %4558 = vmatpush1.msra.mxu0 %v4521
    %4559 = vmatprep.subr.mxu0 %v4526
    %4560 = vmatpush1.msra.mxu0 %v4525
    %4561 = vmatprep.subr.mxu0 0.0
    %4562 = vmatpush1.msra.mxu0 0.0
    %4563 = vmatprep.subr.mxu0 0.0
    %4564 = vmatpush1.msra.mxu0 0.0
    %4565 = vmatprep.subr.mxu0 0.0
    %4566 = vmatpush1.msra.mxu0 0.0
    %4567 = vmatprep.subr.mxu0 0.0
    %4568 = vmatpush1.msra.mxu0 0.0
    %4569 = vmatprep.subr.mxu0 0.0
    %4570 = vmatpush1.msra.mxu0 0.0
    %4571 = vmatprep.subr.mxu0 0.0
    %4572 = vmatpush1.msra.mxu0 0.0
    %4573 = vmatprep.subr.mxu0 0.0
    %4574 = vmatpush1.msra.mxu0 0.0
    %4575 = vmatprep.subr.mxu0 0.0
    %4576 = vmatpush1.msra.mxu0 0.0
    %4577 = vmatprep.subr.mxu0 0.0
    %4578 = vmatpush1.msra.mxu0 0.0
    %4579 = vmatprep.subr.mxu0 0.0
    %4580 = vmatpush1.msra.mxu0 0.0
    %4581 = vmatprep.subr.mxu0 0.0
    %4582 = vmatpush1.msra.mxu0 0.0
    %4583 = vmatprep.subr.mxu0 0.0
    %4584 = vmatpush1.msra.mxu0 0.0
    %4585 = vmatprep.subr.mxu0 0.0
    %4586 = vmatpush1.msra.mxu0 0.0
    %4587 = vmatprep.subr.mxu0 0.0
    %4588 = vmatpush1.msra.mxu0 0.0
    %4589 = vmatprep.subr.mxu0 0.0
    %4590 = vmatpush1.msra.mxu0 0.0
    %4591 = vmatprep.subr.mxu0 0.0
    %4592 = vmatpush1.msra.mxu0 0.0
    %4593 = vmatprep.mubr.f32.mxu0 0.0
    %4594 = vmatmul.mubr.f32.gmra.mrb[0].mxu0 0.0
    %v4595 = vpop.f32.mrb[0].mxu0
    %v4596 = vadd.f32 0.0, %v4595
    %v4597 = vpop.f32.mrb[0].mxu0
    %v4598 = vadd.f32 0.0, %v4597
    %4599 = vdwg.mxu0
    %4600 = vmatprep.subr.mxu0 %v4468
    %4601 = vmatpush1.msra.mxu0 %v4467
    %4602 = vmatprep.subr.mxu0 %v4472
    %4603 = vmatpush1.msra.mxu0 %v4471
    %4604 = vmatprep.subr.mxu0 %v4476
    %4605 = vmatpush1.msra.mxu0 %v4475
    %4606 = vmatprep.subr.mxu0 %v4480
    %4607 = vmatpush1.msra.mxu0 %v4479
    %4608 = vmatprep.subr.mxu0 %v4484
    %4609 = vmatpush1.msra.mxu0 %v4483
    %4610 = vmatprep.subr.mxu0 %v4488
    %4611 = vmatpush1.msra.mxu0 %v4487
    %4612 = vmatprep.subr.mxu0 %v4492
    %4613 = vmatpush1.msra.mxu0 %v4491
    %4614 = vmatprep.subr.mxu0 %v4496
    %4615 = vmatpush1.msra.mxu0 %v4495
    %4616 = vmatprep.subr.mxu0 %v4500
    %4617 = vmatpush1.msra.mxu0 %v4499
    %4618 = vmatprep.subr.mxu0 %v4504
    %4619 = vmatpush1.msra.mxu0 %v4503
    %4620 = vmatprep.subr.mxu0 %v4508
    %4621 = vmatpush1.msra.mxu0 %v4507
    %4622 = vmatprep.subr.mxu0 %v4512
    %4623 = vmatpush1.msra.mxu0 %v4511
    %4624 = vmatprep.subr.mxu0 %v4516
    %4625 = vmatpush1.msra.mxu0 %v4515
    %4626 = vmatprep.subr.mxu0 %v4520
    %4627 = vmatpush1.msra.mxu0 %v4519
    %4628 = vmatprep.subr.mxu0 %v4524
    %4629 = vmatpush1.msra.mxu0 %v4523
    %4630 = vmatprep.subr.mxu0 %v4528
    %4631 = vmatpush1.msra.mxu0 %v4527
    %4632 = vmatprep.subr.mxu0 0.0
    %4633 = vmatpush1.msra.mxu0 0.0
    %4634 = vmatprep.subr.mxu0 0.0
    %4635 = vmatpush1.msra.mxu0 0.0
    %4636 = vmatprep.subr.mxu0 0.0
    %4637 = vmatpush1.msra.mxu0 0.0
    %4638 = vmatprep.subr.mxu0 0.0
    %4639 = vmatpush1.msra.mxu0 0.0
    %4640 = vmatprep.subr.mxu0 0.0
    %4641 = vmatpush1.msra.mxu0 0.0
    %4642 = vmatprep.subr.mxu0 0.0
    %4643 = vmatpush1.msra.mxu0 0.0
    %4644 = vmatprep.subr.mxu0 0.0
    %4645 = vmatpush1.msra.mxu0 0.0
    %4646 = vmatprep.subr.mxu0 0.0
    %4647 = vmatpush1.msra.mxu0 0.0
    %4648 = vmatprep.subr.mxu0 0.0
    %4649 = vmatpush1.msra.mxu0 0.0
    %4650 = vmatprep.subr.mxu0 0.0
    %4651 = vmatpush1.msra.mxu0 0.0
    %4652 = vmatprep.subr.mxu0 0.0
    %4653 = vmatpush1.msra.mxu0 0.0
    %4654 = vmatprep.subr.mxu0 0.0
    %4655 = vmatpush1.msra.mxu0 0.0
    %4656 = vmatprep.subr.mxu0 0.0
    %4657 = vmatpush1.msra.mxu0 0.0
    %4658 = vmatprep.subr.mxu0 0.0
    %4659 = vmatpush1.msra.mxu0 0.0
    %4660 = vmatprep.subr.mxu0 0.0
    %4661 = vmatpush1.msra.mxu0 0.0
    %4662 = vmatprep.subr.mxu0 0.0
    %4663 = vmatpush1.msra.mxu0 0.0
    %4664 = vmatprep.mubr.f32.mxu0 0.0
    %4665 = vmatmul.mubr.f32.gmra.mrb[0].mxu0 0.0
    %v4666 = vpop.f32.mrb[0].mxu0
    %v4667 = vadd.f32 0.0, %v4666
    %v4668 = vpop.f32.mrb[0].mxu0
    %v4669 = vadd.f32 0.0, %v4668
    %4670 = vdwg.mxu0
    %v4671 = vadd.f32 %v4368, %v4596
    %v4672 = vadd.f32 %v4370, %v4598
    %v4673 = vadd.f32 %v4439, %v4667
    %v4674 = vadd.f32 %v4441, %v4669
    %v4675 = vxor.u32 %v4671, 2147483648
    %v4676 = vxor.u32 %v4672, 2147483648
    %v4677 = vxor.u32 %v4673, 2147483648
    %v4678 = vmul.f32 %v4675, 1.442695
    %v4679 = vpow.pop %v4678
    %v4680 = vmul.f32 %v4676, 1.442695
    %v4681 = vpow.pop %v4680
    %v4682 = vmul.f32 %v4677, 1.442695
    %v4683 = vpow.pop %v4682
    %v4684 = vadd.f32 %v4679, 1.0
    %v4685 = vadd.f32 %v4681, 1.0
    %v4686 = vadd.f32 %v4683, 1.0
    %v4687 = vrcp.pop %v4684
    %v4688 = vmul.f32 1.0, %v4687
    %v4689 = vrcp.pop %v4685
    %v4690 = vmul.f32 1.0, %v4689
    %v4691 = vrcp.pop %v4686
    %v4692 = vmul.f32 1.0, %v4691
    %v4693 = vtanh.pop %v4674
    %v4694 = vmul.f32 %v4690, 0.0
    %v4695 = vmul.f32 %v4688, %v4693
    %v4696 = vadd.f32 %v4694, %v4695
    %v4697 = vtanh.pop %v4696
    %v4698 = vmul.f32 %v4692, %v4697
    %4699 = vmatprep.subr.mxu0 %v4466
    %4700 = vmatpush1.msra.mxu0 %v4465
    %4701 = vmatprep.subr.mxu0 %v4470
    %4702 = vmatpush1.msra.mxu0 %v4469
    %4703 = vmatprep.subr.mxu0 %v4474
    %4704 = vmatpush1.msra.mxu0 %v4473
    %4705 = vmatprep.subr.mxu0 %v4478
    %4706 = vmatpush1.msra.mxu0 %v4477
    %4707 = vmatprep.subr.mxu0 %v4482
    %4708 = vmatpush1.msra.mxu0 %v4481
    %4709 = vmatprep.subr.mxu0 %v4486
    %4710 = vmatpush1.msra.mxu0 %v4485
    %4711 = vmatprep.subr.mxu0 %v4490
    %4712 = vmatpush1.msra.mxu0 %v4489
    %4713 = vmatprep.subr.mxu0 %v4494
    %4714 = vmatpush1.msra.mxu0 %v4493
    %4715 = vmatprep.subr.mxu0 %v4498
    %4716 = vmatpush1.msra.mxu0 %v4497
    %4717 = vmatprep.subr.mxu0 %v4502
    %4718 = vmatpush1.msra.mxu0 %v4501
    %4719 = vmatprep.subr.mxu0 %v4506
    %4720 = vmatpush1.msra.mxu0 %v4505
    %4721 = vmatprep.subr.mxu0 %v4510
    %4722 = vmatpush1.msra.mxu0 %v4509
    %4723 = vmatprep.subr.mxu0 %v4514
    %4724 = vmatpush1.msra.mxu0 %v4513
    %4725 = vmatprep.subr.mxu0 %v4518
    %4726 = vmatpush1.msra.mxu0 %v4517
    %4727 = vmatprep.subr.mxu0 %v4522
    %4728 = vmatpush1.msra.mxu0 %v4521
    %4729 = vmatprep.subr.mxu0 %v4526
    %4730 = vmatpush1.msra.mxu0 %v4525
    %4731 = vmatprep.subr.mxu0 0.0
    %4732 = vmatpush1.msra.mxu0 0.0
    %4733 = vmatprep.subr.mxu0 0.0
    %4734 = vmatpush1.msra.mxu0 0.0
    %4735 = vmatprep.subr.mxu0 0.0
    %4736 = vmatpush1.msra.mxu0 0.0
    %4737 = vmatprep.subr.mxu0 0.0
    %4738 = vmatpush1.msra.mxu0 0.0
    %4739 = vmatprep.subr.mxu0 0.0
    %4740 = vmatpush1.msra.mxu0 0.0
    %4741 = vmatprep.subr.mxu0 0.0
    %4742 = vmatpush1.msra.mxu0 0.0
    %4743 = vmatprep.subr.mxu0 0.0
    %4744 = vmatpush1.msra.mxu0 0.0
    %4745 = vmatprep.subr.mxu0 0.0
    %4746 = vmatpush1.msra.mxu0 0.0
    %4747 = vmatprep.subr.mxu0 0.0
    %4748 = vmatpush1.msra.mxu0 0.0
    %4749 = vmatprep.subr.mxu0 0.0
    %4750 = vmatpush1.msra.mxu0 0.0
    %4751 = vmatprep.subr.mxu0 0.0
    %4752 = vmatpush1.msra.mxu0 0.0
    %4753 = vmatprep.subr.mxu0 0.0
    %4754 = vmatpush1.msra.mxu0 0.0
    %4755 = vmatprep.subr.mxu0 0.0
    %4756 = vmatpush1.msra.mxu0 0.0
    %4757 = vmatprep.subr.mxu0 0.0
    %4758 = vmatpush1.msra.mxu0 0.0
    %4759 = vmatprep.subr.mxu0 0.0
    %4760 = vmatpush1.msra.mxu0 0.0
    %4761 = vmatprep.subr.mxu0 0.0
    %4762 = vmatpush1.msra.mxu0 0.0
    %4763 = vmatprep.mubr.f32.mxu0 0.0
    %4764 = vmatmul.mubr.f32.gmra.mrb[0].mxu0 %v4698
    %v4765 = vpop.f32.mrb[0].mxu0
    %v4766 = vadd.f32 0.0, %v4765
    %v4767 = vpop.f32.mrb[0].mxu0
    %v4768 = vadd.f32 0.0, %v4767
    %4769 = vdwg.mxu0
    %4770 = vmatprep.subr.mxu0 %v4468
    %4771 = vmatpush1.msra.mxu0 %v4467
    %4772 = vmatprep.subr.mxu0 %v4472
    %4773 = vmatpush1.msra.mxu0 %v4471
    %4774 = vmatprep.subr.mxu0 %v4476
    %4775 = vmatpush1.msra.mxu0 %v4475
    %4776 = vmatprep.subr.mxu0 %v4480
    %4777 = vmatpush1.msra.mxu0 %v4479
    %4778 = vmatprep.subr.mxu0 %v4484
    %4779 = vmatpush1.msra.mxu0 %v4483
    %4780 = vmatprep.subr.mxu0 %v4488
    %4781 = vmatpush1.msra.mxu0 %v4487
    %4782 = vmatprep.subr.mxu0 %v4492
    %4783 = vmatpush1.msra.mxu0 %v4491
    %4784 = vmatprep.subr.mxu0 %v4496
    %4785 = vmatpush1.msra.mxu0 %v4495
    %4786 = vmatprep.subr.mxu0 %v4500
    %4787 = vmatpush1.msra.mxu0 %v4499
    %4788 = vmatprep.subr.mxu0 %v4504
    %4789 = vmatpush1.msra.mxu0 %v4503
    %4790 = vmatprep.subr.mxu0 %v4508
    %4791 = vmatpush1.msra.mxu0 %v4507
    %4792 = vmatprep.subr.mxu0 %v4512
    %4793 = vmatpush1.msra.mxu0 %v4511
    %4794 = vmatprep.subr.mxu0 %v4516
    %4795 = vmatpush1.msra.mxu0 %v4515
    %4796 = vmatprep.subr.mxu0 %v4520
    %4797 = vmatpush1.msra.mxu0 %v4519
    %4798 = vmatprep.subr.mxu0 %v4524
    %4799 = vmatpush1.msra.mxu0 %v4523
    %4800 = vmatprep.subr.mxu0 %v4528
    %4801 = vmatpush1.msra.mxu0 %v4527
    %4802 = vmatprep.subr.mxu0 0.0
    %4803 = vmatpush1.msra.mxu0 0.0
    %4804 = vmatprep.subr.mxu0 0.0
    %4805 = vmatpush1.msra.mxu0 0.0
    %4806 = vmatprep.subr.mxu0 0.0
    %4807 = vmatpush1.msra.mxu0 0.0
    %4808 = vmatprep.subr.mxu0 0.0
    %4809 = vmatpush1.msra.mxu0 0.0
    %4810 = vmatprep.subr.mxu0 0.0
    %4811 = vmatpush1.msra.mxu0 0.0
    %4812 = vmatprep.subr.mxu0 0.0
    %4813 = vmatpush1.msra.mxu0 0.0
    %4814 = vmatprep.subr.mxu0 0.0
    %4815 = vmatpush1.msra.mxu0 0.0
    %4816 = vmatprep.subr.mxu0 0.0
    %4817 = vmatpush1.msra.mxu0 0.0
    %4818 = vmatprep.subr.mxu0 0.0
    %4819 = vmatpush1.msra.mxu0 0.0
    %4820 = vmatprep.subr.mxu0 0.0
    %4821 = vmatpush1.msra.mxu0 0.0
    %4822 = vmatprep.subr.mxu0 0.0
    %4823 = vmatpush1.msra.mxu0 0.0
    %4824 = vmatprep.subr.mxu0 0.0
    %4825 = vmatpush1.msra.mxu0 0.0
    %4826 = vmatprep.subr.mxu0 0.0
    %4827 = vmatpush1.msra.mxu0 0.0
    %4828 = vmatprep.subr.mxu0 0.0
    %4829 = vmatpush1.msra.mxu0 0.0
    %4830 = vmatprep.subr.mxu0 0.0
    %4831 = vmatpush1.msra.mxu0 0.0
    %4832 = vmatprep.subr.mxu0 0.0
    %4833 = vmatpush1.msra.mxu0 0.0
    %4834 = vmatprep.mubr.f32.mxu0 0.0
    %4835 = vmatmul.mubr.f32.gmra.mrb[0].mxu0 %v4698
    %v4836 = vpop.f32.mrb[0].mxu0
    %v4837 = vadd.f32 0.0, %v4836
    %v4838 = vpop.f32.mrb[0].mxu0
    %v4839 = vadd.f32 0.0, %v4838
    %4840 = vdwg.mxu0
    %v4841 = vadd.f32 %v4368, %v4766
    %v4842 = vadd.f32 %v4370, %v4768
    %v4843 = vadd.f32 %v4439, %v4837
    %v4844 = vadd.f32 %v4441, %v4839
    %v4845 = vxor.u32 %v4841, 2147483648
    %v4846 = vxor.u32 %v4842, 2147483648
    %v4847 = vxor.u32 %v4843, 2147483648
    %v4848 = vmul.f32 %v4845, 1.442695
    %v4849 = vpow.pop %v4848
    %v4850 = vmul.f32 %v4846, 1.442695
    %v4851 = vpow.pop %v4850
    %v4852 = vmul.f32 %v4847, 1.442695
    %v4853 = vpow.pop %v4852
    %v4854 = vadd.f32 %v4849, 1.0
    %v4855 = vadd.f32 %v4851, 1.0
    %v4856 = vadd.f32 %v4853, 1.0
    %v4857 = vrcp.pop %v4854
    %v4858 = vmul.f32 1.0, %v4857
    %v4859 = vrcp.pop %v4855
    %v4860 = vmul.f32 1.0, %v4859
    %v4861 = vrcp.pop %v4856
    %v4862 = vmul.f32 1.0, %v4861
    %v4863 = vtanh.pop %v4844
    %v4864 = vmul.f32 %v4860, %v4696
    %v4865 = vmul.f32 %v4858, %v4863
    %v4866 = vadd.f32 %v4864, %v4865
    %v4867 = vtanh.pop %v4866
    %v4868 = vmul.f32 %v4862, %v4867
    %v4869 = vld [vmem:[#allocation14] sm:$0xff]
    %v4870 = vld [vmem:[#allocation14 + $0x8] sm:$0xff]
    %v4871 = vld [vmem:[#allocation14 + $0x10] sm:$0xff]
    %v4872 = vld [vmem:[#allocation14 + $0x18] sm:$0xff]
    %v4873 = vld [vmem:[#allocation14 + $0x20] sm:$0xff]
    %v4874 = vld [vmem:[#allocation14 + $0x28] sm:$0xff]
    %v4875 = vld [vmem:[#allocation14 + $0x30] sm:$0xff]
    %v4876 = vld [vmem:[#allocation14 + $0x38] sm:$0xff]
    %v4877 = vld [vmem:[#allocation14 + $0x40] sm:$0xff]
    %v4878 = vld [vmem:[#allocation14 + $0x48] sm:$0xff]
    %v4879 = vld [vmem:[#allocation14 + $0x50] sm:$0xff]
    %v4880 = vld [vmem:[#allocation14 + $0x58] sm:$0xff]
    %v4881 = vld [vmem:[#allocation14 + $0x60] sm:$0xff]
    %v4882 = vld [vmem:[#allocation14 + $0x68] sm:$0xff]
    %v4883 = vld [vmem:[#allocation14 + $0x70] sm:$0xff]
    %v4884 = vld [vmem:[#allocation14 + $0x78] sm:$0xff]
    %v4885 = vld [vmem:[#allocation14 + $0x80] sm:$0xff]
    %v4886 = vld [vmem:[#allocation14 + $0x88] sm:$0xff]
    %v4887 = vld [vmem:[#allocation14 + $0x90] sm:$0xff]
    %v4888 = vld [vmem:[#allocation14 + $0x98] sm:$0xff]
    %v4889 = vld [vmem:[#allocation14 + $0xa0] sm:$0xff]
    %v4890 = vld [vmem:[#allocation14 + $0xa8] sm:$0xff]
    %v4891 = vld [vmem:[#allocation14 + $0xb0] sm:$0xff]
    %v4892 = vld [vmem:[#allocation14 + $0xb8] sm:$0xff]
    %v4893 = vld [vmem:[#allocation14 + $0xc0] sm:$0xff]
    %v4894 = vld [vmem:[#allocation14 + $0xc8] sm:$0xff]
    %v4895 = vld [vmem:[#allocation14 + $0xd0] sm:$0xff]
    %v4896 = vld [vmem:[#allocation14 + $0xd8] sm:$0xff]
    %v4897 = vld [vmem:[#allocation14 + $0xe0] sm:$0xff]
    %v4898 = vld [vmem:[#allocation14 + $0xe8] sm:$0xff]
    %v4899 = vld [vmem:[#allocation14 + $0xf0] sm:$0xff]
    %v4900 = vld [vmem:[#allocation14 + $0xf8] sm:$0xff]
    %v4901 = vld [vmem:[#allocation14 + $0x100] sm:$0xff]
    %v4902 = vld [vmem:[#allocation14 + $0x108] sm:$0xff]
    %v4903 = vld [vmem:[#allocation14 + $0x110] sm:$0xff]
    %v4904 = vld [vmem:[#allocation14 + $0x118] sm:$0xff]
    %v4905 = vld [vmem:[#allocation14 + $0x120] sm:$0xff]
    %v4906 = vld [vmem:[#allocation14 + $0x128] sm:$0xff]
    %v4907 = vld [vmem:[#allocation14 + $0x130] sm:$0xff]
    %v4908 = vld [vmem:[#allocation14 + $0x138] sm:$0xff]
    %v4909 = vld [vmem:[#allocation14 + $0x140] sm:$0xff]
    %v4910 = vld [vmem:[#allocation14 + $0x148] sm:$0xff]
    %v4911 = vld [vmem:[#allocation14 + $0x150] sm:$0xff]
    %v4912 = vld [vmem:[#allocation14 + $0x158] sm:$0xff]
    %v4913 = vld [vmem:[#allocation14 + $0x160] sm:$0xff]
    %v4914 = vld [vmem:[#allocation14 + $0x168] sm:$0xff]
    %v4915 = vld [vmem:[#allocation14 + $0x170] sm:$0xff]
    %v4916 = vld [vmem:[#allocation14 + $0x178] sm:$0xff]
    %v4917 = vld [vmem:[#allocation14 + $0x180] sm:$0xff]
    %v4918 = vld [vmem:[#allocation14 + $0x188] sm:$0xff]
    %v4919 = vld [vmem:[#allocation14 + $0x190] sm:$0xff]
    %v4920 = vld [vmem:[#allocation14 + $0x198] sm:$0xff]
    %v4921 = vld [vmem:[#allocation14 + $0x1a0] sm:$0xff]
    %v4922 = vld [vmem:[#allocation14 + $0x1a8] sm:$0xff]
    %v4923 = vld [vmem:[#allocation14 + $0x1b0] sm:$0xff]
    %v4924 = vld [vmem:[#allocation14 + $0x1b8] sm:$0xff]
    %v4925 = vld [vmem:[#allocation14 + $0x1c0] sm:$0xff]
    %v4926 = vld [vmem:[#allocation14 + $0x1c8] sm:$0xff]
    %v4927 = vld [vmem:[#allocation14 + $0x1d0] sm:$0xff]
    %v4928 = vld [vmem:[#allocation14 + $0x1d8] sm:$0xff]
    %v4929 = vld [vmem:[#allocation14 + $0x1e0] sm:$0xff]
    %v4930 = vld [vmem:[#allocation14 + $0x1e8] sm:$0xff]
    %v4931 = vld [vmem:[#allocation14 + $0x1f0] sm:$0xff]
    %v4932 = vld [vmem:[#allocation14 + $0x1f8] sm:$0xff]
    %v4933 = vld [vmem:[#allocation16] sm:$0xff]
    %v4934 = vld [vmem:[#allocation16 + $0x8] sm:$0xff]
    %v4935 = vld [vmem:[#allocation16 + $0x10] sm:$0xff]
    %v4936 = vld [vmem:[#allocation16 + $0x18] sm:$0xff]
    %v4937 = vld [vmem:[#allocation16 + $0x20] sm:$0xff]
    %v4938 = vld [vmem:[#allocation16 + $0x28] sm:$0xff]
    %v4939 = vld [vmem:[#allocation16 + $0x30] sm:$0xff]
    %v4940 = vld [vmem:[#allocation16 + $0x38] sm:$0xff]
    %v4941 = vld [vmem:[#allocation16 + $0x40] sm:$0xff]
    %v4942 = vld [vmem:[#allocation16 + $0x48] sm:$0xff]
    %v4943 = vld [vmem:[#allocation16 + $0x50] sm:$0xff]
    %v4944 = vld [vmem:[#allocation16 + $0x58] sm:$0xff]
    %v4945 = vld [vmem:[#allocation16 + $0x60] sm:$0xff]
    %v4946 = vld [vmem:[#allocation16 + $0x68] sm:$0xff]
    %v4947 = vld [vmem:[#allocation16 + $0x70] sm:$0xff]
    %v4948 = vld [vmem:[#allocation16 + $0x78] sm:$0xff]
    %v4949 = vld [vmem:[#allocation16 + $0x80] sm:$0xff]
    %v4950 = vld [vmem:[#allocation16 + $0x88] sm:$0xff]
    %v4951 = vld [vmem:[#allocation16 + $0x90] sm:$0xff]
    %v4952 = vld [vmem:[#allocation16 + $0x98] sm:$0xff]
    %v4953 = vld [vmem:[#allocation16 + $0xa0] sm:$0xff]
    %v4954 = vld [vmem:[#allocation16 + $0xa8] sm:$0xff]
    %v4955 = vld [vmem:[#allocation16 + $0xb0] sm:$0xff]
    %v4956 = vld [vmem:[#allocation16 + $0xb8] sm:$0xff]
    %v4957 = vld [vmem:[#allocation16 + $0xc0] sm:$0xff]
    %v4958 = vld [vmem:[#allocation16 + $0xc8] sm:$0xff]
    %v4959 = vld [vmem:[#allocation16 + $0xd0] sm:$0xff]
    %v4960 = vld [vmem:[#allocation16 + $0xd8] sm:$0xff]
    %v4961 = vld [vmem:[#allocation16 + $0xe0] sm:$0xff]
    %v4962 = vld [vmem:[#allocation16 + $0xe8] sm:$0xff]
    %v4963 = vld [vmem:[#allocation16 + $0xf0] sm:$0xff]
    %v4964 = vld [vmem:[#allocation16 + $0xf8] sm:$0xff]
    %v4965 = vld [vmem:[#allocation16 + $0x100] sm:$0xff]
    %v4966 = vld [vmem:[#allocation16 + $0x108] sm:$0xff]
    %v4967 = vld [vmem:[#allocation16 + $0x110] sm:$0xff]
    %v4968 = vld [vmem:[#allocation16 + $0x118] sm:$0xff]
    %v4969 = vld [vmem:[#allocation16 + $0x120] sm:$0xff]
    %v4970 = vld [vmem:[#allocation16 + $0x128] sm:$0xff]
    %v4971 = vld [vmem:[#allocation16 + $0x130] sm:$0xff]
    %v4972 = vld [vmem:[#allocation16 + $0x138] sm:$0xff]
    %v4973 = vld [vmem:[#allocation16 + $0x140] sm:$0xff]
    %v4974 = vld [vmem:[#allocation16 + $0x148] sm:$0xff]
    %v4975 = vld [vmem:[#allocation16 + $0x150] sm:$0xff]
    %v4976 = vld [vmem:[#allocation16 + $0x158] sm:$0xff]
    %v4977 = vld [vmem:[#allocation16 + $0x160] sm:$0xff]
    %v4978 = vld [vmem:[#allocation16 + $0x168] sm:$0xff]
    %v4979 = vld [vmem:[#allocation16 + $0x170] sm:$0xff]
    %v4980 = vld [vmem:[#allocation16 + $0x178] sm:$0xff]
    %v4981 = vld [vmem:[#allocation16 + $0x180] sm:$0xff]
    %v4982 = vld [vmem:[#allocation16 + $0x188] sm:$0xff]
    %v4983 = vld [vmem:[#allocation16 + $0x190] sm:$0xff]
    %v4984 = vld [vmem:[#allocation16 + $0x198] sm:$0xff]
    %v4985 = vld [vmem:[#allocation16 + $0x1a0] sm:$0xff]
    %v4986 = vld [vmem:[#allocation16 + $0x1a8] sm:$0xff]
    %v4987 = vld [vmem:[#allocation16 + $0x1b0] sm:$0xff]
    %v4988 = vld [vmem:[#allocation16 + $0x1b8] sm:$0xff]
    %v4989 = vld [vmem:[#allocation16 + $0x1c0] sm:$0xff]
    %v4990 = vld [vmem:[#allocation16 + $0x1c8] sm:$0xff]
    %v4991 = vld [vmem:[#allocation16 + $0x1d0] sm:$0xff]
    %v4992 = vld [vmem:[#allocation16 + $0x1d8] sm:$0xff]
    %v4993 = vld [vmem:[#allocation16 + $0x1e0] sm:$0xff]
    %v4994 = vld [vmem:[#allocation16 + $0x1e8] sm:$0xff]
    %v4995 = vld [vmem:[#allocation16 + $0x1f0] sm:$0xff]
    %v4996 = vld [vmem:[#allocation16 + $0x1f8] sm:$0xff]
    %4997 = vmatprep.subr.mxu0 %v4934
    %4998 = vmatpush1.msra.mxu0 %v4933
    %4999 = vmatprep.subr.mxu0 %v4938
    %5000 = vmatpush1.msra.mxu0 %v4937
    %5001 = vmatprep.subr.mxu0 %v4942
    %5002 = vmatpush1.msra.mxu0 %v4941
    %5003 = vmatprep.subr.mxu0 %v4946
    %5004 = vmatpush1.msra.mxu0 %v4945
    %5005 = vmatprep.subr.mxu0 %v4950
    %5006 = vmatpush1.msra.mxu0 %v4949
    %5007 = vmatprep.subr.mxu0 %v4954
    %5008 = vmatpush1.msra.mxu0 %v4953
    %5009 = vmatprep.subr.mxu0 %v4958
    %5010 = vmatpush1.msra.mxu0 %v4957
    %5011 = vmatprep.subr.mxu0 %v4962
    %5012 = vmatpush1.msra.mxu0 %v4961
    %5013 = vmatprep.subr.mxu0 %v4966
    %5014 = vmatpush1.msra.mxu0 %v4965
    %5015 = vmatprep.subr.mxu0 %v4970
    %5016 = vmatpush1.msra.mxu0 %v4969
    %5017 = vmatprep.subr.mxu0 %v4974
    %5018 = vmatpush1.msra.mxu0 %v4973
    %5019 = vmatprep.subr.mxu0 %v4978
    %5020 = vmatpush1.msra.mxu0 %v4977
    %5021 = vmatprep.subr.mxu0 %v4982
    %5022 = vmatpush1.msra.mxu0 %v4981
    %5023 = vmatprep.subr.mxu0 %v4986
    %5024 = vmatpush1.msra.mxu0 %v4985
    %5025 = vmatprep.subr.mxu0 %v4990
    %5026 = vmatpush1.msra.mxu0 %v4989
    %5027 = vmatprep.subr.mxu0 %v4994
    %5028 = vmatpush1.msra.mxu0 %v4993
    %5029 = vmatprep.subr.mxu0 0.0
    %5030 = vmatpush1.msra.mxu0 0.0
    %5031 = vmatprep.subr.mxu0 0.0
    %5032 = vmatpush1.msra.mxu0 0.0
    %5033 = vmatprep.subr.mxu0 0.0
    %5034 = vmatpush1.msra.mxu0 0.0
    %5035 = vmatprep.subr.mxu0 0.0
    %5036 = vmatpush1.msra.mxu0 0.0
    %5037 = vmatprep.subr.mxu0 0.0
    %5038 = vmatpush1.msra.mxu0 0.0
    %5039 = vmatprep.subr.mxu0 0.0
    %5040 = vmatpush1.msra.mxu0 0.0
    %5041 = vmatprep.subr.mxu0 0.0
    %5042 = vmatpush1.msra.mxu0 0.0
    %5043 = vmatprep.subr.mxu0 0.0
    %5044 = vmatpush1.msra.mxu0 0.0
    %5045 = vmatprep.subr.mxu0 0.0
    %5046 = vmatpush1.msra.mxu0 0.0
    %5047 = vmatprep.subr.mxu0 0.0
    %5048 = vmatpush1.msra.mxu0 0.0
    %5049 = vmatprep.subr.mxu0 0.0
    %5050 = vmatpush1.msra.mxu0 0.0
    %5051 = vmatprep.subr.mxu0 0.0
    %5052 = vmatpush1.msra.mxu0 0.0
    %5053 = vmatprep.subr.mxu0 0.0
    %5054 = vmatpush1.msra.mxu0 0.0
    %5055 = vmatprep.subr.mxu0 0.0
    %5056 = vmatpush1.msra.mxu0 0.0
    %5057 = vmatprep.subr.mxu0 0.0
    %5058 = vmatpush1.msra.mxu0 0.0
    %5059 = vmatprep.subr.mxu0 0.0
    %5060 = vmatpush1.msra.mxu0 0.0
    %5061 = vmatprep.mubr.f32.mxu0 0.0
    %5062 = vmatmul.mubr.f32.gmra.mrb[0].mxu0 0.0
    %v5063 = vpop.f32.mrb[0].mxu0
    %v5064 = vadd.f32 0.0, %v5063
    %v5065 = vpop.f32.mrb[0].mxu0
    %v5066 = vadd.f32 0.0, %v5065
    %5067 = vdwg.mxu0
    %5068 = vmatprep.subr.mxu0 %v4936
    %5069 = vmatpush1.msra.mxu0 %v4935
    %5070 = vmatprep.subr.mxu0 %v4940
    %5071 = vmatpush1.msra.mxu0 %v4939
    %5072 = vmatprep.subr.mxu0 %v4944
    %5073 = vmatpush1.msra.mxu0 %v4943
    %5074 = vmatprep.subr.mxu0 %v4948
    %5075 = vmatpush1.msra.mxu0 %v4947
    %5076 = vmatprep.subr.mxu0 %v4952
    %5077 = vmatpush1.msra.mxu0 %v4951
    %5078 = vmatprep.subr.mxu0 %v4956
    %5079 = vmatpush1.msra.mxu0 %v4955
    %5080 = vmatprep.subr.mxu0 %v4960
    %5081 = vmatpush1.msra.mxu0 %v4959
    %5082 = vmatprep.subr.mxu0 %v4964
    %5083 = vmatpush1.msra.mxu0 %v4963
    %5084 = vmatprep.subr.mxu0 %v4968
    %5085 = vmatpush1.msra.mxu0 %v4967
    %5086 = vmatprep.subr.mxu0 %v4972
    %5087 = vmatpush1.msra.mxu0 %v4971
    %5088 = vmatprep.subr.mxu0 %v4976
    %5089 = vmatpush1.msra.mxu0 %v4975
    %5090 = vmatprep.subr.mxu0 %v4980
    %5091 = vmatpush1.msra.mxu0 %v4979
    %5092 = vmatprep.subr.mxu0 %v4984
    %5093 = vmatpush1.msra.mxu0 %v4983
    %5094 = vmatprep.subr.mxu0 %v4988
    %5095 = vmatpush1.msra.mxu0 %v4987
    %5096 = vmatprep.subr.mxu0 %v4992
    %5097 = vmatpush1.msra.mxu0 %v4991
    %5098 = vmatprep.subr.mxu0 %v4996
    %5099 = vmatpush1.msra.mxu0 %v4995
    %5100 = vmatprep.subr.mxu0 0.0
    %5101 = vmatpush1.msra.mxu0 0.0
    %5102 = vmatprep.subr.mxu0 0.0
    %5103 = vmatpush1.msra.mxu0 0.0
    %5104 = vmatprep.subr.mxu0 0.0
    %5105 = vmatpush1.msra.mxu0 0.0
    %5106 = vmatprep.subr.mxu0 0.0
    %5107 = vmatpush1.msra.mxu0 0.0
    %5108 = vmatprep.subr.mxu0 0.0
    %5109 = vmatpush1.msra.mxu0 0.0
    %5110 = vmatprep.subr.mxu0 0.0
    %5111 = vmatpush1.msra.mxu0 0.0
    %5112 = vmatprep.subr.mxu0 0.0
    %5113 = vmatpush1.msra.mxu0 0.0
    %5114 = vmatprep.subr.mxu0 0.0
    %5115 = vmatpush1.msra.mxu0 0.0
    %5116 = vmatprep.subr.mxu0 0.0
    %5117 = vmatpush1.msra.mxu0 0.0
    %5118 = vmatprep.subr.mxu0 0.0
    %5119 = vmatpush1.msra.mxu0 0.0
    %5120 = vmatprep.subr.mxu0 0.0
    %5121 = vmatpush1.msra.mxu0 0.0
    %5122 = vmatprep.subr.mxu0 0.0
    %5123 = vmatpush1.msra.mxu0 0.0
    %5124 = vmatprep.subr.mxu0 0.0
    %5125 = vmatpush1.msra.mxu0 0.0
    %5126 = vmatprep.subr.mxu0 0.0
    %5127 = vmatpush1.msra.mxu0 0.0
    %5128 = vmatprep.subr.mxu0 0.0
    %5129 = vmatpush1.msra.mxu0 0.0
    %5130 = vmatprep.subr.mxu0 0.0
    %5131 = vmatpush1.msra.mxu0 0.0
    %5132 = vmatprep.mubr.f32.mxu0 0.0
    %5133 = vmatmul.mubr.f32.gmra.mrb[0].mxu0 0.0
    %v5134 = vpop.f32.mrb[0].mxu0
    %v5135 = vadd.f32 0.0, %v5134
    %v5136 = vpop.f32.mrb[0].mxu0
    %v5137 = vadd.f32 0.0, %v5136
    %5138 = vdwg.mxu0
    %5139 = vmatprep.subr.mxu0 %v4870
    %5140 = vmatpush1.msra.mxu0 %v4869
    %5141 = vmatprep.subr.mxu0 %v4874
    %5142 = vmatpush1.msra.mxu0 %v4873
    %5143 = vmatprep.subr.mxu0 %v4878
    %5144 = vmatpush1.msra.mxu0 %v4877
    %5145 = vmatprep.subr.mxu0 %v4882
    %5146 = vmatpush1.msra.mxu0 %v4881
    %5147 = vmatprep.subr.mxu0 %v4886
    %5148 = vmatpush1.msra.mxu0 %v4885
    %5149 = vmatprep.subr.mxu0 %v4890
    %5150 = vmatpush1.msra.mxu0 %v4889
    %5151 = vmatprep.subr.mxu0 %v4894
    %5152 = vmatpush1.msra.mxu0 %v4893
    %5153 = vmatprep.subr.mxu0 %v4898
    %5154 = vmatpush1.msra.mxu0 %v4897
    %5155 = vmatprep.subr.mxu0 %v4902
    %5156 = vmatpush1.msra.mxu0 %v4901
    %5157 = vmatprep.subr.mxu0 %v4906
    %5158 = vmatpush1.msra.mxu0 %v4905
    %5159 = vmatprep.subr.mxu0 %v4910
    %5160 = vmatpush1.msra.mxu0 %v4909
    %5161 = vmatprep.subr.mxu0 %v4914
    %5162 = vmatpush1.msra.mxu0 %v4913
    %5163 = vmatprep.subr.mxu0 %v4918
    %5164 = vmatpush1.msra.mxu0 %v4917
    %5165 = vmatprep.subr.mxu0 %v4922
    %5166 = vmatpush1.msra.mxu0 %v4921
    %5167 = vmatprep.subr.mxu0 %v4926
    %5168 = vmatpush1.msra.mxu0 %v4925
    %5169 = vmatprep.subr.mxu0 %v4930
    %5170 = vmatpush1.msra.mxu0 %v4929
    %5171 = vmatprep.subr.mxu0 0.0
    %5172 = vmatpush1.msra.mxu0 0.0
    %5173 = vmatprep.subr.mxu0 0.0
    %5174 = vmatpush1.msra.mxu0 0.0
    %5175 = vmatprep.subr.mxu0 0.0
    %5176 = vmatpush1.msra.mxu0 0.0
    %5177 = vmatprep.subr.mxu0 0.0
    %5178 = vmatpush1.msra.mxu0 0.0
    %5179 = vmatprep.subr.mxu0 0.0
    %5180 = vmatpush1.msra.mxu0 0.0
    %5181 = vmatprep.subr.mxu0 0.0
    %5182 = vmatpush1.msra.mxu0 0.0
    %5183 = vmatprep.subr.mxu0 0.0
    %5184 = vmatpush1.msra.mxu0 0.0
    %5185 = vmatprep.subr.mxu0 0.0
    %5186 = vmatpush1.msra.mxu0 0.0
    %5187 = vmatprep.subr.mxu0 0.0
    %5188 = vmatpush1.msra.mxu0 0.0
    %5189 = vmatprep.subr.mxu0 0.0
    %5190 = vmatpush1.msra.mxu0 0.0
    %5191 = vmatprep.subr.mxu0 0.0
    %5192 = vmatpush1.msra.mxu0 0.0
    %5193 = vmatprep.subr.mxu0 0.0
    %5194 = vmatpush1.msra.mxu0 0.0
    %5195 = vmatprep.subr.mxu0 0.0
    %5196 = vmatpush1.msra.mxu0 0.0
    %5197 = vmatprep.subr.mxu0 0.0
    %5198 = vmatpush1.msra.mxu0 0.0
    %5199 = vmatprep.subr.mxu0 0.0
    %5200 = vmatpush1.msra.mxu0 0.0
    %5201 = vmatprep.subr.mxu0 0.0
    %5202 = vmatpush1.msra.mxu0 0.0
    %5203 = vmatprep.mubr.f32.mxu0 0.0
    %5204 = vmatmul.mubr.f32.gmra.mrb[0].mxu0 %v4698
    %v5205 = vpop.f32.mrb[0].mxu0
    %v5206 = vadd.f32 %v5064, %v5205
    %v5207 = vpop.f32.mrb[0].mxu0
    %v5208 = vadd.f32 %v5066, %v5207
    %5209 = vdwg.mxu0
    %5210 = vmatprep.subr.mxu0 %v4872
    %5211 = vmatpush1.msra.mxu0 %v4871
    %5212 = vmatprep.subr.mxu0 %v4876
    %5213 = vmatpush1.msra.mxu0 %v4875
    %5214 = vmatprep.subr.mxu0 %v4880
    %5215 = vmatpush1.msra.mxu0 %v4879
    %5216 = vmatprep.subr.mxu0 %v4884
    %5217 = vmatpush1.msra.mxu0 %v4883
    %5218 = vmatprep.subr.mxu0 %v4888
    %5219 = vmatpush1.msra.mxu0 %v4887
    %5220 = vmatprep.subr.mxu0 %v4892
    %5221 = vmatpush1.msra.mxu0 %v4891
    %5222 = vmatprep.subr.mxu0 %v4896
    %5223 = vmatpush1.msra.mxu0 %v4895
    %5224 = vmatprep.subr.mxu0 %v4900
    %5225 = vmatpush1.msra.mxu0 %v4899
    %5226 = vmatprep.subr.mxu0 %v4904
    %5227 = vmatpush1.msra.mxu0 %v4903
    %5228 = vmatprep.subr.mxu0 %v4908
    %5229 = vmatpush1.msra.mxu0 %v4907
    %5230 = vmatprep.subr.mxu0 %v4912
    %5231 = vmatpush1.msra.mxu0 %v4911
    %5232 = vmatprep.subr.mxu0 %v4916
    %5233 = vmatpush1.msra.mxu0 %v4915
    %5234 = vmatprep.subr.mxu0 %v4920
    %5235 = vmatpush1.msra.mxu0 %v4919
    %5236 = vmatprep.subr.mxu0 %v4924
    %5237 = vmatpush1.msra.mxu0 %v4923
    %5238 = vmatprep.subr.mxu0 %v4928
    %5239 = vmatpush1.msra.mxu0 %v4927
    %5240 = vmatprep.subr.mxu0 %v4932
    %5241 = vmatpush1.msra.mxu0 %v4931
    %5242 = vmatprep.subr.mxu0 0.0
    %5243 = vmatpush1.msra.mxu0 0.0
    %5244 = vmatprep.subr.mxu0 0.0
    %5245 = vmatpush1.msra.mxu0 0.0
    %5246 = vmatprep.subr.mxu0 0.0
    %5247 = vmatpush1.msra.mxu0 0.0
    %5248 = vmatprep.subr.mxu0 0.0
    %5249 = vmatpush1.msra.mxu0 0.0
    %5250 = vmatprep.subr.mxu0 0.0
    %5251 = vmatpush1.msra.mxu0 0.0
    %5252 = vmatprep.subr.mxu0 0.0
    %5253 = vmatpush1.msra.mxu0 0.0
    %5254 = vmatprep.subr.mxu0 0.0
    %5255 = vmatpush1.msra.mxu0 0.0
    %5256 = vmatprep.subr.mxu0 0.0
    %5257 = vmatpush1.msra.mxu0 0.0
    %5258 = vmatprep.subr.mxu0 0.0
    %5259 = vmatpush1.msra.mxu0 0.0
    %5260 = vmatprep.subr.mxu0 0.0
    %5261 = vmatpush1.msra.mxu0 0.0
    %5262 = vmatprep.subr.mxu0 0.0
    %5263 = vmatpush1.msra.mxu0 0.0
    %5264 = vmatprep.subr.mxu0 0.0
    %5265 = vmatpush1.msra.mxu0 0.0
    %5266 = vmatprep.subr.mxu0 0.0
    %5267 = vmatpush1.msra.mxu0 0.0
    %5268 = vmatprep.subr.mxu0 0.0
    %5269 = vmatpush1.msra.mxu0 0.0
    %5270 = vmatprep.subr.mxu0 0.0
    %5271 = vmatpush1.msra.mxu0 0.0
    %5272 = vmatprep.subr.mxu0 0.0
    %5273 = vmatpush1.msra.mxu0 0.0
    %5274 = vmatprep.mubr.f32.mxu0 0.0
    %5275 = vmatmul.mubr.f32.gmra.mrb[0].mxu0 %v4698
    %v5276 = vpop.f32.mrb[0].mxu0
    %v5277 = vadd.f32 %v5135, %v5276
    %v5278 = vpop.f32.mrb[0].mxu0
    %v5279 = vadd.f32 %v5137, %v5278
    %5280 = vdwg.mxu0
    %v5281 = vadd.f32 %v5206, %v4448
    %v5282 = vadd.f32 %v5208, %v4452
    %v5283 = vadd.f32 %v5277, %v4456
    %v5284 = vadd.f32 %v5279, %v4460
    %v5285 = vxor.u32 %v5281, 2147483648
    %v5286 = vxor.u32 %v5282, 2147483648
    %v5287 = vxor.u32 %v5283, 2147483648
    %v5288 = vmul.f32 %v5285, 1.442695
    %v5289 = vpow.pop %v5288
    %v5290 = vmul.f32 %v5286, 1.442695
    %v5291 = vpow.pop %v5290
    %v5292 = vmul.f32 %v5287, 1.442695
    %v5293 = vpow.pop %v5292
    %v5294 = vadd.f32 %v5289, 1.0
    %v5295 = vadd.f32 %v5291, 1.0
    %v5296 = vadd.f32 %v5293, 1.0
    %v5297 = vrcp.pop %v5294
    %v5298 = vmul.f32 1.0, %v5297
    %v5299 = vrcp.pop %v5295
    %v5300 = vmul.f32 1.0, %v5299
    %v5301 = vrcp.pop %v5296
    %v5302 = vmul.f32 1.0, %v5301
    %v5303 = vtanh.pop %v5284
    %v5304 = vmul.f32 %v5300, 0.0
    %v5305 = vmul.f32 %v5298, %v5303
    %v5306 = vadd.f32 %v5304, %v5305
    %v5307 = vtanh.pop %v5306
    %v5308 = vmul.f32 %v5302, %v5307
    %5309 = vst [vmem:[#allocation17] sm:$0xff] %v5308
    %v5310 = vld [vmem:[#allocation13] sm:$0xff]
    %v5311 = vld [vmem:[#allocation13 + $0x8] sm:$0xff]
    %v5312 = vld [vmem:[#allocation13 + $0x10] sm:$0xff]
    %v5313 = vld [vmem:[#allocation13 + $0x18] sm:$0xff]
    %v5314 = vld [vmem:[#allocation13 + $0x20] sm:$0xff]
    %v5315 = vld [vmem:[#allocation13 + $0x28] sm:$0xff]
    %v5316 = vld [vmem:[#allocation13 + $0x30] sm:$0xff]
    %v5317 = vld [vmem:[#allocation13 + $0x38] sm:$0xff]
    %v5318 = vld [vmem:[#allocation13 + $0x40] sm:$0xff]
    %v5319 = vld [vmem:[#allocation13 + $0x48] sm:$0xff]
    %v5320 = vld [vmem:[#allocation13 + $0x50] sm:$0xff]
    %v5321 = vld [vmem:[#allocation13 + $0x58] sm:$0xff]
    %v5322 = vld [vmem:[#allocation13 + $0x60] sm:$0xff]
    %v5323 = vld [vmem:[#allocation13 + $0x68] sm:$0xff]
    %v5324 = vld [vmem:[#allocation13 + $0x70] sm:$0xff]
    %v5325 = vld [vmem:[#allocation13 + $0x78] sm:$0xff]
    %v5326 = vld [vmem:[#allocation13 + $0x80] sm:$0xff]
    %v5327 = vld [vmem:[#allocation13 + $0x88] sm:$0xff]
    %v5328 = vld [vmem:[#allocation13 + $0x90] sm:$0xff]
    %v5329 = vld [vmem:[#allocation13 + $0x98] sm:$0xff]
    %v5330 = vld [vmem:[#allocation13 + $0xa0] sm:$0xff]
    %v5331 = vld [vmem:[#allocation13 + $0xa8] sm:$0xff]
    %v5332 = vld [vmem:[#allocation13 + $0xb0] sm:$0xff]
    %v5333 = vld [vmem:[#allocation13 + $0xb8] sm:$0xff]
    %v5334 = vld [vmem:[#allocation13 + $0xc0] sm:$0xff]
    %v5335 = vld [vmem:[#allocation13 + $0xc8] sm:$0xff]
    %v5336 = vld [vmem:[#allocation13 + $0xd0] sm:$0xff]
    %v5337 = vld [vmem:[#allocation13 + $0xd8] sm:$0xff]
    %v5338 = vld [vmem:[#allocation13 + $0xe0] sm:$0xff]
    %v5339 = vld [vmem:[#allocation13 + $0xe8] sm:$0xff]
    %v5340 = vld [vmem:[#allocation13 + $0xf0] sm:$0xff]
    %v5341 = vld [vmem:[#allocation13 + $0xf8] sm:$0xff]
    %v5342 = vld [vmem:[#allocation13 + $0x100] sm:$0xff]
    %v5343 = vld [vmem:[#allocation13 + $0x108] sm:$0xff]
    %v5344 = vld [vmem:[#allocation13 + $0x110] sm:$0xff]
    %v5345 = vld [vmem:[#allocation13 + $0x118] sm:$0xff]
    %v5346 = vld [vmem:[#allocation13 + $0x120] sm:$0xff]
    %v5347 = vld [vmem:[#allocation13 + $0x128] sm:$0xff]
    %v5348 = vld [vmem:[#allocation13 + $0x130] sm:$0xff]
    %v5349 = vld [vmem:[#allocation13 + $0x138] sm:$0xff]
    %v5350 = vld [vmem:[#allocation13 + $0x140] sm:$0xff]
    %v5351 = vld [vmem:[#allocation13 + $0x148] sm:$0xff]
    %v5352 = vld [vmem:[#allocation13 + $0x150] sm:$0xff]
    %v5353 = vld [vmem:[#allocation13 + $0x158] sm:$0xff]
    %v5354 = vld [vmem:[#allocation13 + $0x160] sm:$0xff]
    %v5355 = vld [vmem:[#allocation13 + $0x168] sm:$0xff]
    %v5356 = vld [vmem:[#allocation13 + $0x170] sm:$0xff]
    %v5357 = vld [vmem:[#allocation13 + $0x178] sm:$0xff]
    %v5358 = vld [vmem:[#allocation13 + $0x180] sm:$0xff]
    %v5359 = vld [vmem:[#allocation13 + $0x188] sm:$0xff]
    %v5360 = vld [vmem:[#allocation13 + $0x190] sm:$0xff]
    %v5361 = vld [vmem:[#allocation13 + $0x198] sm:$0xff]
    %v5362 = vld [vmem:[#allocation13 + $0x1a0] sm:$0xff]
    %v5363 = vld [vmem:[#allocation13 + $0x1a8] sm:$0xff]
    %v5364 = vld [vmem:[#allocation13 + $0x1b0] sm:$0xff]
    %v5365 = vld [vmem:[#allocation13 + $0x1b8] sm:$0xff]
    %v5366 = vld [vmem:[#allocation13 + $0x1c0] sm:$0xff]
    %v5367 = vld [vmem:[#allocation13 + $0x1c8] sm:$0xff]
    %v5368 = vld [vmem:[#allocation13 + $0x1d0] sm:$0xff]
    %v5369 = vld [vmem:[#allocation13 + $0x1d8] sm:$0xff]
    %v5370 = vld [vmem:[#allocation13 + $0x1e0] sm:$0xff]
    %v5371 = vld [vmem:[#allocation13 + $0x1e8] sm:$0xff]
    %v5372 = vld [vmem:[#allocation13 + $0x1f0] sm:$0xff]
    %v5373 = vld [vmem:[#allocation13 + $0x1f8] sm:$0xff]
    %5374 = vmatprep.subr.mxu0 %v5311
    %5375 = vmatpush1.msra.mxu0 %v5310
    %5376 = vmatprep.subr.mxu0 %v5315
    %5377 = vmatpush1.msra.mxu0 %v5314
    %5378 = vmatprep.subr.mxu0 %v5319
    %5379 = vmatpush1.msra.mxu0 %v5318
    %5380 = vmatprep.subr.mxu0 %v5323
    %5381 = vmatpush1.msra.mxu0 %v5322
    %5382 = vmatprep.subr.mxu0 %v5327
    %5383 = vmatpush1.msra.mxu0 %v5326
    %5384 = vmatprep.subr.mxu0 %v5331
    %5385 = vmatpush1.msra.mxu0 %v5330
    %5386 = vmatprep.subr.mxu0 %v5335
    %5387 = vmatpush1.msra.mxu0 %v5334
    %5388 = vmatprep.subr.mxu0 %v5339
    %5389 = vmatpush1.msra.mxu0 %v5338
    %5390 = vmatprep.subr.mxu0 %v5343
    %5391 = vmatpush1.msra.mxu0 %v5342
    %5392 = vmatprep.subr.mxu0 %v5347
    %5393 = vmatpush1.msra.mxu0 %v5346
    %5394 = vmatprep.subr.mxu0 %v5351
    %5395 = vmatpush1.msra.mxu0 %v5350
    %5396 = vmatprep.subr.mxu0 %v5355
    %5397 = vmatpush1.msra.mxu0 %v5354
    %5398 = vmatprep.subr.mxu0 %v5359
    %5399 = vmatpush1.msra.mxu0 %v5358
    %5400 = vmatprep.subr.mxu0 %v5363
    %5401 = vmatpush1.msra.mxu0 %v5362
    %5402 = vmatprep.subr.mxu0 %v5367
    %5403 = vmatpush1.msra.mxu0 %v5366
    %5404 = vmatprep.subr.mxu0 %v5371
    %5405 = vmatpush1.msra.mxu0 %v5370
    %5406 = vmatprep.subr.mxu0 0.0
    %5407 = vmatpush1.msra.mxu0 0.0
    %5408 = vmatprep.subr.mxu0 0.0
    %5409 = vmatpush1.msra.mxu0 0.0
    %5410 = vmatprep.subr.mxu0 0.0
    %5411 = vmatpush1.msra.mxu0 0.0
    %5412 = vmatprep.subr.mxu0 0.0
    %5413 = vmatpush1.msra.mxu0 0.0
    %5414 = vmatprep.subr.mxu0 0.0
    %5415 = vmatpush1.msra.mxu0 0.0
    %5416 = vmatprep.subr.mxu0 0.0
    %5417 = vmatpush1.msra.mxu0 0.0
    %5418 = vmatprep.subr.mxu0 0.0
    %5419 = vmatpush1.msra.mxu0 0.0
    %5420 = vmatprep.subr.mxu0 0.0
    %5421 = vmatpush1.msra.mxu0 0.0
    %5422 = vmatprep.subr.mxu0 0.0
    %5423 = vmatpush1.msra.mxu0 0.0
    %5424 = vmatprep.subr.mxu0 0.0
    %5425 = vmatpush1.msra.mxu0 0.0
    %5426 = vmatprep.subr.mxu0 0.0
    %5427 = vmatpush1.msra.mxu0 0.0
    %5428 = vmatprep.subr.mxu0 0.0
    %5429 = vmatpush1.msra.mxu0 0.0
    %5430 = vmatprep.subr.mxu0 0.0
    %5431 = vmatpush1.msra.mxu0 0.0
    %5432 = vmatprep.subr.mxu0 0.0
    %5433 = vmatpush1.msra.mxu0 0.0
    %5434 = vmatprep.subr.mxu0 0.0
    %5435 = vmatpush1.msra.mxu0 0.0
    %5436 = vmatprep.subr.mxu0 0.0
    %5437 = vmatpush1.msra.mxu0 0.0
    %5438 = vmatprep.mubr.f32.mxu0 0.0
    %5439 = vmatmul.mubr.f32.gmra.mrb[0].mxu0 %v4868
    %v5440 = vpop.f32.mrb[0].mxu0
    %v5441 = vadd.f32 0.0, %v5440
    %v5442 = vpop.f32.mrb[0].mxu0
    %v5443 = vadd.f32 0.0, %v5442
    %5444 = vdwg.mxu0
    %5445 = vmatprep.subr.mxu0 %v5313
    %5446 = vmatpush1.msra.mxu0 %v5312
    %5447 = vmatprep.subr.mxu0 %v5317
    %5448 = vmatpush1.msra.mxu0 %v5316
    %5449 = vmatprep.subr.mxu0 %v5321
    %5450 = vmatpush1.msra.mxu0 %v5320
    %5451 = vmatprep.subr.mxu0 %v5325
    %5452 = vmatpush1.msra.mxu0 %v5324
    %5453 = vmatprep.subr.mxu0 %v5329
    %5454 = vmatpush1.msra.mxu0 %v5328
    %5455 = vmatprep.subr.mxu0 %v5333
    %5456 = vmatpush1.msra.mxu0 %v5332
    %5457 = vmatprep.subr.mxu0 %v5337
    %5458 = vmatpush1.msra.mxu0 %v5336
    %5459 = vmatprep.subr.mxu0 %v5341
    %5460 = vmatpush1.msra.mxu0 %v5340
    %5461 = vmatprep.subr.mxu0 %v5345
    %5462 = vmatpush1.msra.mxu0 %v5344
    %5463 = vmatprep.subr.mxu0 %v5349
    %5464 = vmatpush1.msra.mxu0 %v5348
    %5465 = vmatprep.subr.mxu0 %v5353
    %5466 = vmatpush1.msra.mxu0 %v5352
    %5467 = vmatprep.subr.mxu0 %v5357
    %5468 = vmatpush1.msra.mxu0 %v5356
    %5469 = vmatprep.subr.mxu0 %v5361
    %5470 = vmatpush1.msra.mxu0 %v5360
    %5471 = vmatprep.subr.mxu0 %v5365
    %5472 = vmatpush1.msra.mxu0 %v5364
    %5473 = vmatprep.subr.mxu0 %v5369
    %5474 = vmatpush1.msra.mxu0 %v5368
    %5475 = vmatprep.subr.mxu0 %v5373
    %5476 = vmatpush1.msra.mxu0 %v5372
    %5477 = vmatprep.subr.mxu0 0.0
    %5478 = vmatpush1.msra.mxu0 0.0
    %5479 = vmatprep.subr.mxu0 0.0
    %5480 = vmatpush1.msra.mxu0 0.0
    %5481 = vmatprep.subr.mxu0 0.0
    %5482 = vmatpush1.msra.mxu0 0.0
    %5483 = vmatprep.subr.mxu0 0.0
    %5484 = vmatpush1.msra.mxu0 0.0
    %5485 = vmatprep.subr.mxu0 0.0
    %5486 = vmatpush1.msra.mxu0 0.0
    %5487 = vmatprep.subr.mxu0 0.0
    %5488 = vmatpush1.msra.mxu0 0.0
    %5489 = vmatprep.subr.mxu0 0.0
    %5490 = vmatpush1.msra.mxu0 0.0
    %5491 = vmatprep.subr.mxu0 0.0
    %5492 = vmatpush1.msra.mxu0 0.0
    %5493 = vmatprep.subr.mxu0 0.0
    %5494 = vmatpush1.msra.mxu0 0.0
    %5495 = vmatprep.subr.mxu0 0.0
    %5496 = vmatpush1.msra.mxu0 0.0
    %5497 = vmatprep.subr.mxu0 0.0
    %5498 = vmatpush1.msra.mxu0 0.0
    %5499 = vmatprep.subr.mxu0 0.0
    %5500 = vmatpush1.msra.mxu0 0.0
    %5501 = vmatprep.subr.mxu0 0.0
    %5502 = vmatpush1.msra.mxu0 0.0
    %5503 = vmatprep.subr.mxu0 0.0
    %5504 = vmatpush1.msra.mxu0 0.0
    %5505 = vmatprep.subr.mxu0 0.0
    %5506 = vmatpush1.msra.mxu0 0.0
    %5507 = vmatprep.subr.mxu0 0.0
    %5508 = vmatpush1.msra.mxu0 0.0
    %5509 = vmatprep.mubr.f32.mxu0 0.0
    %5510 = vmatmul.mubr.f32.gmra.mrb[0].mxu0 %v4868
    %v5511 = vpop.f32.mrb[0].mxu0
    %v5512 = vadd.f32 0.0, %v5511
    %v5513 = vpop.f32.mrb[0].mxu0
    %v5514 = vadd.f32 0.0, %v5513
    %5515 = vdwg.mxu0
    %v5516 = vadd.f32 %v4368, %v5441
    %v5517 = vadd.f32 %v4370, %v5443
    %v5518 = vadd.f32 %v4439, %v5512
    %v5519 = vadd.f32 %v4441, %v5514
    %v5520 = vxor.u32 %v5516, 2147483648
    %v5521 = vxor.u32 %v5517, 2147483648
    %v5522 = vxor.u32 %v5518, 2147483648
    %v5523 = vmul.f32 %v5520, 1.442695
    %v5524 = vpow.pop %v5523
    %v5525 = vmul.f32 %v5521, 1.442695
    %v5526 = vpow.pop %v5525
    %v5527 = vmul.f32 %v5522, 1.442695
    %v5528 = vpow.pop %v5527
    %v5529 = vadd.f32 %v5524, 1.0
    %v5530 = vadd.f32 %v5526, 1.0
    %v5531 = vadd.f32 %v5528, 1.0
    %v5532 = vrcp.pop %v5529
    %v5533 = vmul.f32 1.0, %v5532
    %v5534 = vrcp.pop %v5530
    %v5535 = vmul.f32 1.0, %v5534
    %v5536 = vrcp.pop %v5531
    %v5537 = vmul.f32 1.0, %v5536
    %v5538 = vtanh.pop %v5519
    %v5539 = vmul.f32 %v5535, %v4866
    %v5540 = vmul.f32 %v5533, %v5538
    %v5541 = vadd.f32 %v5539, %v5540
    %v5542 = vtanh.pop %v5541
    %v5543 = vmul.f32 %v5537, %v5542
    %v5544 = vld [vmem:[#allocation14] sm:$0xff]
    %v5545 = vld [vmem:[#allocation14 + $0x8] sm:$0xff]
    %v5546 = vld [vmem:[#allocation14 + $0x10] sm:$0xff]
    %v5547 = vld [vmem:[#allocation14 + $0x18] sm:$0xff]
    %v5548 = vld [vmem:[#allocation14 + $0x20] sm:$0xff]
    %v5549 = vld [vmem:[#allocation14 + $0x28] sm:$0xff]
    %v5550 = vld [vmem:[#allocation14 + $0x30] sm:$0xff]
    %v5551 = vld [vmem:[#allocation14 + $0x38] sm:$0xff]
    %v5552 = vld [vmem:[#allocation14 + $0x40] sm:$0xff]
    %v5553 = vld [vmem:[#allocation14 + $0x48] sm:$0xff]
    %v5554 = vld [vmem:[#allocation14 + $0x50] sm:$0xff]
    %v5555 = vld [vmem:[#allocation14 + $0x58] sm:$0xff]
    %v5556 = vld [vmem:[#allocation14 + $0x60] sm:$0xff]
    %v5557 = vld [vmem:[#allocation14 + $0x68] sm:$0xff]
    %v5558 = vld [vmem:[#allocation14 + $0x70] sm:$0xff]
    %v5559 = vld [vmem:[#allocation14 + $0x78] sm:$0xff]
    %v5560 = vld [vmem:[#allocation14 + $0x80] sm:$0xff]
    %v5561 = vld [vmem:[#allocation14 + $0x88] sm:$0xff]
    %v5562 = vld [vmem:[#allocation14 + $0x90] sm:$0xff]
    %v5563 = vld [vmem:[#allocation14 + $0x98] sm:$0xff]
    %v5564 = vld [vmem:[#allocation14 + $0xa0] sm:$0xff]
    %v5565 = vld [vmem:[#allocation14 + $0xa8] sm:$0xff]
    %v5566 = vld [vmem:[#allocation14 + $0xb0] sm:$0xff]
    %v5567 = vld [vmem:[#allocation14 + $0xb8] sm:$0xff]
    %v5568 = vld [vmem:[#allocation14 + $0xc0] sm:$0xff]
    %v5569 = vld [vmem:[#allocation14 + $0xc8] sm:$0xff]
    %v5570 = vld [vmem:[#allocation14 + $0xd0] sm:$0xff]
    %v5571 = vld [vmem:[#allocation14 + $0xd8] sm:$0xff]
    %v5572 = vld [vmem:[#allocation14 + $0xe0] sm:$0xff]
    %v5573 = vld [vmem:[#allocation14 + $0xe8] sm:$0xff]
    %v5574 = vld [vmem:[#allocation14 + $0xf0] sm:$0xff]
    %v5575 = vld [vmem:[#allocation14 + $0xf8] sm:$0xff]
    %v5576 = vld [vmem:[#allocation14 + $0x100] sm:$0xff]
    %v5577 = vld [vmem:[#allocation14 + $0x108] sm:$0xff]
    %v5578 = vld [vmem:[#allocation14 + $0x110] sm:$0xff]
    %v5579 = vld [vmem:[#allocation14 + $0x118] sm:$0xff]
    %v5580 = vld [vmem:[#allocation14 + $0x120] sm:$0xff]
    %v5581 = vld [vmem:[#allocation14 + $0x128] sm:$0xff]
    %v5582 = vld [vmem:[#allocation14 + $0x130] sm:$0xff]
    %v5583 = vld [vmem:[#allocation14 + $0x138] sm:$0xff]
    %v5584 = vld [vmem:[#allocation14 + $0x140] sm:$0xff]
    %v5585 = vld [vmem:[#allocation14 + $0x148] sm:$0xff]
    %v5586 = vld [vmem:[#allocation14 + $0x150] sm:$0xff]
    %v5587 = vld [vmem:[#allocation14 + $0x158] sm:$0xff]
    %v5588 = vld [vmem:[#allocation14 + $0x160] sm:$0xff]
    %v5589 = vld [vmem:[#allocation14 + $0x168] sm:$0xff]
    %v5590 = vld [vmem:[#allocation14 + $0x170] sm:$0xff]
    %v5591 = vld [vmem:[#allocation14 + $0x178] sm:$0xff]
    %v5592 = vld [vmem:[#allocation14 + $0x180] sm:$0xff]
    %v5593 = vld [vmem:[#allocation14 + $0x188] sm:$0xff]
    %v5594 = vld [vmem:[#allocation14 + $0x190] sm:$0xff]
    %v5595 = vld [vmem:[#allocation14 + $0x198] sm:$0xff]
    %v5596 = vld [vmem:[#allocation14 + $0x1a0] sm:$0xff]
    %v5597 = vld [vmem:[#allocation14 + $0x1a8] sm:$0xff]
    %v5598 = vld [vmem:[#allocation14 + $0x1b0] sm:$0xff]
    %v5599 = vld [vmem:[#allocation14 + $0x1b8] sm:$0xff]
    %v5600 = vld [vmem:[#allocation14 + $0x1c0] sm:$0xff]
    %v5601 = vld [vmem:[#allocation14 + $0x1c8] sm:$0xff]
    %v5602 = vld [vmem:[#allocation14 + $0x1d0] sm:$0xff]
    %v5603 = vld [vmem:[#allocation14 + $0x1d8] sm:$0xff]
    %v5604 = vld [vmem:[#allocation14 + $0x1e0] sm:$0xff]
    %v5605 = vld [vmem:[#allocation14 + $0x1e8] sm:$0xff]
    %v5606 = vld [vmem:[#allocation14 + $0x1f0] sm:$0xff]
    %v5607 = vld [vmem:[#allocation14 + $0x1f8] sm:$0xff]
    %v5608 = vld [vmem:[#allocation16] sm:$0xff]
    %v5609 = vld [vmem:[#allocation16 + $0x8] sm:$0xff]
    %v5610 = vld [vmem:[#allocation16 + $0x10] sm:$0xff]
    %v5611 = vld [vmem:[#allocation16 + $0x18] sm:$0xff]
    %v5612 = vld [vmem:[#allocation16 + $0x20] sm:$0xff]
    %v5613 = vld [vmem:[#allocation16 + $0x28] sm:$0xff]
    %v5614 = vld [vmem:[#allocation16 + $0x30] sm:$0xff]
    %v5615 = vld [vmem:[#allocation16 + $0x38] sm:$0xff]
    %v5616 = vld [vmem:[#allocation16 + $0x40] sm:$0xff]
    %v5617 = vld [vmem:[#allocation16 + $0x48] sm:$0xff]
    %v5618 = vld [vmem:[#allocation16 + $0x50] sm:$0xff]
    %v5619 = vld [vmem:[#allocation16 + $0x58] sm:$0xff]
    %v5620 = vld [vmem:[#allocation16 + $0x60] sm:$0xff]
    %v5621 = vld [vmem:[#allocation16 + $0x68] sm:$0xff]
    %v5622 = vld [vmem:[#allocation16 + $0x70] sm:$0xff]
    %v5623 = vld [vmem:[#allocation16 + $0x78] sm:$0xff]
    %v5624 = vld [vmem:[#allocation16 + $0x80] sm:$0xff]
    %v5625 = vld [vmem:[#allocation16 + $0x88] sm:$0xff]
    %v5626 = vld [vmem:[#allocation16 + $0x90] sm:$0xff]
    %v5627 = vld [vmem:[#allocation16 + $0x98] sm:$0xff]
    %v5628 = vld [vmem:[#allocation16 + $0xa0] sm:$0xff]
    %v5629 = vld [vmem:[#allocation16 + $0xa8] sm:$0xff]
    %v5630 = vld [vmem:[#allocation16 + $0xb0] sm:$0xff]
    %v5631 = vld [vmem:[#allocation16 + $0xb8] sm:$0xff]
    %v5632 = vld [vmem:[#allocation16 + $0xc0] sm:$0xff]
    %v5633 = vld [vmem:[#allocation16 + $0xc8] sm:$0xff]
    %v5634 = vld [vmem:[#allocation16 + $0xd0] sm:$0xff]
    %v5635 = vld [vmem:[#allocation16 + $0xd8] sm:$0xff]
    %v5636 = vld [vmem:[#allocation16 + $0xe0] sm:$0xff]
    %v5637 = vld [vmem:[#allocation16 + $0xe8] sm:$0xff]
    %v5638 = vld [vmem:[#allocation16 + $0xf0] sm:$0xff]
    %v5639 = vld [vmem:[#allocation16 + $0xf8] sm:$0xff]
    %v5640 = vld [vmem:[#allocation16 + $0x100] sm:$0xff]
    %v5641 = vld [vmem:[#allocation16 + $0x108] sm:$0xff]
    %v5642 = vld [vmem:[#allocation16 + $0x110] sm:$0xff]
    %v5643 = vld [vmem:[#allocation16 + $0x118] sm:$0xff]
    %v5644 = vld [vmem:[#allocation16 + $0x120] sm:$0xff]
    %v5645 = vld [vmem:[#allocation16 + $0x128] sm:$0xff]
    %v5646 = vld [vmem:[#allocation16 + $0x130] sm:$0xff]
    %v5647 = vld [vmem:[#allocation16 + $0x138] sm:$0xff]
    %v5648 = vld [vmem:[#allocation16 + $0x140] sm:$0xff]
    %v5649 = vld [vmem:[#allocation16 + $0x148] sm:$0xff]
    %v5650 = vld [vmem:[#allocation16 + $0x150] sm:$0xff]
    %v5651 = vld [vmem:[#allocation16 + $0x158] sm:$0xff]
    %v5652 = vld [vmem:[#allocation16 + $0x160] sm:$0xff]
    %v5653 = vld [vmem:[#allocation16 + $0x168] sm:$0xff]
    %v5654 = vld [vmem:[#allocation16 + $0x170] sm:$0xff]
    %v5655 = vld [vmem:[#allocation16 + $0x178] sm:$0xff]
    %v5656 = vld [vmem:[#allocation16 + $0x180] sm:$0xff]
    %v5657 = vld [vmem:[#allocation16 + $0x188] sm:$0xff]
    %v5658 = vld [vmem:[#allocation16 + $0x190] sm:$0xff]
    %v5659 = vld [vmem:[#allocation16 + $0x198] sm:$0xff]
    %v5660 = vld [vmem:[#allocation16 + $0x1a0] sm:$0xff]
    %v5661 = vld [vmem:[#allocation16 + $0x1a8] sm:$0xff]
    %v5662 = vld [vmem:[#allocation16 + $0x1b0] sm:$0xff]
    %v5663 = vld [vmem:[#allocation16 + $0x1b8] sm:$0xff]
    %v5664 = vld [vmem:[#allocation16 + $0x1c0] sm:$0xff]
    %v5665 = vld [vmem:[#allocation16 + $0x1c8] sm:$0xff]
    %v5666 = vld [vmem:[#allocation16 + $0x1d0] sm:$0xff]
    %v5667 = vld [vmem:[#allocation16 + $0x1d8] sm:$0xff]
    %v5668 = vld [vmem:[#allocation16 + $0x1e0] sm:$0xff]
    %v5669 = vld [vmem:[#allocation16 + $0x1e8] sm:$0xff]
    %v5670 = vld [vmem:[#allocation16 + $0x1f0] sm:$0xff]
    %v5671 = vld [vmem:[#allocation16 + $0x1f8] sm:$0xff]
    %5672 = vmatprep.subr.mxu0 %v5609
    %5673 = vmatpush1.msra.mxu0 %v5608
    %5674 = vmatprep.subr.mxu0 %v5613
    %5675 = vmatpush1.msra.mxu0 %v5612
    %5676 = vmatprep.subr.mxu0 %v5617
    %5677 = vmatpush1.msra.mxu0 %v5616
    %5678 = vmatprep.subr.mxu0 %v5621
    %5679 = vmatpush1.msra.mxu0 %v5620
    %5680 = vmatprep.subr.mxu0 %v5625
    %5681 = vmatpush1.msra.mxu0 %v5624
    %5682 = vmatprep.subr.mxu0 %v5629
    %5683 = vmatpush1.msra.mxu0 %v5628
    %5684 = vmatprep.subr.mxu0 %v5633
    %5685 = vmatpush1.msra.mxu0 %v5632
    %5686 = vmatprep.subr.mxu0 %v5637
    %5687 = vmatpush1.msra.mxu0 %v5636
    %5688 = vmatprep.subr.mxu0 %v5641
    %5689 = vmatpush1.msra.mxu0 %v5640
    %5690 = vmatprep.subr.mxu0 %v5645
    %5691 = vmatpush1.msra.mxu0 %v5644
    %5692 = vmatprep.subr.mxu0 %v5649
    %5693 = vmatpush1.msra.mxu0 %v5648
    %5694 = vmatprep.subr.mxu0 %v5653
    %5695 = vmatpush1.msra.mxu0 %v5652
    %5696 = vmatprep.subr.mxu0 %v5657
    %5697 = vmatpush1.msra.mxu0 %v5656
    %5698 = vmatprep.subr.mxu0 %v5661
    %5699 = vmatpush1.msra.mxu0 %v5660
    %5700 = vmatprep.subr.mxu0 %v5665
    %5701 = vmatpush1.msra.mxu0 %v5664
    %5702 = vmatprep.subr.mxu0 %v5669
    %5703 = vmatpush1.msra.mxu0 %v5668
    %5704 = vmatprep.subr.mxu0 0.0
    %5705 = vmatpush1.msra.mxu0 0.0
    %5706 = vmatprep.subr.mxu0 0.0
    %5707 = vmatpush1.msra.mxu0 0.0
    %5708 = vmatprep.subr.mxu0 0.0
    %5709 = vmatpush1.msra.mxu0 0.0
    %5710 = vmatprep.subr.mxu0 0.0
    %5711 = vmatpush1.msra.mxu0 0.0
    %5712 = vmatprep.subr.mxu0 0.0
    %5713 = vmatpush1.msra.mxu0 0.0
    %5714 = vmatprep.subr.mxu0 0.0
    %5715 = vmatpush1.msra.mxu0 0.0
    %5716 = vmatprep.subr.mxu0 0.0
    %5717 = vmatpush1.msra.mxu0 0.0
    %5718 = vmatprep.subr.mxu0 0.0
    %5719 = vmatpush1.msra.mxu0 0.0
    %5720 = vmatprep.subr.mxu0 0.0
    %5721 = vmatpush1.msra.mxu0 0.0
    %5722 = vmatprep.subr.mxu0 0.0
    %5723 = vmatpush1.msra.mxu0 0.0
    %5724 = vmatprep.subr.mxu0 0.0
    %5725 = vmatpush1.msra.mxu0 0.0
    %5726 = vmatprep.subr.mxu0 0.0
    %5727 = vmatpush1.msra.mxu0 0.0
    %5728 = vmatprep.subr.mxu0 0.0
    %5729 = vmatpush1.msra.mxu0 0.0
    %5730 = vmatprep.subr.mxu0 0.0
    %5731 = vmatpush1.msra.mxu0 0.0
    %5732 = vmatprep.subr.mxu0 0.0
    %5733 = vmatpush1.msra.mxu0 0.0
    %5734 = vmatprep.subr.mxu0 0.0
    %5735 = vmatpush1.msra.mxu0 0.0
    %5736 = vmatprep.mubr.f32.mxu0 0.0
    %5737 = vmatmul.mubr.f32.gmra.mrb[0].mxu0 %v5308
    %v5738 = vpop.f32.mrb[0].mxu0
    %v5739 = vadd.f32 0.0, %v5738
    %v5740 = vpop.f32.mrb[0].mxu0
    %v5741 = vadd.f32 0.0, %v5740
    %5742 = vdwg.mxu0
    %5743 = vmatprep.subr.mxu0 %v5611
    %5744 = vmatpush1.msra.mxu0 %v5610
    %5745 = vmatprep.subr.mxu0 %v5615
    %5746 = vmatpush1.msra.mxu0 %v5614
    %5747 = vmatprep.subr.mxu0 %v5619
    %5748 = vmatpush1.msra.mxu0 %v5618
    %5749 = vmatprep.subr.mxu0 %v5623
    %5750 = vmatpush1.msra.mxu0 %v5622
    %5751 = vmatprep.subr.mxu0 %v5627
    %5752 = vmatpush1.msra.mxu0 %v5626
    %5753 = vmatprep.subr.mxu0 %v5631
    %5754 = vmatpush1.msra.mxu0 %v5630
    %5755 = vmatprep.subr.mxu0 %v5635
    %5756 = vmatpush1.msra.mxu0 %v5634
    %5757 = vmatprep.subr.mxu0 %v5639
    %5758 = vmatpush1.msra.mxu0 %v5638
    %5759 = vmatprep.subr.mxu0 %v5643
    %5760 = vmatpush1.msra.mxu0 %v5642
    %5761 = vmatprep.subr.mxu0 %v5647
    %5762 = vmatpush1.msra.mxu0 %v5646
    %5763 = vmatprep.subr.mxu0 %v5651
    %5764 = vmatpush1.msra.mxu0 %v5650
    %5765 = vmatprep.subr.mxu0 %v5655
    %5766 = vmatpush1.msra.mxu0 %v5654
    %5767 = vmatprep.subr.mxu0 %v5659
    %5768 = vmatpush1.msra.mxu0 %v5658
    %5769 = vmatprep.subr.mxu0 %v5663
    %5770 = vmatpush1.msra.mxu0 %v5662
    %5771 = vmatprep.subr.mxu0 %v5667
    %5772 = vmatpush1.msra.mxu0 %v5666
    %5773 = vmatprep.subr.mxu0 %v5671
    %5774 = vmatpush1.msra.mxu0 %v5670
    %5775 = vmatprep.subr.mxu0 0.0
    %5776 = vmatpush1.msra.mxu0 0.0
    %5777 = vmatprep.subr.mxu0 0.0
    %5778 = vmatpush1.msra.mxu0 0.0
    %5779 = vmatprep.subr.mxu0 0.0
    %5780 = vmatpush1.msra.mxu0 0.0
    %5781 = vmatprep.subr.mxu0 0.0
    %5782 = vmatpush1.msra.mxu0 0.0
    %5783 = vmatprep.subr.mxu0 0.0
    %5784 = vmatpush1.msra.mxu0 0.0
    %5785 = vmatprep.subr.mxu0 0.0
    %5786 = vmatpush1.msra.mxu0 0.0
    %5787 = vmatprep.subr.mxu0 0.0
    %5788 = vmatpush1.msra.mxu0 0.0
    %5789 = vmatprep.subr.mxu0 0.0
    %5790 = vmatpush1.msra.mxu0 0.0
    %5791 = vmatprep.subr.mxu0 0.0
    %5792 = vmatpush1.msra.mxu0 0.0
    %5793 = vmatprep.subr.mxu0 0.0
    %5794 = vmatpush1.msra.mxu0 0.0
    %5795 = vmatprep.subr.mxu0 0.0
    %5796 = vmatpush1.msra.mxu0 0.0
    %5797 = vmatprep.subr.mxu0 0.0
    %5798 = vmatpush1.msra.mxu0 0.0
    %5799 = vmatprep.subr.mxu0 0.0
    %5800 = vmatpush1.msra.mxu0 0.0
    %5801 = vmatprep.subr.mxu0 0.0
    %5802 = vmatpush1.msra.mxu0 0.0
    %5803 = vmatprep.subr.mxu0 0.0
    %5804 = vmatpush1.msra.mxu0 0.0
    %5805 = vmatprep.subr.mxu0 0.0
    %5806 = vmatpush1.msra.mxu0 0.0
    %5807 = vmatprep.mubr.f32.mxu0 0.0
    %5808 = vmatmul.mubr.f32.gmra.mrb[0].mxu0 %v5308
    %v5809 = vpop.f32.mrb[0].mxu0
    %v5810 = vadd.f32 0.0, %v5809
    %v5811 = vpop.f32.mrb[0].mxu0
    %v5812 = vadd.f32 0.0, %v5811
    %5813 = vdwg.mxu0
    %5814 = vmatprep.subr.mxu0 %v5545
    %5815 = vmatpush1.msra.mxu0 %v5544
    %5816 = vmatprep.subr.mxu0 %v5549
    %5817 = vmatpush1.msra.mxu0 %v5548
    %5818 = vmatprep.subr.mxu0 %v5553
    %5819 = vmatpush1.msra.mxu0 %v5552
    %5820 = vmatprep.subr.mxu0 %v5557
    %5821 = vmatpush1.msra.mxu0 %v5556
    %5822 = vmatprep.subr.mxu0 %v5561
    %5823 = vmatpush1.msra.mxu0 %v5560
    %5824 = vmatprep.subr.mxu0 %v5565
    %5825 = vmatpush1.msra.mxu0 %v5564
    %5826 = vmatprep.subr.mxu0 %v5569
    %5827 = vmatpush1.msra.mxu0 %v5568
    %5828 = vmatprep.subr.mxu0 %v5573
    %5829 = vmatpush1.msra.mxu0 %v5572
    %5830 = vmatprep.subr.mxu0 %v5577
    %5831 = vmatpush1.msra.mxu0 %v5576
    %5832 = vmatprep.subr.mxu0 %v5581
    %5833 = vmatpush1.msra.mxu0 %v5580
    %5834 = vmatprep.subr.mxu0 %v5585
    %5835 = vmatpush1.msra.mxu0 %v5584
    %5836 = vmatprep.subr.mxu0 %v5589
    %5837 = vmatpush1.msra.mxu0 %v5588
    %5838 = vmatprep.subr.mxu0 %v5593
    %5839 = vmatpush1.msra.mxu0 %v5592
    %5840 = vmatprep.subr.mxu0 %v5597
    %5841 = vmatpush1.msra.mxu0 %v5596
    %5842 = vmatprep.subr.mxu0 %v5601
    %5843 = vmatpush1.msra.mxu0 %v5600
    %5844 = vmatprep.subr.mxu0 %v5605
    %5845 = vmatpush1.msra.mxu0 %v5604
    %5846 = vmatprep.subr.mxu0 0.0
    %5847 = vmatpush1.msra.mxu0 0.0
    %5848 = vmatprep.subr.mxu0 0.0
    %5849 = vmatpush1.msra.mxu0 0.0
    %5850 = vmatprep.subr.mxu0 0.0
    %5851 = vmatpush1.msra.mxu0 0.0
    %5852 = vmatprep.subr.mxu0 0.0
    %5853 = vmatpush1.msra.mxu0 0.0
    %5854 = vmatprep.subr.mxu0 0.0
    %5855 = vmatpush1.msra.mxu0 0.0
    %5856 = vmatprep.subr.mxu0 0.0
    %5857 = vmatpush1.msra.mxu0 0.0
    %5858 = vmatprep.subr.mxu0 0.0
    %5859 = vmatpush1.msra.mxu0 0.0
    %5860 = vmatprep.subr.mxu0 0.0
    %5861 = vmatpush1.msra.mxu0 0.0
    %5862 = vmatprep.subr.mxu0 0.0
    %5863 = vmatpush1.msra.mxu0 0.0
    %5864 = vmatprep.subr.mxu0 0.0
    %5865 = vmatpush1.msra.mxu0 0.0
    %5866 = vmatprep.subr.mxu0 0.0
    %5867 = vmatpush1.msra.mxu0 0.0
    %5868 = vmatprep.subr.mxu0 0.0
    %5869 = vmatpush1.msra.mxu0 0.0
    %5870 = vmatprep.subr.mxu0 0.0
    %5871 = vmatpush1.msra.mxu0 0.0
    %5872 = vmatprep.subr.mxu0 0.0
    %5873 = vmatpush1.msra.mxu0 0.0
    %5874 = vmatprep.subr.mxu0 0.0
    %5875 = vmatpush1.msra.mxu0 0.0
    %5876 = vmatprep.subr.mxu0 0.0
    %5877 = vmatpush1.msra.mxu0 0.0
    %5878 = vmatprep.mubr.f32.mxu0 0.0
    %5879 = vmatmul.mubr.f32.gmra.mrb[0].mxu0 %v4868
    %v5880 = vpop.f32.mrb[0].mxu0
    %v5881 = vadd.f32 %v5739, %v5880
    %v5882 = vpop.f32.mrb[0].mxu0
    %v5883 = vadd.f32 %v5741, %v5882
    %5884 = vdwg.mxu0
    %5885 = vmatprep.subr.mxu0 %v5547
    %5886 = vmatpush1.msra.mxu0 %v5546
    %5887 = vmatprep.subr.mxu0 %v5551
    %5888 = vmatpush1.msra.mxu0 %v5550
    %5889 = vmatprep.subr.mxu0 %v5555
    %5890 = vmatpush1.msra.mxu0 %v5554
    %5891 = vmatprep.subr.mxu0 %v5559
    %5892 = vmatpush1.msra.mxu0 %v5558
    %5893 = vmatprep.subr.mxu0 %v5563
    %5894 = vmatpush1.msra.mxu0 %v5562
    %5895 = vmatprep.subr.mxu0 %v5567
    %5896 = vmatpush1.msra.mxu0 %v5566
    %5897 = vmatprep.subr.mxu0 %v5571
    %5898 = vmatpush1.msra.mxu0 %v5570
    %5899 = vmatprep.subr.mxu0 %v5575
    %5900 = vmatpush1.msra.mxu0 %v5574
    %5901 = vmatprep.subr.mxu0 %v5579
    %5902 = vmatpush1.msra.mxu0 %v5578
    %5903 = vmatprep.subr.mxu0 %v5583
    %5904 = vmatpush1.msra.mxu0 %v5582
    %5905 = vmatprep.subr.mxu0 %v5587
    %5906 = vmatpush1.msra.mxu0 %v5586
    %5907 = vmatprep.subr.mxu0 %v5591
    %5908 = vmatpush1.msra.mxu0 %v5590
    %5909 = vmatprep.subr.mxu0 %v5595
    %5910 = vmatpush1.msra.mxu0 %v5594
    %5911 = vmatprep.subr.mxu0 %v5599
    %5912 = vmatpush1.msra.mxu0 %v5598
    %5913 = vmatprep.subr.mxu0 %v5603
    %5914 = vmatpush1.msra.mxu0 %v5602
    %5915 = vmatprep.subr.mxu0 %v5607
    %5916 = vmatpush1.msra.mxu0 %v5606
    %5917 = vmatprep.subr.mxu0 0.0
    %5918 = vmatpush1.msra.mxu0 0.0
    %5919 = vmatprep.subr.mxu0 0.0
    %5920 = vmatpush1.msra.mxu0 0.0
    %5921 = vmatprep.subr.mxu0 0.0
    %5922 = vmatpush1.msra.mxu0 0.0
    %5923 = vmatprep.subr.mxu0 0.0
    %5924 = vmatpush1.msra.mxu0 0.0
    %5925 = vmatprep.subr.mxu0 0.0
    %5926 = vmatpush1.msra.mxu0 0.0
    %5927 = vmatprep.subr.mxu0 0.0
    %5928 = vmatpush1.msra.mxu0 0.0
    %5929 = vmatprep.subr.mxu0 0.0
    %5930 = vmatpush1.msra.mxu0 0.0
    %5931 = vmatprep.subr.mxu0 0.0
    %5932 = vmatpush1.msra.mxu0 0.0
    %5933 = vmatprep.subr.mxu0 0.0
    %5934 = vmatpush1.msra.mxu0 0.0
    %5935 = vmatprep.subr.mxu0 0.0
    %5936 = vmatpush1.msra.mxu0 0.0
    %5937 = vmatprep.subr.mxu0 0.0
    %5938 = vmatpush1.msra.mxu0 0.0
    %5939 = vmatprep.subr.mxu0 0.0
    %5940 = vmatpush1.msra.mxu0 0.0
    %5941 = vmatprep.subr.mxu0 0.0
    %5942 = vmatpush1.msra.mxu0 0.0
    %5943 = vmatprep.subr.mxu0 0.0
    %5944 = vmatpush1.msra.mxu0 0.0
    %5945 = vmatprep.subr.mxu0 0.0
    %5946 = vmatpush1.msra.mxu0 0.0
    %5947 = vmatprep.subr.mxu0 0.0
    %5948 = vmatpush1.msra.mxu0 0.0
    %5949 = vmatprep.mubr.f32.mxu0 0.0
    %5950 = vmatmul.mubr.f32.gmra.mrb[0].mxu0 %v4868
    %v5951 = vpop.f32.mrb[0].mxu0
    %v5952 = vadd.f32 %v5810, %v5951
    %v5953 = vpop.f32.mrb[0].mxu0
    %v5954 = vadd.f32 %v5812, %v5953
    %5955 = vdwg.mxu0
    %v5956 = vadd.f32 %v5881, %v4448
    %v5957 = vadd.f32 %v5883, %v4452
    %v5958 = vadd.f32 %v5952, %v4456
    %v5959 = vadd.f32 %v5954, %v4460
    %v5960 = vxor.u32 %v5956, 2147483648
    %v5961 = vxor.u32 %v5957, 2147483648
    %v5962 = vxor.u32 %v5958, 2147483648
    %v5963 = vmul.f32 %v5960, 1.442695
    %v5964 = vpow.pop %v5963
    %v5965 = vmul.f32 %v5961, 1.442695
    %v5966 = vpow.pop %v5965
    %v5967 = vmul.f32 %v5962, 1.442695
    %v5968 = vpow.pop %v5967
    %v5969 = vadd.f32 %v5964, 1.0
    %v5970 = vadd.f32 %v5966, 1.0
    %v5971 = vadd.f32 %v5968, 1.0
    %v5972 = vrcp.pop %v5969
    %v5973 = vmul.f32 1.0, %v5972
    %v5974 = vrcp.pop %v5970
    %v5975 = vmul.f32 1.0, %v5974
    %v5976 = vrcp.pop %v5971
    %v5977 = vmul.f32 1.0, %v5976
    %v5978 = vtanh.pop %v5959
    %v5979 = vmul.f32 %v5975, %v5306
    %v5980 = vmul.f32 %v5973, %v5978
    %v5981 = vadd.f32 %v5979, %v5980
    %v5982 = vtanh.pop %v5981
    %v5983 = vmul.f32 %v5977, %v5982
    %5984 = vst [vmem:[#allocation17 + $0x8] sm:$0xff] %v5983
    %v5985 = vld [vmem:[#allocation13] sm:$0xff]
    %v5986 = vld [vmem:[#allocation13 + $0x8] sm:$0xff]
    %v5987 = vld [vmem:[#allocation13 + $0x10] sm:$0xff]
    %v5988 = vld [vmem:[#allocation13 + $0x18] sm:$0xff]
    %v5989 = vld [vmem:[#allocation13 + $0x20] sm:$0xff]
    %v5990 = vld [vmem:[#allocation13 + $0x28] sm:$0xff]
    %v5991 = vld [vmem:[#allocation13 + $0x30] sm:$0xff]
    %v5992 = vld [vmem:[#allocation13 + $0x38] sm:$0xff]
    %v5993 = vld [vmem:[#allocation13 + $0x40] sm:$0xff]
    %v5994 = vld [vmem:[#allocation13 + $0x48] sm:$0xff]
    %v5995 = vld [vmem:[#allocation13 + $0x50] sm:$0xff]
    %v5996 = vld [vmem:[#allocation13 + $0x58] sm:$0xff]
    %v5997 = vld [vmem:[#allocation13 + $0x60] sm:$0xff]
    %v5998 = vld [vmem:[#allocation13 + $0x68] sm:$0xff]
    %v5999 = vld [vmem:[#allocation13 + $0x70] sm:$0xff]
    %v6000 = vld [vmem:[#allocation13 + $0x78] sm:$0xff]
    %v6001 = vld [vmem:[#allocation13 + $0x80] sm:$0xff]
    %v6002 = vld [vmem:[#allocation13 + $0x88] sm:$0xff]
    %v6003 = vld [vmem:[#allocation13 + $0x90] sm:$0xff]
    %v6004 = vld [vmem:[#allocation13 + $0x98] sm:$0xff]
    %v6005 = vld [vmem:[#allocation13 + $0xa0] sm:$0xff]
    %v6006 = vld [vmem:[#allocation13 + $0xa8] sm:$0xff]
    %v6007 = vld [vmem:[#allocation13 + $0xb0] sm:$0xff]
    %v6008 = vld [vmem:[#allocation13 + $0xb8] sm:$0xff]
    %v6009 = vld [vmem:[#allocation13 + $0xc0] sm:$0xff]
    %v6010 = vld [vmem:[#allocation13 + $0xc8] sm:$0xff]
    %v6011 = vld [vmem:[#allocation13 + $0xd0] sm:$0xff]
    %v6012 = vld [vmem:[#allocation13 + $0xd8] sm:$0xff]
    %v6013 = vld [vmem:[#allocation13 + $0xe0] sm:$0xff]
    %v6014 = vld [vmem:[#allocation13 + $0xe8] sm:$0xff]
    %v6015 = vld [vmem:[#allocation13 + $0xf0] sm:$0xff]
    %v6016 = vld [vmem:[#allocation13 + $0xf8] sm:$0xff]
    %v6017 = vld [vmem:[#allocation13 + $0x100] sm:$0xff]
    %v6018 = vld [vmem:[#allocation13 + $0x108] sm:$0xff]
    %v6019 = vld [vmem:[#allocation13 + $0x110] sm:$0xff]
    %v6020 = vld [vmem:[#allocation13 + $0x118] sm:$0xff]
    %v6021 = vld [vmem:[#allocation13 + $0x120] sm:$0xff]
    %v6022 = vld [vmem:[#allocation13 + $0x128] sm:$0xff]
    %v6023 = vld [vmem:[#allocation13 + $0x130] sm:$0xff]
    %v6024 = vld [vmem:[#allocation13 + $0x138] sm:$0xff]
    %v6025 = vld [vmem:[#allocation13 + $0x140] sm:$0xff]
    %v6026 = vld [vmem:[#allocation13 + $0x148] sm:$0xff]
    %v6027 = vld [vmem:[#allocation13 + $0x150] sm:$0xff]
    %v6028 = vld [vmem:[#allocation13 + $0x158] sm:$0xff]
    %v6029 = vld [vmem:[#allocation13 + $0x160] sm:$0xff]
    %v6030 = vld [vmem:[#allocation13 + $0x168] sm:$0xff]
    %v6031 = vld [vmem:[#allocation13 + $0x170] sm:$0xff]
    %v6032 = vld [vmem:[#allocation13 + $0x178] sm:$0xff]
    %v6033 = vld [vmem:[#allocation13 + $0x180] sm:$0xff]
    %v6034 = vld [vmem:[#allocation13 + $0x188] sm:$0xff]
    %v6035 = vld [vmem:[#allocation13 + $0x190] sm:$0xff]
    %v6036 = vld [vmem:[#allocation13 + $0x198] sm:$0xff]
    %v6037 = vld [vmem:[#allocation13 + $0x1a0] sm:$0xff]
    %v6038 = vld [vmem:[#allocation13 + $0x1a8] sm:$0xff]
    %v6039 = vld [vmem:[#allocation13 + $0x1b0] sm:$0xff]
    %v6040 = vld [vmem:[#allocation13 + $0x1b8] sm:$0xff]
    %v6041 = vld [vmem:[#allocation13 + $0x1c0] sm:$0xff]
    %v6042 = vld [vmem:[#allocation13 + $0x1c8] sm:$0xff]
    %v6043 = vld [vmem:[#allocation13 + $0x1d0] sm:$0xff]
    %v6044 = vld [vmem:[#allocation13 + $0x1d8] sm:$0xff]
    %v6045 = vld [vmem:[#allocation13 + $0x1e0] sm:$0xff]
    %v6046 = vld [vmem:[#allocation13 + $0x1e8] sm:$0xff]
    %v6047 = vld [vmem:[#allocation13 + $0x1f0] sm:$0xff]
    %v6048 = vld [vmem:[#allocation13 + $0x1f8] sm:$0xff]
    %6049 = vmatprep.subr.mxu0 %v5986
    %6050 = vmatpush1.msra.mxu0 %v5985
    %6051 = vmatprep.subr.mxu0 %v5990
    %6052 = vmatpush1.msra.mxu0 %v5989
    %6053 = vmatprep.subr.mxu0 %v5994
    %6054 = vmatpush1.msra.mxu0 %v5993
    %6055 = vmatprep.subr.mxu0 %v5998
    %6056 = vmatpush1.msra.mxu0 %v5997
    %6057 = vmatprep.subr.mxu0 %v6002
    %6058 = vmatpush1.msra.mxu0 %v6001
    %6059 = vmatprep.subr.mxu0 %v6006
    %6060 = vmatpush1.msra.mxu0 %v6005
    %6061 = vmatprep.subr.mxu0 %v6010
    %6062 = vmatpush1.msra.mxu0 %v6009
    %6063 = vmatprep.subr.mxu0 %v6014
    %6064 = vmatpush1.msra.mxu0 %v6013
    %6065 = vmatprep.subr.mxu0 %v6018
    %6066 = vmatpush1.msra.mxu0 %v6017
    %6067 = vmatprep.subr.mxu0 %v6022
    %6068 = vmatpush1.msra.mxu0 %v6021
    %6069 = vmatprep.subr.mxu0 %v6026
    %6070 = vmatpush1.msra.mxu0 %v6025
    %6071 = vmatprep.subr.mxu0 %v6030
    %6072 = vmatpush1.msra.mxu0 %v6029
    %6073 = vmatprep.subr.mxu0 %v6034
    %6074 = vmatpush1.msra.mxu0 %v6033
    %6075 = vmatprep.subr.mxu0 %v6038
    %6076 = vmatpush1.msra.mxu0 %v6037
    %6077 = vmatprep.subr.mxu0 %v6042
    %6078 = vmatpush1.msra.mxu0 %v6041
    %6079 = vmatprep.subr.mxu0 %v6046
    %6080 = vmatpush1.msra.mxu0 %v6045
    %6081 = vmatprep.subr.mxu0 0.0
    %6082 = vmatpush1.msra.mxu0 0.0
    %6083 = vmatprep.subr.mxu0 0.0
    %6084 = vmatpush1.msra.mxu0 0.0
    %6085 = vmatprep.subr.mxu0 0.0
    %6086 = vmatpush1.msra.mxu0 0.0
    %6087 = vmatprep.subr.mxu0 0.0
    %6088 = vmatpush1.msra.mxu0 0.0
    %6089 = vmatprep.subr.mxu0 0.0
    %6090 = vmatpush1.msra.mxu0 0.0
    %6091 = vmatprep.subr.mxu0 0.0
    %6092 = vmatpush1.msra.mxu0 0.0
    %6093 = vmatprep.subr.mxu0 0.0
    %6094 = vmatpush1.msra.mxu0 0.0
    %6095 = vmatprep.subr.mxu0 0.0
    %6096 = vmatpush1.msra.mxu0 0.0
    %6097 = vmatprep.subr.mxu0 0.0
    %6098 = vmatpush1.msra.mxu0 0.0
    %6099 = vmatprep.subr.mxu0 0.0
    %6100 = vmatpush1.msra.mxu0 0.0
    %6101 = vmatprep.subr.mxu0 0.0
    %6102 = vmatpush1.msra.mxu0 0.0
    %6103 = vmatprep.subr.mxu0 0.0
    %6104 = vmatpush1.msra.mxu0 0.0
    %6105 = vmatprep.subr.mxu0 0.0
    %6106 = vmatpush1.msra.mxu0 0.0
    %6107 = vmatprep.subr.mxu0 0.0
    %6108 = vmatpush1.msra.mxu0 0.0
    %6109 = vmatprep.subr.mxu0 0.0
    %6110 = vmatpush1.msra.mxu0 0.0
    %6111 = vmatprep.subr.mxu0 0.0
    %6112 = vmatpush1.msra.mxu0 0.0
    %6113 = vmatprep.mubr.f32.mxu0 0.0
    %6114 = vmatmul.mubr.f32.gmra.mrb[0].mxu0 %v5543
    %v6115 = vpop.f32.mrb[0].mxu0
    %v6116 = vadd.f32 0.0, %v6115
    %v6117 = vpop.f32.mrb[0].mxu0
    %v6118 = vadd.f32 0.0, %v6117
    %6119 = vdwg.mxu0
    %6120 = vmatprep.subr.mxu0 %v5988
    %6121 = vmatpush1.msra.mxu0 %v5987
    %6122 = vmatprep.subr.mxu0 %v5992
    %6123 = vmatpush1.msra.mxu0 %v5991
    %6124 = vmatprep.subr.mxu0 %v5996
    %6125 = vmatpush1.msra.mxu0 %v5995
    %6126 = vmatprep.subr.mxu0 %v6000
    %6127 = vmatpush1.msra.mxu0 %v5999
    %6128 = vmatprep.subr.mxu0 %v6004
    %6129 = vmatpush1.msra.mxu0 %v6003
    %6130 = vmatprep.subr.mxu0 %v6008
    %6131 = vmatpush1.msra.mxu0 %v6007
    %6132 = vmatprep.subr.mxu0 %v6012
    %6133 = vmatpush1.msra.mxu0 %v6011
    %6134 = vmatprep.subr.mxu0 %v6016
    %6135 = vmatpush1.msra.mxu0 %v6015
    %6136 = vmatprep.subr.mxu0 %v6020
    %6137 = vmatpush1.msra.mxu0 %v6019
    %6138 = vmatprep.subr.mxu0 %v6024
    %6139 = vmatpush1.msra.mxu0 %v6023
    %6140 = vmatprep.subr.mxu0 %v6028
    %6141 = vmatpush1.msra.mxu0 %v6027
    %6142 = vmatprep.subr.mxu0 %v6032
    %6143 = vmatpush1.msra.mxu0 %v6031
    %6144 = vmatprep.subr.mxu0 %v6036
    %6145 = vmatpush1.msra.mxu0 %v6035
    %6146 = vmatprep.subr.mxu0 %v6040
    %6147 = vmatpush1.msra.mxu0 %v6039
    %6148 = vmatprep.subr.mxu0 %v6044
    %6149 = vmatpush1.msra.mxu0 %v6043
    %6150 = vmatprep.subr.mxu0 %v6048
    %6151 = vmatpush1.msra.mxu0 %v6047
    %6152 = vmatprep.subr.mxu0 0.0
    %6153 = vmatpush1.msra.mxu0 0.0
    %6154 = vmatprep.subr.mxu0 0.0
    %6155 = vmatpush1.msra.mxu0 0.0
    %6156 = vmatprep.subr.mxu0 0.0
    %6157 = vmatpush1.msra.mxu0 0.0
    %6158 = vmatprep.subr.mxu0 0.0
    %6159 = vmatpush1.msra.mxu0 0.0
    %6160 = vmatprep.subr.mxu0 0.0
    %6161 = vmatpush1.msra.mxu0 0.0
    %6162 = vmatprep.subr.mxu0 0.0
    %6163 = vmatpush1.msra.mxu0 0.0
    %6164 = vmatprep.subr.mxu0 0.0
    %6165 = vmatpush1.msra.mxu0 0.0
    %6166 = vmatprep.subr.mxu0 0.0
    %6167 = vmatpush1.msra.mxu0 0.0
    %6168 = vmatprep.subr.mxu0 0.0
    %6169 = vmatpush1.msra.mxu0 0.0
    %6170 = vmatprep.subr.mxu0 0.0
    %6171 = vmatpush1.msra.mxu0 0.0
    %6172 = vmatprep.subr.mxu0 0.0
    %6173 = vmatpush1.msra.mxu0 0.0
    %6174 = vmatprep.subr.mxu0 0.0
    %6175 = vmatpush1.msra.mxu0 0.0
    %6176 = vmatprep.subr.mxu0 0.0
    %6177 = vmatpush1.msra.mxu0 0.0
    %6178 = vmatprep.subr.mxu0 0.0
    %6179 = vmatpush1.msra.mxu0 0.0
    %6180 = vmatprep.subr.mxu0 0.0
    %6181 = vmatpush1.msra.mxu0 0.0
    %6182 = vmatprep.subr.mxu0 0.0
    %6183 = vmatpush1.msra.mxu0 0.0
    %6184 = vmatprep.mubr.f32.mxu0 0.0
    %6185 = vmatmul.mubr.f32.gmra.mrb[0].mxu0 %v5543
    %v6186 = vpop.f32.mrb[0].mxu0
    %v6187 = vadd.f32 0.0, %v6186
    %v6188 = vpop.f32.mrb[0].mxu0
    %v6189 = vadd.f32 0.0, %v6188
    %6190 = vdwg.mxu0
    %v6191 = vadd.f32 %v4368, %v6116
    %v6192 = vadd.f32 %v4370, %v6118
    %v6193 = vadd.f32 %v4439, %v6187
    %v6194 = vadd.f32 %v4441, %v6189
    %v6195 = vxor.u32 %v6191, 2147483648
    %v6196 = vxor.u32 %v6192, 2147483648
    %v6197 = vxor.u32 %v6193, 2147483648
    %v6198 = vmul.f32 %v6195, 1.442695
    %v6199 = vpow.pop %v6198
    %v6200 = vmul.f32 %v6196, 1.442695
    %v6201 = vpow.pop %v6200
    %v6202 = vmul.f32 %v6197, 1.442695
    %v6203 = vpow.pop %v6202
    %v6204 = vadd.f32 %v6199, 1.0
    %v6205 = vadd.f32 %v6201, 1.0
    %v6206 = vadd.f32 %v6203, 1.0
    %v6207 = vrcp.pop %v6204
    %v6208 = vmul.f32 1.0, %v6207
    %v6209 = vrcp.pop %v6205
    %v6210 = vmul.f32 1.0, %v6209
    %v6211 = vrcp.pop %v6206
    %v6212 = vmul.f32 1.0, %v6211
    %v6213 = vtanh.pop %v6194
    %v6214 = vmul.f32 %v6210, %v5541
    %v6215 = vmul.f32 %v6208, %v6213
    %v6216 = vadd.f32 %v6214, %v6215
    %v6217 = vtanh.pop %v6216
    %v6218 = vmul.f32 %v6212, %v6217
    %v6219 = vld [vmem:[#allocation14] sm:$0xff]
    %v6220 = vld [vmem:[#allocation14 + $0x8] sm:$0xff]
    %v6221 = vld [vmem:[#allocation14 + $0x10] sm:$0xff]
    %v6222 = vld [vmem:[#allocation14 + $0x18] sm:$0xff]
    %v6223 = vld [vmem:[#allocation14 + $0x20] sm:$0xff]
    %v6224 = vld [vmem:[#allocation14 + $0x28] sm:$0xff]
    %v6225 = vld [vmem:[#allocation14 + $0x30] sm:$0xff]
    %v6226 = vld [vmem:[#allocation14 + $0x38] sm:$0xff]
    %v6227 = vld [vmem:[#allocation14 + $0x40] sm:$0xff]
    %v6228 = vld [vmem:[#allocation14 + $0x48] sm:$0xff]
    %v6229 = vld [vmem:[#allocation14 + $0x50] sm:$0xff]
    %v6230 = vld [vmem:[#allocation14 + $0x58] sm:$0xff]
    %v6231 = vld [vmem:[#allocation14 + $0x60] sm:$0xff]
    %v6232 = vld [vmem:[#allocation14 + $0x68] sm:$0xff]
    %v6233 = vld [vmem:[#allocation14 + $0x70] sm:$0xff]
    %v6234 = vld [vmem:[#allocation14 + $0x78] sm:$0xff]
    %v6235 = vld [vmem:[#allocation14 + $0x80] sm:$0xff]
    %v6236 = vld [vmem:[#allocation14 + $0x88] sm:$0xff]
    %v6237 = vld [vmem:[#allocation14 + $0x90] sm:$0xff]
    %v6238 = vld [vmem:[#allocation14 + $0x98] sm:$0xff]
    %v6239 = vld [vmem:[#allocation14 + $0xa0] sm:$0xff]
    %v6240 = vld [vmem:[#allocation14 + $0xa8] sm:$0xff]
    %v6241 = vld [vmem:[#allocation14 + $0xb0] sm:$0xff]
    %v6242 = vld [vmem:[#allocation14 + $0xb8] sm:$0xff]
    %v6243 = vld [vmem:[#allocation14 + $0xc0] sm:$0xff]
    %v6244 = vld [vmem:[#allocation14 + $0xc8] sm:$0xff]
    %v6245 = vld [vmem:[#allocation14 + $0xd0] sm:$0xff]
    %v6246 = vld [vmem:[#allocation14 + $0xd8] sm:$0xff]
    %v6247 = vld [vmem:[#allocation14 + $0xe0] sm:$0xff]
    %v6248 = vld [vmem:[#allocation14 + $0xe8] sm:$0xff]
    %v6249 = vld [vmem:[#allocation14 + $0xf0] sm:$0xff]
    %v6250 = vld [vmem:[#allocation14 + $0xf8] sm:$0xff]
    %v6251 = vld [vmem:[#allocation14 + $0x100] sm:$0xff]
    %v6252 = vld [vmem:[#allocation14 + $0x108] sm:$0xff]
    %v6253 = vld [vmem:[#allocation14 + $0x110] sm:$0xff]
    %v6254 = vld [vmem:[#allocation14 + $0x118] sm:$0xff]
    %v6255 = vld [vmem:[#allocation14 + $0x120] sm:$0xff]
    %v6256 = vld [vmem:[#allocation14 + $0x128] sm:$0xff]
    %v6257 = vld [vmem:[#allocation14 + $0x130] sm:$0xff]
    %v6258 = vld [vmem:[#allocation14 + $0x138] sm:$0xff]
    %v6259 = vld [vmem:[#allocation14 + $0x140] sm:$0xff]
    %v6260 = vld [vmem:[#allocation14 + $0x148] sm:$0xff]
    %v6261 = vld [vmem:[#allocation14 + $0x150] sm:$0xff]
    %v6262 = vld [vmem:[#allocation14 + $0x158] sm:$0xff]
    %v6263 = vld [vmem:[#allocation14 + $0x160] sm:$0xff]
    %v6264 = vld [vmem:[#allocation14 + $0x168] sm:$0xff]
    %v6265 = vld [vmem:[#allocation14 + $0x170] sm:$0xff]
    %v6266 = vld [vmem:[#allocation14 + $0x178] sm:$0xff]
    %v6267 = vld [vmem:[#allocation14 + $0x180] sm:$0xff]
    %v6268 = vld [vmem:[#allocation14 + $0x188] sm:$0xff]
    %v6269 = vld [vmem:[#allocation14 + $0x190] sm:$0xff]
    %v6270 = vld [vmem:[#allocation14 + $0x198] sm:$0xff]
    %v6271 = vld [vmem:[#allocation14 + $0x1a0] sm:$0xff]
    %v6272 = vld [vmem:[#allocation14 + $0x1a8] sm:$0xff]
    %v6273 = vld [vmem:[#allocation14 + $0x1b0] sm:$0xff]
    %v6274 = vld [vmem:[#allocation14 + $0x1b8] sm:$0xff]
    %v6275 = vld [vmem:[#allocation14 + $0x1c0] sm:$0xff]
    %v6276 = vld [vmem:[#allocation14 + $0x1c8] sm:$0xff]
    %v6277 = vld [vmem:[#allocation14 + $0x1d0] sm:$0xff]
    %v6278 = vld [vmem:[#allocation14 + $0x1d8] sm:$0xff]
    %v6279 = vld [vmem:[#allocation14 + $0x1e0] sm:$0xff]
    %v6280 = vld [vmem:[#allocation14 + $0x1e8] sm:$0xff]
    %v6281 = vld [vmem:[#allocation14 + $0x1f0] sm:$0xff]
    %v6282 = vld [vmem:[#allocation14 + $0x1f8] sm:$0xff]
    %v6283 = vld [vmem:[#allocation16] sm:$0xff]
    %v6284 = vld [vmem:[#allocation16 + $0x8] sm:$0xff]
    %v6285 = vld [vmem:[#allocation16 + $0x10] sm:$0xff]
    %v6286 = vld [vmem:[#allocation16 + $0x18] sm:$0xff]
    %v6287 = vld [vmem:[#allocation16 + $0x20] sm:$0xff]
    %v6288 = vld [vmem:[#allocation16 + $0x28] sm:$0xff]
    %v6289 = vld [vmem:[#allocation16 + $0x30] sm:$0xff]
    %v6290 = vld [vmem:[#allocation16 + $0x38] sm:$0xff]
    %v6291 = vld [vmem:[#allocation16 + $0x40] sm:$0xff]
    %v6292 = vld [vmem:[#allocation16 + $0x48] sm:$0xff]
    %v6293 = vld [vmem:[#allocation16 + $0x50] sm:$0xff]
    %v6294 = vld [vmem:[#allocation16 + $0x58] sm:$0xff]
    %v6295 = vld [vmem:[#allocation16 + $0x60] sm:$0xff]
    %v6296 = vld [vmem:[#allocation16 + $0x68] sm:$0xff]
    %v6297 = vld [vmem:[#allocation16 + $0x70] sm:$0xff]
    %v6298 = vld [vmem:[#allocation16 + $0x78] sm:$0xff]
    %v6299 = vld [vmem:[#allocation16 + $0x80] sm:$0xff]
    %v6300 = vld [vmem:[#allocation16 + $0x88] sm:$0xff]
    %v6301 = vld [vmem:[#allocation16 + $0x90] sm:$0xff]
    %v6302 = vld [vmem:[#allocation16 + $0x98] sm:$0xff]
    %v6303 = vld [vmem:[#allocation16 + $0xa0] sm:$0xff]
    %v6304 = vld [vmem:[#allocation16 + $0xa8] sm:$0xff]
    %v6305 = vld [vmem:[#allocation16 + $0xb0] sm:$0xff]
    %v6306 = vld [vmem:[#allocation16 + $0xb8] sm:$0xff]
    %v6307 = vld [vmem:[#allocation16 + $0xc0] sm:$0xff]
    %v6308 = vld [vmem:[#allocation16 + $0xc8] sm:$0xff]
    %v6309 = vld [vmem:[#allocation16 + $0xd0] sm:$0xff]
    %v6310 = vld [vmem:[#allocation16 + $0xd8] sm:$0xff]
    %v6311 = vld [vmem:[#allocation16 + $0xe0] sm:$0xff]
    %v6312 = vld [vmem:[#allocation16 + $0xe8] sm:$0xff]
    %v6313 = vld [vmem:[#allocation16 + $0xf0] sm:$0xff]
    %v6314 = vld [vmem:[#allocation16 + $0xf8] sm:$0xff]
    %v6315 = vld [vmem:[#allocation16 + $0x100] sm:$0xff]
    %v6316 = vld [vmem:[#allocation16 + $0x108] sm:$0xff]
    %v6317 = vld [vmem:[#allocation16 + $0x110] sm:$0xff]
    %v6318 = vld [vmem:[#allocation16 + $0x118] sm:$0xff]
    %v6319 = vld [vmem:[#allocation16 + $0x120] sm:$0xff]
    %v6320 = vld [vmem:[#allocation16 + $0x128] sm:$0xff]
    %v6321 = vld [vmem:[#allocation16 + $0x130] sm:$0xff]
    %v6322 = vld [vmem:[#allocation16 + $0x138] sm:$0xff]
    %v6323 = vld [vmem:[#allocation16 + $0x140] sm:$0xff]
    %v6324 = vld [vmem:[#allocation16 + $0x148] sm:$0xff]
    %v6325 = vld [vmem:[#allocation16 + $0x150] sm:$0xff]
    %v6326 = vld [vmem:[#allocation16 + $0x158] sm:$0xff]
    %v6327 = vld [vmem:[#allocation16 + $0x160] sm:$0xff]
    %v6328 = vld [vmem:[#allocation16 + $0x168] sm:$0xff]
    %v6329 = vld [vmem:[#allocation16 + $0x170] sm:$0xff]
    %v6330 = vld [vmem:[#allocation16 + $0x178] sm:$0xff]
    %v6331 = vld [vmem:[#allocation16 + $0x180] sm:$0xff]
    %v6332 = vld [vmem:[#allocation16 + $0x188] sm:$0xff]
    %v6333 = vld [vmem:[#allocation16 + $0x190] sm:$0xff]
    %v6334 = vld [vmem:[#allocation16 + $0x198] sm:$0xff]
    %v6335 = vld [vmem:[#allocation16 + $0x1a0] sm:$0xff]
    %v6336 = vld [vmem:[#allocation16 + $0x1a8] sm:$0xff]
    %v6337 = vld [vmem:[#allocation16 + $0x1b0] sm:$0xff]
    %v6338 = vld [vmem:[#allocation16 + $0x1b8] sm:$0xff]
    %v6339 = vld [vmem:[#allocation16 + $0x1c0] sm:$0xff]
    %v6340 = vld [vmem:[#allocation16 + $0x1c8] sm:$0xff]
    %v6341 = vld [vmem:[#allocation16 + $0x1d0] sm:$0xff]
    %v6342 = vld [vmem:[#allocation16 + $0x1d8] sm:$0xff]
    %v6343 = vld [vmem:[#allocation16 + $0x1e0] sm:$0xff]
    %v6344 = vld [vmem:[#allocation16 + $0x1e8] sm:$0xff]
    %v6345 = vld [vmem:[#allocation16 + $0x1f0] sm:$0xff]
    %v6346 = vld [vmem:[#allocation16 + $0x1f8] sm:$0xff]
    %6347 = vmatprep.subr.mxu0 %v6284
    %6348 = vmatpush1.msra.mxu0 %v6283
    %6349 = vmatprep.subr.mxu0 %v6288
    %6350 = vmatpush1.msra.mxu0 %v6287
    %6351 = vmatprep.subr.mxu0 %v6292
    %6352 = vmatpush1.msra.mxu0 %v6291
    %6353 = vmatprep.subr.mxu0 %v6296
    %6354 = vmatpush1.msra.mxu0 %v6295
    %6355 = vmatprep.subr.mxu0 %v6300
    %6356 = vmatpush1.msra.mxu0 %v6299
    %6357 = vmatprep.subr.mxu0 %v6304
    %6358 = vmatpush1.msra.mxu0 %v6303
    %6359 = vmatprep.subr.mxu0 %v6308
    %6360 = vmatpush1.msra.mxu0 %v6307
    %6361 = vmatprep.subr.mxu0 %v6312
    %6362 = vmatpush1.msra.mxu0 %v6311
    %6363 = vmatprep.subr.mxu0 %v6316
    %6364 = vmatpush1.msra.mxu0 %v6315
    %6365 = vmatprep.subr.mxu0 %v6320
    %6366 = vmatpush1.msra.mxu0 %v6319
    %6367 = vmatprep.subr.mxu0 %v6324
    %6368 = vmatpush1.msra.mxu0 %v6323
    %6369 = vmatprep.subr.mxu0 %v6328
    %6370 = vmatpush1.msra.mxu0 %v6327
    %6371 = vmatprep.subr.mxu0 %v6332
    %6372 = vmatpush1.msra.mxu0 %v6331
    %6373 = vmatprep.subr.mxu0 %v6336
    %6374 = vmatpush1.msra.mxu0 %v6335
    %6375 = vmatprep.subr.mxu0 %v6340
    %6376 = vmatpush1.msra.mxu0 %v6339
    %6377 = vmatprep.subr.mxu0 %v6344
    %6378 = vmatpush1.msra.mxu0 %v6343
    %6379 = vmatprep.subr.mxu0 0.0
    %6380 = vmatpush1.msra.mxu0 0.0
    %6381 = vmatprep.subr.mxu0 0.0
    %6382 = vmatpush1.msra.mxu0 0.0
    %6383 = vmatprep.subr.mxu0 0.0
    %6384 = vmatpush1.msra.mxu0 0.0
    %6385 = vmatprep.subr.mxu0 0.0
    %6386 = vmatpush1.msra.mxu0 0.0
    %6387 = vmatprep.subr.mxu0 0.0
    %6388 = vmatpush1.msra.mxu0 0.0
    %6389 = vmatprep.subr.mxu0 0.0
    %6390 = vmatpush1.msra.mxu0 0.0
    %6391 = vmatprep.subr.mxu0 0.0
    %6392 = vmatpush1.msra.mxu0 0.0
    %6393 = vmatprep.subr.mxu0 0.0
    %6394 = vmatpush1.msra.mxu0 0.0
    %6395 = vmatprep.subr.mxu0 0.0
    %6396 = vmatpush1.msra.mxu0 0.0
    %6397 = vmatprep.subr.mxu0 0.0
    %6398 = vmatpush1.msra.mxu0 0.0
    %6399 = vmatprep.subr.mxu0 0.0
    %6400 = vmatpush1.msra.mxu0 0.0
    %6401 = vmatprep.subr.mxu0 0.0
    %6402 = vmatpush1.msra.mxu0 0.0
    %6403 = vmatprep.subr.mxu0 0.0
    %6404 = vmatpush1.msra.mxu0 0.0
    %6405 = vmatprep.subr.mxu0 0.0
    %6406 = vmatpush1.msra.mxu0 0.0
    %6407 = vmatprep.subr.mxu0 0.0
    %6408 = vmatpush1.msra.mxu0 0.0
    %6409 = vmatprep.subr.mxu0 0.0
    %6410 = vmatpush1.msra.mxu0 0.0
    %6411 = vmatprep.mubr.f32.mxu0 0.0
    %6412 = vmatmul.mubr.f32.gmra.mrb[0].mxu0 %v5983
    %v6413 = vpop.f32.mrb[0].mxu0
    %v6414 = vadd.f32 0.0, %v6413
    %v6415 = vpop.f32.mrb[0].mxu0
    %v6416 = vadd.f32 0.0, %v6415
    %6417 = vdwg.mxu0
    %6418 = vmatprep.subr.mxu0 %v6286
    %6419 = vmatpush1.msra.mxu0 %v6285
    %6420 = vmatprep.subr.mxu0 %v6290
    %6421 = vmatpush1.msra.mxu0 %v6289
    %6422 = vmatprep.subr.mxu0 %v6294
    %6423 = vmatpush1.msra.mxu0 %v6293
    %6424 = vmatprep.subr.mxu0 %v6298
    %6425 = vmatpush1.msra.mxu0 %v6297
    %6426 = vmatprep.subr.mxu0 %v6302
    %6427 = vmatpush1.msra.mxu0 %v6301
    %6428 = vmatprep.subr.mxu0 %v6306
    %6429 = vmatpush1.msra.mxu0 %v6305
    %6430 = vmatprep.subr.mxu0 %v6310
    %6431 = vmatpush1.msra.mxu0 %v6309
    %6432 = vmatprep.subr.mxu0 %v6314
    %6433 = vmatpush1.msra.mxu0 %v6313
    %6434 = vmatprep.subr.mxu0 %v6318
    %6435 = vmatpush1.msra.mxu0 %v6317
    %6436 = vmatprep.subr.mxu0 %v6322
    %6437 = vmatpush1.msra.mxu0 %v6321
    %6438 = vmatprep.subr.mxu0 %v6326
    %6439 = vmatpush1.msra.mxu0 %v6325
    %6440 = vmatprep.subr.mxu0 %v6330
    %6441 = vmatpush1.msra.mxu0 %v6329
    %6442 = vmatprep.subr.mxu0 %v6334
    %6443 = vmatpush1.msra.mxu0 %v6333
    %6444 = vmatprep.subr.mxu0 %v6338
    %6445 = vmatpush1.msra.mxu0 %v6337
    %6446 = vmatprep.subr.mxu0 %v6342
    %6447 = vmatpush1.msra.mxu0 %v6341
    %6448 = vmatprep.subr.mxu0 %v6346
    %6449 = vmatpush1.msra.mxu0 %v6345
    %6450 = vmatprep.subr.mxu0 0.0
    %6451 = vmatpush1.msra.mxu0 0.0
    %6452 = vmatprep.subr.mxu0 0.0
    %6453 = vmatpush1.msra.mxu0 0.0
    %6454 = vmatprep.subr.mxu0 0.0
    %6455 = vmatpush1.msra.mxu0 0.0
    %6456 = vmatprep.subr.mxu0 0.0
    %6457 = vmatpush1.msra.mxu0 0.0
    %6458 = vmatprep.subr.mxu0 0.0
    %6459 = vmatpush1.msra.mxu0 0.0
    %6460 = vmatprep.subr.mxu0 0.0
    %6461 = vmatpush1.msra.mxu0 0.0
    %6462 = vmatprep.subr.mxu0 0.0
    %6463 = vmatpush1.msra.mxu0 0.0
    %6464 = vmatprep.subr.mxu0 0.0
    %6465 = vmatpush1.msra.mxu0 0.0
    %6466 = vmatprep.subr.mxu0 0.0
    %6467 = vmatpush1.msra.mxu0 0.0
    %6468 = vmatprep.subr.mxu0 0.0
    %6469 = vmatpush1.msra.mxu0 0.0
    %6470 = vmatprep.subr.mxu0 0.0
    %6471 = vmatpush1.msra.mxu0 0.0
    %6472 = vmatprep.subr.mxu0 0.0
    %6473 = vmatpush1.msra.mxu0 0.0
    %6474 = vmatprep.subr.mxu0 0.0
    %6475 = vmatpush1.msra.mxu0 0.0
    %6476 = vmatprep.subr.mxu0 0.0
    %6477 = vmatpush1.msra.mxu0 0.0
    %6478 = vmatprep.subr.mxu0 0.0
    %6479 = vmatpush1.msra.mxu0 0.0
    %6480 = vmatprep.subr.mxu0 0.0
    %6481 = vmatpush1.msra.mxu0 0.0
    %6482 = vmatprep.mubr.f32.mxu0 0.0
    %6483 = vmatmul.mubr.f32.gmra.mrb[0].mxu0 %v5983
    %v6484 = vpop.f32.mrb[0].mxu0
    %v6485 = vadd.f32 0.0, %v6484
    %v6486 = vpop.f32.mrb[0].mxu0
    %v6487 = vadd.f32 0.0, %v6486
    %6488 = vdwg.mxu0
    %6489 = vmatprep.subr.mxu0 %v6220
    %6490 = vmatpush1.msra.mxu0 %v6219
    %6491 = vmatprep.subr.mxu0 %v6224
    %6492 = vmatpush1.msra.mxu0 %v6223
    %6493 = vmatprep.subr.mxu0 %v6228
    %6494 = vmatpush1.msra.mxu0 %v6227
    %6495 = vmatprep.subr.mxu0 %v6232
    %6496 = vmatpush1.msra.mxu0 %v6231
    %6497 = vmatprep.subr.mxu0 %v6236
    %6498 = vmatpush1.msra.mxu0 %v6235
    %6499 = vmatprep.subr.mxu0 %v6240
    %6500 = vmatpush1.msra.mxu0 %v6239
    %6501 = vmatprep.subr.mxu0 %v6244
    %6502 = vmatpush1.msra.mxu0 %v6243
    %6503 = vmatprep.subr.mxu0 %v6248
    %6504 = vmatpush1.msra.mxu0 %v6247
    %6505 = vmatprep.subr.mxu0 %v6252
    %6506 = vmatpush1.msra.mxu0 %v6251
    %6507 = vmatprep.subr.mxu0 %v6256
    %6508 = vmatpush1.msra.mxu0 %v6255
    %6509 = vmatprep.subr.mxu0 %v6260
    %6510 = vmatpush1.msra.mxu0 %v6259
    %6511 = vmatprep.subr.mxu0 %v6264
    %6512 = vmatpush1.msra.mxu0 %v6263
    %6513 = vmatprep.subr.mxu0 %v6268
    %6514 = vmatpush1.msra.mxu0 %v6267
    %6515 = vmatprep.subr.mxu0 %v6272
    %6516 = vmatpush1.msra.mxu0 %v6271
    %6517 = vmatprep.subr.mxu0 %v6276
    %6518 = vmatpush1.msra.mxu0 %v6275
    %6519 = vmatprep.subr.mxu0 %v6280
    %6520 = vmatpush1.msra.mxu0 %v6279
    %6521 = vmatprep.subr.mxu0 0.0
    %6522 = vmatpush1.msra.mxu0 0.0
    %6523 = vmatprep.subr.mxu0 0.0
    %6524 = vmatpush1.msra.mxu0 0.0
    %6525 = vmatprep.subr.mxu0 0.0
    %6526 = vmatpush1.msra.mxu0 0.0
    %6527 = vmatprep.subr.mxu0 0.0
    %6528 = vmatpush1.msra.mxu0 0.0
    %6529 = vmatprep.subr.mxu0 0.0
    %6530 = vmatpush1.msra.mxu0 0.0
    %6531 = vmatprep.subr.mxu0 0.0
    %6532 = vmatpush1.msra.mxu0 0.0
    %6533 = vmatprep.subr.mxu0 0.0
    %6534 = vmatpush1.msra.mxu0 0.0
    %6535 = vmatprep.subr.mxu0 0.0
    %6536 = vmatpush1.msra.mxu0 0.0
    %6537 = vmatprep.subr.mxu0 0.0
    %6538 = vmatpush1.msra.mxu0 0.0
    %6539 = vmatprep.subr.mxu0 0.0
    %6540 = vmatpush1.msra.mxu0 0.0
    %6541 = vmatprep.subr.mxu0 0.0
    %6542 = vmatpush1.msra.mxu0 0.0
    %6543 = vmatprep.subr.mxu0 0.0
    %6544 = vmatpush1.msra.mxu0 0.0
    %6545 = vmatprep.subr.mxu0 0.0
    %6546 = vmatpush1.msra.mxu0 0.0
    %6547 = vmatprep.subr.mxu0 0.0
    %6548 = vmatpush1.msra.mxu0 0.0
    %6549 = vmatprep.subr.mxu0 0.0
    %6550 = vmatpush1.msra.mxu0 0.0
    %6551 = vmatprep.subr.mxu0 0.0
    %6552 = vmatpush1.msra.mxu0 0.0
    %6553 = vmatprep.mubr.f32.mxu0 0.0
    %6554 = vmatmul.mubr.f32.gmra.mrb[0].mxu0 %v5543
    %v6555 = vpop.f32.mrb[0].mxu0
    %v6556 = vadd.f32 %v6414, %v6555
    %v6557 = vpop.f32.mrb[0].mxu0
    %v6558 = vadd.f32 %v6416, %v6557
    %6559 = vdwg.mxu0
    %6560 = vmatprep.subr.mxu0 %v6222
    %6561 = vmatpush1.msra.mxu0 %v6221
    %6562 = vmatprep.subr.mxu0 %v6226
    %6563 = vmatpush1.msra.mxu0 %v6225
    %6564 = vmatprep.subr.mxu0 %v6230
    %6565 = vmatpush1.msra.mxu0 %v6229
    %6566 = vmatprep.subr.mxu0 %v6234
    %6567 = vmatpush1.msra.mxu0 %v6233
    %6568 = vmatprep.subr.mxu0 %v6238
    %6569 = vmatpush1.msra.mxu0 %v6237
    %6570 = vmatprep.subr.mxu0 %v6242
    %6571 = vmatpush1.msra.mxu0 %v6241
    %6572 = vmatprep.subr.mxu0 %v6246
    %6573 = vmatpush1.msra.mxu0 %v6245
    %6574 = vmatprep.subr.mxu0 %v6250
    %6575 = vmatpush1.msra.mxu0 %v6249
    %6576 = vmatprep.subr.mxu0 %v6254
    %6577 = vmatpush1.msra.mxu0 %v6253
    %6578 = vmatprep.subr.mxu0 %v6258
    %6579 = vmatpush1.msra.mxu0 %v6257
    %6580 = vmatprep.subr.mxu0 %v6262
    %6581 = vmatpush1.msra.mxu0 %v6261
    %6582 = vmatprep.subr.mxu0 %v6266
    %6583 = vmatpush1.msra.mxu0 %v6265
    %6584 = vmatprep.subr.mxu0 %v6270
    %6585 = vmatpush1.msra.mxu0 %v6269
    %6586 = vmatprep.subr.mxu0 %v6274
    %6587 = vmatpush1.msra.mxu0 %v6273
    %6588 = vmatprep.subr.mxu0 %v6278
    %6589 = vmatpush1.msra.mxu0 %v6277
    %6590 = vmatprep.subr.mxu0 %v6282
    %6591 = vmatpush1.msra.mxu0 %v6281
    %6592 = vmatprep.subr.mxu0 0.0
    %6593 = vmatpush1.msra.mxu0 0.0
    %6594 = vmatprep.subr.mxu0 0.0
    %6595 = vmatpush1.msra.mxu0 0.0
    %6596 = vmatprep.subr.mxu0 0.0
    %6597 = vmatpush1.msra.mxu0 0.0
    %6598 = vmatprep.subr.mxu0 0.0
    %6599 = vmatpush1.msra.mxu0 0.0
    %6600 = vmatprep.subr.mxu0 0.0
    %6601 = vmatpush1.msra.mxu0 0.0
    %6602 = vmatprep.subr.mxu0 0.0
    %6603 = vmatpush1.msra.mxu0 0.0
    %6604 = vmatprep.subr.mxu0 0.0
    %6605 = vmatpush1.msra.mxu0 0.0
    %6606 = vmatprep.subr.mxu0 0.0
    %6607 = vmatpush1.msra.mxu0 0.0
    %6608 = vmatprep.subr.mxu0 0.0
    %6609 = vmatpush1.msra.mxu0 0.0
    %6610 = vmatprep.subr.mxu0 0.0
    %6611 = vmatpush1.msra.mxu0 0.0
    %6612 = vmatprep.subr.mxu0 0.0
    %6613 = vmatpush1.msra.mxu0 0.0
    %6614 = vmatprep.subr.mxu0 0.0
    %6615 = vmatpush1.msra.mxu0 0.0
    %6616 = vmatprep.subr.mxu0 0.0
    %6617 = vmatpush1.msra.mxu0 0.0
    %6618 = vmatprep.subr.mxu0 0.0
    %6619 = vmatpush1.msra.mxu0 0.0
    %6620 = vmatprep.subr.mxu0 0.0
    %6621 = vmatpush1.msra.mxu0 0.0
    %6622 = vmatprep.subr.mxu0 0.0
    %6623 = vmatpush1.msra.mxu0 0.0
    %6624 = vmatprep.mubr.f32.mxu0 0.0
    %6625 = vmatmul.mubr.f32.gmra.mrb[0].mxu0 %v5543
    %v6626 = vpop.f32.mrb[0].mxu0
    %v6627 = vadd.f32 %v6485, %v6626
    %v6628 = vpop.f32.mrb[0].mxu0
    %v6629 = vadd.f32 %v6487, %v6628
    %6630 = vdwg.mxu0
    %v6631 = vadd.f32 %v6556, %v4448
    %v6632 = vadd.f32 %v6558, %v4452
    %v6633 = vadd.f32 %v6627, %v4456
    %v6634 = vadd.f32 %v6629, %v4460
    %v6635 = vxor.u32 %v6631, 2147483648
    %v6636 = vxor.u32 %v6632, 2147483648
    %v6637 = vxor.u32 %v6633, 2147483648
    %v6638 = vmul.f32 %v6635, 1.442695
    %v6639 = vpow.pop %v6638
    %v6640 = vmul.f32 %v6636, 1.442695
    %v6641 = vpow.pop %v6640
    %v6642 = vmul.f32 %v6637, 1.442695
    %v6643 = vpow.pop %v6642
    %v6644 = vadd.f32 %v6639, 1.0
    %v6645 = vadd.f32 %v6641, 1.0
    %v6646 = vadd.f32 %v6643, 1.0
    %v6647 = vrcp.pop %v6644
    %v6648 = vmul.f32 1.0, %v6647
    %v6649 = vrcp.pop %v6645
    %v6650 = vmul.f32 1.0, %v6649
    %v6651 = vrcp.pop %v6646
    %v6652 = vmul.f32 1.0, %v6651
    %v6653 = vtanh.pop %v6634
    %v6654 = vmul.f32 %v6650, %v5981
    %v6655 = vmul.f32 %v6648, %v6653
    %v6656 = vadd.f32 %v6654, %v6655
    %v6657 = vtanh.pop %v6656
    %v6658 = vmul.f32 %v6652, %v6657
    %6659 = vst [vmem:[#allocation17 + $0x10] sm:$0xff] %v6658
    %v6660 = vld [vmem:[#allocation13] sm:$0xff]
    %v6661 = vld [vmem:[#allocation13 + $0x8] sm:$0xff]
    %v6662 = vld [vmem:[#allocation13 + $0x10] sm:$0xff]
    %v6663 = vld [vmem:[#allocation13 + $0x18] sm:$0xff]
    %v6664 = vld [vmem:[#allocation13 + $0x20] sm:$0xff]
    %v6665 = vld [vmem:[#allocation13 + $0x28] sm:$0xff]
    %v6666 = vld [vmem:[#allocation13 + $0x30] sm:$0xff]
    %v6667 = vld [vmem:[#allocation13 + $0x38] sm:$0xff]
    %v6668 = vld [vmem:[#allocation13 + $0x40] sm:$0xff]
    %v6669 = vld [vmem:[#allocation13 + $0x48] sm:$0xff]
    %v6670 = vld [vmem:[#allocation13 + $0x50] sm:$0xff]
    %v6671 = vld [vmem:[#allocation13 + $0x58] sm:$0xff]
    %v6672 = vld [vmem:[#allocation13 + $0x60] sm:$0xff]
    %v6673 = vld [vmem:[#allocation13 + $0x68] sm:$0xff]
    %v6674 = vld [vmem:[#allocation13 + $0x70] sm:$0xff]
    %v6675 = vld [vmem:[#allocation13 + $0x78] sm:$0xff]
    %v6676 = vld [vmem:[#allocation13 + $0x80] sm:$0xff]
    %v6677 = vld [vmem:[#allocation13 + $0x88] sm:$0xff]
    %v6678 = vld [vmem:[#allocation13 + $0x90] sm:$0xff]
    %v6679 = vld [vmem:[#allocation13 + $0x98] sm:$0xff]
    %v6680 = vld [vmem:[#allocation13 + $0xa0] sm:$0xff]
    %v6681 = vld [vmem:[#allocation13 + $0xa8] sm:$0xff]
    %v6682 = vld [vmem:[#allocation13 + $0xb0] sm:$0xff]
    %v6683 = vld [vmem:[#allocation13 + $0xb8] sm:$0xff]
    %v6684 = vld [vmem:[#allocation13 + $0xc0] sm:$0xff]
    %v6685 = vld [vmem:[#allocation13 + $0xc8] sm:$0xff]
    %v6686 = vld [vmem:[#allocation13 + $0xd0] sm:$0xff]
    %v6687 = vld [vmem:[#allocation13 + $0xd8] sm:$0xff]
    %v6688 = vld [vmem:[#allocation13 + $0xe0] sm:$0xff]
    %v6689 = vld [vmem:[#allocation13 + $0xe8] sm:$0xff]
    %v6690 = vld [vmem:[#allocation13 + $0xf0] sm:$0xff]
    %v6691 = vld [vmem:[#allocation13 + $0xf8] sm:$0xff]
    %v6692 = vld [vmem:[#allocation13 + $0x100] sm:$0xff]
    %v6693 = vld [vmem:[#allocation13 + $0x108] sm:$0xff]
    %v6694 = vld [vmem:[#allocation13 + $0x110] sm:$0xff]
    %v6695 = vld [vmem:[#allocation13 + $0x118] sm:$0xff]
    %v6696 = vld [vmem:[#allocation13 + $0x120] sm:$0xff]
    %v6697 = vld [vmem:[#allocation13 + $0x128] sm:$0xff]
    %v6698 = vld [vmem:[#allocation13 + $0x130] sm:$0xff]
    %v6699 = vld [vmem:[#allocation13 + $0x138] sm:$0xff]
    %v6700 = vld [vmem:[#allocation13 + $0x140] sm:$0xff]
    %v6701 = vld [vmem:[#allocation13 + $0x148] sm:$0xff]
    %v6702 = vld [vmem:[#allocation13 + $0x150] sm:$0xff]
    %v6703 = vld [vmem:[#allocation13 + $0x158] sm:$0xff]
    %v6704 = vld [vmem:[#allocation13 + $0x160] sm:$0xff]
    %v6705 = vld [vmem:[#allocation13 + $0x168] sm:$0xff]
    %v6706 = vld [vmem:[#allocation13 + $0x170] sm:$0xff]
    %v6707 = vld [vmem:[#allocation13 + $0x178] sm:$0xff]
    %v6708 = vld [vmem:[#allocation13 + $0x180] sm:$0xff]
    %v6709 = vld [vmem:[#allocation13 + $0x188] sm:$0xff]
    %v6710 = vld [vmem:[#allocation13 + $0x190] sm:$0xff]
    %v6711 = vld [vmem:[#allocation13 + $0x198] sm:$0xff]
    %v6712 = vld [vmem:[#allocation13 + $0x1a0] sm:$0xff]
    %v6713 = vld [vmem:[#allocation13 + $0x1a8] sm:$0xff]
    %v6714 = vld [vmem:[#allocation13 + $0x1b0] sm:$0xff]
    %v6715 = vld [vmem:[#allocation13 + $0x1b8] sm:$0xff]
    %v6716 = vld [vmem:[#allocation13 + $0x1c0] sm:$0xff]
    %v6717 = vld [vmem:[#allocation13 + $0x1c8] sm:$0xff]
    %v6718 = vld [vmem:[#allocation13 + $0x1d0] sm:$0xff]
    %v6719 = vld [vmem:[#allocation13 + $0x1d8] sm:$0xff]
    %v6720 = vld [vmem:[#allocation13 + $0x1e0] sm:$0xff]
    %v6721 = vld [vmem:[#allocation13 + $0x1e8] sm:$0xff]
    %v6722 = vld [vmem:[#allocation13 + $0x1f0] sm:$0xff]
    %v6723 = vld [vmem:[#allocation13 + $0x1f8] sm:$0xff]
    %6724 = vmatprep.subr.mxu0 %v6661
    %6725 = vmatpush1.msra.mxu0 %v6660
    %6726 = vmatprep.subr.mxu0 %v6665
    %6727 = vmatpush1.msra.mxu0 %v6664
    %6728 = vmatprep.subr.mxu0 %v6669
    %6729 = vmatpush1.msra.mxu0 %v6668
    %6730 = vmatprep.subr.mxu0 %v6673
    %6731 = vmatpush1.msra.mxu0 %v6672
    %6732 = vmatprep.subr.mxu0 %v6677
    %6733 = vmatpush1.msra.mxu0 %v6676
    %6734 = vmatprep.subr.mxu0 %v6681
    %6735 = vmatpush1.msra.mxu0 %v6680
    %6736 = vmatprep.subr.mxu0 %v6685
    %6737 = vmatpush1.msra.mxu0 %v6684
    %6738 = vmatprep.subr.mxu0 %v6689
    %6739 = vmatpush1.msra.mxu0 %v6688
    %6740 = vmatprep.subr.mxu0 %v6693
    %6741 = vmatpush1.msra.mxu0 %v6692
    %6742 = vmatprep.subr.mxu0 %v6697
    %6743 = vmatpush1.msra.mxu0 %v6696
    %6744 = vmatprep.subr.mxu0 %v6701
    %6745 = vmatpush1.msra.mxu0 %v6700
    %6746 = vmatprep.subr.mxu0 %v6705
    %6747 = vmatpush1.msra.mxu0 %v6704
    %6748 = vmatprep.subr.mxu0 %v6709
    %6749 = vmatpush1.msra.mxu0 %v6708
    %6750 = vmatprep.subr.mxu0 %v6713
    %6751 = vmatpush1.msra.mxu0 %v6712
    %6752 = vmatprep.subr.mxu0 %v6717
    %6753 = vmatpush1.msra.mxu0 %v6716
    %6754 = vmatprep.subr.mxu0 %v6721
    %6755 = vmatpush1.msra.mxu0 %v6720
    %6756 = vmatprep.subr.mxu0 0.0
    %6757 = vmatpush1.msra.mxu0 0.0
    %6758 = vmatprep.subr.mxu0 0.0
    %6759 = vmatpush1.msra.mxu0 0.0
    %6760 = vmatprep.subr.mxu0 0.0
    %6761 = vmatpush1.msra.mxu0 0.0
    %6762 = vmatprep.subr.mxu0 0.0
    %6763 = vmatpush1.msra.mxu0 0.0
    %6764 = vmatprep.subr.mxu0 0.0
    %6765 = vmatpush1.msra.mxu0 0.0
    %6766 = vmatprep.subr.mxu0 0.0
    %6767 = vmatpush1.msra.mxu0 0.0
    %6768 = vmatprep.subr.mxu0 0.0
    %6769 = vmatpush1.msra.mxu0 0.0
    %6770 = vmatprep.subr.mxu0 0.0
    %6771 = vmatpush1.msra.mxu0 0.0
    %6772 = vmatprep.subr.mxu0 0.0
    %6773 = vmatpush1.msra.mxu0 0.0
    %6774 = vmatprep.subr.mxu0 0.0
    %6775 = vmatpush1.msra.mxu0 0.0
    %6776 = vmatprep.subr.mxu0 0.0
    %6777 = vmatpush1.msra.mxu0 0.0
    %6778 = vmatprep.subr.mxu0 0.0
    %6779 = vmatpush1.msra.mxu0 0.0
    %6780 = vmatprep.subr.mxu0 0.0
    %6781 = vmatpush1.msra.mxu0 0.0
    %6782 = vmatprep.subr.mxu0 0.0
    %6783 = vmatpush1.msra.mxu0 0.0
    %6784 = vmatprep.subr.mxu0 0.0
    %6785 = vmatpush1.msra.mxu0 0.0
    %6786 = vmatprep.subr.mxu0 0.0
    %6787 = vmatpush1.msra.mxu0 0.0
    %6788 = vmatprep.mubr.f32.mxu0 0.0
    %6789 = vmatmul.mubr.f32.gmra.mrb[0].mxu0 %v6218
    %v6790 = vpop.f32.mrb[0].mxu0
    %v6791 = vadd.f32 0.0, %v6790
    %v6792 = vpop.f32.mrb[0].mxu0
    %v6793 = vadd.f32 0.0, %v6792
    %6794 = vdwg.mxu0
    %6795 = vmatprep.subr.mxu0 %v6663
    %6796 = vmatpush1.msra.mxu0 %v6662
    %6797 = vmatprep.subr.mxu0 %v6667
    %6798 = vmatpush1.msra.mxu0 %v6666
    %6799 = vmatprep.subr.mxu0 %v6671
    %6800 = vmatpush1.msra.mxu0 %v6670
    %6801 = vmatprep.subr.mxu0 %v6675
    %6802 = vmatpush1.msra.mxu0 %v6674
    %6803 = vmatprep.subr.mxu0 %v6679
    %6804 = vmatpush1.msra.mxu0 %v6678
    %6805 = vmatprep.subr.mxu0 %v6683
    %6806 = vmatpush1.msra.mxu0 %v6682
    %6807 = vmatprep.subr.mxu0 %v6687
    %6808 = vmatpush1.msra.mxu0 %v6686
    %6809 = vmatprep.subr.mxu0 %v6691
    %6810 = vmatpush1.msra.mxu0 %v6690
    %6811 = vmatprep.subr.mxu0 %v6695
    %6812 = vmatpush1.msra.mxu0 %v6694
    %6813 = vmatprep.subr.mxu0 %v6699
    %6814 = vmatpush1.msra.mxu0 %v6698
    %6815 = vmatprep.subr.mxu0 %v6703
    %6816 = vmatpush1.msra.mxu0 %v6702
    %6817 = vmatprep.subr.mxu0 %v6707
    %6818 = vmatpush1.msra.mxu0 %v6706
    %6819 = vmatprep.subr.mxu0 %v6711
    %6820 = vmatpush1.msra.mxu0 %v6710
    %6821 = vmatprep.subr.mxu0 %v6715
    %6822 = vmatpush1.msra.mxu0 %v6714
    %6823 = vmatprep.subr.mxu0 %v6719
    %6824 = vmatpush1.msra.mxu0 %v6718
    %6825 = vmatprep.subr.mxu0 %v6723
    %6826 = vmatpush1.msra.mxu0 %v6722
    %6827 = vmatprep.subr.mxu0 0.0
    %6828 = vmatpush1.msra.mxu0 0.0
    %6829 = vmatprep.subr.mxu0 0.0
    %6830 = vmatpush1.msra.mxu0 0.0
    %6831 = vmatprep.subr.mxu0 0.0
    %6832 = vmatpush1.msra.mxu0 0.0
    %6833 = vmatprep.subr.mxu0 0.0
    %6834 = vmatpush1.msra.mxu0 0.0
    %6835 = vmatprep.subr.mxu0 0.0
    %6836 = vmatpush1.msra.mxu0 0.0
    %6837 = vmatprep.subr.mxu0 0.0
    %6838 = vmatpush1.msra.mxu0 0.0
    %6839 = vmatprep.subr.mxu0 0.0
    %6840 = vmatpush1.msra.mxu0 0.0
    %6841 = vmatprep.subr.mxu0 0.0
    %6842 = vmatpush1.msra.mxu0 0.0
    %6843 = vmatprep.subr.mxu0 0.0
    %6844 = vmatpush1.msra.mxu0 0.0
    %6845 = vmatprep.subr.mxu0 0.0
    %6846 = vmatpush1.msra.mxu0 0.0
    %6847 = vmatprep.subr.mxu0 0.0
    %6848 = vmatpush1.msra.mxu0 0.0
    %6849 = vmatprep.subr.mxu0 0.0
    %6850 = vmatpush1.msra.mxu0 0.0
    %6851 = vmatprep.subr.mxu0 0.0
    %6852 = vmatpush1.msra.mxu0 0.0
    %6853 = vmatprep.subr.mxu0 0.0
    %6854 = vmatpush1.msra.mxu0 0.0
    %6855 = vmatprep.subr.mxu0 0.0
    %6856 = vmatpush1.msra.mxu0 0.0
    %6857 = vmatprep.subr.mxu0 0.0
    %6858 = vmatpush1.msra.mxu0 0.0
    %6859 = vmatprep.mubr.f32.mxu0 0.0
    %6860 = vmatmul.mubr.f32.gmra.mrb[0].mxu0 %v6218
    %v6861 = vpop.f32.mrb[0].mxu0
    %v6862 = vadd.f32 0.0, %v6861
    %v6863 = vpop.f32.mrb[0].mxu0
    %v6864 = vadd.f32 0.0, %v6863
    %6865 = vdwg.mxu0
    %v6866 = vadd.f32 %v4368, %v6791
    %v6867 = vadd.f32 %v4370, %v6793
    %v6868 = vadd.f32 %v4439, %v6862
    %v6869 = vadd.f32 %v4441, %v6864
    %v6870 = vxor.u32 %v6866, 2147483648
    %v6871 = vxor.u32 %v6867, 2147483648
    %v6872 = vxor.u32 %v6868, 2147483648
    %v6873 = vmul.f32 %v6870, 1.442695
    %v6874 = vpow.pop %v6873
    %v6875 = vmul.f32 %v6871, 1.442695
    %v6876 = vpow.pop %v6875
    %v6877 = vmul.f32 %v6872, 1.442695
    %v6878 = vpow.pop %v6877
    %v6879 = vadd.f32 %v6874, 1.0
    %v6880 = vadd.f32 %v6876, 1.0
    %v6881 = vadd.f32 %v6878, 1.0
    %v6882 = vrcp.pop %v6879
    %v6883 = vmul.f32 1.0, %v6882
    %v6884 = vrcp.pop %v6880
    %v6885 = vmul.f32 1.0, %v6884
    %v6886 = vrcp.pop %v6881
    %v6887 = vmul.f32 1.0, %v6886
    %v6888 = vtanh.pop %v6869
    %v6889 = vmul.f32 %v6885, %v6216
    %v6890 = vmul.f32 %v6883, %v6888
    %v6891 = vadd.f32 %v6889, %v6890
    %v6892 = vtanh.pop %v6891
    %v6893 = vmul.f32 %v6887, %v6892
    %v6894 = vld [vmem:[#allocation14] sm:$0xff]
    %v6895 = vld [vmem:[#allocation14 + $0x8] sm:$0xff]
    %v6896 = vld [vmem:[#allocation14 + $0x10] sm:$0xff]
    %v6897 = vld [vmem:[#allocation14 + $0x18] sm:$0xff]
    %v6898 = vld [vmem:[#allocation14 + $0x20] sm:$0xff]
    %v6899 = vld [vmem:[#allocation14 + $0x28] sm:$0xff]
    %v6900 = vld [vmem:[#allocation14 + $0x30] sm:$0xff]
    %v6901 = vld [vmem:[#allocation14 + $0x38] sm:$0xff]
    %v6902 = vld [vmem:[#allocation14 + $0x40] sm:$0xff]
    %v6903 = vld [vmem:[#allocation14 + $0x48] sm:$0xff]
    %v6904 = vld [vmem:[#allocation14 + $0x50] sm:$0xff]
    %v6905 = vld [vmem:[#allocation14 + $0x58] sm:$0xff]
    %v6906 = vld [vmem:[#allocation14 + $0x60] sm:$0xff]
    %v6907 = vld [vmem:[#allocation14 + $0x68] sm:$0xff]
    %v6908 = vld [vmem:[#allocation14 + $0x70] sm:$0xff]
    %v6909 = vld [vmem:[#allocation14 + $0x78] sm:$0xff]
    %v6910 = vld [vmem:[#allocation14 + $0x80] sm:$0xff]
    %v6911 = vld [vmem:[#allocation14 + $0x88] sm:$0xff]
    %v6912 = vld [vmem:[#allocation14 + $0x90] sm:$0xff]
    %v6913 = vld [vmem:[#allocation14 + $0x98] sm:$0xff]
    %v6914 = vld [vmem:[#allocation14 + $0xa0] sm:$0xff]
    %v6915 = vld [vmem:[#allocation14 + $0xa8] sm:$0xff]
    %v6916 = vld [vmem:[#allocation14 + $0xb0] sm:$0xff]
    %v6917 = vld [vmem:[#allocation14 + $0xb8] sm:$0xff]
    %v6918 = vld [vmem:[#allocation14 + $0xc0] sm:$0xff]
    %v6919 = vld [vmem:[#allocation14 + $0xc8] sm:$0xff]
    %v6920 = vld [vmem:[#allocation14 + $0xd0] sm:$0xff]
    %v6921 = vld [vmem:[#allocation14 + $0xd8] sm:$0xff]
    %v6922 = vld [vmem:[#allocation14 + $0xe0] sm:$0xff]
    %v6923 = vld [vmem:[#allocation14 + $0xe8] sm:$0xff]
    %v6924 = vld [vmem:[#allocation14 + $0xf0] sm:$0xff]
    %v6925 = vld [vmem:[#allocation14 + $0xf8] sm:$0xff]
    %v6926 = vld [vmem:[#allocation14 + $0x100] sm:$0xff]
    %v6927 = vld [vmem:[#allocation14 + $0x108] sm:$0xff]
    %v6928 = vld [vmem:[#allocation14 + $0x110] sm:$0xff]
    %v6929 = vld [vmem:[#allocation14 + $0x118] sm:$0xff]
    %v6930 = vld [vmem:[#allocation14 + $0x120] sm:$0xff]
    %v6931 = vld [vmem:[#allocation14 + $0x128] sm:$0xff]
    %v6932 = vld [vmem:[#allocation14 + $0x130] sm:$0xff]
    %v6933 = vld [vmem:[#allocation14 + $0x138] sm:$0xff]
    %v6934 = vld [vmem:[#allocation14 + $0x140] sm:$0xff]
    %v6935 = vld [vmem:[#allocation14 + $0x148] sm:$0xff]
    %v6936 = vld [vmem:[#allocation14 + $0x150] sm:$0xff]
    %v6937 = vld [vmem:[#allocation14 + $0x158] sm:$0xff]
    %v6938 = vld [vmem:[#allocation14 + $0x160] sm:$0xff]
    %v6939 = vld [vmem:[#allocation14 + $0x168] sm:$0xff]
    %v6940 = vld [vmem:[#allocation14 + $0x170] sm:$0xff]
    %v6941 = vld [vmem:[#allocation14 + $0x178] sm:$0xff]
    %v6942 = vld [vmem:[#allocation14 + $0x180] sm:$0xff]
    %v6943 = vld [vmem:[#allocation14 + $0x188] sm:$0xff]
    %v6944 = vld [vmem:[#allocation14 + $0x190] sm:$0xff]
    %v6945 = vld [vmem:[#allocation14 + $0x198] sm:$0xff]
    %v6946 = vld [vmem:[#allocation14 + $0x1a0] sm:$0xff]
    %v6947 = vld [vmem:[#allocation14 + $0x1a8] sm:$0xff]
    %v6948 = vld [vmem:[#allocation14 + $0x1b0] sm:$0xff]
    %v6949 = vld [vmem:[#allocation14 + $0x1b8] sm:$0xff]
    %v6950 = vld [vmem:[#allocation14 + $0x1c0] sm:$0xff]
    %v6951 = vld [vmem:[#allocation14 + $0x1c8] sm:$0xff]
    %v6952 = vld [vmem:[#allocation14 + $0x1d0] sm:$0xff]
    %v6953 = vld [vmem:[#allocation14 + $0x1d8] sm:$0xff]
    %v6954 = vld [vmem:[#allocation14 + $0x1e0] sm:$0xff]
    %v6955 = vld [vmem:[#allocation14 + $0x1e8] sm:$0xff]
    %v6956 = vld [vmem:[#allocation14 + $0x1f0] sm:$0xff]
    %v6957 = vld [vmem:[#allocation14 + $0x1f8] sm:$0xff]
    %v6958 = vld [vmem:[#allocation16] sm:$0xff]
    %v6959 = vld [vmem:[#allocation16 + $0x8] sm:$0xff]
    %v6960 = vld [vmem:[#allocation16 + $0x10] sm:$0xff]
    %v6961 = vld [vmem:[#allocation16 + $0x18] sm:$0xff]
    %v6962 = vld [vmem:[#allocation16 + $0x20] sm:$0xff]
    %v6963 = vld [vmem:[#allocation16 + $0x28] sm:$0xff]
    %v6964 = vld [vmem:[#allocation16 + $0x30] sm:$0xff]
    %v6965 = vld [vmem:[#allocation16 + $0x38] sm:$0xff]
    %v6966 = vld [vmem:[#allocation16 + $0x40] sm:$0xff]
    %v6967 = vld [vmem:[#allocation16 + $0x48] sm:$0xff]
    %v6968 = vld [vmem:[#allocation16 + $0x50] sm:$0xff]
    %v6969 = vld [vmem:[#allocation16 + $0x58] sm:$0xff]
    %v6970 = vld [vmem:[#allocation16 + $0x60] sm:$0xff]
    %v6971 = vld [vmem:[#allocation16 + $0x68] sm:$0xff]
    %v6972 = vld [vmem:[#allocation16 + $0x70] sm:$0xff]
    %v6973 = vld [vmem:[#allocation16 + $0x78] sm:$0xff]
    %v6974 = vld [vmem:[#allocation16 + $0x80] sm:$0xff]
    %v6975 = vld [vmem:[#allocation16 + $0x88] sm:$0xff]
    %v6976 = vld [vmem:[#allocation16 + $0x90] sm:$0xff]
    %v6977 = vld [vmem:[#allocation16 + $0x98] sm:$0xff]
    %v6978 = vld [vmem:[#allocation16 + $0xa0] sm:$0xff]
    %v6979 = vld [vmem:[#allocation16 + $0xa8] sm:$0xff]
    %v6980 = vld [vmem:[#allocation16 + $0xb0] sm:$0xff]
    %v6981 = vld [vmem:[#allocation16 + $0xb8] sm:$0xff]
    %v6982 = vld [vmem:[#allocation16 + $0xc0] sm:$0xff]
    %v6983 = vld [vmem:[#allocation16 + $0xc8] sm:$0xff]
    %v6984 = vld [vmem:[#allocation16 + $0xd0] sm:$0xff]
    %v6985 = vld [vmem:[#allocation16 + $0xd8] sm:$0xff]
    %v6986 = vld [vmem:[#allocation16 + $0xe0] sm:$0xff]
    %v6987 = vld [vmem:[#allocation16 + $0xe8] sm:$0xff]
    %v6988 = vld [vmem:[#allocation16 + $0xf0] sm:$0xff]
    %v6989 = vld [vmem:[#allocation16 + $0xf8] sm:$0xff]
    %v6990 = vld [vmem:[#allocation16 + $0x100] sm:$0xff]
    %v6991 = vld [vmem:[#allocation16 + $0x108] sm:$0xff]
    %v6992 = vld [vmem:[#allocation16 + $0x110] sm:$0xff]
    %v6993 = vld [vmem:[#allocation16 + $0x118] sm:$0xff]
    %v6994 = vld [vmem:[#allocation16 + $0x120] sm:$0xff]
    %v6995 = vld [vmem:[#allocation16 + $0x128] sm:$0xff]
    %v6996 = vld [vmem:[#allocation16 + $0x130] sm:$0xff]
    %v6997 = vld [vmem:[#allocation16 + $0x138] sm:$0xff]
    %v6998 = vld [vmem:[#allocation16 + $0x140] sm:$0xff]
    %v6999 = vld [vmem:[#allocation16 + $0x148] sm:$0xff]
    %v7000 = vld [vmem:[#allocation16 + $0x150] sm:$0xff]
    %v7001 = vld [vmem:[#allocation16 + $0x158] sm:$0xff]
    %v7002 = vld [vmem:[#allocation16 + $0x160] sm:$0xff]
    %v7003 = vld [vmem:[#allocation16 + $0x168] sm:$0xff]
    %v7004 = vld [vmem:[#allocation16 + $0x170] sm:$0xff]
    %v7005 = vld [vmem:[#allocation16 + $0x178] sm:$0xff]
    %v7006 = vld [vmem:[#allocation16 + $0x180] sm:$0xff]
    %v7007 = vld [vmem:[#allocation16 + $0x188] sm:$0xff]
    %v7008 = vld [vmem:[#allocation16 + $0x190] sm:$0xff]
    %v7009 = vld [vmem:[#allocation16 + $0x198] sm:$0xff]
    %v7010 = vld [vmem:[#allocation16 + $0x1a0] sm:$0xff]
    %v7011 = vld [vmem:[#allocation16 + $0x1a8] sm:$0xff]
    %v7012 = vld [vmem:[#allocation16 + $0x1b0] sm:$0xff]
    %v7013 = vld [vmem:[#allocation16 + $0x1b8] sm:$0xff]
    %v7014 = vld [vmem:[#allocation16 + $0x1c0] sm:$0xff]
    %v7015 = vld [vmem:[#allocation16 + $0x1c8] sm:$0xff]
    %v7016 = vld [vmem:[#allocation16 + $0x1d0] sm:$0xff]
    %v7017 = vld [vmem:[#allocation16 + $0x1d8] sm:$0xff]
    %v7018 = vld [vmem:[#allocation16 + $0x1e0] sm:$0xff]
    %v7019 = vld [vmem:[#allocation16 + $0x1e8] sm:$0xff]
    %v7020 = vld [vmem:[#allocation16 + $0x1f0] sm:$0xff]
    %v7021 = vld [vmem:[#allocation16 + $0x1f8] sm:$0xff]
    %7022 = vmatprep.subr.mxu0 %v6959
    %7023 = vmatpush1.msra.mxu0 %v6958
    %7024 = vmatprep.subr.mxu0 %v6963
    %7025 = vmatpush1.msra.mxu0 %v6962
    %7026 = vmatprep.subr.mxu0 %v6967
    %7027 = vmatpush1.msra.mxu0 %v6966
    %7028 = vmatprep.subr.mxu0 %v6971
    %7029 = vmatpush1.msra.mxu0 %v6970
    %7030 = vmatprep.subr.mxu0 %v6975
    %7031 = vmatpush1.msra.mxu0 %v6974
    %7032 = vmatprep.subr.mxu0 %v6979
    %7033 = vmatpush1.msra.mxu0 %v6978
    %7034 = vmatprep.subr.mxu0 %v6983
    %7035 = vmatpush1.msra.mxu0 %v6982
    %7036 = vmatprep.subr.mxu0 %v6987
    %7037 = vmatpush1.msra.mxu0 %v6986
    %7038 = vmatprep.subr.mxu0 %v6991
    %7039 = vmatpush1.msra.mxu0 %v6990
    %7040 = vmatprep.subr.mxu0 %v6995
    %7041 = vmatpush1.msra.mxu0 %v6994
    %7042 = vmatprep.subr.mxu0 %v6999
    %7043 = vmatpush1.msra.mxu0 %v6998
    %7044 = vmatprep.subr.mxu0 %v7003
    %7045 = vmatpush1.msra.mxu0 %v7002
    %7046 = vmatprep.subr.mxu0 %v7007
    %7047 = vmatpush1.msra.mxu0 %v7006
    %7048 = vmatprep.subr.mxu0 %v7011
    %7049 = vmatpush1.msra.mxu0 %v7010
    %7050 = vmatprep.subr.mxu0 %v7015
    %7051 = vmatpush1.msra.mxu0 %v7014
    %7052 = vmatprep.subr.mxu0 %v7019
    %7053 = vmatpush1.msra.mxu0 %v7018
    %7054 = vmatprep.subr.mxu0 0.0
    %7055 = vmatpush1.msra.mxu0 0.0
    %7056 = vmatprep.subr.mxu0 0.0
    %7057 = vmatpush1.msra.mxu0 0.0
    %7058 = vmatprep.subr.mxu0 0.0
    %7059 = vmatpush1.msra.mxu0 0.0
    %7060 = vmatprep.subr.mxu0 0.0
    %7061 = vmatpush1.msra.mxu0 0.0
    %7062 = vmatprep.subr.mxu0 0.0
    %7063 = vmatpush1.msra.mxu0 0.0
    %7064 = vmatprep.subr.mxu0 0.0
    %7065 = vmatpush1.msra.mxu0 0.0
    %7066 = vmatprep.subr.mxu0 0.0
    %7067 = vmatpush1.msra.mxu0 0.0
    %7068 = vmatprep.subr.mxu0 0.0
    %7069 = vmatpush1.msra.mxu0 0.0
    %7070 = vmatprep.subr.mxu0 0.0
    %7071 = vmatpush1.msra.mxu0 0.0
    %7072 = vmatprep.subr.mxu0 0.0
    %7073 = vmatpush1.msra.mxu0 0.0
    %7074 = vmatprep.subr.mxu0 0.0
    %7075 = vmatpush1.msra.mxu0 0.0
    %7076 = vmatprep.subr.mxu0 0.0
    %7077 = vmatpush1.msra.mxu0 0.0
    %7078 = vmatprep.subr.mxu0 0.0
    %7079 = vmatpush1.msra.mxu0 0.0
    %7080 = vmatprep.subr.mxu0 0.0
    %7081 = vmatpush1.msra.mxu0 0.0
    %7082 = vmatprep.subr.mxu0 0.0
    %7083 = vmatpush1.msra.mxu0 0.0
    %7084 = vmatprep.subr.mxu0 0.0
    %7085 = vmatpush1.msra.mxu0 0.0
    %7086 = vmatprep.mubr.f32.mxu0 0.0
    %7087 = vmatmul.mubr.f32.gmra.mrb[0].mxu0 %v6658
    %v7088 = vpop.f32.mrb[0].mxu0
    %v7089 = vadd.f32 0.0, %v7088
    %v7090 = vpop.f32.mrb[0].mxu0
    %v7091 = vadd.f32 0.0, %v7090
    %7092 = vdwg.mxu0
    %7093 = vmatprep.subr.mxu0 %v6961
    %7094 = vmatpush1.msra.mxu0 %v6960
    %7095 = vmatprep.subr.mxu0 %v6965
    %7096 = vmatpush1.msra.mxu0 %v6964
    %7097 = vmatprep.subr.mxu0 %v6969
    %7098 = vmatpush1.msra.mxu0 %v6968
    %7099 = vmatprep.subr.mxu0 %v6973
    %7100 = vmatpush1.msra.mxu0 %v6972
    %7101 = vmatprep.subr.mxu0 %v6977
    %7102 = vmatpush1.msra.mxu0 %v6976
    %7103 = vmatprep.subr.mxu0 %v6981
    %7104 = vmatpush1.msra.mxu0 %v6980
    %7105 = vmatprep.subr.mxu0 %v6985
    %7106 = vmatpush1.msra.mxu0 %v6984
    %7107 = vmatprep.subr.mxu0 %v6989
    %7108 = vmatpush1.msra.mxu0 %v6988
    %7109 = vmatprep.subr.mxu0 %v6993
    %7110 = vmatpush1.msra.mxu0 %v6992
    %7111 = vmatprep.subr.mxu0 %v6997
    %7112 = vmatpush1.msra.mxu0 %v6996
    %7113 = vmatprep.subr.mxu0 %v7001
    %7114 = vmatpush1.msra.mxu0 %v7000
    %7115 = vmatprep.subr.mxu0 %v7005
    %7116 = vmatpush1.msra.mxu0 %v7004
    %7117 = vmatprep.subr.mxu0 %v7009
    %7118 = vmatpush1.msra.mxu0 %v7008
    %7119 = vmatprep.subr.mxu0 %v7013
    %7120 = vmatpush1.msra.mxu0 %v7012
    %7121 = vmatprep.subr.mxu0 %v7017
    %7122 = vmatpush1.msra.mxu0 %v7016
    %7123 = vmatprep.subr.mxu0 %v7021
    %7124 = vmatpush1.msra.mxu0 %v7020
    %7125 = vmatprep.subr.mxu0 0.0
    %7126 = vmatpush1.msra.mxu0 0.0
    %7127 = vmatprep.subr.mxu0 0.0
    %7128 = vmatpush1.msra.mxu0 0.0
    %7129 = vmatprep.subr.mxu0 0.0
    %7130 = vmatpush1.msra.mxu0 0.0
    %7131 = vmatprep.subr.mxu0 0.0
    %7132 = vmatpush1.msra.mxu0 0.0
    %7133 = vmatprep.subr.mxu0 0.0
    %7134 = vmatpush1.msra.mxu0 0.0
    %7135 = vmatprep.subr.mxu0 0.0
    %7136 = vmatpush1.msra.mxu0 0.0
    %7137 = vmatprep.subr.mxu0 0.0
    %7138 = vmatpush1.msra.mxu0 0.0
    %7139 = vmatprep.subr.mxu0 0.0
    %7140 = vmatpush1.msra.mxu0 0.0
    %7141 = vmatprep.subr.mxu0 0.0
    %7142 = vmatpush1.msra.mxu0 0.0
    %7143 = vmatprep.subr.mxu0 0.0
    %7144 = vmatpush1.msra.mxu0 0.0
    %7145 = vmatprep.subr.mxu0 0.0
    %7146 = vmatpush1.msra.mxu0 0.0
    %7147 = vmatprep.subr.mxu0 0.0
    %7148 = vmatpush1.msra.mxu0 0.0
    %7149 = vmatprep.subr.mxu0 0.0
    %7150 = vmatpush1.msra.mxu0 0.0
    %7151 = vmatprep.subr.mxu0 0.0
    %7152 = vmatpush1.msra.mxu0 0.0
    %7153 = vmatprep.subr.mxu0 0.0
    %7154 = vmatpush1.msra.mxu0 0.0
    %7155 = vmatprep.subr.mxu0 0.0
    %7156 = vmatpush1.msra.mxu0 0.0
    %7157 = vmatprep.mubr.f32.mxu0 0.0
    %7158 = vmatmul.mubr.f32.gmra.mrb[0].mxu0 %v6658
    %v7159 = vpop.f32.mrb[0].mxu0
    %v7160 = vadd.f32 0.0, %v7159
    %v7161 = vpop.f32.mrb[0].mxu0
    %v7162 = vadd.f32 0.0, %v7161
    %7163 = vdwg.mxu0
    %7164 = vmatprep.subr.mxu0 %v6895
    %7165 = vmatpush1.msra.mxu0 %v6894
    %7166 = vmatprep.subr.mxu0 %v6899
    %7167 = vmatpush1.msra.mxu0 %v6898
    %7168 = vmatprep.subr.mxu0 %v6903
    %7169 = vmatpush1.msra.mxu0 %v6902
    %7170 = vmatprep.subr.mxu0 %v6907
    %7171 = vmatpush1.msra.mxu0 %v6906
    %7172 = vmatprep.subr.mxu0 %v6911
    %7173 = vmatpush1.msra.mxu0 %v6910
    %7174 = vmatprep.subr.mxu0 %v6915
    %7175 = vmatpush1.msra.mxu0 %v6914
    %7176 = vmatprep.subr.mxu0 %v6919
    %7177 = vmatpush1.msra.mxu0 %v6918
    %7178 = vmatprep.subr.mxu0 %v6923
    %7179 = vmatpush1.msra.mxu0 %v6922
    %7180 = vmatprep.subr.mxu0 %v6927
    %7181 = vmatpush1.msra.mxu0 %v6926
    %7182 = vmatprep.subr.mxu0 %v6931
    %7183 = vmatpush1.msra.mxu0 %v6930
    %7184 = vmatprep.subr.mxu0 %v6935
    %7185 = vmatpush1.msra.mxu0 %v6934
    %7186 = vmatprep.subr.mxu0 %v6939
    %7187 = vmatpush1.msra.mxu0 %v6938
    %7188 = vmatprep.subr.mxu0 %v6943
    %7189 = vmatpush1.msra.mxu0 %v6942
    %7190 = vmatprep.subr.mxu0 %v6947
    %7191 = vmatpush1.msra.mxu0 %v6946
    %7192 = vmatprep.subr.mxu0 %v6951
    %7193 = vmatpush1.msra.mxu0 %v6950
    %7194 = vmatprep.subr.mxu0 %v6955
    %7195 = vmatpush1.msra.mxu0 %v6954
    %7196 = vmatprep.subr.mxu0 0.0
    %7197 = vmatpush1.msra.mxu0 0.0
    %7198 = vmatprep.subr.mxu0 0.0
    %7199 = vmatpush1.msra.mxu0 0.0
    %7200 = vmatprep.subr.mxu0 0.0
    %7201 = vmatpush1.msra.mxu0 0.0
    %7202 = vmatprep.subr.mxu0 0.0
    %7203 = vmatpush1.msra.mxu0 0.0
    %7204 = vmatprep.subr.mxu0 0.0
    %7205 = vmatpush1.msra.mxu0 0.0
    %7206 = vmatprep.subr.mxu0 0.0
    %7207 = vmatpush1.msra.mxu0 0.0
    %7208 = vmatprep.subr.mxu0 0.0
    %7209 = vmatpush1.msra.mxu0 0.0
    %7210 = vmatprep.subr.mxu0 0.0
    %7211 = vmatpush1.msra.mxu0 0.0
    %7212 = vmatprep.subr.mxu0 0.0
    %7213 = vmatpush1.msra.mxu0 0.0
    %7214 = vmatprep.subr.mxu0 0.0
    %7215 = vmatpush1.msra.mxu0 0.0
    %7216 = vmatprep.subr.mxu0 0.0
    %7217 = vmatpush1.msra.mxu0 0.0
    %7218 = vmatprep.subr.mxu0 0.0
    %7219 = vmatpush1.msra.mxu0 0.0
    %7220 = vmatprep.subr.mxu0 0.0
    %7221 = vmatpush1.msra.mxu0 0.0
    %7222 = vmatprep.subr.mxu0 0.0
    %7223 = vmatpush1.msra.mxu0 0.0
    %7224 = vmatprep.subr.mxu0 0.0
    %7225 = vmatpush1.msra.mxu0 0.0
    %7226 = vmatprep.subr.mxu0 0.0
    %7227 = vmatpush1.msra.mxu0 0.0
    %7228 = vmatprep.mubr.f32.mxu0 0.0
    %7229 = vmatmul.mubr.f32.gmra.mrb[0].mxu0 %v6218
    %v7230 = vpop.f32.mrb[0].mxu0
    %v7231 = vadd.f32 %v7089, %v7230
    %v7232 = vpop.f32.mrb[0].mxu0
    %v7233 = vadd.f32 %v7091, %v7232
    %7234 = vdwg.mxu0
    %7235 = vmatprep.subr.mxu0 %v6897
    %7236 = vmatpush1.msra.mxu0 %v6896
    %7237 = vmatprep.subr.mxu0 %v6901
    %7238 = vmatpush1.msra.mxu0 %v6900
    %7239 = vmatprep.subr.mxu0 %v6905
    %7240 = vmatpush1.msra.mxu0 %v6904
    %7241 = vmatprep.subr.mxu0 %v6909
    %7242 = vmatpush1.msra.mxu0 %v6908
    %7243 = vmatprep.subr.mxu0 %v6913
    %7244 = vmatpush1.msra.mxu0 %v6912
    %7245 = vmatprep.subr.mxu0 %v6917
    %7246 = vmatpush1.msra.mxu0 %v6916
    %7247 = vmatprep.subr.mxu0 %v6921
    %7248 = vmatpush1.msra.mxu0 %v6920
    %7249 = vmatprep.subr.mxu0 %v6925
    %7250 = vmatpush1.msra.mxu0 %v6924
    %7251 = vmatprep.subr.mxu0 %v6929
    %7252 = vmatpush1.msra.mxu0 %v6928
    %7253 = vmatprep.subr.mxu0 %v6933
    %7254 = vmatpush1.msra.mxu0 %v6932
    %7255 = vmatprep.subr.mxu0 %v6937
    %7256 = vmatpush1.msra.mxu0 %v6936
    %7257 = vmatprep.subr.mxu0 %v6941
    %7258 = vmatpush1.msra.mxu0 %v6940
    %7259 = vmatprep.subr.mxu0 %v6945
    %7260 = vmatpush1.msra.mxu0 %v6944
    %7261 = vmatprep.subr.mxu0 %v6949
    %7262 = vmatpush1.msra.mxu0 %v6948
    %7263 = vmatprep.subr.mxu0 %v6953
    %7264 = vmatpush1.msra.mxu0 %v6952
    %7265 = vmatprep.subr.mxu0 %v6957
    %7266 = vmatpush1.msra.mxu0 %v6956
    %7267 = vmatprep.subr.mxu0 0.0
    %7268 = vmatpush1.msra.mxu0 0.0
    %7269 = vmatprep.subr.mxu0 0.0
    %7270 = vmatpush1.msra.mxu0 0.0
    %7271 = vmatprep.subr.mxu0 0.0
    %7272 = vmatpush1.msra.mxu0 0.0
    %7273 = vmatprep.subr.mxu0 0.0
    %7274 = vmatpush1.msra.mxu0 0.0
    %7275 = vmatprep.subr.mxu0 0.0
    %7276 = vmatpush1.msra.mxu0 0.0
    %7277 = vmatprep.subr.mxu0 0.0
    %7278 = vmatpush1.msra.mxu0 0.0
    %7279 = vmatprep.subr.mxu0 0.0
    %7280 = vmatpush1.msra.mxu0 0.0
    %7281 = vmatprep.subr.mxu0 0.0
    %7282 = vmatpush1.msra.mxu0 0.0
    %7283 = vmatprep.subr.mxu0 0.0
    %7284 = vmatpush1.msra.mxu0 0.0
    %7285 = vmatprep.subr.mxu0 0.0
    %7286 = vmatpush1.msra.mxu0 0.0
    %7287 = vmatprep.subr.mxu0 0.0
    %7288 = vmatpush1.msra.mxu0 0.0
    %7289 = vmatprep.subr.mxu0 0.0
    %7290 = vmatpush1.msra.mxu0 0.0
    %7291 = vmatprep.subr.mxu0 0.0
    %7292 = vmatpush1.msra.mxu0 0.0
    %7293 = vmatprep.subr.mxu0 0.0
    %7294 = vmatpush1.msra.mxu0 0.0
    %7295 = vmatprep.subr.mxu0 0.0
    %7296 = vmatpush1.msra.mxu0 0.0
    %7297 = vmatprep.subr.mxu0 0.0
    %7298 = vmatpush1.msra.mxu0 0.0
    %7299 = vmatprep.mubr.f32.mxu0 0.0
    %7300 = vmatmul.mubr.f32.gmra.mrb[0].mxu0 %v6218
    %v7301 = vpop.f32.mrb[0].mxu0
    %v7302 = vadd.f32 %v7160, %v7301
    %v7303 = vpop.f32.mrb[0].mxu0
    %v7304 = vadd.f32 %v7162, %v7303
    %7305 = vdwg.mxu0
    %v7306 = vadd.f32 %v7231, %v4448
    %v7307 = vadd.f32 %v7233, %v4452
    %v7308 = vadd.f32 %v7302, %v4456
    %v7309 = vadd.f32 %v7304, %v4460
    %v7310 = vxor.u32 %v7306, 2147483648
    %v7311 = vxor.u32 %v7307, 2147483648
    %v7312 = vxor.u32 %v7308, 2147483648
    %v7313 = vmul.f32 %v7310, 1.442695
    %v7314 = vpow.pop %v7313
    %v7315 = vmul.f32 %v7311, 1.442695
    %v7316 = vpow.pop %v7315
    %v7317 = vmul.f32 %v7312, 1.442695
    %v7318 = vpow.pop %v7317
    %v7319 = vadd.f32 %v7314, 1.0
    %v7320 = vadd.f32 %v7316, 1.0
    %v7321 = vadd.f32 %v7318, 1.0
    %v7322 = vrcp.pop %v7319
    %v7323 = vmul.f32 1.0, %v7322
    %v7324 = vrcp.pop %v7320
    %v7325 = vmul.f32 1.0, %v7324
    %v7326 = vrcp.pop %v7321
    %v7327 = vmul.f32 1.0, %v7326
    %v7328 = vtanh.pop %v7309
    %v7329 = vmul.f32 %v7325, %v6656
    %v7330 = vmul.f32 %v7323, %v7328
    %v7331 = vadd.f32 %v7329, %v7330
    %v7332 = vtanh.pop %v7331
    %v7333 = vmul.f32 %v7327, %v7332
    %7334 = vst [vmem:[#allocation17 + $0x18] sm:$0xff] %v7333
    %v7335 = vld [vmem:[#allocation13] sm:$0xff]
    %v7336 = vld [vmem:[#allocation13 + $0x8] sm:$0xff]
    %v7337 = vld [vmem:[#allocation13 + $0x10] sm:$0xff]
    %v7338 = vld [vmem:[#allocation13 + $0x18] sm:$0xff]
    %v7339 = vld [vmem:[#allocation13 + $0x20] sm:$0xff]
    %v7340 = vld [vmem:[#allocation13 + $0x28] sm:$0xff]
    %v7341 = vld [vmem:[#allocation13 + $0x30] sm:$0xff]
    %v7342 = vld [vmem:[#allocation13 + $0x38] sm:$0xff]
    %v7343 = vld [vmem:[#allocation13 + $0x40] sm:$0xff]
    %v7344 = vld [vmem:[#allocation13 + $0x48] sm:$0xff]
    %v7345 = vld [vmem:[#allocation13 + $0x50] sm:$0xff]
    %v7346 = vld [vmem:[#allocation13 + $0x58] sm:$0xff]
    %v7347 = vld [vmem:[#allocation13 + $0x60] sm:$0xff]
    %v7348 = vld [vmem:[#allocation13 + $0x68] sm:$0xff]
    %v7349 = vld [vmem:[#allocation13 + $0x70] sm:$0xff]
    %v7350 = vld [vmem:[#allocation13 + $0x78] sm:$0xff]
    %v7351 = vld [vmem:[#allocation13 + $0x80] sm:$0xff]
    %v7352 = vld [vmem:[#allocation13 + $0x88] sm:$0xff]
    %v7353 = vld [vmem:[#allocation13 + $0x90] sm:$0xff]
    %v7354 = vld [vmem:[#allocation13 + $0x98] sm:$0xff]
    %v7355 = vld [vmem:[#allocation13 + $0xa0] sm:$0xff]
    %v7356 = vld [vmem:[#allocation13 + $0xa8] sm:$0xff]
    %v7357 = vld [vmem:[#allocation13 + $0xb0] sm:$0xff]
    %v7358 = vld [vmem:[#allocation13 + $0xb8] sm:$0xff]
    %v7359 = vld [vmem:[#allocation13 + $0xc0] sm:$0xff]
    %v7360 = vld [vmem:[#allocation13 + $0xc8] sm:$0xff]
    %v7361 = vld [vmem:[#allocation13 + $0xd0] sm:$0xff]
    %v7362 = vld [vmem:[#allocation13 + $0xd8] sm:$0xff]
    %v7363 = vld [vmem:[#allocation13 + $0xe0] sm:$0xff]
    %v7364 = vld [vmem:[#allocation13 + $0xe8] sm:$0xff]
    %v7365 = vld [vmem:[#allocation13 + $0xf0] sm:$0xff]
    %v7366 = vld [vmem:[#allocation13 + $0xf8] sm:$0xff]
    %v7367 = vld [vmem:[#allocation13 + $0x100] sm:$0xff]
    %v7368 = vld [vmem:[#allocation13 + $0x108] sm:$0xff]
    %v7369 = vld [vmem:[#allocation13 + $0x110] sm:$0xff]
    %v7370 = vld [vmem:[#allocation13 + $0x118] sm:$0xff]
    %v7371 = vld [vmem:[#allocation13 + $0x120] sm:$0xff]
    %v7372 = vld [vmem:[#allocation13 + $0x128] sm:$0xff]
    %v7373 = vld [vmem:[#allocation13 + $0x130] sm:$0xff]
    %v7374 = vld [vmem:[#allocation13 + $0x138] sm:$0xff]
    %v7375 = vld [vmem:[#allocation13 + $0x140] sm:$0xff]
    %v7376 = vld [vmem:[#allocation13 + $0x148] sm:$0xff]
    %v7377 = vld [vmem:[#allocation13 + $0x150] sm:$0xff]
    %v7378 = vld [vmem:[#allocation13 + $0x158] sm:$0xff]
    %v7379 = vld [vmem:[#allocation13 + $0x160] sm:$0xff]
    %v7380 = vld [vmem:[#allocation13 + $0x168] sm:$0xff]
    %v7381 = vld [vmem:[#allocation13 + $0x170] sm:$0xff]
    %v7382 = vld [vmem:[#allocation13 + $0x178] sm:$0xff]
    %v7383 = vld [vmem:[#allocation13 + $0x180] sm:$0xff]
    %v7384 = vld [vmem:[#allocation13 + $0x188] sm:$0xff]
    %v7385 = vld [vmem:[#allocation13 + $0x190] sm:$0xff]
    %v7386 = vld [vmem:[#allocation13 + $0x198] sm:$0xff]
    %v7387 = vld [vmem:[#allocation13 + $0x1a0] sm:$0xff]
    %v7388 = vld [vmem:[#allocation13 + $0x1a8] sm:$0xff]
    %v7389 = vld [vmem:[#allocation13 + $0x1b0] sm:$0xff]
    %v7390 = vld [vmem:[#allocation13 + $0x1b8] sm:$0xff]
    %v7391 = vld [vmem:[#allocation13 + $0x1c0] sm:$0xff]
    %v7392 = vld [vmem:[#allocation13 + $0x1c8] sm:$0xff]
    %v7393 = vld [vmem:[#allocation13 + $0x1d0] sm:$0xff]
    %v7394 = vld [vmem:[#allocation13 + $0x1d8] sm:$0xff]
    %v7395 = vld [vmem:[#allocation13 + $0x1e0] sm:$0xff]
    %v7396 = vld [vmem:[#allocation13 + $0x1e8] sm:$0xff]
    %v7397 = vld [vmem:[#allocation13 + $0x1f0] sm:$0xff]
    %v7398 = vld [vmem:[#allocation13 + $0x1f8] sm:$0xff]
    %7399 = vmatprep.subr.mxu0 %v7336
    %7400 = vmatpush1.msra.mxu0 %v7335
    %7401 = vmatprep.subr.mxu0 %v7340
    %7402 = vmatpush1.msra.mxu0 %v7339
    %7403 = vmatprep.subr.mxu0 %v7344
    %7404 = vmatpush1.msra.mxu0 %v7343
    %7405 = vmatprep.subr.mxu0 %v7348
    %7406 = vmatpush1.msra.mxu0 %v7347
    %7407 = vmatprep.subr.mxu0 %v7352
    %7408 = vmatpush1.msra.mxu0 %v7351
    %7409 = vmatprep.subr.mxu0 %v7356
    %7410 = vmatpush1.msra.mxu0 %v7355
    %7411 = vmatprep.subr.mxu0 %v7360
    %7412 = vmatpush1.msra.mxu0 %v7359
    %7413 = vmatprep.subr.mxu0 %v7364
    %7414 = vmatpush1.msra.mxu0 %v7363
    %7415 = vmatprep.subr.mxu0 %v7368
    %7416 = vmatpush1.msra.mxu0 %v7367
    %7417 = vmatprep.subr.mxu0 %v7372
    %7418 = vmatpush1.msra.mxu0 %v7371
    %7419 = vmatprep.subr.mxu0 %v7376
    %7420 = vmatpush1.msra.mxu0 %v7375
    %7421 = vmatprep.subr.mxu0 %v7380
    %7422 = vmatpush1.msra.mxu0 %v7379
    %7423 = vmatprep.subr.mxu0 %v7384
    %7424 = vmatpush1.msra.mxu0 %v7383
    %7425 = vmatprep.subr.mxu0 %v7388
    %7426 = vmatpush1.msra.mxu0 %v7387
    %7427 = vmatprep.subr.mxu0 %v7392
    %7428 = vmatpush1.msra.mxu0 %v7391
    %7429 = vmatprep.subr.mxu0 %v7396
    %7430 = vmatpush1.msra.mxu0 %v7395
    %7431 = vmatprep.subr.mxu0 0.0
    %7432 = vmatpush1.msra.mxu0 0.0
    %7433 = vmatprep.subr.mxu0 0.0
    %7434 = vmatpush1.msra.mxu0 0.0
    %7435 = vmatprep.subr.mxu0 0.0
    %7436 = vmatpush1.msra.mxu0 0.0
    %7437 = vmatprep.subr.mxu0 0.0
    %7438 = vmatpush1.msra.mxu0 0.0
    %7439 = vmatprep.subr.mxu0 0.0
    %7440 = vmatpush1.msra.mxu0 0.0
    %7441 = vmatprep.subr.mxu0 0.0
    %7442 = vmatpush1.msra.mxu0 0.0
    %7443 = vmatprep.subr.mxu0 0.0
    %7444 = vmatpush1.msra.mxu0 0.0
    %7445 = vmatprep.subr.mxu0 0.0
    %7446 = vmatpush1.msra.mxu0 0.0
    %7447 = vmatprep.subr.mxu0 0.0
    %7448 = vmatpush1.msra.mxu0 0.0
    %7449 = vmatprep.subr.mxu0 0.0
    %7450 = vmatpush1.msra.mxu0 0.0
    %7451 = vmatprep.subr.mxu0 0.0
    %7452 = vmatpush1.msra.mxu0 0.0
    %7453 = vmatprep.subr.mxu0 0.0
    %7454 = vmatpush1.msra.mxu0 0.0
    %7455 = vmatprep.subr.mxu0 0.0
    %7456 = vmatpush1.msra.mxu0 0.0
    %7457 = vmatprep.subr.mxu0 0.0
    %7458 = vmatpush1.msra.mxu0 0.0
    %7459 = vmatprep.subr.mxu0 0.0
    %7460 = vmatpush1.msra.mxu0 0.0
    %7461 = vmatprep.subr.mxu0 0.0
    %7462 = vmatpush1.msra.mxu0 0.0
    %7463 = vmatprep.mubr.f32.mxu0 0.0
    %7464 = vmatmul.mubr.f32.gmra.mrb[0].mxu0 %v6893
    %v7465 = vpop.f32.mrb[0].mxu0
    %v7466 = vadd.f32 0.0, %v7465
    %v7467 = vpop.f32.mrb[0].mxu0
    %v7468 = vadd.f32 0.0, %v7467
    %7469 = vdwg.mxu0
    %7470 = vmatprep.subr.mxu0 %v7338
    %7471 = vmatpush1.msra.mxu0 %v7337
    %7472 = vmatprep.subr.mxu0 %v7342
    %7473 = vmatpush1.msra.mxu0 %v7341
    %7474 = vmatprep.subr.mxu0 %v7346
    %7475 = vmatpush1.msra.mxu0 %v7345
    %7476 = vmatprep.subr.mxu0 %v7350
    %7477 = vmatpush1.msra.mxu0 %v7349
    %7478 = vmatprep.subr.mxu0 %v7354
    %7479 = vmatpush1.msra.mxu0 %v7353
    %7480 = vmatprep.subr.mxu0 %v7358
    %7481 = vmatpush1.msra.mxu0 %v7357
    %7482 = vmatprep.subr.mxu0 %v7362
    %7483 = vmatpush1.msra.mxu0 %v7361
    %7484 = vmatprep.subr.mxu0 %v7366
    %7485 = vmatpush1.msra.mxu0 %v7365
    %7486 = vmatprep.subr.mxu0 %v7370
    %7487 = vmatpush1.msra.mxu0 %v7369
    %7488 = vmatprep.subr.mxu0 %v7374
    %7489 = vmatpush1.msra.mxu0 %v7373
    %7490 = vmatprep.subr.mxu0 %v7378
    %7491 = vmatpush1.msra.mxu0 %v7377
    %7492 = vmatprep.subr.mxu0 %v7382
    %7493 = vmatpush1.msra.mxu0 %v7381
    %7494 = vmatprep.subr.mxu0 %v7386
    %7495 = vmatpush1.msra.mxu0 %v7385
    %7496 = vmatprep.subr.mxu0 %v7390
    %7497 = vmatpush1.msra.mxu0 %v7389
    %7498 = vmatprep.subr.mxu0 %v7394
    %7499 = vmatpush1.msra.mxu0 %v7393
    %7500 = vmatprep.subr.mxu0 %v7398
    %7501 = vmatpush1.msra.mxu0 %v7397
    %7502 = vmatprep.subr.mxu0 0.0
    %7503 = vmatpush1.msra.mxu0 0.0
    %7504 = vmatprep.subr.mxu0 0.0
    %7505 = vmatpush1.msra.mxu0 0.0
    %7506 = vmatprep.subr.mxu0 0.0
    %7507 = vmatpush1.msra.mxu0 0.0
    %7508 = vmatprep.subr.mxu0 0.0
    %7509 = vmatpush1.msra.mxu0 0.0
    %7510 = vmatprep.subr.mxu0 0.0
    %7511 = vmatpush1.msra.mxu0 0.0
    %7512 = vmatprep.subr.mxu0 0.0
    %7513 = vmatpush1.msra.mxu0 0.0
    %7514 = vmatprep.subr.mxu0 0.0
    %7515 = vmatpush1.msra.mxu0 0.0
    %7516 = vmatprep.subr.mxu0 0.0
    %7517 = vmatpush1.msra.mxu0 0.0
    %7518 = vmatprep.subr.mxu0 0.0
    %7519 = vmatpush1.msra.mxu0 0.0
    %7520 = vmatprep.subr.mxu0 0.0
    %7521 = vmatpush1.msra.mxu0 0.0
    %7522 = vmatprep.subr.mxu0 0.0
    %7523 = vmatpush1.msra.mxu0 0.0
    %7524 = vmatprep.subr.mxu0 0.0
    %7525 = vmatpush1.msra.mxu0 0.0
    %7526 = vmatprep.subr.mxu0 0.0
    %7527 = vmatpush1.msra.mxu0 0.0
    %7528 = vmatprep.subr.mxu0 0.0
    %7529 = vmatpush1.msra.mxu0 0.0
    %7530 = vmatprep.subr.mxu0 0.0
    %7531 = vmatpush1.msra.mxu0 0.0
    %7532 = vmatprep.subr.mxu0 0.0
    %7533 = vmatpush1.msra.mxu0 0.0
    %7534 = vmatprep.mubr.f32.mxu0 0.0
    %7535 = vmatmul.mubr.f32.gmra.mrb[0].mxu0 %v6893
    %v7536 = vpop.f32.mrb[0].mxu0
    %v7537 = vadd.f32 0.0, %v7536
    %v7538 = vpop.f32.mrb[0].mxu0
    %v7539 = vadd.f32 0.0, %v7538
    %7540 = vdwg.mxu0
    %v7541 = vadd.f32 %v4368, %v7466
    %v7542 = vadd.f32 %v4370, %v7468
    %v7543 = vadd.f32 %v4439, %v7537
    %v7544 = vadd.f32 %v4441, %v7539
    %v7545 = vxor.u32 %v7541, 2147483648
    %v7546 = vxor.u32 %v7542, 2147483648
    %v7547 = vxor.u32 %v7543, 2147483648
    %v7548 = vmul.f32 %v7545, 1.442695
    %v7549 = vpow.pop %v7548
    %v7550 = vmul.f32 %v7546, 1.442695
    %v7551 = vpow.pop %v7550
    %v7552 = vmul.f32 %v7547, 1.442695
    %v7553 = vpow.pop %v7552
    %v7554 = vadd.f32 %v7549, 1.0
    %v7555 = vadd.f32 %v7551, 1.0
    %v7556 = vadd.f32 %v7553, 1.0
    %v7557 = vrcp.pop %v7554
    %v7558 = vmul.f32 1.0, %v7557
    %v7559 = vrcp.pop %v7555
    %v7560 = vmul.f32 1.0, %v7559
    %v7561 = vrcp.pop %v7556
    %v7562 = vmul.f32 1.0, %v7561
    %v7563 = vtanh.pop %v7544
    %v7564 = vmul.f32 %v7560, %v6891
    %v7565 = vmul.f32 %v7558, %v7563
    %v7566 = vadd.f32 %v7564, %v7565
    %v7567 = vtanh.pop %v7566
    %v7568 = vmul.f32 %v7562, %v7567
    %v7569 = vld [vmem:[#allocation14] sm:$0xff]
    %v7570 = vld [vmem:[#allocation14 + $0x8] sm:$0xff]
    %v7571 = vld [vmem:[#allocation14 + $0x10] sm:$0xff]
    %v7572 = vld [vmem:[#allocation14 + $0x18] sm:$0xff]
    %v7573 = vld [vmem:[#allocation14 + $0x20] sm:$0xff]
    %v7574 = vld [vmem:[#allocation14 + $0x28] sm:$0xff]
    %v7575 = vld [vmem:[#allocation14 + $0x30] sm:$0xff]
    %v7576 = vld [vmem:[#allocation14 + $0x38] sm:$0xff]
    %v7577 = vld [vmem:[#allocation14 + $0x40] sm:$0xff]
    %v7578 = vld [vmem:[#allocation14 + $0x48] sm:$0xff]
    %v7579 = vld [vmem:[#allocation14 + $0x50] sm:$0xff]
    %v7580 = vld [vmem:[#allocation14 + $0x58] sm:$0xff]
    %v7581 = vld [vmem:[#allocation14 + $0x60] sm:$0xff]
    %v7582 = vld [vmem:[#allocation14 + $0x68] sm:$0xff]
    %v7583 = vld [vmem:[#allocation14 + $0x70] sm:$0xff]
    %v7584 = vld [vmem:[#allocation14 + $0x78] sm:$0xff]
    %v7585 = vld [vmem:[#allocation14 + $0x80] sm:$0xff]
    %v7586 = vld [vmem:[#allocation14 + $0x88] sm:$0xff]
    %v7587 = vld [vmem:[#allocation14 + $0x90] sm:$0xff]
    %v7588 = vld [vmem:[#allocation14 + $0x98] sm:$0xff]
    %v7589 = vld [vmem:[#allocation14 + $0xa0] sm:$0xff]
    %v7590 = vld [vmem:[#allocation14 + $0xa8] sm:$0xff]
    %v7591 = vld [vmem:[#allocation14 + $0xb0] sm:$0xff]
    %v7592 = vld [vmem:[#allocation14 + $0xb8] sm:$0xff]
    %v7593 = vld [vmem:[#allocation14 + $0xc0] sm:$0xff]
    %v7594 = vld [vmem:[#allocation14 + $0xc8] sm:$0xff]
    %v7595 = vld [vmem:[#allocation14 + $0xd0] sm:$0xff]
    %v7596 = vld [vmem:[#allocation14 + $0xd8] sm:$0xff]
    %v7597 = vld [vmem:[#allocation14 + $0xe0] sm:$0xff]
    %v7598 = vld [vmem:[#allocation14 + $0xe8] sm:$0xff]
    %v7599 = vld [vmem:[#allocation14 + $0xf0] sm:$0xff]
    %v7600 = vld [vmem:[#allocation14 + $0xf8] sm:$0xff]
    %v7601 = vld [vmem:[#allocation14 + $0x100] sm:$0xff]
    %v7602 = vld [vmem:[#allocation14 + $0x108] sm:$0xff]
    %v7603 = vld [vmem:[#allocation14 + $0x110] sm:$0xff]
    %v7604 = vld [vmem:[#allocation14 + $0x118] sm:$0xff]
    %v7605 = vld [vmem:[#allocation14 + $0x120] sm:$0xff]
    %v7606 = vld [vmem:[#allocation14 + $0x128] sm:$0xff]
    %v7607 = vld [vmem:[#allocation14 + $0x130] sm:$0xff]
    %v7608 = vld [vmem:[#allocation14 + $0x138] sm:$0xff]
    %v7609 = vld [vmem:[#allocation14 + $0x140] sm:$0xff]
    %v7610 = vld [vmem:[#allocation14 + $0x148] sm:$0xff]
    %v7611 = vld [vmem:[#allocation14 + $0x150] sm:$0xff]
    %v7612 = vld [vmem:[#allocation14 + $0x158] sm:$0xff]
    %v7613 = vld [vmem:[#allocation14 + $0x160] sm:$0xff]
    %v7614 = vld [vmem:[#allocation14 + $0x168] sm:$0xff]
    %v7615 = vld [vmem:[#allocation14 + $0x170] sm:$0xff]
    %v7616 = vld [vmem:[#allocation14 + $0x178] sm:$0xff]
    %v7617 = vld [vmem:[#allocation14 + $0x180] sm:$0xff]
    %v7618 = vld [vmem:[#allocation14 + $0x188] sm:$0xff]
    %v7619 = vld [vmem:[#allocation14 + $0x190] sm:$0xff]
    %v7620 = vld [vmem:[#allocation14 + $0x198] sm:$0xff]
    %v7621 = vld [vmem:[#allocation14 + $0x1a0] sm:$0xff]
    %v7622 = vld [vmem:[#allocation14 + $0x1a8] sm:$0xff]
    %v7623 = vld [vmem:[#allocation14 + $0x1b0] sm:$0xff]
    %v7624 = vld [vmem:[#allocation14 + $0x1b8] sm:$0xff]
    %v7625 = vld [vmem:[#allocation14 + $0x1c0] sm:$0xff]
    %v7626 = vld [vmem:[#allocation14 + $0x1c8] sm:$0xff]
    %v7627 = vld [vmem:[#allocation14 + $0x1d0] sm:$0xff]
    %v7628 = vld [vmem:[#allocation14 + $0x1d8] sm:$0xff]
    %v7629 = vld [vmem:[#allocation14 + $0x1e0] sm:$0xff]
    %v7630 = vld [vmem:[#allocation14 + $0x1e8] sm:$0xff]
    %v7631 = vld [vmem:[#allocation14 + $0x1f0] sm:$0xff]
    %v7632 = vld [vmem:[#allocation14 + $0x1f8] sm:$0xff]
    %v7633 = vld [vmem:[#allocation16] sm:$0xff]
    %v7634 = vld [vmem:[#allocation16 + $0x8] sm:$0xff]
    %v7635 = vld [vmem:[#allocation16 + $0x10] sm:$0xff]
    %v7636 = vld [vmem:[#allocation16 + $0x18] sm:$0xff]
    %v7637 = vld [vmem:[#allocation16 + $0x20] sm:$0xff]
    %v7638 = vld [vmem:[#allocation16 + $0x28] sm:$0xff]
    %v7639 = vld [vmem:[#allocation16 + $0x30] sm:$0xff]
    %v7640 = vld [vmem:[#allocation16 + $0x38] sm:$0xff]
    %v7641 = vld [vmem:[#allocation16 + $0x40] sm:$0xff]
    %v7642 = vld [vmem:[#allocation16 + $0x48] sm:$0xff]
    %v7643 = vld [vmem:[#allocation16 + $0x50] sm:$0xff]
    %v7644 = vld [vmem:[#allocation16 + $0x58] sm:$0xff]
    %v7645 = vld [vmem:[#allocation16 + $0x60] sm:$0xff]
    %v7646 = vld [vmem:[#allocation16 + $0x68] sm:$0xff]
    %v7647 = vld [vmem:[#allocation16 + $0x70] sm:$0xff]
    %v7648 = vld [vmem:[#allocation16 + $0x78] sm:$0xff]
    %v7649 = vld [vmem:[#allocation16 + $0x80] sm:$0xff]
    %v7650 = vld [vmem:[#allocation16 + $0x88] sm:$0xff]
    %v7651 = vld [vmem:[#allocation16 + $0x90] sm:$0xff]
    %v7652 = vld [vmem:[#allocation16 + $0x98] sm:$0xff]
    %v7653 = vld [vmem:[#allocation16 + $0xa0] sm:$0xff]
    %v7654 = vld [vmem:[#allocation16 + $0xa8] sm:$0xff]
    %v7655 = vld [vmem:[#allocation16 + $0xb0] sm:$0xff]
    %v7656 = vld [vmem:[#allocation16 + $0xb8] sm:$0xff]
    %v7657 = vld [vmem:[#allocation16 + $0xc0] sm:$0xff]
    %v7658 = vld [vmem:[#allocation16 + $0xc8] sm:$0xff]
    %v7659 = vld [vmem:[#allocation16 + $0xd0] sm:$0xff]
    %v7660 = vld [vmem:[#allocation16 + $0xd8] sm:$0xff]
    %v7661 = vld [vmem:[#allocation16 + $0xe0] sm:$0xff]
    %v7662 = vld [vmem:[#allocation16 + $0xe8] sm:$0xff]
    %v7663 = vld [vmem:[#allocation16 + $0xf0] sm:$0xff]
    %v7664 = vld [vmem:[#allocation16 + $0xf8] sm:$0xff]
    %v7665 = vld [vmem:[#allocation16 + $0x100] sm:$0xff]
    %v7666 = vld [vmem:[#allocation16 + $0x108] sm:$0xff]
    %v7667 = vld [vmem:[#allocation16 + $0x110] sm:$0xff]
    %v7668 = vld [vmem:[#allocation16 + $0x118] sm:$0xff]
    %v7669 = vld [vmem:[#allocation16 + $0x120] sm:$0xff]
    %v7670 = vld [vmem:[#allocation16 + $0x128] sm:$0xff]
    %v7671 = vld [vmem:[#allocation16 + $0x130] sm:$0xff]
    %v7672 = vld [vmem:[#allocation16 + $0x138] sm:$0xff]
    %v7673 = vld [vmem:[#allocation16 + $0x140] sm:$0xff]
    %v7674 = vld [vmem:[#allocation16 + $0x148] sm:$0xff]
    %v7675 = vld [vmem:[#allocation16 + $0x150] sm:$0xff]
    %v7676 = vld [vmem:[#allocation16 + $0x158] sm:$0xff]
    %v7677 = vld [vmem:[#allocation16 + $0x160] sm:$0xff]
    %v7678 = vld [vmem:[#allocation16 + $0x168] sm:$0xff]
    %v7679 = vld [vmem:[#allocation16 + $0x170] sm:$0xff]
    %v7680 = vld [vmem:[#allocation16 + $0x178] sm:$0xff]
    %v7681 = vld [vmem:[#allocation16 + $0x180] sm:$0xff]
    %v7682 = vld [vmem:[#allocation16 + $0x188] sm:$0xff]
    %v7683 = vld [vmem:[#allocation16 + $0x190] sm:$0xff]
    %v7684 = vld [vmem:[#allocation16 + $0x198] sm:$0xff]
    %v7685 = vld [vmem:[#allocation16 + $0x1a0] sm:$0xff]
    %v7686 = vld [vmem:[#allocation16 + $0x1a8] sm:$0xff]
    %v7687 = vld [vmem:[#allocation16 + $0x1b0] sm:$0xff]
    %v7688 = vld [vmem:[#allocation16 + $0x1b8] sm:$0xff]
    %v7689 = vld [vmem:[#allocation16 + $0x1c0] sm:$0xff]
    %v7690 = vld [vmem:[#allocation16 + $0x1c8] sm:$0xff]
    %v7691 = vld [vmem:[#allocation16 + $0x1d0] sm:$0xff]
    %v7692 = vld [vmem:[#allocation16 + $0x1d8] sm:$0xff]
    %v7693 = vld [vmem:[#allocation16 + $0x1e0] sm:$0xff]
    %v7694 = vld [vmem:[#allocation16 + $0x1e8] sm:$0xff]
    %v7695 = vld [vmem:[#allocation16 + $0x1f0] sm:$0xff]
    %v7696 = vld [vmem:[#allocation16 + $0x1f8] sm:$0xff]
    %7697 = vmatprep.subr.mxu0 %v7634
    %7698 = vmatpush1.msra.mxu0 %v7633
    %7699 = vmatprep.subr.mxu0 %v7638
    %7700 = vmatpush1.msra.mxu0 %v7637
    %7701 = vmatprep.subr.mxu0 %v7642
    %7702 = vmatpush1.msra.mxu0 %v7641
    %7703 = vmatprep.subr.mxu0 %v7646
    %7704 = vmatpush1.msra.mxu0 %v7645
    %7705 = vmatprep.subr.mxu0 %v7650
    %7706 = vmatpush1.msra.mxu0 %v7649
    %7707 = vmatprep.subr.mxu0 %v7654
    %7708 = vmatpush1.msra.mxu0 %v7653
    %7709 = vmatprep.subr.mxu0 %v7658
    %7710 = vmatpush1.msra.mxu0 %v7657
    %7711 = vmatprep.subr.mxu0 %v7662
    %7712 = vmatpush1.msra.mxu0 %v7661
    %7713 = vmatprep.subr.mxu0 %v7666
    %7714 = vmatpush1.msra.mxu0 %v7665
    %7715 = vmatprep.subr.mxu0 %v7670
    %7716 = vmatpush1.msra.mxu0 %v7669
    %7717 = vmatprep.subr.mxu0 %v7674
    %7718 = vmatpush1.msra.mxu0 %v7673
    %7719 = vmatprep.subr.mxu0 %v7678
    %7720 = vmatpush1.msra.mxu0 %v7677
    %7721 = vmatprep.subr.mxu0 %v7682
    %7722 = vmatpush1.msra.mxu0 %v7681
    %7723 = vmatprep.subr.mxu0 %v7686
    %7724 = vmatpush1.msra.mxu0 %v7685
    %7725 = vmatprep.subr.mxu0 %v7690
    %7726 = vmatpush1.msra.mxu0 %v7689
    %7727 = vmatprep.subr.mxu0 %v7694
    %7728 = vmatpush1.msra.mxu0 %v7693
    %7729 = vmatprep.subr.mxu0 0.0
    %7730 = vmatpush1.msra.mxu0 0.0
    %7731 = vmatprep.subr.mxu0 0.0
    %7732 = vmatpush1.msra.mxu0 0.0
    %7733 = vmatprep.subr.mxu0 0.0
    %7734 = vmatpush1.msra.mxu0 0.0
    %7735 = vmatprep.subr.mxu0 0.0
    %7736 = vmatpush1.msra.mxu0 0.0
    %7737 = vmatprep.subr.mxu0 0.0
    %7738 = vmatpush1.msra.mxu0 0.0
    %7739 = vmatprep.subr.mxu0 0.0
    %7740 = vmatpush1.msra.mxu0 0.0
    %7741 = vmatprep.subr.mxu0 0.0
    %7742 = vmatpush1.msra.mxu0 0.0
    %7743 = vmatprep.subr.mxu0 0.0
    %7744 = vmatpush1.msra.mxu0 0.0
    %7745 = vmatprep.subr.mxu0 0.0
    %7746 = vmatpush1.msra.mxu0 0.0
    %7747 = vmatprep.subr.mxu0 0.0
    %7748 = vmatpush1.msra.mxu0 0.0
    %7749 = vmatprep.subr.mxu0 0.0
    %7750 = vmatpush1.msra.mxu0 0.0
    %7751 = vmatprep.subr.mxu0 0.0
    %7752 = vmatpush1.msra.mxu0 0.0
    %7753 = vmatprep.subr.mxu0 0.0
    %7754 = vmatpush1.msra.mxu0 0.0
    %7755 = vmatprep.subr.mxu0 0.0
    %7756 = vmatpush1.msra.mxu0 0.0
    %7757 = vmatprep.subr.mxu0 0.0
    %7758 = vmatpush1.msra.mxu0 0.0
    %7759 = vmatprep.subr.mxu0 0.0
    %7760 = vmatpush1.msra.mxu0 0.0
    %7761 = vmatprep.mubr.f32.mxu0 0.0
    %7762 = vmatmul.mubr.f32.gmra.mrb[0].mxu0 %v7333
    %v7763 = vpop.f32.mrb[0].mxu0
    %v7764 = vadd.f32 0.0, %v7763
    %v7765 = vpop.f32.mrb[0].mxu0
    %v7766 = vadd.f32 0.0, %v7765
    %7767 = vdwg.mxu0
    %7768 = vmatprep.subr.mxu0 %v7636
    %7769 = vmatpush1.msra.mxu0 %v7635
    %7770 = vmatprep.subr.mxu0 %v7640
    %7771 = vmatpush1.msra.mxu0 %v7639
    %7772 = vmatprep.subr.mxu0 %v7644
    %7773 = vmatpush1.msra.mxu0 %v7643
    %7774 = vmatprep.subr.mxu0 %v7648
    %7775 = vmatpush1.msra.mxu0 %v7647
    %7776 = vmatprep.subr.mxu0 %v7652
    %7777 = vmatpush1.msra.mxu0 %v7651
    %7778 = vmatprep.subr.mxu0 %v7656
    %7779 = vmatpush1.msra.mxu0 %v7655
    %7780 = vmatprep.subr.mxu0 %v7660
    %7781 = vmatpush1.msra.mxu0 %v7659
    %7782 = vmatprep.subr.mxu0 %v7664
    %7783 = vmatpush1.msra.mxu0 %v7663
    %7784 = vmatprep.subr.mxu0 %v7668
    %7785 = vmatpush1.msra.mxu0 %v7667
    %7786 = vmatprep.subr.mxu0 %v7672
    %7787 = vmatpush1.msra.mxu0 %v7671
    %7788 = vmatprep.subr.mxu0 %v7676
    %7789 = vmatpush1.msra.mxu0 %v7675
    %7790 = vmatprep.subr.mxu0 %v7680
    %7791 = vmatpush1.msra.mxu0 %v7679
    %7792 = vmatprep.subr.mxu0 %v7684
    %7793 = vmatpush1.msra.mxu0 %v7683
    %7794 = vmatprep.subr.mxu0 %v7688
    %7795 = vmatpush1.msra.mxu0 %v7687
    %7796 = vmatprep.subr.mxu0 %v7692
    %7797 = vmatpush1.msra.mxu0 %v7691
    %7798 = vmatprep.subr.mxu0 %v7696
    %7799 = vmatpush1.msra.mxu0 %v7695
    %7800 = vmatprep.subr.mxu0 0.0
    %7801 = vmatpush1.msra.mxu0 0.0
    %7802 = vmatprep.subr.mxu0 0.0
    %7803 = vmatpush1.msra.mxu0 0.0
    %7804 = vmatprep.subr.mxu0 0.0
    %7805 = vmatpush1.msra.mxu0 0.0
    %7806 = vmatprep.subr.mxu0 0.0
    %7807 = vmatpush1.msra.mxu0 0.0
    %7808 = vmatprep.subr.mxu0 0.0
    %7809 = vmatpush1.msra.mxu0 0.0
    %7810 = vmatprep.subr.mxu0 0.0
    %7811 = vmatpush1.msra.mxu0 0.0
    %7812 = vmatprep.subr.mxu0 0.0
    %7813 = vmatpush1.msra.mxu0 0.0
    %7814 = vmatprep.subr.mxu0 0.0
    %7815 = vmatpush1.msra.mxu0 0.0
    %7816 = vmatprep.subr.mxu0 0.0
    %7817 = vmatpush1.msra.mxu0 0.0
    %7818 = vmatprep.subr.mxu0 0.0
    %7819 = vmatpush1.msra.mxu0 0.0
    %7820 = vmatprep.subr.mxu0 0.0
    %7821 = vmatpush1.msra.mxu0 0.0
    %7822 = vmatprep.subr.mxu0 0.0
    %7823 = vmatpush1.msra.mxu0 0.0
    %7824 = vmatprep.subr.mxu0 0.0
    %7825 = vmatpush1.msra.mxu0 0.0
    %7826 = vmatprep.subr.mxu0 0.0
    %7827 = vmatpush1.msra.mxu0 0.0
    %7828 = vmatprep.subr.mxu0 0.0
    %7829 = vmatpush1.msra.mxu0 0.0
    %7830 = vmatprep.subr.mxu0 0.0
    %7831 = vmatpush1.msra.mxu0 0.0
    %7832 = vmatprep.mubr.f32.mxu0 0.0
    %7833 = vmatmul.mubr.f32.gmra.mrb[0].mxu0 %v7333
    %v7834 = vpop.f32.mrb[0].mxu0
    %v7835 = vadd.f32 0.0, %v7834
    %v7836 = vpop.f32.mrb[0].mxu0
    %v7837 = vadd.f32 0.0, %v7836
    %7838 = vdwg.mxu0
    %7839 = vmatprep.subr.mxu0 %v7570
    %7840 = vmatpush1.msra.mxu0 %v7569
    %7841 = vmatprep.subr.mxu0 %v7574
    %7842 = vmatpush1.msra.mxu0 %v7573
    %7843 = vmatprep.subr.mxu0 %v7578
    %7844 = vmatpush1.msra.mxu0 %v7577
    %7845 = vmatprep.subr.mxu0 %v7582
    %7846 = vmatpush1.msra.mxu0 %v7581
    %7847 = vmatprep.subr.mxu0 %v7586
    %7848 = vmatpush1.msra.mxu0 %v7585
    %7849 = vmatprep.subr.mxu0 %v7590
    %7850 = vmatpush1.msra.mxu0 %v7589
    %7851 = vmatprep.subr.mxu0 %v7594
    %7852 = vmatpush1.msra.mxu0 %v7593
    %7853 = vmatprep.subr.mxu0 %v7598
    %7854 = vmatpush1.msra.mxu0 %v7597
    %7855 = vmatprep.subr.mxu0 %v7602
    %7856 = vmatpush1.msra.mxu0 %v7601
    %7857 = vmatprep.subr.mxu0 %v7606
    %7858 = vmatpush1.msra.mxu0 %v7605
    %7859 = vmatprep.subr.mxu0 %v7610
    %7860 = vmatpush1.msra.mxu0 %v7609
    %7861 = vmatprep.subr.mxu0 %v7614
    %7862 = vmatpush1.msra.mxu0 %v7613
    %7863 = vmatprep.subr.mxu0 %v7618
    %7864 = vmatpush1.msra.mxu0 %v7617
    %7865 = vmatprep.subr.mxu0 %v7622
    %7866 = vmatpush1.msra.mxu0 %v7621
    %7867 = vmatprep.subr.mxu0 %v7626
    %7868 = vmatpush1.msra.mxu0 %v7625
    %7869 = vmatprep.subr.mxu0 %v7630
    %7870 = vmatpush1.msra.mxu0 %v7629
    %7871 = vmatprep.subr.mxu0 0.0
    %7872 = vmatpush1.msra.mxu0 0.0
    %7873 = vmatprep.subr.mxu0 0.0
    %7874 = vmatpush1.msra.mxu0 0.0
    %7875 = vmatprep.subr.mxu0 0.0
    %7876 = vmatpush1.msra.mxu0 0.0
    %7877 = vmatprep.subr.mxu0 0.0
    %7878 = vmatpush1.msra.mxu0 0.0
    %7879 = vmatprep.subr.mxu0 0.0
    %7880 = vmatpush1.msra.mxu0 0.0
    %7881 = vmatprep.subr.mxu0 0.0
    %7882 = vmatpush1.msra.mxu0 0.0
    %7883 = vmatprep.subr.mxu0 0.0
    %7884 = vmatpush1.msra.mxu0 0.0
    %7885 = vmatprep.subr.mxu0 0.0
    %7886 = vmatpush1.msra.mxu0 0.0
    %7887 = vmatprep.subr.mxu0 0.0
    %7888 = vmatpush1.msra.mxu0 0.0
    %7889 = vmatprep.subr.mxu0 0.0
    %7890 = vmatpush1.msra.mxu0 0.0
    %7891 = vmatprep.subr.mxu0 0.0
    %7892 = vmatpush1.msra.mxu0 0.0
    %7893 = vmatprep.subr.mxu0 0.0
    %7894 = vmatpush1.msra.mxu0 0.0
    %7895 = vmatprep.subr.mxu0 0.0
    %7896 = vmatpush1.msra.mxu0 0.0
    %7897 = vmatprep.subr.mxu0 0.0
    %7898 = vmatpush1.msra.mxu0 0.0
    %7899 = vmatprep.subr.mxu0 0.0
    %7900 = vmatpush1.msra.mxu0 0.0
    %7901 = vmatprep.subr.mxu0 0.0
    %7902 = vmatpush1.msra.mxu0 0.0
    %7903 = vmatprep.mubr.f32.mxu0 0.0
    %7904 = vmatmul.mubr.f32.gmra.mrb[0].mxu0 %v6893
    %v7905 = vpop.f32.mrb[0].mxu0
    %v7906 = vadd.f32 %v7764, %v7905
    %v7907 = vpop.f32.mrb[0].mxu0
    %v7908 = vadd.f32 %v7766, %v7907
    %7909 = vdwg.mxu0
    %7910 = vmatprep.subr.mxu0 %v7572
    %7911 = vmatpush1.msra.mxu0 %v7571
    %7912 = vmatprep.subr.mxu0 %v7576
    %7913 = vmatpush1.msra.mxu0 %v7575
    %7914 = vmatprep.subr.mxu0 %v7580
    %7915 = vmatpush1.msra.mxu0 %v7579
    %7916 = vmatprep.subr.mxu0 %v7584
    %7917 = vmatpush1.msra.mxu0 %v7583
    %7918 = vmatprep.subr.mxu0 %v7588
    %7919 = vmatpush1.msra.mxu0 %v7587
    %7920 = vmatprep.subr.mxu0 %v7592
    %7921 = vmatpush1.msra.mxu0 %v7591
    %7922 = vmatprep.subr.mxu0 %v7596
    %7923 = vmatpush1.msra.mxu0 %v7595
    %7924 = vmatprep.subr.mxu0 %v7600
    %7925 = vmatpush1.msra.mxu0 %v7599
    %7926 = vmatprep.subr.mxu0 %v7604
    %7927 = vmatpush1.msra.mxu0 %v7603
    %7928 = vmatprep.subr.mxu0 %v7608
    %7929 = vmatpush1.msra.mxu0 %v7607
    %7930 = vmatprep.subr.mxu0 %v7612
    %7931 = vmatpush1.msra.mxu0 %v7611
    %7932 = vmatprep.subr.mxu0 %v7616
    %7933 = vmatpush1.msra.mxu0 %v7615
    %7934 = vmatprep.subr.mxu0 %v7620
    %7935 = vmatpush1.msra.mxu0 %v7619
    %7936 = vmatprep.subr.mxu0 %v7624
    %7937 = vmatpush1.msra.mxu0 %v7623
    %7938 = vmatprep.subr.mxu0 %v7628
    %7939 = vmatpush1.msra.mxu0 %v7627
    %7940 = vmatprep.subr.mxu0 %v7632
    %7941 = vmatpush1.msra.mxu0 %v7631
    %7942 = vmatprep.subr.mxu0 0.0
    %7943 = vmatpush1.msra.mxu0 0.0
    %7944 = vmatprep.subr.mxu0 0.0
    %7945 = vmatpush1.msra.mxu0 0.0
    %7946 = vmatprep.subr.mxu0 0.0
    %7947 = vmatpush1.msra.mxu0 0.0
    %7948 = vmatprep.subr.mxu0 0.0
    %7949 = vmatpush1.msra.mxu0 0.0
    %7950 = vmatprep.subr.mxu0 0.0
    %7951 = vmatpush1.msra.mxu0 0.0
    %7952 = vmatprep.subr.mxu0 0.0
    %7953 = vmatpush1.msra.mxu0 0.0
    %7954 = vmatprep.subr.mxu0 0.0
    %7955 = vmatpush1.msra.mxu0 0.0
    %7956 = vmatprep.subr.mxu0 0.0
    %7957 = vmatpush1.msra.mxu0 0.0
    %7958 = vmatprep.subr.mxu0 0.0
    %7959 = vmatpush1.msra.mxu0 0.0
    %7960 = vmatprep.subr.mxu0 0.0
    %7961 = vmatpush1.msra.mxu0 0.0
    %7962 = vmatprep.subr.mxu0 0.0
    %7963 = vmatpush1.msra.mxu0 0.0
    %7964 = vmatprep.subr.mxu0 0.0
    %7965 = vmatpush1.msra.mxu0 0.0
    %7966 = vmatprep.subr.mxu0 0.0
    %7967 = vmatpush1.msra.mxu0 0.0
    %7968 = vmatprep.subr.mxu0 0.0
    %7969 = vmatpush1.msra.mxu0 0.0
    %7970 = vmatprep.subr.mxu0 0.0
    %7971 = vmatpush1.msra.mxu0 0.0
    %7972 = vmatprep.subr.mxu0 0.0
    %7973 = vmatpush1.msra.mxu0 0.0
    %7974 = vmatprep.mubr.f32.mxu0 0.0
    %7975 = vmatmul.mubr.f32.gmra.mrb[0].mxu0 %v6893
    %v7976 = vpop.f32.mrb[0].mxu0
    %v7977 = vadd.f32 %v7835, %v7976
    %v7978 = vpop.f32.mrb[0].mxu0
    %v7979 = vadd.f32 %v7837, %v7978
    %7980 = vdwg.mxu0
    %v7981 = vadd.f32 %v7906, %v4448
    %v7982 = vadd.f32 %v7908, %v4452
    %v7983 = vadd.f32 %v7977, %v4456
    %v7984 = vadd.f32 %v7979, %v4460
    %v7985 = vxor.u32 %v7981, 2147483648
    %v7986 = vxor.u32 %v7982, 2147483648
    %v7987 = vxor.u32 %v7983, 2147483648
    %v7988 = vmul.f32 %v7985, 1.442695
    %v7989 = vpow.pop %v7988
    %v7990 = vmul.f32 %v7986, 1.442695
    %v7991 = vpow.pop %v7990
    %v7992 = vmul.f32 %v7987, 1.442695
    %v7993 = vpow.pop %v7992
    %v7994 = vadd.f32 %v7989, 1.0
    %v7995 = vadd.f32 %v7991, 1.0
    %v7996 = vadd.f32 %v7993, 1.0
    %v7997 = vrcp.pop %v7994
    %v7998 = vmul.f32 1.0, %v7997
    %v7999 = vrcp.pop %v7995
    %v8000 = vmul.f32 1.0, %v7999
    %v8001 = vrcp.pop %v7996
    %v8002 = vmul.f32 1.0, %v8001
    %v8003 = vtanh.pop %v7984
    %v8004 = vmul.f32 %v8000, %v7331
    %v8005 = vmul.f32 %v7998, %v8003
    %v8006 = vadd.f32 %v8004, %v8005
    %v8007 = vtanh.pop %v8006
    %v8008 = vmul.f32 %v8002, %v8007
    %8009 = vst [vmem:[#allocation17 + $0x20] sm:$0xff] %v8008
    %v8010 = vld [vmem:[#allocation14] sm:$0xff]
    %v8011 = vld [vmem:[#allocation14 + $0x8] sm:$0xff]
    %v8012 = vld [vmem:[#allocation14 + $0x10] sm:$0xff]
    %v8013 = vld [vmem:[#allocation14 + $0x18] sm:$0xff]
    %v8014 = vld [vmem:[#allocation14 + $0x20] sm:$0xff]
    %v8015 = vld [vmem:[#allocation14 + $0x28] sm:$0xff]
    %v8016 = vld [vmem:[#allocation14 + $0x30] sm:$0xff]
    %v8017 = vld [vmem:[#allocation14 + $0x38] sm:$0xff]
    %v8018 = vld [vmem:[#allocation14 + $0x40] sm:$0xff]
    %v8019 = vld [vmem:[#allocation14 + $0x48] sm:$0xff]
    %v8020 = vld [vmem:[#allocation14 + $0x50] sm:$0xff]
    %v8021 = vld [vmem:[#allocation14 + $0x58] sm:$0xff]
    %v8022 = vld [vmem:[#allocation14 + $0x60] sm:$0xff]
    %v8023 = vld [vmem:[#allocation14 + $0x68] sm:$0xff]
    %v8024 = vld [vmem:[#allocation14 + $0x70] sm:$0xff]
    %v8025 = vld [vmem:[#allocation14 + $0x78] sm:$0xff]
    %v8026 = vld [vmem:[#allocation14 + $0x80] sm:$0xff]
    %v8027 = vld [vmem:[#allocation14 + $0x88] sm:$0xff]
    %v8028 = vld [vmem:[#allocation14 + $0x90] sm:$0xff]
    %v8029 = vld [vmem:[#allocation14 + $0x98] sm:$0xff]
    %v8030 = vld [vmem:[#allocation14 + $0xa0] sm:$0xff]
    %v8031 = vld [vmem:[#allocation14 + $0xa8] sm:$0xff]
    %v8032 = vld [vmem:[#allocation14 + $0xb0] sm:$0xff]
    %v8033 = vld [vmem:[#allocation14 + $0xb8] sm:$0xff]
    %v8034 = vld [vmem:[#allocation14 + $0xc0] sm:$0xff]
    %v8035 = vld [vmem:[#allocation14 + $0xc8] sm:$0xff]
    %v8036 = vld [vmem:[#allocation14 + $0xd0] sm:$0xff]
    %v8037 = vld [vmem:[#allocation14 + $0xd8] sm:$0xff]
    %v8038 = vld [vmem:[#allocation14 + $0xe0] sm:$0xff]
    %v8039 = vld [vmem:[#allocation14 + $0xe8] sm:$0xff]
    %v8040 = vld [vmem:[#allocation14 + $0xf0] sm:$0xff]
    %v8041 = vld [vmem:[#allocation14 + $0xf8] sm:$0xff]
    %v8042 = vld [vmem:[#allocation14 + $0x100] sm:$0xff]
    %v8043 = vld [vmem:[#allocation14 + $0x108] sm:$0xff]
    %v8044 = vld [vmem:[#allocation14 + $0x110] sm:$0xff]
    %v8045 = vld [vmem:[#allocation14 + $0x118] sm:$0xff]
    %v8046 = vld [vmem:[#allocation14 + $0x120] sm:$0xff]
    %v8047 = vld [vmem:[#allocation14 + $0x128] sm:$0xff]
    %v8048 = vld [vmem:[#allocation14 + $0x130] sm:$0xff]
    %v8049 = vld [vmem:[#allocation14 + $0x138] sm:$0xff]
    %v8050 = vld [vmem:[#allocation14 + $0x140] sm:$0xff]
    %v8051 = vld [vmem:[#allocation14 + $0x148] sm:$0xff]
    %v8052 = vld [vmem:[#allocation14 + $0x150] sm:$0xff]
    %v8053 = vld [vmem:[#allocation14 + $0x158] sm:$0xff]
    %v8054 = vld [vmem:[#allocation14 + $0x160] sm:$0xff]
    %v8055 = vld [vmem:[#allocation14 + $0x168] sm:$0xff]
    %v8056 = vld [vmem:[#allocation14 + $0x170] sm:$0xff]
    %v8057 = vld [vmem:[#allocation14 + $0x178] sm:$0xff]
    %v8058 = vld [vmem:[#allocation14 + $0x180] sm:$0xff]
    %v8059 = vld [vmem:[#allocation14 + $0x188] sm:$0xff]
    %v8060 = vld [vmem:[#allocation14 + $0x190] sm:$0xff]
    %v8061 = vld [vmem:[#allocation14 + $0x198] sm:$0xff]
    %v8062 = vld [vmem:[#allocation14 + $0x1a0] sm:$0xff]
    %v8063 = vld [vmem:[#allocation14 + $0x1a8] sm:$0xff]
    %v8064 = vld [vmem:[#allocation14 + $0x1b0] sm:$0xff]
    %v8065 = vld [vmem:[#allocation14 + $0x1b8] sm:$0xff]
    %v8066 = vld [vmem:[#allocation14 + $0x1c0] sm:$0xff]
    %v8067 = vld [vmem:[#allocation14 + $0x1c8] sm:$0xff]
    %v8068 = vld [vmem:[#allocation14 + $0x1d0] sm:$0xff]
    %v8069 = vld [vmem:[#allocation14 + $0x1d8] sm:$0xff]
    %v8070 = vld [vmem:[#allocation14 + $0x1e0] sm:$0xff]
    %v8071 = vld [vmem:[#allocation14 + $0x1e8] sm:$0xff]
    %v8072 = vld [vmem:[#allocation14 + $0x1f0] sm:$0xff]
    %v8073 = vld [vmem:[#allocation14 + $0x1f8] sm:$0xff]
    %v8074 = vld [vmem:[#allocation16] sm:$0xff]
    %v8075 = vld [vmem:[#allocation16 + $0x8] sm:$0xff]
    %v8076 = vld [vmem:[#allocation16 + $0x10] sm:$0xff]
    %v8077 = vld [vmem:[#allocation16 + $0x18] sm:$0xff]
    %v8078 = vld [vmem:[#allocation16 + $0x20] sm:$0xff]
    %v8079 = vld [vmem:[#allocation16 + $0x28] sm:$0xff]
    %v8080 = vld [vmem:[#allocation16 + $0x30] sm:$0xff]
    %v8081 = vld [vmem:[#allocation16 + $0x38] sm:$0xff]
    %v8082 = vld [vmem:[#allocation16 + $0x40] sm:$0xff]
    %v8083 = vld [vmem:[#allocation16 + $0x48] sm:$0xff]
    %v8084 = vld [vmem:[#allocation16 + $0x50] sm:$0xff]
    %v8085 = vld [vmem:[#allocation16 + $0x58] sm:$0xff]
    %v8086 = vld [vmem:[#allocation16 + $0x60] sm:$0xff]
    %v8087 = vld [vmem:[#allocation16 + $0x68] sm:$0xff]
    %v8088 = vld [vmem:[#allocation16 + $0x70] sm:$0xff]
    %v8089 = vld [vmem:[#allocation16 + $0x78] sm:$0xff]
    %v8090 = vld [vmem:[#allocation16 + $0x80] sm:$0xff]
    %v8091 = vld [vmem:[#allocation16 + $0x88] sm:$0xff]
    %v8092 = vld [vmem:[#allocation16 + $0x90] sm:$0xff]
    %v8093 = vld [vmem:[#allocation16 + $0x98] sm:$0xff]
    %v8094 = vld [vmem:[#allocation16 + $0xa0] sm:$0xff]
    %v8095 = vld [vmem:[#allocation16 + $0xa8] sm:$0xff]
    %v8096 = vld [vmem:[#allocation16 + $0xb0] sm:$0xff]
    %v8097 = vld [vmem:[#allocation16 + $0xb8] sm:$0xff]
    %v8098 = vld [vmem:[#allocation16 + $0xc0] sm:$0xff]
    %v8099 = vld [vmem:[#allocation16 + $0xc8] sm:$0xff]
    %v8100 = vld [vmem:[#allocation16 + $0xd0] sm:$0xff]
    %v8101 = vld [vmem:[#allocation16 + $0xd8] sm:$0xff]
    %v8102 = vld [vmem:[#allocation16 + $0xe0] sm:$0xff]
    %v8103 = vld [vmem:[#allocation16 + $0xe8] sm:$0xff]
    %v8104 = vld [vmem:[#allocation16 + $0xf0] sm:$0xff]
    %v8105 = vld [vmem:[#allocation16 + $0xf8] sm:$0xff]
    %v8106 = vld [vmem:[#allocation16 + $0x100] sm:$0xff]
    %v8107 = vld [vmem:[#allocation16 + $0x108] sm:$0xff]
    %v8108 = vld [vmem:[#allocation16 + $0x110] sm:$0xff]
    %v8109 = vld [vmem:[#allocation16 + $0x118] sm:$0xff]
    %v8110 = vld [vmem:[#allocation16 + $0x120] sm:$0xff]
    %v8111 = vld [vmem:[#allocation16 + $0x128] sm:$0xff]
    %v8112 = vld [vmem:[#allocation16 + $0x130] sm:$0xff]
    %v8113 = vld [vmem:[#allocation16 + $0x138] sm:$0xff]
    %v8114 = vld [vmem:[#allocation16 + $0x140] sm:$0xff]
    %v8115 = vld [vmem:[#allocation16 + $0x148] sm:$0xff]
    %v8116 = vld [vmem:[#allocation16 + $0x150] sm:$0xff]
    %v8117 = vld [vmem:[#allocation16 + $0x158] sm:$0xff]
    %v8118 = vld [vmem:[#allocation16 + $0x160] sm:$0xff]
    %v8119 = vld [vmem:[#allocation16 + $0x168] sm:$0xff]
    %v8120 = vld [vmem:[#allocation16 + $0x170] sm:$0xff]
    %v8121 = vld [vmem:[#allocation16 + $0x178] sm:$0xff]
    %v8122 = vld [vmem:[#allocation16 + $0x180] sm:$0xff]
    %v8123 = vld [vmem:[#allocation16 + $0x188] sm:$0xff]
    %v8124 = vld [vmem:[#allocation16 + $0x190] sm:$0xff]
    %v8125 = vld [vmem:[#allocation16 + $0x198] sm:$0xff]
    %v8126 = vld [vmem:[#allocation16 + $0x1a0] sm:$0xff]
    %v8127 = vld [vmem:[#allocation16 + $0x1a8] sm:$0xff]
    %v8128 = vld [vmem:[#allocation16 + $0x1b0] sm:$0xff]
    %v8129 = vld [vmem:[#allocation16 + $0x1b8] sm:$0xff]
    %v8130 = vld [vmem:[#allocation16 + $0x1c0] sm:$0xff]
    %v8131 = vld [vmem:[#allocation16 + $0x1c8] sm:$0xff]
    %v8132 = vld [vmem:[#allocation16 + $0x1d0] sm:$0xff]
    %v8133 = vld [vmem:[#allocation16 + $0x1d8] sm:$0xff]
    %v8134 = vld [vmem:[#allocation16 + $0x1e0] sm:$0xff]
    %v8135 = vld [vmem:[#allocation16 + $0x1e8] sm:$0xff]
    %v8136 = vld [vmem:[#allocation16 + $0x1f0] sm:$0xff]
    %v8137 = vld [vmem:[#allocation16 + $0x1f8] sm:$0xff]
    %8138 = vmatprep.subr.mxu0 %v8075
    %8139 = vmatpush1.msra.mxu0 %v8074
    %8140 = vmatprep.subr.mxu0 %v8079
    %8141 = vmatpush1.msra.mxu0 %v8078
    %8142 = vmatprep.subr.mxu0 %v8083
    %8143 = vmatpush1.msra.mxu0 %v8082
    %8144 = vmatprep.subr.mxu0 %v8087
    %8145 = vmatpush1.msra.mxu0 %v8086
    %8146 = vmatprep.subr.mxu0 %v8091
    %8147 = vmatpush1.msra.mxu0 %v8090
    %8148 = vmatprep.subr.mxu0 %v8095
    %8149 = vmatpush1.msra.mxu0 %v8094
    %8150 = vmatprep.subr.mxu0 %v8099
    %8151 = vmatpush1.msra.mxu0 %v8098
    %8152 = vmatprep.subr.mxu0 %v8103
    %8153 = vmatpush1.msra.mxu0 %v8102
    %8154 = vmatprep.subr.mxu0 %v8107
    %8155 = vmatpush1.msra.mxu0 %v8106
    %8156 = vmatprep.subr.mxu0 %v8111
    %8157 = vmatpush1.msra.mxu0 %v8110
    %8158 = vmatprep.subr.mxu0 %v8115
    %8159 = vmatpush1.msra.mxu0 %v8114
    %8160 = vmatprep.subr.mxu0 %v8119
    %8161 = vmatpush1.msra.mxu0 %v8118
    %8162 = vmatprep.subr.mxu0 %v8123
    %8163 = vmatpush1.msra.mxu0 %v8122
    %8164 = vmatprep.subr.mxu0 %v8127
    %8165 = vmatpush1.msra.mxu0 %v8126
    %8166 = vmatprep.subr.mxu0 %v8131
    %8167 = vmatpush1.msra.mxu0 %v8130
    %8168 = vmatprep.subr.mxu0 %v8135
    %8169 = vmatpush1.msra.mxu0 %v8134
    %8170 = vmatprep.subr.mxu0 0.0
    %8171 = vmatpush1.msra.mxu0 0.0
    %8172 = vmatprep.subr.mxu0 0.0
    %8173 = vmatpush1.msra.mxu0 0.0
    %8174 = vmatprep.subr.mxu0 0.0
    %8175 = vmatpush1.msra.mxu0 0.0
    %8176 = vmatprep.subr.mxu0 0.0
    %8177 = vmatpush1.msra.mxu0 0.0
    %8178 = vmatprep.subr.mxu0 0.0
    %8179 = vmatpush1.msra.mxu0 0.0
    %8180 = vmatprep.subr.mxu0 0.0
    %8181 = vmatpush1.msra.mxu0 0.0
    %8182 = vmatprep.subr.mxu0 0.0
    %8183 = vmatpush1.msra.mxu0 0.0
    %8184 = vmatprep.subr.mxu0 0.0
    %8185 = vmatpush1.msra.mxu0 0.0
    %8186 = vmatprep.subr.mxu0 0.0
    %8187 = vmatpush1.msra.mxu0 0.0
    %8188 = vmatprep.subr.mxu0 0.0
    %8189 = vmatpush1.msra.mxu0 0.0
    %8190 = vmatprep.subr.mxu0 0.0
    %8191 = vmatpush1.msra.mxu0 0.0
    %8192 = vmatprep.subr.mxu0 0.0
    %8193 = vmatpush1.msra.mxu0 0.0
    %8194 = vmatprep.subr.mxu0 0.0
    %8195 = vmatpush1.msra.mxu0 0.0
    %8196 = vmatprep.subr.mxu0 0.0
    %8197 = vmatpush1.msra.mxu0 0.0
    %8198 = vmatprep.subr.mxu0 0.0
    %8199 = vmatpush1.msra.mxu0 0.0
    %8200 = vmatprep.subr.mxu0 0.0
    %8201 = vmatpush1.msra.mxu0 0.0
    %8202 = vmatprep.mubr.f32.mxu0 0.0
    %8203 = vmatmul.mubr.f32.gmra.mrb[0].mxu0 %v8008
    %v8204 = vpop.f32.mrb[0].mxu0
    %v8205 = vadd.f32 0.0, %v8204
    %v8206 = vpop.f32.mrb[0].mxu0
    %v8207 = vadd.f32 0.0, %v8206
    %8208 = vdwg.mxu0
    %8209 = vmatprep.subr.mxu0 %v8077
    %8210 = vmatpush1.msra.mxu0 %v8076
    %8211 = vmatprep.subr.mxu0 %v8081
    %8212 = vmatpush1.msra.mxu0 %v8080
    %8213 = vmatprep.subr.mxu0 %v8085
    %8214 = vmatpush1.msra.mxu0 %v8084
    %8215 = vmatprep.subr.mxu0 %v8089
    %8216 = vmatpush1.msra.mxu0 %v8088
    %8217 = vmatprep.subr.mxu0 %v8093
    %8218 = vmatpush1.msra.mxu0 %v8092
    %8219 = vmatprep.subr.mxu0 %v8097
    %8220 = vmatpush1.msra.mxu0 %v8096
    %8221 = vmatprep.subr.mxu0 %v8101
    %8222 = vmatpush1.msra.mxu0 %v8100
    %8223 = vmatprep.subr.mxu0 %v8105
    %8224 = vmatpush1.msra.mxu0 %v8104
    %8225 = vmatprep.subr.mxu0 %v8109
    %8226 = vmatpush1.msra.mxu0 %v8108
    %8227 = vmatprep.subr.mxu0 %v8113
    %8228 = vmatpush1.msra.mxu0 %v8112
    %8229 = vmatprep.subr.mxu0 %v8117
    %8230 = vmatpush1.msra.mxu0 %v8116
    %8231 = vmatprep.subr.mxu0 %v8121
    %8232 = vmatpush1.msra.mxu0 %v8120
    %8233 = vmatprep.subr.mxu0 %v8125
    %8234 = vmatpush1.msra.mxu0 %v8124
    %8235 = vmatprep.subr.mxu0 %v8129
    %8236 = vmatpush1.msra.mxu0 %v8128
    %8237 = vmatprep.subr.mxu0 %v8133
    %8238 = vmatpush1.msra.mxu0 %v8132
    %8239 = vmatprep.subr.mxu0 %v8137
    %8240 = vmatpush1.msra.mxu0 %v8136
    %8241 = vmatprep.subr.mxu0 0.0
    %8242 = vmatpush1.msra.mxu0 0.0
    %8243 = vmatprep.subr.mxu0 0.0
    %8244 = vmatpush1.msra.mxu0 0.0
    %8245 = vmatprep.subr.mxu0 0.0
    %8246 = vmatpush1.msra.mxu0 0.0
    %8247 = vmatprep.subr.mxu0 0.0
    %8248 = vmatpush1.msra.mxu0 0.0
    %8249 = vmatprep.subr.mxu0 0.0
    %8250 = vmatpush1.msra.mxu0 0.0
    %8251 = vmatprep.subr.mxu0 0.0
    %8252 = vmatpush1.msra.mxu0 0.0
    %8253 = vmatprep.subr.mxu0 0.0
    %8254 = vmatpush1.msra.mxu0 0.0
    %8255 = vmatprep.subr.mxu0 0.0
    %8256 = vmatpush1.msra.mxu0 0.0
    %8257 = vmatprep.subr.mxu0 0.0
    %8258 = vmatpush1.msra.mxu0 0.0
    %8259 = vmatprep.subr.mxu0 0.0
    %8260 = vmatpush1.msra.mxu0 0.0
    %8261 = vmatprep.subr.mxu0 0.0
    %8262 = vmatpush1.msra.mxu0 0.0
    %8263 = vmatprep.subr.mxu0 0.0
    %8264 = vmatpush1.msra.mxu0 0.0
    %8265 = vmatprep.subr.mxu0 0.0
    %8266 = vmatpush1.msra.mxu0 0.0
    %8267 = vmatprep.subr.mxu0 0.0
    %8268 = vmatpush1.msra.mxu0 0.0
    %8269 = vmatprep.subr.mxu0 0.0
    %8270 = vmatpush1.msra.mxu0 0.0
    %8271 = vmatprep.subr.mxu0 0.0
    %8272 = vmatpush1.msra.mxu0 0.0
    %8273 = vmatprep.mubr.f32.mxu0 0.0
    %8274 = vmatmul.mubr.f32.gmra.mrb[0].mxu0 %v8008
    %v8275 = vpop.f32.mrb[0].mxu0
    %v8276 = vadd.f32 0.0, %v8275
    %v8277 = vpop.f32.mrb[0].mxu0
    %v8278 = vadd.f32 0.0, %v8277
    %8279 = vdwg.mxu0
    %8280 = vmatprep.subr.mxu0 %v8011
    %8281 = vmatpush1.msra.mxu0 %v8010
    %8282 = vmatprep.subr.mxu0 %v8015
    %8283 = vmatpush1.msra.mxu0 %v8014
    %8284 = vmatprep.subr.mxu0 %v8019
    %8285 = vmatpush1.msra.mxu0 %v8018
    %8286 = vmatprep.subr.mxu0 %v8023
    %8287 = vmatpush1.msra.mxu0 %v8022
    %8288 = vmatprep.subr.mxu0 %v8027
    %8289 = vmatpush1.msra.mxu0 %v8026
    %8290 = vmatprep.subr.mxu0 %v8031
    %8291 = vmatpush1.msra.mxu0 %v8030
    %8292 = vmatprep.subr.mxu0 %v8035
    %8293 = vmatpush1.msra.mxu0 %v8034
    %8294 = vmatprep.subr.mxu0 %v8039
    %8295 = vmatpush1.msra.mxu0 %v8038
    %8296 = vmatprep.subr.mxu0 %v8043
    %8297 = vmatpush1.msra.mxu0 %v8042
    %8298 = vmatprep.subr.mxu0 %v8047
    %8299 = vmatpush1.msra.mxu0 %v8046
    %8300 = vmatprep.subr.mxu0 %v8051
    %8301 = vmatpush1.msra.mxu0 %v8050
    %8302 = vmatprep.subr.mxu0 %v8055
    %8303 = vmatpush1.msra.mxu0 %v8054
    %8304 = vmatprep.subr.mxu0 %v8059
    %8305 = vmatpush1.msra.mxu0 %v8058
    %8306 = vmatprep.subr.mxu0 %v8063
    %8307 = vmatpush1.msra.mxu0 %v8062
    %8308 = vmatprep.subr.mxu0 %v8067
    %8309 = vmatpush1.msra.mxu0 %v8066
    %8310 = vmatprep.subr.mxu0 %v8071
    %8311 = vmatpush1.msra.mxu0 %v8070
    %8312 = vmatprep.subr.mxu0 0.0
    %8313 = vmatpush1.msra.mxu0 0.0
    %8314 = vmatprep.subr.mxu0 0.0
    %8315 = vmatpush1.msra.mxu0 0.0
    %8316 = vmatprep.subr.mxu0 0.0
    %8317 = vmatpush1.msra.mxu0 0.0
    %8318 = vmatprep.subr.mxu0 0.0
    %8319 = vmatpush1.msra.mxu0 0.0
    %8320 = vmatprep.subr.mxu0 0.0
    %8321 = vmatpush1.msra.mxu0 0.0
    %8322 = vmatprep.subr.mxu0 0.0
    %8323 = vmatpush1.msra.mxu0 0.0
    %8324 = vmatprep.subr.mxu0 0.0
    %8325 = vmatpush1.msra.mxu0 0.0
    %8326 = vmatprep.subr.mxu0 0.0
    %8327 = vmatpush1.msra.mxu0 0.0
    %8328 = vmatprep.subr.mxu0 0.0
    %8329 = vmatpush1.msra.mxu0 0.0
    %8330 = vmatprep.subr.mxu0 0.0
    %8331 = vmatpush1.msra.mxu0 0.0
    %8332 = vmatprep.subr.mxu0 0.0
    %8333 = vmatpush1.msra.mxu0 0.0
    %8334 = vmatprep.subr.mxu0 0.0
    %8335 = vmatpush1.msra.mxu0 0.0
    %8336 = vmatprep.subr.mxu0 0.0
    %8337 = vmatpush1.msra.mxu0 0.0
    %8338 = vmatprep.subr.mxu0 0.0
    %8339 = vmatpush1.msra.mxu0 0.0
    %8340 = vmatprep.subr.mxu0 0.0
    %8341 = vmatpush1.msra.mxu0 0.0
    %8342 = vmatprep.subr.mxu0 0.0
    %8343 = vmatpush1.msra.mxu0 0.0
    %8344 = vmatprep.mubr.f32.mxu0 0.0
    %8345 = vmatmul.mubr.f32.gmra.mrb[0].mxu0 %v7568
    %v8346 = vpop.f32.mrb[0].mxu0
    %v8347 = vadd.f32 %v8205, %v8346
    %v8348 = vpop.f32.mrb[0].mxu0
    %v8349 = vadd.f32 %v8207, %v8348
    %8350 = vdwg.mxu0
    %8351 = vmatprep.subr.mxu0 %v8013
    %8352 = vmatpush1.msra.mxu0 %v8012
    %8353 = vmatprep.subr.mxu0 %v8017
    %8354 = vmatpush1.msra.mxu0 %v8016
    %8355 = vmatprep.subr.mxu0 %v8021
    %8356 = vmatpush1.msra.mxu0 %v8020
    %8357 = vmatprep.subr.mxu0 %v8025
    %8358 = vmatpush1.msra.mxu0 %v8024
    %8359 = vmatprep.subr.mxu0 %v8029
    %8360 = vmatpush1.msra.mxu0 %v8028
    %8361 = vmatprep.subr.mxu0 %v8033
    %8362 = vmatpush1.msra.mxu0 %v8032
    %8363 = vmatprep.subr.mxu0 %v8037
    %8364 = vmatpush1.msra.mxu0 %v8036
    %8365 = vmatprep.subr.mxu0 %v8041
    %8366 = vmatpush1.msra.mxu0 %v8040
    %8367 = vmatprep.subr.mxu0 %v8045
    %8368 = vmatpush1.msra.mxu0 %v8044
    %8369 = vmatprep.subr.mxu0 %v8049
    %8370 = vmatpush1.msra.mxu0 %v8048
    %8371 = vmatprep.subr.mxu0 %v8053
    %8372 = vmatpush1.msra.mxu0 %v8052
    %8373 = vmatprep.subr.mxu0 %v8057
    %8374 = vmatpush1.msra.mxu0 %v8056
    %8375 = vmatprep.subr.mxu0 %v8061
    %8376 = vmatpush1.msra.mxu0 %v8060
    %8377 = vmatprep.subr.mxu0 %v8065
    %8378 = vmatpush1.msra.mxu0 %v8064
    %8379 = vmatprep.subr.mxu0 %v8069
    %8380 = vmatpush1.msra.mxu0 %v8068
    %8381 = vmatprep.subr.mxu0 %v8073
    %8382 = vmatpush1.msra.mxu0 %v8072
    %8383 = vmatprep.subr.mxu0 0.0
    %8384 = vmatpush1.msra.mxu0 0.0
    %8385 = vmatprep.subr.mxu0 0.0
    %8386 = vmatpush1.msra.mxu0 0.0
    %8387 = vmatprep.subr.mxu0 0.0
    %8388 = vmatpush1.msra.mxu0 0.0
    %8389 = vmatprep.subr.mxu0 0.0
    %8390 = vmatpush1.msra.mxu0 0.0
    %8391 = vmatprep.subr.mxu0 0.0
    %8392 = vmatpush1.msra.mxu0 0.0
    %8393 = vmatprep.subr.mxu0 0.0
    %8394 = vmatpush1.msra.mxu0 0.0
    %8395 = vmatprep.subr.mxu0 0.0
    %8396 = vmatpush1.msra.mxu0 0.0
    %8397 = vmatprep.subr.mxu0 0.0
    %8398 = vmatpush1.msra.mxu0 0.0
    %8399 = vmatprep.subr.mxu0 0.0
    %8400 = vmatpush1.msra.mxu0 0.0
    %8401 = vmatprep.subr.mxu0 0.0
    %8402 = vmatpush1.msra.mxu0 0.0
    %8403 = vmatprep.subr.mxu0 0.0
    %8404 = vmatpush1.msra.mxu0 0.0
    %8405 = vmatprep.subr.mxu0 0.0
    %8406 = vmatpush1.msra.mxu0 0.0
    %8407 = vmatprep.subr.mxu0 0.0
    %8408 = vmatpush1.msra.mxu0 0.0
    %8409 = vmatprep.subr.mxu0 0.0
    %8410 = vmatpush1.msra.mxu0 0.0
    %8411 = vmatprep.subr.mxu0 0.0
    %8412 = vmatpush1.msra.mxu0 0.0
    %8413 = vmatprep.subr.mxu0 0.0
    %8414 = vmatpush1.msra.mxu0 0.0
    %8415 = vmatprep.mubr.f32.mxu0 0.0
    %8416 = vmatmul.mubr.f32.gmra.mrb[0].mxu0 %v7568
    %v8417 = vpop.f32.mrb[0].mxu0
    %v8418 = vadd.f32 %v8276, %v8417
    %v8419 = vpop.f32.mrb[0].mxu0
    %v8420 = vadd.f32 %v8278, %v8419
    %8421 = vdwg.mxu0
    %v8422 = vadd.f32 %v8347, %v4448
    %v8423 = vadd.f32 %v8349, %v4452
    %v8424 = vadd.f32 %v8418, %v4456
    %v8425 = vadd.f32 %v8420, %v4460
    %v8426 = vxor.u32 %v8422, 2147483648
    %v8427 = vxor.u32 %v8423, 2147483648
    %v8428 = vxor.u32 %v8424, 2147483648
    %v8429 = vmul.f32 %v8426, 1.442695
    %v8430 = vpow.pop %v8429
    %v8431 = vmul.f32 %v8427, 1.442695
    %v8432 = vpow.pop %v8431
    %v8433 = vmul.f32 %v8428, 1.442695
    %v8434 = vpow.pop %v8433
    %v8435 = vadd.f32 %v8430, 1.0
    %v8436 = vadd.f32 %v8432, 1.0
    %v8437 = vadd.f32 %v8434, 1.0
    %v8438 = vrcp.pop %v8435
    %v8439 = vmul.f32 1.0, %v8438
    %v8440 = vrcp.pop %v8436
    %v8441 = vmul.f32 1.0, %v8440
    %v8442 = vrcp.pop %v8437
    %v8443 = vmul.f32 1.0, %v8442
    %v8444 = vtanh.pop %v8425
    %v8445 = vmul.f32 %v8441, %v8006
    %v8446 = vmul.f32 %v8439, %v8444
    %v8447 = vadd.f32 %v8445, %v8446
    %v8448 = vtanh.pop %v8447
    %v8449 = vmul.f32 %v8443, %v8448
    %8450 = vst [vmem:[#allocation17 + $0x28] sm:$0xff] %v8449
    // Predicated region
    $region90: #{tpu_custom_call.1} parent=1 // pred_check
      _
    $region91: #{tpu_custom_call.1} parent=1 // pred_check_branch
      %8452 = sbr.rel (0) target = $region93
    $region92: #{tpu_custom_call.1} parent=1 // pred_region
      %s8454 = ssub.s32 768, 768
      %8455 = vsyncadd [#allocation4], %s8454
      %s8457 = sshll.u32 [#allocation17], 4
      %s8458 = int_to_ptr.vmem [resolvable:$true] %s8457
      %8460 = dma.vmem_to_hbm [thread:$0]  %s8458, 768, %s13, [#allocation4]
    $region93: #{tpu_custom_call.1} parent=1 // pred_fallthru
      _
    // Predicated region
    $region94: #{tpu_custom_call.1} parent=1 // pred_check
      _
    $region95: #{tpu_custom_call.1} parent=1 // pred_check_branch
      %8462 = sbr.rel (0) target = $region97
    $region96: #{tpu_custom_call.1} parent=1 // pred_region
      %8463 = dma.done [#allocation4], 768
    $region97: #{tpu_custom_call.1} parent=1 // pred_fallthru
      _
    %8464 = vsyncpa [#allocation3], 1
    %8465 = vsyncpa [#allocation6], 1
    %8466 = vsyncpa [#allocation9], 1
    %8467 = vsyncpa [#allocation12], 1
    %8468 = vsyncpa [#allocation15], 1
    %8469 = vsyncpa [#allocation4], 1

</llo_original>
